<compile_context>
chip_gen: v6e
topology: v6e:2x2x1
jax: 0.10.0
libtpu: 0.0.40
codegen_flags: <defaults>
</compile_context>

<pallas_src>
import functools

import jax
import jax.numpy as jnp
from jax.experimental import pallas as pl
from jax.experimental.pallas import tpu as pltpu


# ----------------------------- Pallas kernels -----------------------------

def _apply_act(y, act):
    # y is always f32 here (keep elementwise math in f32 for v5e).
    if act == "leaky":
        return jnp.where(y > 0, y, 0.2 * y)
    if act == "sigmoid":
        return 1.0 / (1.0 + jnp.exp(-y))
    return y  # "none"


def _conv_act_kernel(w_ref, a_ref, o_ref, *, act):
    # o = act(W @ A)   -- non-BN path.
    y = jnp.dot(w_ref[...], a_ref[...], preferred_element_type=jnp.float32)
    o_ref[...] = _apply_act(y, act).astype(o_ref.dtype)


def _conv_bn_act_kernel(w_ref, a_ref, o_ref, *, act, eps):
    # Fully fused: conv matmul -> batch statistics -> normalize -> activation.
    # Single grid step, so y [C_out, M] is resident (a value) and the stats
    # are exact full-batch stats: mean / biased variance over the M lanes.
    y = jnp.dot(w_ref[...], a_ref[...], preferred_element_type=jnp.float32)
    mean = jnp.mean(y, axis=1, keepdims=True)                 # [C_out, 1]
    centered = y - mean
    var = jnp.mean(centered * centered, axis=1, keepdims=True)  # biased var
    inv = jax.lax.rsqrt(var + eps)                            # gamma=1, beta=0
    o_ref[...] = _apply_act(centered * inv, act).astype(o_ref.dtype)


# ----------------------------- Pallas wrapper -----------------------------

_VMEM_SPEC = pl.BlockSpec(memory_space=pltpu.MemorySpace.VMEM)


def pallas_conv_layer(w_t, a_t, *, batchnorm, act, out_dtype, eps=1e-5):
    """W[C_out, K](bf16) @ A[K, M](bf16) (+BN) (+act) -> [C_out, M](out_dtype).

    Grid-free: whole operands live in VMEM for the single kernel invocation
    (largest layer is ~1 MB total), which minimizes dispatch / pipeline
    overhead on this overhead-bound workload.
    """
    c_out, _ = w_t.shape
    _, m = a_t.shape
    if batchnorm:
        kernel = functools.partial(_conv_bn_act_kernel, act=act, eps=eps)
    else:
        kernel = functools.partial(_conv_act_kernel, act=act)
    return pl.pallas_call(
        kernel,
        out_shape=jax.ShapeDtypeStruct((c_out, m), out_dtype),
        in_specs=[_VMEM_SPEC, _VMEM_SPEC],
        out_specs=_VMEM_SPEC,
    )(w_t, a_t)


# ----------------------------- glue (im2col etc.) -----------------------------

def im2col_t(x_cnhw, k, stride, pad):
    """x: [C, N, H, W] -> A^T [K, M] with K=(kh, kw, c_in), M=(n, h_out, w_out).

    Keeping M on the lane (last) axis makes the kernel loads/stores lane-dense.
    Runs on bf16 inputs so the stacked intermediate is half the size.
    """
    c, n, h, w = x_cnhw.shape
    h_out = (h + 2 * pad - k) // stride + 1
    w_out = (w + 2 * pad - k) // stride + 1
    xp = jnp.pad(x_cnhw, ((0, 0), (0, 0), (pad, pad), (pad, pad)))
    cols = [
        xp[:, :, di:di + stride * h_out:stride, dj:dj + stride * w_out:stride]
        for di in range(k) for dj in range(k)
    ]
    a_t = jnp.stack(cols, axis=0)                    # [k*k, C, N, H_out, W_out]
    a_t = a_t.reshape(k * k * c, n * h_out * w_out)  # K=(kh,kw,c_in) on sublanes
    return a_t, h_out, w_out


def conv_layer(x_cnhw, weight, stride, pad, *, batchnorm, act, out_dtype):
    """x: [C_in, N, H, W], weight: [C_out, C_in, k, k] -> [C_out, N, Ho, Wo]."""
    _, n, _, _ = x_cnhw.shape
    c_out, c_in, k, _ = weight.shape

    # bf16 BEFORE im2col (no-op for layers 2+ whose kernels already emit bf16).
    a_t, h_out, w_out = im2col_t(x_cnhw.astype(jnp.bfloat16), k, stride, pad)
    # Flatten weight with K order (kh, kw, c_in) to match im2col_t.
    w_t = weight.transpose(0, 2, 3, 1).reshape(c_out, k * k * c_in)
    w_t = w_t.astype(jnp.bfloat16)

    y = pallas_conv_layer(w_t, a_t, batchnorm=batchnorm, act=act,
                          out_dtype=out_dtype)
    return y.reshape(c_out, n, h_out, w_out)          # stays in CNHW layout


def init_params(key, num_img_ch, num_hidden_ch):
    chans = [num_img_ch,
             num_hidden_ch, num_hidden_ch * 2, num_hidden_ch * 4,
             num_hidden_ch * 8, num_hidden_ch * 16, 1]
    weights = []
    for i in range(6):
        key, sub = jax.random.split(key)
        w = 0.02 * jax.random.normal(sub, (chans[i + 1], chans[i], 4, 4),
                                     dtype=jnp.float32)
        weights.append(w)
    return weights


def discriminator_forward(x_nchw, weights):
    # Single NCHW -> CNHW transpose at the boundary; internal layout is CNHW.
    x = jnp.transpose(x_nchw, (1, 0, 2, 3))
    # Layer 1: Conv(4, s=2, p=1) + LeakyReLU(0.2)              128 -> 64
    x = conv_layer(x, weights[0], 2, 1, batchnorm=False, act="leaky",
                   out_dtype=jnp.bfloat16)
    # Layers 2-5: Conv(4, s=2, p=1) + BatchNorm + LeakyReLU    64 -> 32 -> 16 -> 8 -> 4
    for w in weights[1:5]:
        x = conv_layer(x, w, 2, 1, batchnorm=True, act="leaky",
                       out_dtype=jnp.bfloat16)
    # Layer 6: Conv(4, s=1, p=0) + Sigmoid                      4 -> 1
    x = conv_layer(x, weights[5], 1, 0, batchnorm=False, act="sigmoid",
                   out_dtype=jnp.float32)
    # [1, N, 1, 1] CNHW -> [N, 1, 1, 1] NCHW
    return jnp.transpose(x, (1, 0, 2, 3))


# ----------------------------- main -----------------------------

if __name__ == "__main__":
    key = jax.random.PRNGKey(0)
    k_x, k_w = jax.random.split(key)

    # Spatial size 128 is dictated by the 6-layer architecture (the final 4x4
    # valid conv needs a 4x4 feature map); batch / hidden channels kept small.
    batch, num_img_ch, num_hidden_ch, spatial = 2, 3, 8, 128
    x = jax.random.normal(k_x, (batch, num_img_ch, spatial, spatial),
                          dtype=jnp.float32)
    weights = init_params(k_w, num_img_ch, num_hidden_ch)

    forward = jax.jit(discriminator_forward)
    out = forward(x, weights)
    out = jax.block_until_ready(out)

    assert out.shape == (batch, 1, 1, 1), out.shape
    assert bool(jnp.all(jnp.isfinite(out)))
    assert bool(jnp.all((out >= 0.0) & (out <= 1.0)))  # sigmoid range
    print("KERNEL_OK")
</pallas_src>

<mosaic_0001>
module attributes {stable_mosaic.version = 11 : i64} {
  func.func @_conv_act_kernel(%arg0: memref<8x48xbf16, #tpu.memory_space<vmem>>, %arg1: memref<48x8192xbf16, #tpu.memory_space<vmem>>, %arg2: memref<8x8192xbf16, #tpu.memory_space<vmem>>) attributes {dimension_semantics = [], scalar_prefetch = 0 : i64, scratch_operands = 0 : i64, tpu.core_type = #tpu.core_type<tc>} {
    %c0 = arith.constant 0 : index
    %c0_0 = arith.constant 0 : index
    %0 = vector.load %arg0[%c0, %c0_0] : memref<8x48xbf16, #tpu.memory_space<vmem>>, vector<8x48xbf16>
    %c0_1 = arith.constant 0 : index
    %c0_2 = arith.constant 0 : index
    %1 = vector.load %arg1[%c0_1, %c0_2] : memref<48x8192xbf16, #tpu.memory_space<vmem>>, vector<48x8192xbf16>
    %cst = arith.constant dense<0.000000e+00> : vector<8x8192xf32>
    %2 = tpu.matmul %0, %1, %cst {dimension_numbers = #tpu.dot_dimension_numbers<[1], [0], [0], [1], [0, 0, 1, 1], [], []>} : vector<8x48xbf16>, vector<48x8192xbf16>, vector<8x8192xf32> -> vector<8x8192xf32>
    %cst_3 = arith.constant 0.000000e+00 : f32
    %3 = vector.broadcast %cst_3 : f32 to vector<8x8192xf32>
    %4 = arith.cmpf ogt, %2, %3 : vector<8x8192xf32>
    %cst_4 = arith.constant 2.000000e-01 : f32
    %5 = vector.broadcast %cst_4 : f32 to vector<8x8192xf32>
    %6 = arith.mulf %5, %2 : vector<8x8192xf32>
    %7 = arith.select %4, %2, %6 : vector<8x8192xi1>, vector<8x8192xf32>
    %8 = arith.truncf %7 : vector<8x8192xf32> to vector<8x8192xbf16>
    %c0_5 = arith.constant 0 : index
    %c0_6 = arith.constant 0 : index
    %9 = vector.load %arg2[%c0_5, %c0_6] : memref<8x8192xbf16, #tpu.memory_space<vmem>>, vector<8x8192xbf16>
    tpu.vector_store %arg2[%c0_5, %c0_6], %8 {strides = array<i32>} : memref<8x8192xbf16, #tpu.memory_space<vmem>>, vector<8x8192xbf16>,
    return
  }
}

module attributes {stable_mosaic.version = 11 : i64} {
  func.func @_conv_bn_act_kernel(%arg0: memref<16x128xbf16, #tpu.memory_space<vmem>>, %arg1: memref<128x2048xbf16, #tpu.memory_space<vmem>>, %arg2: memref<16x2048xbf16, #tpu.memory_space<vmem>>) attributes {dimension_semantics = [], scalar_prefetch = 0 : i64, scratch_operands = 0 : i64, tpu.core_type = #tpu.core_type<tc>} {
    %c0 = arith.constant 0 : index
    %c0_0 = arith.constant 0 : index
    %0 = vector.load %arg0[%c0, %c0_0] : memref<16x128xbf16, #tpu.memory_space<vmem>>, vector<16x128xbf16>
    %c0_1 = arith.constant 0 : index
    %c0_2 = arith.constant 0 : index
    %1 = vector.load %arg1[%c0_1, %c0_2] : memref<128x2048xbf16, #tpu.memory_space<vmem>>, vector<128x2048xbf16>
    %cst = arith.constant dense<0.000000e+00> : vector<16x2048xf32>
    %2 = tpu.matmul %0, %1, %cst {dimension_numbers = #tpu.dot_dimension_numbers<[1], [0], [0], [1], [0, 0, 1, 1], [], []>} : vector<16x128xbf16>, vector<128x2048xbf16>, vector<16x2048xf32> -> vector<16x2048xf32>
    %cst_3 = arith.constant dense<0.000000e+00> : vector<16xf32>
    %3 = vector.multi_reduction <add>, %2, %cst_3 [1] : vector<16x2048xf32> to vector<16xf32>
    %4 = vector.shape_cast %3 : vector<16xf32> to vector<16x1xf32>
    %cst_4 = arith.constant 2.048000e+03 : f32
    %5 = vector.broadcast %cst_4 : f32 to vector<16x1xf32>
    %6 = arith.divf %4, %5 : vector<16x1xf32>
    %7 = vector.broadcast %6 : vector<16x1xf32> to vector<16x2048xf32>
    %8 = arith.subf %2, %7 : vector<16x2048xf32>
    %9 = arith.mulf %8, %8 : vector<16x2048xf32>
    %cst_5 = arith.constant dense<0.000000e+00> : vector<16xf32>
    %10 = vector.multi_reduction <add>, %9, %cst_5 [1] : vector<16x2048xf32> to vector<16xf32>
    %11 = vector.shape_cast %10 : vector<16xf32> to vector<16x1xf32>
    %cst_6 = arith.constant 2.048000e+03 : f32
    %12 = vector.broadcast %cst_6 : f32 to vector<16x1xf32>
    %13 = arith.divf %11, %12 : vector<16x1xf32>
    %cst_7 = arith.constant 9.99999974E-6 : f32
    %14 = vector.broadcast %cst_7 : f32 to vector<16x1xf32>
    %15 = arith.addf %13, %14 : vector<16x1xf32>
    %16 = math.rsqrt %15 : vector<16x1xf32>
    %17 = vector.broadcast %16 : vector<16x1xf32> to vector<16x2048xf32>
    %18 = arith.mulf %8, %17 : vector<16x2048xf32>
    %cst_8 = arith.constant 0.000000e+00 : f32
    %19 = vector.broadcast %cst_8 : f32 to vector<16x2048xf32>
    %20 = arith.cmpf ogt, %18, %19 : vector<16x2048xf32>
    %cst_9 = arith.constant 2.000000e-01 : f32
    %21 = vector.broadcast %cst_9 : f32 to vector<16x2048xf32>
    %22 = arith.mulf %21, %18 : vector<16x2048xf32>
    %23 = arith.select %20, %18, %22 : vector<16x2048xi1>, vector<16x2048xf32>
    %24 = arith.truncf %23 : vector<16x2048xf32> to vector<16x2048xbf16>
    %c0_10 = arith.constant 0 : index
    %c0_11 = arith.constant 0 : index
    %25 = vector.load %arg2[%c0_10, %c0_11] : memref<16x2048xbf16, #tpu.memory_space<vmem>>, vector<16x2048xbf16>
    tpu.vector_store %arg2[%c0_10, %c0_11], %24 {strides = array<i32>} : memref<16x2048xbf16, #tpu.memory_space<vmem>>, vector<16x2048xbf16>,
    return
  }
}

module attributes {stable_mosaic.version = 11 : i64} {
  func.func @_conv_bn_act_kernel(%arg0: memref<32x256xbf16, #tpu.memory_space<vmem>>, %arg1: memref<256x512xbf16, #tpu.memory_space<vmem>>, %arg2: memref<32x512xbf16, #tpu.memory_space<vmem>>) attributes {dimension_semantics = [], scalar_prefetch = 0 : i64, scratch_operands = 0 : i64, tpu.core_type = #tpu.core_type<tc>} {
    %c0 = arith.constant 0 : index
    %c0_0 = arith.constant 0 : index
    %0 = vector.load %arg0[%c0, %c0_0] : memref<32x256xbf16, #tpu.memory_space<vmem>>, vector<32x256xbf16>
    %c0_1 = arith.constant 0 : index
    %c0_2 = arith.constant 0 : index
    %1 = vector.load %arg1[%c0_1, %c0_2] : memref<256x512xbf16, #tpu.memory_space<vmem>>, vector<256x512xbf16>
    %cst = arith.constant dense<0.000000e+00> : vector<32x512xf32>
    %2 = tpu.matmul %0, %1, %cst {dimension_numbers = #tpu.dot_dimension_numbers<[1], [0], [0], [1], [0, 0, 1, 1], [], []>} : vector<32x256xbf16>, vector<256x512xbf16>, vector<32x512xf32> -> vector<32x512xf32>
    %cst_3 = arith.constant dense<0.000000e+00> : vector<32xf32>
    %3 = vector.multi_reduction <add>, %2, %cst_3 [1] : vector<32x512xf32> to vector<32xf32>
    %4 = vector.shape_cast %3 : vector<32xf32> to vector<32x1xf32>
    %cst_4 = arith.constant 5.120000e+02 : f32
    %5 = vector.broadcast %cst_4 : f32 to vector<32x1xf32>
    %6 = arith.divf %4, %5 : vector<32x1xf32>
    %7 = vector.broadcast %6 : vector<32x1xf32> to vector<32x512xf32>
    %8 = arith.subf %2, %7 : vector<32x512xf32>
    %9 = arith.mulf %8, %8 : vector<32x512xf32>
    %cst_5 = arith.constant dense<0.000000e+00> : vector<32xf32>
    %10 = vector.multi_reduction <add>, %9, %cst_5 [1] : vector<32x512xf32> to vector<32xf32>
    %11 = vector.shape_cast %10 : vector<32xf32> to vector<32x1xf32>
    %cst_6 = arith.constant 5.120000e+02 : f32
    %12 = vector.broadcast %cst_6 : f32 to vector<32x1xf32>
    %13 = arith.divf %11, %12 : vector<32x1xf32>
    %cst_7 = arith.constant 9.99999974E-6 : f32
    %14 = vector.broadcast %cst_7 : f32 to vector<32x1xf32>
    %15 = arith.addf %13, %14 : vector<32x1xf32>
    %16 = math.rsqrt %15 : vector<32x1xf32>
    %17 = vector.broadcast %16 : vector<32x1xf32> to vector<32x512xf32>
    %18 = arith.mulf %8, %17 : vector<32x512xf32>
    %cst_8 = arith.constant 0.000000e+00 : f32
    %19 = vector.broadcast %cst_8 : f32 to vector<32x512xf32>
    %20 = arith.cmpf ogt, %18, %19 : vector<32x512xf32>
    %cst_9 = arith.constant 2.000000e-01 : f32
    %21 = vector.broadcast %cst_9 : f32 to vector<32x512xf32>
    %22 = arith.mulf %21, %18 : vector<32x512xf32>
    %23 = arith.select %20, %18, %22 : vector<32x512xi1>, vector<32x512xf32>
    %24 = arith.truncf %23 : vector<32x512xf32> to vector<32x512xbf16>
    %c0_10 = arith.constant 0 : index
    %c0_11 = arith.constant 0 : index
    %25 = vector.load %arg2[%c0_10, %c0_11] : memref<32x512xbf16, #tpu.memory_space<vmem>>, vector<32x512xbf16>
    tpu.vector_store %arg2[%c0_10, %c0_11], %24 {strides = array<i32>} : memref<32x512xbf16, #tpu.memory_space<vmem>>, vector<32x512xbf16>,
    return
  }
}

module attributes {stable_mosaic.version = 11 : i64} {
  func.func @_conv_bn_act_kernel(%arg0: memref<64x512xbf16, #tpu.memory_space<vmem>>, %arg1: memref<512x128xbf16, #tpu.memory_space<vmem>>, %arg2: memref<64x128xbf16, #tpu.memory_space<vmem>>) attributes {dimension_semantics = [], scalar_prefetch = 0 : i64, scratch_operands = 0 : i64, tpu.core_type = #tpu.core_type<tc>} {
    %c0 = arith.constant 0 : index
    %c0_0 = arith.constant 0 : index
    %0 = vector.load %arg0[%c0, %c0_0] : memref<64x512xbf16, #tpu.memory_space<vmem>>, vector<64x512xbf16>
    %c0_1 = arith.constant 0 : index
    %c0_2 = arith.constant 0 : index
    %1 = vector.load %arg1[%c0_1, %c0_2] : memref<512x128xbf16, #tpu.memory_space<vmem>>, vector<512x128xbf16>
    %cst = arith.constant dense<0.000000e+00> : vector<64x128xf32>
    %2 = tpu.matmul %0, %1, %cst {dimension_numbers = #tpu.dot_dimension_numbers<[1], [0], [0], [1], [0, 0, 1, 1], [], []>} : vector<64x512xbf16>, vector<512x128xbf16>, vector<64x128xf32> -> vector<64x128xf32>
    %cst_3 = arith.constant dense<0.000000e+00> : vector<64xf32>
    %3 = vector.multi_reduction <add>, %2, %cst_3 [1] : vector<64x128xf32> to vector<64xf32>
    %4 = vector.shape_cast %3 : vector<64xf32> to vector<64x1xf32>
    %cst_4 = arith.constant 1.280000e+02 : f32
    %5 = vector.broadcast %cst_4 : f32 to vector<64x1xf32>
    %6 = arith.divf %4, %5 : vector<64x1xf32>
    %7 = vector.broadcast %6 : vector<64x1xf32> to vector<64x128xf32>
    %8 = arith.subf %2, %7 : vector<64x128xf32>
    %9 = arith.mulf %8, %8 : vector<64x128xf32>
    %cst_5 = arith.constant dense<0.000000e+00> : vector<64xf32>
    %10 = vector.multi_reduction <add>, %9, %cst_5 [1] : vector<64x128xf32> to vector<64xf32>
    %11 = vector.shape_cast %10 : vector<64xf32> to vector<64x1xf32>
    %cst_6 = arith.constant 1.280000e+02 : f32
    %12 = vector.broadcast %cst_6 : f32 to vector<64x1xf32>
    %13 = arith.divf %11, %12 : vector<64x1xf32>
    %cst_7 = arith.constant 9.99999974E-6 : f32
    %14 = vector.broadcast %cst_7 : f32 to vector<64x1xf32>
    %15 = arith.addf %13, %14 : vector<64x1xf32>
    %16 = math.rsqrt %15 : vector<64x1xf32>
    %17 = vector.broadcast %16 : vector<64x1xf32> to vector<64x128xf32>
    %18 = arith.mulf %8, %17 : vector<64x128xf32>
    %cst_8 = arith.constant 0.000000e+00 : f32
    %19 = vector.broadcast %cst_8 : f32 to vector<64x128xf32>
    %20 = arith.cmpf ogt, %18, %19 : vector<64x128xf32>
    %cst_9 = arith.constant 2.000000e-01 : f32
    %21 = vector.broadcast %cst_9 : f32 to vector<64x128xf32>
    %22 = arith.mulf %21, %18 : vector<64x128xf32>
    %23 = arith.select %20, %18, %22 : vector<64x128xi1>, vector<64x128xf32>
    %24 = arith.truncf %23 : vector<64x128xf32> to vector<64x128xbf16>
    %c0_10 = arith.constant 0 : index
    %c0_11 = arith.constant 0 : index
    %25 = vector.load %arg2[%c0_10, %c0_11] : memref<64x128xbf16, #tpu.memory_space<vmem>>, vector<64x128xbf16>
    tpu.vector_store %arg2[%c0_10, %c0_11], %24 {strides = array<i32>} : memref<64x128xbf16, #tpu.memory_space<vmem>>, vector<64x128xbf16>,
    return
  }
}

module attributes {stable_mosaic.version = 11 : i64} {
  func.func @_conv_bn_act_kernel(%arg0: memref<128x1024xbf16, #tpu.memory_space<vmem>>, %arg1: memref<1024x32xbf16, #tpu.memory_space<vmem>>, %arg2: memref<128x32xbf16, #tpu.memory_space<vmem>>) attributes {dimension_semantics = [], scalar_prefetch = 0 : i64, scratch_operands = 0 : i64, tpu.core_type = #tpu.core_type<tc>} {
    %c0 = arith.constant 0 : index
    %c0_0 = arith.constant 0 : index
    %0 = vector.load %arg0[%c0, %c0_0] : memref<128x1024xbf16, #tpu.memory_space<vmem>>, vector<128x1024xbf16>
    %c0_1 = arith.constant 0 : index
    %c0_2 = arith.constant 0 : index
    %1 = vector.load %arg1[%c0_1, %c0_2] : memref<1024x32xbf16, #tpu.memory_space<vmem>>, vector<1024x32xbf16>
    %cst = arith.constant dense<0.000000e+00> : vector<128x32xf32>
    %2 = tpu.matmul %0, %1, %cst {dimension_numbers = #tpu.dot_dimension_numbers<[1], [0], [0], [1], [0, 0, 1, 1], [], []>} : vector<128x1024xbf16>, vector<1024x32xbf16>, vector<128x32xf32> -> vector<128x32xf32>
    %cst_3 = arith.constant dense<0.000000e+00> : vector<128xf32>
    %3 = vector.multi_reduction <add>, %2, %cst_3 [1] : vector<128x32xf32> to vector<128xf32>
    %4 = vector.shape_cast %3 : vector<128xf32> to vector<128x1xf32>
    %cst_4 = arith.constant 3.200000e+01 : f32
    %5 = vector.broadcast %cst_4 : f32 to vector<128x1xf32>
    %6 = arith.divf %4, %5 : vector<128x1xf32>
    %7 = vector.broadcast %6 : vector<128x1xf32> to vector<128x32xf32>
    %8 = arith.subf %2, %7 : vector<128x32xf32>
    %9 = arith.mulf %8, %8 : vector<128x32xf32>
    %cst_5 = arith.constant dense<0.000000e+00> : vector<128xf32>
    %10 = vector.multi_reduction <add>, %9, %cst_5 [1] : vector<128x32xf32> to vector<128xf32>
    %11 = vector.shape_cast %10 : vector<128xf32> to vector<128x1xf32>
    %cst_6 = arith.constant 3.200000e+01 : f32
    %12 = vector.broadcast %cst_6 : f32 to vector<128x1xf32>
    %13 = arith.divf %11, %12 : vector<128x1xf32>
    %cst_7 = arith.constant 9.99999974E-6 : f32
    %14 = vector.broadcast %cst_7 : f32 to vector<128x1xf32>
    %15 = arith.addf %13, %14 : vector<128x1xf32>
    %16 = math.rsqrt %15 : vector<128x1xf32>
    %17 = vector.broadcast %16 : vector<128x1xf32> to vector<128x32xf32>
    %18 = arith.mulf %8, %17 : vector<128x32xf32>
    %cst_8 = arith.constant 0.000000e+00 : f32
    %19 = vector.broadcast %cst_8 : f32 to vector<128x32xf32>
    %20 = arith.cmpf ogt, %18, %19 : vector<128x32xf32>
    %cst_9 = arith.constant 2.000000e-01 : f32
    %21 = vector.broadcast %cst_9 : f32 to vector<128x32xf32>
    %22 = arith.mulf %21, %18 : vector<128x32xf32>
    %23 = arith.select %20, %18, %22 : vector<128x32xi1>, vector<128x32xf32>
    %24 = arith.truncf %23 : vector<128x32xf32> to vector<128x32xbf16>
    %c0_10 = arith.constant 0 : index
    %c0_11 = arith.constant 0 : index
    %25 = vector.load %arg2[%c0_10, %c0_11] : memref<128x32xbf16, #tpu.memory_space<vmem>>, vector<128x32xbf16>
    tpu.vector_store %arg2[%c0_10, %c0_11], %24 {strides = array<i32>} : memref<128x32xbf16, #tpu.memory_space<vmem>>, vector<128x32xbf16>,
    return
  }
}

module attributes {stable_mosaic.version = 11 : i64} {
  func.func @_conv_act_kernel(%arg0: memref<1x2048xbf16, #tpu.memory_space<vmem>>, %arg1: memref<2048x2xbf16, #tpu.memory_space<vmem>>, %arg2: memref<1x2xf32, #tpu.memory_space<vmem>>) attributes {dimension_semantics = [], scalar_prefetch = 0 : i64, scratch_operands = 0 : i64, tpu.core_type = #tpu.core_type<tc>} {
    %c0 = arith.constant 0 : index
    %c0_0 = arith.constant 0 : index
    %0 = vector.load %arg0[%c0, %c0_0] : memref<1x2048xbf16, #tpu.memory_space<vmem>>, vector<1x2048xbf16>
    %c0_1 = arith.constant 0 : index
    %c0_2 = arith.constant 0 : index
    %1 = vector.load %arg1[%c0_1, %c0_2] : memref<2048x2xbf16, #tpu.memory_space<vmem>>, vector<2048x2xbf16>
    %cst = arith.constant dense<0.000000e+00> : vector<1x2xf32>
    %2 = tpu.matmul %0, %1, %cst {dimension_numbers = #tpu.dot_dimension_numbers<[1], [0], [0], [1], [0, 0, 1, 1], [], []>} : vector<1x2048xbf16>, vector<2048x2xbf16>, vector<1x2xf32> -> vector<1x2xf32>
    %cst_3 = arith.constant 0.000000e+00 : f32
    %3 = vector.broadcast %cst_3 : f32 to vector<1x2xf32>
    %4 = arith.subf %3, %2 : vector<1x2xf32>
    %5 = math.exp %4 : vector<1x2xf32>
    %cst_4 = arith.constant 1.000000e+00 : f32
    %6 = vector.broadcast %cst_4 : f32 to vector<1x2xf32>
    %7 = arith.addf %6, %5 : vector<1x2xf32>
    %cst_5 = arith.constant 1.000000e+00 : f32
    %8 = vector.broadcast %cst_5 : f32 to vector<1x2xf32>
    %9 = arith.divf %8, %7 : vector<1x2xf32>
    %c0_6 = arith.constant 0 : index
    %c0_7 = arith.constant 0 : index
    %10 = vector.load %arg2[%c0_6, %c0_7] : memref<1x2xf32, #tpu.memory_space<vmem>>, vector<1x2xf32>
    tpu.vector_store %arg2[%c0_6, %c0_7], %9 {strides = array<i32>} : memref<1x2xf32, #tpu.memory_space<vmem>>, vector<1x2xf32>,
    return
  }
}

</mosaic_0001>

<llo_original>
// kernel: discriminator_forward.6
$region0: #{discriminator_forward.6}
  #allocation0 [shape = 'u32[]', space=smem, size = 0x4, offset = 0x4, fixed_abs, tag = 'smem constant byte address 0x4 - core index']
  #allocation1 [shape = 'u32[144,128]{1,0:T(1,128)}', space=vmem, size = 0x12000, scoped, tag = 'internal scratch']
  %s0 = inlined_call_operand.vmem [shape: bf16[8,48], index: 0, kind: input, shape index: {}]
  %s1 = inlined_call_operand.vmem [shape: bf16[48,8192], index: 1, kind: input, shape index: {}]
  %s2 = inlined_call_operand.vmem [shape: bf16[8,8192], index: 2, kind: output, shape index: {}]
  %s3 = sld [smem:[#allocation0]]
  $region18: #{discriminator_forward.6} parent=0
    _
  %s5 = ssub.s32 1, %s3
  %s6 = scalar_select 0, %s5, %s3
  // Predicated region
  $region2: #{discriminator_forward.6} parent=0 // pred_check
    _
  $region3: #{discriminator_forward.6} parent=0 // pred_check_branch
    %8 = sbr.rel (0) target = $region5
  $region4: #{discriminator_forward.6} parent=0 // pred_region
    _
  $region5: #{discriminator_forward.6} parent=0 // pred_fallthru
    _
  // Predicated region
  $region6: #{discriminator_forward.6} parent=0 // pred_check
    _
  $region7: #{discriminator_forward.6} parent=0 // pred_check_branch
    %10 = sbr.rel (0) target = $region9
  $region8: #{discriminator_forward.6} parent=0 // pred_region
    _
  $region9: #{discriminator_forward.6} parent=0 // pred_fallthru
    _
  %v12 = vld [vmem:[%s0] sm:$0xf]
  %v13 = vld [vmem:[%s1] sm:$0xff]
  %v14 = vld [vmem:[%s1 + $0x8] sm:$0xff]
  %v15 = vld [vmem:[%s1 + $0x10] sm:$0xff]
  %v16 = vld [vmem:[%s1 + $0x18] sm:$0xff]
  %v17 = vld [vmem:[%s1 + $0x20] sm:$0xff]
  %v18 = vld [vmem:[%s1 + $0x28] sm:$0xff]
  %v19 = vld [vmem:[%s1 + $0x30] sm:$0xff]
  %v20 = vld [vmem:[%s1 + $0x38] sm:$0xff]
  %v21 = vld [vmem:[%s1 + $0x40] sm:$0xff]
  %v22 = vld [vmem:[%s1 + $0x48] sm:$0xff]
  %v23 = vld [vmem:[%s1 + $0x50] sm:$0xff]
  %v24 = vld [vmem:[%s1 + $0x58] sm:$0xff]
  %v25 = vld [vmem:[%s1 + $0x60] sm:$0xff]
  %v26 = vld [vmem:[%s1 + $0x68] sm:$0xff]
  %v27 = vld [vmem:[%s1 + $0x70] sm:$0xff]
  %v28 = vld [vmem:[%s1 + $0x78] sm:$0xff]
  %v29 = vld [vmem:[%s1 + $0x80] sm:$0xff]
  %v30 = vld [vmem:[%s1 + $0x88] sm:$0xff]
  %v31 = vld [vmem:[%s1 + $0x90] sm:$0xff]
  %v32 = vld [vmem:[%s1 + $0x98] sm:$0xff]
  %v33 = vld [vmem:[%s1 + $0xa0] sm:$0xff]
  %v34 = vld [vmem:[%s1 + $0xa8] sm:$0xff]
  %v35 = vld [vmem:[%s1 + $0xb0] sm:$0xff]
  %v36 = vld [vmem:[%s1 + $0xb8] sm:$0xff]
  %v37 = vld [vmem:[%s1 + $0xc0] sm:$0xff]
  %v38 = vld [vmem:[%s1 + $0xc8] sm:$0xff]
  %v39 = vld [vmem:[%s1 + $0xd0] sm:$0xff]
  %v40 = vld [vmem:[%s1 + $0xd8] sm:$0xff]
  %v41 = vld [vmem:[%s1 + $0xe0] sm:$0xff]
  %v42 = vld [vmem:[%s1 + $0xe8] sm:$0xff]
  %v43 = vld [vmem:[%s1 + $0xf0] sm:$0xff]
  %v44 = vld [vmem:[%s1 + $0xf8] sm:$0xff]
  %v45 = vld [vmem:[%s1 + $0x100] sm:$0xff]
  %v46 = vld [vmem:[%s1 + $0x108] sm:$0xff]
  %v47 = vld [vmem:[%s1 + $0x110] sm:$0xff]
  %v48 = vld [vmem:[%s1 + $0x118] sm:$0xff]
  %v49 = vld [vmem:[%s1 + $0x120] sm:$0xff]
  %v50 = vld [vmem:[%s1 + $0x128] sm:$0xff]
  %v51 = vld [vmem:[%s1 + $0x130] sm:$0xff]
  %v52 = vld [vmem:[%s1 + $0x138] sm:$0xff]
  %v53 = vld [vmem:[%s1 + $0x140] sm:$0xff]
  %v54 = vld [vmem:[%s1 + $0x148] sm:$0xff]
  %v55 = vld [vmem:[%s1 + $0x150] sm:$0xff]
  %v56 = vld [vmem:[%s1 + $0x158] sm:$0xff]
  %v57 = vld [vmem:[%s1 + $0x160] sm:$0xff]
  %v58 = vld [vmem:[%s1 + $0x168] sm:$0xff]
  %v59 = vld [vmem:[%s1 + $0x170] sm:$0xff]
  %v60 = vld [vmem:[%s1 + $0x178] sm:$0xff]
  %v61 = vld [vmem:[%s1 + $0x180] sm:$0xff]
  %v62 = vld [vmem:[%s1 + $0x188] sm:$0xff]
  %v63 = vld [vmem:[%s1 + $0x190] sm:$0xff]
  %v64 = vld [vmem:[%s1 + $0x198] sm:$0xff]
  %v65 = vld [vmem:[%s1 + $0x1a0] sm:$0xff]
  %v66 = vld [vmem:[%s1 + $0x1a8] sm:$0xff]
  %v67 = vld [vmem:[%s1 + $0x1b0] sm:$0xff]
  %v68 = vld [vmem:[%s1 + $0x1b8] sm:$0xff]
  %v69 = vld [vmem:[%s1 + $0x1c0] sm:$0xff]
  %v70 = vld [vmem:[%s1 + $0x1c8] sm:$0xff]
  %v71 = vld [vmem:[%s1 + $0x1d0] sm:$0xff]
  %v72 = vld [vmem:[%s1 + $0x1d8] sm:$0xff]
  %v73 = vld [vmem:[%s1 + $0x1e0] sm:$0xff]
  %v74 = vld [vmem:[%s1 + $0x1e8] sm:$0xff]
  %v75 = vld [vmem:[%s1 + $0x1f0] sm:$0xff]
  %v76 = vld [vmem:[%s1 + $0x1f8] sm:$0xff]
  %v77 = vld [vmem:[%s1 + $0x200] sm:$0xff]
  %v78 = vld [vmem:[%s1 + $0x208] sm:$0xff]
  %v79 = vld [vmem:[%s1 + $0x210] sm:$0xff]
  %v80 = vld [vmem:[%s1 + $0x218] sm:$0xff]
  %v81 = vld [vmem:[%s1 + $0x220] sm:$0xff]
  %v82 = vld [vmem:[%s1 + $0x228] sm:$0xff]
  %v83 = vld [vmem:[%s1 + $0x230] sm:$0xff]
  %v84 = vld [vmem:[%s1 + $0x238] sm:$0xff]
  %v85 = vld [vmem:[%s1 + $0x240] sm:$0xff]
  %v86 = vld [vmem:[%s1 + $0x248] sm:$0xff]
  %v87 = vld [vmem:[%s1 + $0x250] sm:$0xff]
  %v88 = vld [vmem:[%s1 + $0x258] sm:$0xff]
  %v89 = vld [vmem:[%s1 + $0x260] sm:$0xff]
  %v90 = vld [vmem:[%s1 + $0x268] sm:$0xff]
  %v91 = vld [vmem:[%s1 + $0x270] sm:$0xff]
  %v92 = vld [vmem:[%s1 + $0x278] sm:$0xff]
  %v93 = vld [vmem:[%s1 + $0x280] sm:$0xff]
  %v94 = vld [vmem:[%s1 + $0x288] sm:$0xff]
  %v95 = vld [vmem:[%s1 + $0x290] sm:$0xff]
  %v96 = vld [vmem:[%s1 + $0x298] sm:$0xff]
  %v97 = vld [vmem:[%s1 + $0x2a0] sm:$0xff]
  %v98 = vld [vmem:[%s1 + $0x2a8] sm:$0xff]
  %v99 = vld [vmem:[%s1 + $0x2b0] sm:$0xff]
  %v100 = vld [vmem:[%s1 + $0x2b8] sm:$0xff]
  %v101 = vld [vmem:[%s1 + $0x2c0] sm:$0xff]
  %v102 = vld [vmem:[%s1 + $0x2c8] sm:$0xff]
  %v103 = vld [vmem:[%s1 + $0x2d0] sm:$0xff]
  %v104 = vld [vmem:[%s1 + $0x2d8] sm:$0xff]
  %v105 = vld [vmem:[%s1 + $0x2e0] sm:$0xff]
  %v106 = vld [vmem:[%s1 + $0x2e8] sm:$0xff]
  %v107 = vld [vmem:[%s1 + $0x2f0] sm:$0xff]
  %v108 = vld [vmem:[%s1 + $0x2f8] sm:$0xff]
  %v109 = vld [vmem:[%s1 + $0x300] sm:$0xff]
  %v110 = vld [vmem:[%s1 + $0x308] sm:$0xff]
  %v111 = vld [vmem:[%s1 + $0x310] sm:$0xff]
  %v112 = vld [vmem:[%s1 + $0x318] sm:$0xff]
  %v113 = vld [vmem:[%s1 + $0x320] sm:$0xff]
  %v114 = vld [vmem:[%s1 + $0x328] sm:$0xff]
  %v115 = vld [vmem:[%s1 + $0x330] sm:$0xff]
  %v116 = vld [vmem:[%s1 + $0x338] sm:$0xff]
  %v117 = vld [vmem:[%s1 + $0x340] sm:$0xff]
  %v118 = vld [vmem:[%s1 + $0x348] sm:$0xff]
  %v119 = vld [vmem:[%s1 + $0x350] sm:$0xff]
  %v120 = vld [vmem:[%s1 + $0x358] sm:$0xff]
  %v121 = vld [vmem:[%s1 + $0x360] sm:$0xff]
  %v122 = vld [vmem:[%s1 + $0x368] sm:$0xff]
  %v123 = vld [vmem:[%s1 + $0x370] sm:$0xff]
  %v124 = vld [vmem:[%s1 + $0x378] sm:$0xff]
  %v125 = vld [vmem:[%s1 + $0x380] sm:$0xff]
  %v126 = vld [vmem:[%s1 + $0x388] sm:$0xff]
  %v127 = vld [vmem:[%s1 + $0x390] sm:$0xff]
  %v128 = vld [vmem:[%s1 + $0x398] sm:$0xff]
  %v129 = vld [vmem:[%s1 + $0x3a0] sm:$0xff]
  %v130 = vld [vmem:[%s1 + $0x3a8] sm:$0xff]
  %v131 = vld [vmem:[%s1 + $0x3b0] sm:$0xff]
  %v132 = vld [vmem:[%s1 + $0x3b8] sm:$0xff]
  %v133 = vld [vmem:[%s1 + $0x3c0] sm:$0xff]
  %v134 = vld [vmem:[%s1 + $0x3c8] sm:$0xff]
  %v135 = vld [vmem:[%s1 + $0x3d0] sm:$0xff]
  %v136 = vld [vmem:[%s1 + $0x3d8] sm:$0xff]
  %v137 = vld [vmem:[%s1 + $0x3e0] sm:$0xff]
  %v138 = vld [vmem:[%s1 + $0x3e8] sm:$0xff]
  %v139 = vld [vmem:[%s1 + $0x3f0] sm:$0xff]
  %v140 = vld [vmem:[%s1 + $0x3f8] sm:$0xff]
  %v141 = vld [vmem:[%s1 + $0x400] sm:$0xff]
  %v142 = vld [vmem:[%s1 + $0x408] sm:$0xff]
  %v143 = vld [vmem:[%s1 + $0x410] sm:$0xff]
  %v144 = vld [vmem:[%s1 + $0x418] sm:$0xff]
  %v145 = vld [vmem:[%s1 + $0x420] sm:$0xff]
  %v146 = vld [vmem:[%s1 + $0x428] sm:$0xff]
  %v147 = vld [vmem:[%s1 + $0x430] sm:$0xff]
  %v148 = vld [vmem:[%s1 + $0x438] sm:$0xff]
  %v149 = vld [vmem:[%s1 + $0x440] sm:$0xff]
  %v150 = vld [vmem:[%s1 + $0x448] sm:$0xff]
  %v151 = vld [vmem:[%s1 + $0x450] sm:$0xff]
  %v152 = vld [vmem:[%s1 + $0x458] sm:$0xff]
  %v153 = vld [vmem:[%s1 + $0x460] sm:$0xff]
  %v154 = vld [vmem:[%s1 + $0x468] sm:$0xff]
  %v155 = vld [vmem:[%s1 + $0x470] sm:$0xff]
  %v156 = vld [vmem:[%s1 + $0x478] sm:$0xff]
  %v157 = vld [vmem:[%s1 + $0x480] sm:$0xff]
  %v158 = vld [vmem:[%s1 + $0x488] sm:$0xff]
  %v159 = vld [vmem:[%s1 + $0x490] sm:$0xff]
  %v160 = vld [vmem:[%s1 + $0x498] sm:$0xff]
  %v161 = vld [vmem:[%s1 + $0x4a0] sm:$0xff]
  %v162 = vld [vmem:[%s1 + $0x4a8] sm:$0xff]
  %v163 = vld [vmem:[%s1 + $0x4b0] sm:$0xff]
  %v164 = vld [vmem:[%s1 + $0x4b8] sm:$0xff]
  %v165 = vld [vmem:[%s1 + $0x4c0] sm:$0xff]
  %v166 = vld [vmem:[%s1 + $0x4c8] sm:$0xff]
  %v167 = vld [vmem:[%s1 + $0x4d0] sm:$0xff]
  %v168 = vld [vmem:[%s1 + $0x4d8] sm:$0xff]
  %v169 = vld [vmem:[%s1 + $0x4e0] sm:$0xff]
  %v170 = vld [vmem:[%s1 + $0x4e8] sm:$0xff]
  %v171 = vld [vmem:[%s1 + $0x4f0] sm:$0xff]
  %v172 = vld [vmem:[%s1 + $0x4f8] sm:$0xff]
  %v173 = vld [vmem:[%s1 + $0x500] sm:$0xff]
  %v174 = vld [vmem:[%s1 + $0x508] sm:$0xff]
  %v175 = vld [vmem:[%s1 + $0x510] sm:$0xff]
  %v176 = vld [vmem:[%s1 + $0x518] sm:$0xff]
  %v177 = vld [vmem:[%s1 + $0x520] sm:$0xff]
  %v178 = vld [vmem:[%s1 + $0x528] sm:$0xff]
  %v179 = vld [vmem:[%s1 + $0x530] sm:$0xff]
  %v180 = vld [vmem:[%s1 + $0x538] sm:$0xff]
  %v181 = vld [vmem:[%s1 + $0x540] sm:$0xff]
  %v182 = vld [vmem:[%s1 + $0x548] sm:$0xff]
  %v183 = vld [vmem:[%s1 + $0x550] sm:$0xff]
  %v184 = vld [vmem:[%s1 + $0x558] sm:$0xff]
  %v185 = vld [vmem:[%s1 + $0x560] sm:$0xff]
  %v186 = vld [vmem:[%s1 + $0x568] sm:$0xff]
  %v187 = vld [vmem:[%s1 + $0x570] sm:$0xff]
  %v188 = vld [vmem:[%s1 + $0x578] sm:$0xff]
  %v189 = vld [vmem:[%s1 + $0x580] sm:$0xff]
  %v190 = vld [vmem:[%s1 + $0x588] sm:$0xff]
  %v191 = vld [vmem:[%s1 + $0x590] sm:$0xff]
  %v192 = vld [vmem:[%s1 + $0x598] sm:$0xff]
  %v193 = vld [vmem:[%s1 + $0x5a0] sm:$0xff]
  %v194 = vld [vmem:[%s1 + $0x5a8] sm:$0xff]
  %v195 = vld [vmem:[%s1 + $0x5b0] sm:$0xff]
  %v196 = vld [vmem:[%s1 + $0x5b8] sm:$0xff]
  %v197 = vld [vmem:[%s1 + $0x5c0] sm:$0xff]
  %v198 = vld [vmem:[%s1 + $0x5c8] sm:$0xff]
  %v199 = vld [vmem:[%s1 + $0x5d0] sm:$0xff]
  %v200 = vld [vmem:[%s1 + $0x5d8] sm:$0xff]
  %v201 = vld [vmem:[%s1 + $0x5e0] sm:$0xff]
  %v202 = vld [vmem:[%s1 + $0x5e8] sm:$0xff]
  %v203 = vld [vmem:[%s1 + $0x5f0] sm:$0xff]
  %v204 = vld [vmem:[%s1 + $0x5f8] sm:$0xff]
  %v397 = vunpack.c.l.b16 %v13
  %v398 = vunpack.c.h.b16 %v13
  %v399 = vunpack.c.l.b16 %v14
  %v400 = vunpack.c.h.b16 %v14
  %v401 = vunpack.c.l.b16 %v15
  %v402 = vunpack.c.h.b16 %v15
  %v403 = vunpack.c.l.b16 %v16
  %v404 = vunpack.c.h.b16 %v16
  %v405 = vunpack.c.l.b16 %v17
  %v406 = vunpack.c.h.b16 %v17
  %v407 = vunpack.c.l.b16 %v18
  %v408 = vunpack.c.h.b16 %v18
  %v409 = vunpack.c.l.b16 %v19
  %v410 = vunpack.c.h.b16 %v19
  %v411 = vunpack.c.l.b16 %v20
  %v412 = vunpack.c.h.b16 %v20
  %v413 = vunpack.c.l.b16 %v21
  %v414 = vunpack.c.h.b16 %v21
  %v415 = vunpack.c.l.b16 %v22
  %v416 = vunpack.c.h.b16 %v22
  %v417 = vunpack.c.l.b16 %v23
  %v418 = vunpack.c.h.b16 %v23
  %v419 = vunpack.c.l.b16 %v24
  %v420 = vunpack.c.h.b16 %v24
  %v421 = vunpack.c.l.b16 %v25
  %v422 = vunpack.c.h.b16 %v25
  %v423 = vunpack.c.l.b16 %v26
  %v424 = vunpack.c.h.b16 %v26
  %v425 = vunpack.c.l.b16 %v27
  %v426 = vunpack.c.h.b16 %v27
  %v427 = vunpack.c.l.b16 %v28
  %v428 = vunpack.c.h.b16 %v28
  %v429 = vunpack.c.l.b16 %v29
  %v430 = vunpack.c.h.b16 %v29
  %v431 = vunpack.c.l.b16 %v30
  %v432 = vunpack.c.h.b16 %v30
  %v433 = vunpack.c.l.b16 %v31
  %v434 = vunpack.c.h.b16 %v31
  %v435 = vunpack.c.l.b16 %v32
  %v436 = vunpack.c.h.b16 %v32
  %v437 = vunpack.c.l.b16 %v33
  %v438 = vunpack.c.h.b16 %v33
  %v439 = vunpack.c.l.b16 %v34
  %v440 = vunpack.c.h.b16 %v34
  %v441 = vunpack.c.l.b16 %v35
  %v442 = vunpack.c.h.b16 %v35
  %v443 = vunpack.c.l.b16 %v36
  %v444 = vunpack.c.h.b16 %v36
  %v445 = vunpack.c.l.b16 %v37
  %v446 = vunpack.c.h.b16 %v37
  %v447 = vunpack.c.l.b16 %v38
  %v448 = vunpack.c.h.b16 %v38
  %v449 = vunpack.c.l.b16 %v39
  %v450 = vunpack.c.h.b16 %v39
  %v451 = vunpack.c.l.b16 %v40
  %v452 = vunpack.c.h.b16 %v40
  %v453 = vunpack.c.l.b16 %v41
  %v454 = vunpack.c.h.b16 %v41
  %v455 = vunpack.c.l.b16 %v42
  %v456 = vunpack.c.h.b16 %v42
  %v457 = vunpack.c.l.b16 %v43
  %v458 = vunpack.c.h.b16 %v43
  %v459 = vunpack.c.l.b16 %v44
  %v460 = vunpack.c.h.b16 %v44
  %v461 = vunpack.c.l.b16 %v45
  %v462 = vunpack.c.h.b16 %v45
  %v463 = vunpack.c.l.b16 %v46
  %v464 = vunpack.c.h.b16 %v46
  %v465 = vunpack.c.l.b16 %v47
  %v466 = vunpack.c.h.b16 %v47
  %v467 = vunpack.c.l.b16 %v48
  %v468 = vunpack.c.h.b16 %v48
  %v469 = vunpack.c.l.b16 %v49
  %v470 = vunpack.c.h.b16 %v49
  %v471 = vunpack.c.l.b16 %v50
  %v472 = vunpack.c.h.b16 %v50
  %v473 = vunpack.c.l.b16 %v51
  %v474 = vunpack.c.h.b16 %v51
  %v475 = vunpack.c.l.b16 %v52
  %v476 = vunpack.c.h.b16 %v52
  %v477 = vunpack.c.l.b16 %v53
  %v478 = vunpack.c.h.b16 %v53
  %v479 = vunpack.c.l.b16 %v54
  %v480 = vunpack.c.h.b16 %v54
  %v481 = vunpack.c.l.b16 %v55
  %v482 = vunpack.c.h.b16 %v55
  %v483 = vunpack.c.l.b16 %v56
  %v484 = vunpack.c.h.b16 %v56
  %v485 = vunpack.c.l.b16 %v57
  %v486 = vunpack.c.h.b16 %v57
  %v487 = vunpack.c.l.b16 %v58
  %v488 = vunpack.c.h.b16 %v58
  %v489 = vunpack.c.l.b16 %v59
  %v490 = vunpack.c.h.b16 %v59
  %v491 = vunpack.c.l.b16 %v60
  %v492 = vunpack.c.h.b16 %v60
  %v493 = vunpack.c.l.b16 %v61
  %v494 = vunpack.c.h.b16 %v61
  %v495 = vunpack.c.l.b16 %v62
  %v496 = vunpack.c.h.b16 %v62
  %v497 = vunpack.c.l.b16 %v63
  %v498 = vunpack.c.h.b16 %v63
  %v499 = vunpack.c.l.b16 %v64
  %v500 = vunpack.c.h.b16 %v64
  %v501 = vunpack.c.l.b16 %v65
  %v502 = vunpack.c.h.b16 %v65
  %v503 = vunpack.c.l.b16 %v66
  %v504 = vunpack.c.h.b16 %v66
  %v505 = vunpack.c.l.b16 %v67
  %v506 = vunpack.c.h.b16 %v67
  %v507 = vunpack.c.l.b16 %v68
  %v508 = vunpack.c.h.b16 %v68
  %v509 = vunpack.c.l.b16 %v69
  %v510 = vunpack.c.h.b16 %v69
  %v511 = vunpack.c.l.b16 %v70
  %v512 = vunpack.c.h.b16 %v70
  %v513 = vunpack.c.l.b16 %v71
  %v514 = vunpack.c.h.b16 %v71
  %v515 = vunpack.c.l.b16 %v72
  %v516 = vunpack.c.h.b16 %v72
  %v517 = vunpack.c.l.b16 %v73
  %v518 = vunpack.c.h.b16 %v73
  %v519 = vunpack.c.l.b16 %v74
  %v520 = vunpack.c.h.b16 %v74
  %v521 = vunpack.c.l.b16 %v75
  %v522 = vunpack.c.h.b16 %v75
  %v523 = vunpack.c.l.b16 %v76
  %v524 = vunpack.c.h.b16 %v76
  %v525 = vunpack.c.l.b16 %v77
  %v526 = vunpack.c.h.b16 %v77
  %v527 = vunpack.c.l.b16 %v78
  %v528 = vunpack.c.h.b16 %v78
  %v529 = vunpack.c.l.b16 %v79
  %v530 = vunpack.c.h.b16 %v79
  %v531 = vunpack.c.l.b16 %v80
  %v532 = vunpack.c.h.b16 %v80
  %v533 = vunpack.c.l.b16 %v81
  %v534 = vunpack.c.h.b16 %v81
  %v535 = vunpack.c.l.b16 %v82
  %v536 = vunpack.c.h.b16 %v82
  %v537 = vunpack.c.l.b16 %v83
  %v538 = vunpack.c.h.b16 %v83
  %v539 = vunpack.c.l.b16 %v84
  %v540 = vunpack.c.h.b16 %v84
  %v541 = vunpack.c.l.b16 %v85
  %v542 = vunpack.c.h.b16 %v85
  %v543 = vunpack.c.l.b16 %v86
  %v544 = vunpack.c.h.b16 %v86
  %v545 = vunpack.c.l.b16 %v87
  %v546 = vunpack.c.h.b16 %v87
  %v547 = vunpack.c.l.b16 %v88
  %v548 = vunpack.c.h.b16 %v88
  %v549 = vunpack.c.l.b16 %v89
  %v550 = vunpack.c.h.b16 %v89
  %v551 = vunpack.c.l.b16 %v90
  %v552 = vunpack.c.h.b16 %v90
  %v553 = vunpack.c.l.b16 %v91
  %v554 = vunpack.c.h.b16 %v91
  %v555 = vunpack.c.l.b16 %v92
  %v556 = vunpack.c.h.b16 %v92
  %v557 = vunpack.c.l.b16 %v93
  %v558 = vunpack.c.h.b16 %v93
  %v559 = vunpack.c.l.b16 %v94
  %v560 = vunpack.c.h.b16 %v94
  %v561 = vunpack.c.l.b16 %v95
  %v562 = vunpack.c.h.b16 %v95
  %v563 = vunpack.c.l.b16 %v96
  %v564 = vunpack.c.h.b16 %v96
  %v565 = vunpack.c.l.b16 %v97
  %v566 = vunpack.c.h.b16 %v97
  %v567 = vunpack.c.l.b16 %v98
  %v568 = vunpack.c.h.b16 %v98
  %v569 = vunpack.c.l.b16 %v99
  %v570 = vunpack.c.h.b16 %v99
  %v571 = vunpack.c.l.b16 %v100
  %v572 = vunpack.c.h.b16 %v100
  %v573 = vunpack.c.l.b16 %v101
  %v574 = vunpack.c.h.b16 %v101
  %v575 = vunpack.c.l.b16 %v102
  %v576 = vunpack.c.h.b16 %v102
  %v577 = vunpack.c.l.b16 %v103
  %v578 = vunpack.c.h.b16 %v103
  %v579 = vunpack.c.l.b16 %v104
  %v580 = vunpack.c.h.b16 %v104
  %v581 = vunpack.c.l.b16 %v105
  %v582 = vunpack.c.h.b16 %v105
  %v583 = vunpack.c.l.b16 %v106
  %v584 = vunpack.c.h.b16 %v106
  %v585 = vunpack.c.l.b16 %v107
  %v586 = vunpack.c.h.b16 %v107
  %v587 = vunpack.c.l.b16 %v108
  %v588 = vunpack.c.h.b16 %v108
  %v589 = vunpack.c.l.b16 %v109
  %v590 = vunpack.c.h.b16 %v109
  %v591 = vunpack.c.l.b16 %v110
  %v592 = vunpack.c.h.b16 %v110
  %v593 = vunpack.c.l.b16 %v111
  %v594 = vunpack.c.h.b16 %v111
  %v595 = vunpack.c.l.b16 %v112
  %v596 = vunpack.c.h.b16 %v112
  %v597 = vunpack.c.l.b16 %v113
  %v598 = vunpack.c.h.b16 %v113
  %v599 = vunpack.c.l.b16 %v114
  %v600 = vunpack.c.h.b16 %v114
  %v601 = vunpack.c.l.b16 %v115
  %v602 = vunpack.c.h.b16 %v115
  %v603 = vunpack.c.l.b16 %v116
  %v604 = vunpack.c.h.b16 %v116
  %v605 = vunpack.c.l.b16 %v117
  %v606 = vunpack.c.h.b16 %v117
  %v607 = vunpack.c.l.b16 %v118
  %v608 = vunpack.c.h.b16 %v118
  %v609 = vunpack.c.l.b16 %v119
  %v610 = vunpack.c.h.b16 %v119
  %v611 = vunpack.c.l.b16 %v120
  %v612 = vunpack.c.h.b16 %v120
  %v613 = vunpack.c.l.b16 %v121
  %v614 = vunpack.c.h.b16 %v121
  %v615 = vunpack.c.l.b16 %v122
  %v616 = vunpack.c.h.b16 %v122
  %v617 = vunpack.c.l.b16 %v123
  %v618 = vunpack.c.h.b16 %v123
  %v619 = vunpack.c.l.b16 %v124
  %v620 = vunpack.c.h.b16 %v124
  %v621 = vunpack.c.l.b16 %v125
  %v622 = vunpack.c.h.b16 %v125
  %v623 = vunpack.c.l.b16 %v126
  %v624 = vunpack.c.h.b16 %v126
  %v625 = vunpack.c.l.b16 %v127
  %v626 = vunpack.c.h.b16 %v127
  %v627 = vunpack.c.l.b16 %v128
  %v628 = vunpack.c.h.b16 %v128
  %v629 = vunpack.c.l.b16 %v129
  %v630 = vunpack.c.h.b16 %v129
  %v631 = vunpack.c.l.b16 %v130
  %v632 = vunpack.c.h.b16 %v130
  %v633 = vunpack.c.l.b16 %v131
  %v634 = vunpack.c.h.b16 %v131
  %v635 = vunpack.c.l.b16 %v132
  %v636 = vunpack.c.h.b16 %v132
  %v637 = vunpack.c.l.b16 %v133
  %v638 = vunpack.c.h.b16 %v133
  %v639 = vunpack.c.l.b16 %v134
  %v640 = vunpack.c.h.b16 %v134
  %v641 = vunpack.c.l.b16 %v135
  %v642 = vunpack.c.h.b16 %v135
  %v643 = vunpack.c.l.b16 %v136
  %v644 = vunpack.c.h.b16 %v136
  %v645 = vunpack.c.l.b16 %v137
  %v646 = vunpack.c.h.b16 %v137
  %v647 = vunpack.c.l.b16 %v138
  %v648 = vunpack.c.h.b16 %v138
  %v649 = vunpack.c.l.b16 %v139
  %v650 = vunpack.c.h.b16 %v139
  %v651 = vunpack.c.l.b16 %v140
  %v652 = vunpack.c.h.b16 %v140
  %v653 = vunpack.c.l.b16 %v141
  %v654 = vunpack.c.h.b16 %v141
  %v655 = vunpack.c.l.b16 %v142
  %v656 = vunpack.c.h.b16 %v142
  %v657 = vunpack.c.l.b16 %v143
  %v658 = vunpack.c.h.b16 %v143
  %v659 = vunpack.c.l.b16 %v144
  %v660 = vunpack.c.h.b16 %v144
  %v661 = vunpack.c.l.b16 %v145
  %v662 = vunpack.c.h.b16 %v145
  %v663 = vunpack.c.l.b16 %v146
  %v664 = vunpack.c.h.b16 %v146
  %v665 = vunpack.c.l.b16 %v147
  %v666 = vunpack.c.h.b16 %v147
  %v667 = vunpack.c.l.b16 %v148
  %v668 = vunpack.c.h.b16 %v148
  %v669 = vunpack.c.l.b16 %v149
  %v670 = vunpack.c.h.b16 %v149
  %v671 = vunpack.c.l.b16 %v150
  %v672 = vunpack.c.h.b16 %v150
  %v673 = vunpack.c.l.b16 %v151
  %v674 = vunpack.c.h.b16 %v151
  %v675 = vunpack.c.l.b16 %v152
  %v676 = vunpack.c.h.b16 %v152
  %v677 = vunpack.c.l.b16 %v153
  %v678 = vunpack.c.h.b16 %v153
  %v679 = vunpack.c.l.b16 %v154
  %v680 = vunpack.c.h.b16 %v154
  %v681 = vunpack.c.l.b16 %v155
  %v682 = vunpack.c.h.b16 %v155
  %v683 = vunpack.c.l.b16 %v156
  %v684 = vunpack.c.h.b16 %v156
  %v685 = vunpack.c.l.b16 %v157
  %v686 = vunpack.c.h.b16 %v157
  %v687 = vunpack.c.l.b16 %v158
  %v688 = vunpack.c.h.b16 %v158
  %v689 = vunpack.c.l.b16 %v159
  %v690 = vunpack.c.h.b16 %v159
  %v691 = vunpack.c.l.b16 %v160
  %v692 = vunpack.c.h.b16 %v160
  %v693 = vunpack.c.l.b16 %v161
  %v694 = vunpack.c.h.b16 %v161
  %v695 = vunpack.c.l.b16 %v162
  %v696 = vunpack.c.h.b16 %v162
  %v697 = vunpack.c.l.b16 %v163
  %v698 = vunpack.c.h.b16 %v163
  %v699 = vunpack.c.l.b16 %v164
  %v700 = vunpack.c.h.b16 %v164
  %v701 = vunpack.c.l.b16 %v165
  %v702 = vunpack.c.h.b16 %v165
  %v703 = vunpack.c.l.b16 %v166
  %v704 = vunpack.c.h.b16 %v166
  %v705 = vunpack.c.l.b16 %v167
  %v706 = vunpack.c.h.b16 %v167
  %v707 = vunpack.c.l.b16 %v168
  %v708 = vunpack.c.h.b16 %v168
  %v709 = vunpack.c.l.b16 %v169
  %v710 = vunpack.c.h.b16 %v169
  %v711 = vunpack.c.l.b16 %v170
  %v712 = vunpack.c.h.b16 %v170
  %v713 = vunpack.c.l.b16 %v171
  %v714 = vunpack.c.h.b16 %v171
  %v715 = vunpack.c.l.b16 %v172
  %v716 = vunpack.c.h.b16 %v172
  %v717 = vunpack.c.l.b16 %v173
  %v718 = vunpack.c.h.b16 %v173
  %v719 = vunpack.c.l.b16 %v174
  %v720 = vunpack.c.h.b16 %v174
  %v721 = vunpack.c.l.b16 %v175
  %v722 = vunpack.c.h.b16 %v175
  %v723 = vunpack.c.l.b16 %v176
  %v724 = vunpack.c.h.b16 %v176
  %v725 = vunpack.c.l.b16 %v177
  %v726 = vunpack.c.h.b16 %v177
  %v727 = vunpack.c.l.b16 %v178
  %v728 = vunpack.c.h.b16 %v178
  %v729 = vunpack.c.l.b16 %v179
  %v730 = vunpack.c.h.b16 %v179
  %v731 = vunpack.c.l.b16 %v180
  %v732 = vunpack.c.h.b16 %v180
  %v733 = vunpack.c.l.b16 %v181
  %v734 = vunpack.c.h.b16 %v181
  %v735 = vunpack.c.l.b16 %v182
  %v736 = vunpack.c.h.b16 %v182
  %v737 = vunpack.c.l.b16 %v183
  %v738 = vunpack.c.h.b16 %v183
  %v739 = vunpack.c.l.b16 %v184
  %v740 = vunpack.c.h.b16 %v184
  %v741 = vunpack.c.l.b16 %v185
  %v742 = vunpack.c.h.b16 %v185
  %v743 = vunpack.c.l.b16 %v186
  %v744 = vunpack.c.h.b16 %v186
  %v745 = vunpack.c.l.b16 %v187
  %v746 = vunpack.c.h.b16 %v187
  %v747 = vunpack.c.l.b16 %v188
  %v748 = vunpack.c.h.b16 %v188
  %v749 = vunpack.c.l.b16 %v189
  %v750 = vunpack.c.h.b16 %v189
  %v751 = vunpack.c.l.b16 %v190
  %v752 = vunpack.c.h.b16 %v190
  %v753 = vunpack.c.l.b16 %v191
  %v754 = vunpack.c.h.b16 %v191
  %v755 = vunpack.c.l.b16 %v192
  %v756 = vunpack.c.h.b16 %v192
  %v757 = vunpack.c.l.b16 %v193
  %v758 = vunpack.c.h.b16 %v193
  %v759 = vunpack.c.l.b16 %v194
  %v760 = vunpack.c.h.b16 %v194
  %v761 = vunpack.c.l.b16 %v195
  %v762 = vunpack.c.h.b16 %v195
  %v763 = vunpack.c.l.b16 %v196
  %v764 = vunpack.c.h.b16 %v196
  %v765 = vunpack.c.l.b16 %v197
  %v766 = vunpack.c.h.b16 %v197
  %v767 = vunpack.c.l.b16 %v198
  %v768 = vunpack.c.h.b16 %v198
  %v769 = vunpack.c.l.b16 %v199
  %v770 = vunpack.c.h.b16 %v199
  %v771 = vunpack.c.l.b16 %v200
  %v772 = vunpack.c.h.b16 %v200
  %v773 = vunpack.c.l.b16 %v201
  %v774 = vunpack.c.h.b16 %v201
  %v775 = vunpack.c.l.b16 %v202
  %v776 = vunpack.c.h.b16 %v202
  %v777 = vunpack.c.l.b16 %v203
  %v778 = vunpack.c.h.b16 %v203
  %v779 = vunpack.c.l.b16 %v204
  %v780 = vunpack.c.h.b16 %v204
  %v781 = vpack.c.b16 %v461, %v397
  %v782 = vpack.c.b16 %v462, %v398
  %v783 = vpack.c.b16 %v463, %v399
  %v784 = vpack.c.b16 %v464, %v400
  %v785 = vpack.c.b16 %v465, %v401
  %v786 = vpack.c.b16 %v466, %v402
  %v787 = vpack.c.b16 %v467, %v403
  %v788 = vpack.c.b16 %v468, %v404
  %v789 = vpack.c.b16 %v469, %v405
  %v790 = vpack.c.b16 %v470, %v406
  %v791 = vpack.c.b16 %v471, %v407
  %v792 = vpack.c.b16 %v472, %v408
  %v793 = vpack.c.b16 %v473, %v409
  %v794 = vpack.c.b16 %v474, %v410
  %v795 = vpack.c.b16 %v475, %v411
  %v796 = vpack.c.b16 %v476, %v412
  %v797 = vpack.c.b16 %v477, %v413
  %v798 = vpack.c.b16 %v478, %v414
  %v799 = vpack.c.b16 %v479, %v415
  %v800 = vpack.c.b16 %v480, %v416
  %v801 = vpack.c.b16 %v481, %v417
  %v802 = vpack.c.b16 %v482, %v418
  %v803 = vpack.c.b16 %v483, %v419
  %v804 = vpack.c.b16 %v484, %v420
  %v805 = vpack.c.b16 %v485, %v421
  %v806 = vpack.c.b16 %v486, %v422
  %v807 = vpack.c.b16 %v487, %v423
  %v808 = vpack.c.b16 %v488, %v424
  %v809 = vpack.c.b16 %v489, %v425
  %v810 = vpack.c.b16 %v490, %v426
  %v811 = vpack.c.b16 %v491, %v427
  %v812 = vpack.c.b16 %v492, %v428
  %v813 = vpack.c.b16 %v493, %v429
  %v814 = vpack.c.b16 %v494, %v430
  %v815 = vpack.c.b16 %v495, %v431
  %v816 = vpack.c.b16 %v496, %v432
  %v817 = vpack.c.b16 %v497, %v433
  %v818 = vpack.c.b16 %v498, %v434
  %v819 = vpack.c.b16 %v499, %v435
  %v820 = vpack.c.b16 %v500, %v436
  %v821 = vpack.c.b16 %v501, %v437
  %v822 = vpack.c.b16 %v502, %v438
  %v823 = vpack.c.b16 %v503, %v439
  %v824 = vpack.c.b16 %v504, %v440
  %v825 = vpack.c.b16 %v505, %v441
  %v826 = vpack.c.b16 %v506, %v442
  %v827 = vpack.c.b16 %v507, %v443
  %v828 = vpack.c.b16 %v508, %v444
  %v829 = vpack.c.b16 %v509, %v445
  %v830 = vpack.c.b16 %v510, %v446
  %v831 = vpack.c.b16 %v511, %v447
  %v832 = vpack.c.b16 %v512, %v448
  %v833 = vpack.c.b16 %v513, %v449
  %v834 = vpack.c.b16 %v514, %v450
  %v835 = vpack.c.b16 %v515, %v451
  %v836 = vpack.c.b16 %v516, %v452
  %v837 = vpack.c.b16 %v517, %v453
  %v838 = vpack.c.b16 %v518, %v454
  %v839 = vpack.c.b16 %v519, %v455
  %v840 = vpack.c.b16 %v520, %v456
  %v841 = vpack.c.b16 %v521, %v457
  %v842 = vpack.c.b16 %v522, %v458
  %v843 = vpack.c.b16 %v523, %v459
  %v844 = vpack.c.b16 %v524, %v460
  %v845 = vpack.c.b16 %v589, %v525
  %v846 = vpack.c.b16 %v590, %v526
  %v847 = vpack.c.b16 %v591, %v527
  %v848 = vpack.c.b16 %v592, %v528
  %v849 = vpack.c.b16 %v593, %v529
  %v850 = vpack.c.b16 %v594, %v530
  %v851 = vpack.c.b16 %v595, %v531
  %v852 = vpack.c.b16 %v596, %v532
  %v853 = vpack.c.b16 %v597, %v533
  %v854 = vpack.c.b16 %v598, %v534
  %v855 = vpack.c.b16 %v599, %v535
  %v856 = vpack.c.b16 %v600, %v536
  %v857 = vpack.c.b16 %v601, %v537
  %v858 = vpack.c.b16 %v602, %v538
  %v859 = vpack.c.b16 %v603, %v539
  %v860 = vpack.c.b16 %v604, %v540
  %v861 = vpack.c.b16 %v605, %v541
  %v862 = vpack.c.b16 %v606, %v542
  %v863 = vpack.c.b16 %v607, %v543
  %v864 = vpack.c.b16 %v608, %v544
  %v865 = vpack.c.b16 %v609, %v545
  %v866 = vpack.c.b16 %v610, %v546
  %v867 = vpack.c.b16 %v611, %v547
  %v868 = vpack.c.b16 %v612, %v548
  %v869 = vpack.c.b16 %v613, %v549
  %v870 = vpack.c.b16 %v614, %v550
  %v871 = vpack.c.b16 %v615, %v551
  %v872 = vpack.c.b16 %v616, %v552
  %v873 = vpack.c.b16 %v617, %v553
  %v874 = vpack.c.b16 %v618, %v554
  %v875 = vpack.c.b16 %v619, %v555
  %v876 = vpack.c.b16 %v620, %v556
  %v877 = vpack.c.b16 %v621, %v557
  %v878 = vpack.c.b16 %v622, %v558
  %v879 = vpack.c.b16 %v623, %v559
  %v880 = vpack.c.b16 %v624, %v560
  %v881 = vpack.c.b16 %v625, %v561
  %v882 = vpack.c.b16 %v626, %v562
  %v883 = vpack.c.b16 %v627, %v563
  %v884 = vpack.c.b16 %v628, %v564
  %v885 = vpack.c.b16 %v629, %v565
  %v886 = vpack.c.b16 %v630, %v566
  %v887 = vpack.c.b16 %v631, %v567
  %v888 = vpack.c.b16 %v632, %v568
  %v889 = vpack.c.b16 %v633, %v569
  %v890 = vpack.c.b16 %v634, %v570
  %v891 = vpack.c.b16 %v635, %v571
  %v892 = vpack.c.b16 %v636, %v572
  %v893 = vpack.c.b16 %v637, %v573
  %v894 = vpack.c.b16 %v638, %v574
  %v895 = vpack.c.b16 %v639, %v575
  %v896 = vpack.c.b16 %v640, %v576
  %v897 = vpack.c.b16 %v641, %v577
  %v898 = vpack.c.b16 %v642, %v578
  %v899 = vpack.c.b16 %v643, %v579
  %v900 = vpack.c.b16 %v644, %v580
  %v901 = vpack.c.b16 %v645, %v581
  %v902 = vpack.c.b16 %v646, %v582
  %v903 = vpack.c.b16 %v647, %v583
  %v904 = vpack.c.b16 %v648, %v584
  %v905 = vpack.c.b16 %v649, %v585
  %v906 = vpack.c.b16 %v650, %v586
  %v907 = vpack.c.b16 %v651, %v587
  %v908 = vpack.c.b16 %v652, %v588
  %v909 = vpack.c.b16 %v717, %v653
  %v910 = vpack.c.b16 %v718, %v654
  %v911 = vpack.c.b16 %v719, %v655
  %v912 = vpack.c.b16 %v720, %v656
  %v913 = vpack.c.b16 %v721, %v657
  %v914 = vpack.c.b16 %v722, %v658
  %v915 = vpack.c.b16 %v723, %v659
  %v916 = vpack.c.b16 %v724, %v660
  %v917 = vpack.c.b16 %v725, %v661
  %v918 = vpack.c.b16 %v726, %v662
  %v919 = vpack.c.b16 %v727, %v663
  %v920 = vpack.c.b16 %v728, %v664
  %v921 = vpack.c.b16 %v729, %v665
  %v922 = vpack.c.b16 %v730, %v666
  %v923 = vpack.c.b16 %v731, %v667
  %v924 = vpack.c.b16 %v732, %v668
  %v925 = vpack.c.b16 %v733, %v669
  %v926 = vpack.c.b16 %v734, %v670
  %v927 = vpack.c.b16 %v735, %v671
  %v928 = vpack.c.b16 %v736, %v672
  %v929 = vpack.c.b16 %v737, %v673
  %v930 = vpack.c.b16 %v738, %v674
  %v931 = vpack.c.b16 %v739, %v675
  %v932 = vpack.c.b16 %v740, %v676
  %v933 = vpack.c.b16 %v741, %v677
  %v934 = vpack.c.b16 %v742, %v678
  %v935 = vpack.c.b16 %v743, %v679
  %v936 = vpack.c.b16 %v744, %v680
  %v937 = vpack.c.b16 %v745, %v681
  %v938 = vpack.c.b16 %v746, %v682
  %v939 = vpack.c.b16 %v747, %v683
  %v940 = vpack.c.b16 %v748, %v684
  %v941 = vpack.c.b16 %v749, %v685
  %v942 = vpack.c.b16 %v750, %v686
  %v943 = vpack.c.b16 %v751, %v687
  %v944 = vpack.c.b16 %v752, %v688
  %v945 = vpack.c.b16 %v753, %v689
  %v946 = vpack.c.b16 %v754, %v690
  %v947 = vpack.c.b16 %v755, %v691
  %v948 = vpack.c.b16 %v756, %v692
  %v949 = vpack.c.b16 %v757, %v693
  %v950 = vpack.c.b16 %v758, %v694
  %v951 = vpack.c.b16 %v759, %v695
  %v952 = vpack.c.b16 %v760, %v696
  %v953 = vpack.c.b16 %v761, %v697
  %v954 = vpack.c.b16 %v762, %v698
  %v955 = vpack.c.b16 %v763, %v699
  %v956 = vpack.c.b16 %v764, %v700
  %v957 = vpack.c.b16 %v765, %v701
  %v958 = vpack.c.b16 %v766, %v702
  %v959 = vpack.c.b16 %v767, %v703
  %v960 = vpack.c.b16 %v768, %v704
  %v961 = vpack.c.b16 %v769, %v705
  %v962 = vpack.c.b16 %v770, %v706
  %v963 = vpack.c.b16 %v771, %v707
  %v964 = vpack.c.b16 %v772, %v708
  %v965 = vpack.c.b16 %v773, %v709
  %v966 = vpack.c.b16 %v774, %v710
  %v967 = vpack.c.b16 %v775, %v711
  %v968 = vpack.c.b16 %v776, %v712
  %v969 = vpack.c.b16 %v777, %v713
  %v970 = vpack.c.b16 %v778, %v714
  %v971 = vpack.c.b16 %v779, %v715
  %v972 = vpack.c.b16 %v780, %v716
  %vm1165 = vcmask 392192
  %v1167 = vsel %vm1165, %v12, 0
  %1169 = vmatprep.subr.bf16.mxu0 0
  %1170 = vmatpush1.bf16.msra.mxu0 0
  %1171 = vmatprep.subr.bf16.mxu0 0
  %1172 = vmatpush1.bf16.msra.mxu0 0
  %1173 = vmatprep.subr.bf16.mxu0 0
  %1174 = vmatpush1.bf16.msra.mxu0 0
  %1175 = vmatprep.subr.bf16.mxu0 0
  %1176 = vmatpush1.bf16.msra.mxu0 0
  %1177 = vmatprep.subr.bf16.mxu0 0
  %1178 = vmatpush1.bf16.msra.mxu0 0
  %1179 = vmatprep.subr.bf16.mxu0 %v910
  %1180 = vmatpush1.bf16.msra.mxu0 %v909
  %1181 = vmatprep.subr.bf16.mxu0 %v846
  %1182 = vmatpush1.bf16.msra.mxu0 %v845
  %1183 = vmatprep.subr.bf16.mxu0 %v782
  %1184 = vmatpush1.bf16.msra.mxu0 %v781
  %1185 = vmatprep.subr.bf16.mxu0 0
  %1186 = vmatpush2.bf16.msra.mxu0 0
  %1187 = vmatprep.subr.bf16.mxu0 0
  %1188 = vmatpush2.bf16.msra.mxu0 0
  %1189 = vmatprep.subr.bf16.mxu0 0
  %1190 = vmatpush2.bf16.msra.mxu0 0
  %1191 = vmatprep.subr.bf16.mxu0 0
  %1192 = vmatpush2.bf16.msra.mxu0 0
  %1193 = vmatprep.subr.bf16.mxu0 0
  %1194 = vmatpush2.bf16.msra.mxu0 0
  %1195 = vmatprep.subr.bf16.mxu0 0
  %1196 = vmatpush2.bf16.msra.mxu0 0
  %1197 = vmatprep.subr.bf16.mxu0 0
  %1198 = vmatpush2.bf16.msra.mxu0 0
  %1199 = vmatprep.subr.bf16.mxu0 0
  %1200 = vmatpush2.bf16.msra.mxu0 0
  %1201 = vmatprep.mubr.bf16.mxu0 0
  %1202 = vmatmul.mubr.bf16.gmra.mxu0 %v1167
  %v1203 = vpop.f32.mrf.mxu0
  %v1204 = vadd.f32 0.0, %v1203
  %v1205 = vpop.f32.mrf.mxu0
  %v1206 = vadd.f32 0.0, %v1205
  %v1207 = vpop.f32.mrf.mxu0
  %v1208 = vpop.f32.mrf.mxu0
  %1209 = vdwg.mxu0
  %1210 = vmatprep.subr.bf16.mxu0 0
  %1211 = vmatpush1.bf16.msra.mxu0 0
  %1212 = vmatprep.subr.bf16.mxu0 0
  %1213 = vmatpush1.bf16.msra.mxu0 0
  %1214 = vmatprep.subr.bf16.mxu0 0
  %1215 = vmatpush1.bf16.msra.mxu0 0
  %1216 = vmatprep.subr.bf16.mxu0 0
  %1217 = vmatpush1.bf16.msra.mxu0 0
  %1218 = vmatprep.subr.bf16.mxu0 0
  %1219 = vmatpush1.bf16.msra.mxu0 0
  %1220 = vmatprep.subr.bf16.mxu0 %v912
  %1221 = vmatpush1.bf16.msra.mxu0 %v911
  %1222 = vmatprep.subr.bf16.mxu0 %v848
  %1223 = vmatpush1.bf16.msra.mxu0 %v847
  %1224 = vmatprep.subr.bf16.mxu0 %v784
  %1225 = vmatpush1.bf16.msra.mxu0 %v783
  %1226 = vmatprep.subr.bf16.mxu0 0
  %1227 = vmatpush2.bf16.msra.mxu0 0
  %1228 = vmatprep.subr.bf16.mxu0 0
  %1229 = vmatpush2.bf16.msra.mxu0 0
  %1230 = vmatprep.subr.bf16.mxu0 0
  %1231 = vmatpush2.bf16.msra.mxu0 0
  %1232 = vmatprep.subr.bf16.mxu0 0
  %1233 = vmatpush2.bf16.msra.mxu0 0
  %1234 = vmatprep.subr.bf16.mxu0 0
  %1235 = vmatpush2.bf16.msra.mxu0 0
  %1236 = vmatprep.subr.bf16.mxu0 0
  %1237 = vmatpush2.bf16.msra.mxu0 0
  %1238 = vmatprep.subr.bf16.mxu0 0
  %1239 = vmatpush2.bf16.msra.mxu0 0
  %1240 = vmatprep.subr.bf16.mxu0 0
  %1241 = vmatpush2.bf16.msra.mxu0 0
  %1242 = vmatprep.mubr.bf16.mxu0 0
  %1243 = vmatmul.mubr.bf16.gmra.mxu0 %v1167
  %v1244 = vpop.f32.mrf.mxu0
  %v1245 = vadd.f32 0.0, %v1244
  %v1246 = vpop.f32.mrf.mxu0
  %v1247 = vadd.f32 0.0, %v1246
  %v1248 = vpop.f32.mrf.mxu0
  %v1249 = vpop.f32.mrf.mxu0
  %1250 = vdwg.mxu0
  %1251 = vmatprep.subr.bf16.mxu0 0
  %1252 = vmatpush1.bf16.msra.mxu0 0
  %1253 = vmatprep.subr.bf16.mxu0 0
  %1254 = vmatpush1.bf16.msra.mxu0 0
  %1255 = vmatprep.subr.bf16.mxu0 0
  %1256 = vmatpush1.bf16.msra.mxu0 0
  %1257 = vmatprep.subr.bf16.mxu0 0
  %1258 = vmatpush1.bf16.msra.mxu0 0
  %1259 = vmatprep.subr.bf16.mxu0 0
  %1260 = vmatpush1.bf16.msra.mxu0 0
  %1261 = vmatprep.subr.bf16.mxu0 %v914
  %1262 = vmatpush1.bf16.msra.mxu0 %v913
  %1263 = vmatprep.subr.bf16.mxu0 %v850
  %1264 = vmatpush1.bf16.msra.mxu0 %v849
  %1265 = vmatprep.subr.bf16.mxu0 %v786
  %1266 = vmatpush1.bf16.msra.mxu0 %v785
  %1267 = vmatprep.subr.bf16.mxu0 0
  %1268 = vmatpush2.bf16.msra.mxu0 0
  %1269 = vmatprep.subr.bf16.mxu0 0
  %1270 = vmatpush2.bf16.msra.mxu0 0
  %1271 = vmatprep.subr.bf16.mxu0 0
  %1272 = vmatpush2.bf16.msra.mxu0 0
  %1273 = vmatprep.subr.bf16.mxu0 0
  %1274 = vmatpush2.bf16.msra.mxu0 0
  %1275 = vmatprep.subr.bf16.mxu0 0
  %1276 = vmatpush2.bf16.msra.mxu0 0
  %1277 = vmatprep.subr.bf16.mxu0 0
  %1278 = vmatpush2.bf16.msra.mxu0 0
  %1279 = vmatprep.subr.bf16.mxu0 0
  %1280 = vmatpush2.bf16.msra.mxu0 0
  %1281 = vmatprep.subr.bf16.mxu0 0
  %1282 = vmatpush2.bf16.msra.mxu0 0
  %1283 = vmatprep.mubr.bf16.mxu0 0
  %1284 = vmatmul.mubr.bf16.gmra.mxu0 %v1167
  %v1285 = vpop.f32.mrf.mxu0
  %v1286 = vadd.f32 0.0, %v1285
  %v1287 = vpop.f32.mrf.mxu0
  %v1288 = vadd.f32 0.0, %v1287
  %v1289 = vpop.f32.mrf.mxu0
  %v1290 = vpop.f32.mrf.mxu0
  %1291 = vdwg.mxu0
  %1292 = vmatprep.subr.bf16.mxu0 0
  %1293 = vmatpush1.bf16.msra.mxu0 0
  %1294 = vmatprep.subr.bf16.mxu0 0
  %1295 = vmatpush1.bf16.msra.mxu0 0
  %1296 = vmatprep.subr.bf16.mxu0 0
  %1297 = vmatpush1.bf16.msra.mxu0 0
  %1298 = vmatprep.subr.bf16.mxu0 0
  %1299 = vmatpush1.bf16.msra.mxu0 0
  %1300 = vmatprep.subr.bf16.mxu0 0
  %1301 = vmatpush1.bf16.msra.mxu0 0
  %1302 = vmatprep.subr.bf16.mxu0 %v916
  %1303 = vmatpush1.bf16.msra.mxu0 %v915
  %1304 = vmatprep.subr.bf16.mxu0 %v852
  %1305 = vmatpush1.bf16.msra.mxu0 %v851
  %1306 = vmatprep.subr.bf16.mxu0 %v788
  %1307 = vmatpush1.bf16.msra.mxu0 %v787
  %1308 = vmatprep.subr.bf16.mxu0 0
  %1309 = vmatpush2.bf16.msra.mxu0 0
  %1310 = vmatprep.subr.bf16.mxu0 0
  %1311 = vmatpush2.bf16.msra.mxu0 0
  %1312 = vmatprep.subr.bf16.mxu0 0
  %1313 = vmatpush2.bf16.msra.mxu0 0
  %1314 = vmatprep.subr.bf16.mxu0 0
  %1315 = vmatpush2.bf16.msra.mxu0 0
  %1316 = vmatprep.subr.bf16.mxu0 0
  %1317 = vmatpush2.bf16.msra.mxu0 0
  %1318 = vmatprep.subr.bf16.mxu0 0
  %1319 = vmatpush2.bf16.msra.mxu0 0
  %1320 = vmatprep.subr.bf16.mxu0 0
  %1321 = vmatpush2.bf16.msra.mxu0 0
  %1322 = vmatprep.subr.bf16.mxu0 0
  %1323 = vmatpush2.bf16.msra.mxu0 0
  %1324 = vmatprep.mubr.bf16.mxu0 0
  %1325 = vmatmul.mubr.bf16.gmra.mxu0 %v1167
  %v1326 = vpop.f32.mrf.mxu0
  %v1327 = vadd.f32 0.0, %v1326
  %v1328 = vpop.f32.mrf.mxu0
  %v1329 = vadd.f32 0.0, %v1328
  %v1330 = vpop.f32.mrf.mxu0
  %v1331 = vpop.f32.mrf.mxu0
  %1332 = vdwg.mxu0
  %1333 = vmatprep.subr.bf16.mxu0 0
  %1334 = vmatpush1.bf16.msra.mxu0 0
  %1335 = vmatprep.subr.bf16.mxu0 0
  %1336 = vmatpush1.bf16.msra.mxu0 0
  %1337 = vmatprep.subr.bf16.mxu0 0
  %1338 = vmatpush1.bf16.msra.mxu0 0
  %1339 = vmatprep.subr.bf16.mxu0 0
  %1340 = vmatpush1.bf16.msra.mxu0 0
  %1341 = vmatprep.subr.bf16.mxu0 0
  %1342 = vmatpush1.bf16.msra.mxu0 0
  %1343 = vmatprep.subr.bf16.mxu0 %v918
  %1344 = vmatpush1.bf16.msra.mxu0 %v917
  %1345 = vmatprep.subr.bf16.mxu0 %v854
  %1346 = vmatpush1.bf16.msra.mxu0 %v853
  %1347 = vmatprep.subr.bf16.mxu0 %v790
  %1348 = vmatpush1.bf16.msra.mxu0 %v789
  %1349 = vmatprep.subr.bf16.mxu0 0
  %1350 = vmatpush2.bf16.msra.mxu0 0
  %1351 = vmatprep.subr.bf16.mxu0 0
  %1352 = vmatpush2.bf16.msra.mxu0 0
  %1353 = vmatprep.subr.bf16.mxu0 0
  %1354 = vmatpush2.bf16.msra.mxu0 0
  %1355 = vmatprep.subr.bf16.mxu0 0
  %1356 = vmatpush2.bf16.msra.mxu0 0
  %1357 = vmatprep.subr.bf16.mxu0 0
  %1358 = vmatpush2.bf16.msra.mxu0 0
  %1359 = vmatprep.subr.bf16.mxu0 0
  %1360 = vmatpush2.bf16.msra.mxu0 0
  %1361 = vmatprep.subr.bf16.mxu0 0
  %1362 = vmatpush2.bf16.msra.mxu0 0
  %1363 = vmatprep.subr.bf16.mxu0 0
  %1364 = vmatpush2.bf16.msra.mxu0 0
  %1365 = vmatprep.mubr.bf16.mxu0 0
  %1366 = vmatmul.mubr.bf16.gmra.mxu0 %v1167
  %v1367 = vpop.f32.mrf.mxu0
  %v1368 = vadd.f32 0.0, %v1367
  %v1369 = vpop.f32.mrf.mxu0
  %v1370 = vadd.f32 0.0, %v1369
  %v1371 = vpop.f32.mrf.mxu0
  %v1372 = vpop.f32.mrf.mxu0
  %1373 = vdwg.mxu0
  %1374 = vmatprep.subr.bf16.mxu0 0
  %1375 = vmatpush1.bf16.msra.mxu0 0
  %1376 = vmatprep.subr.bf16.mxu0 0
  %1377 = vmatpush1.bf16.msra.mxu0 0
  %1378 = vmatprep.subr.bf16.mxu0 0
  %1379 = vmatpush1.bf16.msra.mxu0 0
  %1380 = vmatprep.subr.bf16.mxu0 0
  %1381 = vmatpush1.bf16.msra.mxu0 0
  %1382 = vmatprep.subr.bf16.mxu0 0
  %1383 = vmatpush1.bf16.msra.mxu0 0
  %1384 = vmatprep.subr.bf16.mxu0 %v920
  %1385 = vmatpush1.bf16.msra.mxu0 %v919
  %1386 = vmatprep.subr.bf16.mxu0 %v856
  %1387 = vmatpush1.bf16.msra.mxu0 %v855
  %1388 = vmatprep.subr.bf16.mxu0 %v792
  %1389 = vmatpush1.bf16.msra.mxu0 %v791
  %1390 = vmatprep.subr.bf16.mxu0 0
  %1391 = vmatpush2.bf16.msra.mxu0 0
  %1392 = vmatprep.subr.bf16.mxu0 0
  %1393 = vmatpush2.bf16.msra.mxu0 0
  %1394 = vmatprep.subr.bf16.mxu0 0
  %1395 = vmatpush2.bf16.msra.mxu0 0
  %1396 = vmatprep.subr.bf16.mxu0 0
  %1397 = vmatpush2.bf16.msra.mxu0 0
  %1398 = vmatprep.subr.bf16.mxu0 0
  %1399 = vmatpush2.bf16.msra.mxu0 0
  %1400 = vmatprep.subr.bf16.mxu0 0
  %1401 = vmatpush2.bf16.msra.mxu0 0
  %1402 = vmatprep.subr.bf16.mxu0 0
  %1403 = vmatpush2.bf16.msra.mxu0 0
  %1404 = vmatprep.subr.bf16.mxu0 0
  %1405 = vmatpush2.bf16.msra.mxu0 0
  %1406 = vmatprep.mubr.bf16.mxu0 0
  %1407 = vmatmul.mubr.bf16.gmra.mxu0 %v1167
  %v1408 = vpop.f32.mrf.mxu0
  %v1409 = vadd.f32 0.0, %v1408
  %v1410 = vpop.f32.mrf.mxu0
  %v1411 = vadd.f32 0.0, %v1410
  %v1412 = vpop.f32.mrf.mxu0
  %v1413 = vpop.f32.mrf.mxu0
  %1414 = vdwg.mxu0
  %1415 = vmatprep.subr.bf16.mxu0 0
  %1416 = vmatpush1.bf16.msra.mxu0 0
  %1417 = vmatprep.subr.bf16.mxu0 0
  %1418 = vmatpush1.bf16.msra.mxu0 0
  %1419 = vmatprep.subr.bf16.mxu0 0
  %1420 = vmatpush1.bf16.msra.mxu0 0
  %1421 = vmatprep.subr.bf16.mxu0 0
  %1422 = vmatpush1.bf16.msra.mxu0 0
  %1423 = vmatprep.subr.bf16.mxu0 0
  %1424 = vmatpush1.bf16.msra.mxu0 0
  %1425 = vmatprep.subr.bf16.mxu0 %v922
  %1426 = vmatpush1.bf16.msra.mxu0 %v921
  %1427 = vmatprep.subr.bf16.mxu0 %v858
  %1428 = vmatpush1.bf16.msra.mxu0 %v857
  %1429 = vmatprep.subr.bf16.mxu0 %v794
  %1430 = vmatpush1.bf16.msra.mxu0 %v793
  %1431 = vmatprep.subr.bf16.mxu0 0
  %1432 = vmatpush2.bf16.msra.mxu0 0
  %1433 = vmatprep.subr.bf16.mxu0 0
  %1434 = vmatpush2.bf16.msra.mxu0 0
  %1435 = vmatprep.subr.bf16.mxu0 0
  %1436 = vmatpush2.bf16.msra.mxu0 0
  %1437 = vmatprep.subr.bf16.mxu0 0
  %1438 = vmatpush2.bf16.msra.mxu0 0
  %1439 = vmatprep.subr.bf16.mxu0 0
  %1440 = vmatpush2.bf16.msra.mxu0 0
  %1441 = vmatprep.subr.bf16.mxu0 0
  %1442 = vmatpush2.bf16.msra.mxu0 0
  %1443 = vmatprep.subr.bf16.mxu0 0
  %1444 = vmatpush2.bf16.msra.mxu0 0
  %1445 = vmatprep.subr.bf16.mxu0 0
  %1446 = vmatpush2.bf16.msra.mxu0 0
  %1447 = vmatprep.mubr.bf16.mxu0 0
  %1448 = vmatmul.mubr.bf16.gmra.mxu0 %v1167
  %v1449 = vpop.f32.mrf.mxu0
  %v1450 = vadd.f32 0.0, %v1449
  %v1451 = vpop.f32.mrf.mxu0
  %v1452 = vadd.f32 0.0, %v1451
  %v1453 = vpop.f32.mrf.mxu0
  %v1454 = vpop.f32.mrf.mxu0
  %1455 = vdwg.mxu0
  %1456 = vmatprep.subr.bf16.mxu0 0
  %1457 = vmatpush1.bf16.msra.mxu0 0
  %1458 = vmatprep.subr.bf16.mxu0 0
  %1459 = vmatpush1.bf16.msra.mxu0 0
  %1460 = vmatprep.subr.bf16.mxu0 0
  %1461 = vmatpush1.bf16.msra.mxu0 0
  %1462 = vmatprep.subr.bf16.mxu0 0
  %1463 = vmatpush1.bf16.msra.mxu0 0
  %1464 = vmatprep.subr.bf16.mxu0 0
  %1465 = vmatpush1.bf16.msra.mxu0 0
  %1466 = vmatprep.subr.bf16.mxu0 %v924
  %1467 = vmatpush1.bf16.msra.mxu0 %v923
  %1468 = vmatprep.subr.bf16.mxu0 %v860
  %1469 = vmatpush1.bf16.msra.mxu0 %v859
  %1470 = vmatprep.subr.bf16.mxu0 %v796
  %1471 = vmatpush1.bf16.msra.mxu0 %v795
  %1472 = vmatprep.subr.bf16.mxu0 0
  %1473 = vmatpush2.bf16.msra.mxu0 0
  %1474 = vmatprep.subr.bf16.mxu0 0
  %1475 = vmatpush2.bf16.msra.mxu0 0
  %1476 = vmatprep.subr.bf16.mxu0 0
  %1477 = vmatpush2.bf16.msra.mxu0 0
  %1478 = vmatprep.subr.bf16.mxu0 0
  %1479 = vmatpush2.bf16.msra.mxu0 0
  %1480 = vmatprep.subr.bf16.mxu0 0
  %1481 = vmatpush2.bf16.msra.mxu0 0
  %1482 = vmatprep.subr.bf16.mxu0 0
  %1483 = vmatpush2.bf16.msra.mxu0 0
  %1484 = vmatprep.subr.bf16.mxu0 0
  %1485 = vmatpush2.bf16.msra.mxu0 0
  %1486 = vmatprep.subr.bf16.mxu0 0
  %1487 = vmatpush2.bf16.msra.mxu0 0
  %1488 = vmatprep.mubr.bf16.mxu0 0
  %1489 = vmatmul.mubr.bf16.gmra.mxu0 %v1167
  %v1490 = vpop.f32.mrf.mxu0
  %v1491 = vadd.f32 0.0, %v1490
  %v1492 = vpop.f32.mrf.mxu0
  %v1493 = vadd.f32 0.0, %v1492
  %v1494 = vpop.f32.mrf.mxu0
  %v1495 = vpop.f32.mrf.mxu0
  %1496 = vdwg.mxu0
  %1497 = vmatprep.subr.bf16.mxu0 0
  %1498 = vmatpush1.bf16.msra.mxu0 0
  %1499 = vmatprep.subr.bf16.mxu0 0
  %1500 = vmatpush1.bf16.msra.mxu0 0
  %1501 = vmatprep.subr.bf16.mxu0 0
  %1502 = vmatpush1.bf16.msra.mxu0 0
  %1503 = vmatprep.subr.bf16.mxu0 0
  %1504 = vmatpush1.bf16.msra.mxu0 0
  %1505 = vmatprep.subr.bf16.mxu0 0
  %1506 = vmatpush1.bf16.msra.mxu0 0
  %1507 = vmatprep.subr.bf16.mxu0 %v926
  %1508 = vmatpush1.bf16.msra.mxu0 %v925
  %1509 = vmatprep.subr.bf16.mxu0 %v862
  %1510 = vmatpush1.bf16.msra.mxu0 %v861
  %1511 = vmatprep.subr.bf16.mxu0 %v798
  %1512 = vmatpush1.bf16.msra.mxu0 %v797
  %1513 = vmatprep.subr.bf16.mxu0 0
  %1514 = vmatpush2.bf16.msra.mxu0 0
  %1515 = vmatprep.subr.bf16.mxu0 0
  %1516 = vmatpush2.bf16.msra.mxu0 0
  %1517 = vmatprep.subr.bf16.mxu0 0
  %1518 = vmatpush2.bf16.msra.mxu0 0
  %1519 = vmatprep.subr.bf16.mxu0 0
  %1520 = vmatpush2.bf16.msra.mxu0 0
  %1521 = vmatprep.subr.bf16.mxu0 0
  %1522 = vmatpush2.bf16.msra.mxu0 0
  %1523 = vmatprep.subr.bf16.mxu0 0
  %1524 = vmatpush2.bf16.msra.mxu0 0
  %1525 = vmatprep.subr.bf16.mxu0 0
  %1526 = vmatpush2.bf16.msra.mxu0 0
  %1527 = vmatprep.subr.bf16.mxu0 0
  %1528 = vmatpush2.bf16.msra.mxu0 0
  %1529 = vmatprep.mubr.bf16.mxu0 0
  %1530 = vmatmul.mubr.bf16.gmra.mxu0 %v1167
  %v1531 = vpop.f32.mrf.mxu0
  %v1532 = vadd.f32 0.0, %v1531
  %v1533 = vpop.f32.mrf.mxu0
  %v1534 = vadd.f32 0.0, %v1533
  %v1535 = vpop.f32.mrf.mxu0
  %v1536 = vpop.f32.mrf.mxu0
  %1537 = vdwg.mxu0
  %1538 = vmatprep.subr.bf16.mxu0 0
  %1539 = vmatpush1.bf16.msra.mxu0 0
  %1540 = vmatprep.subr.bf16.mxu0 0
  %1541 = vmatpush1.bf16.msra.mxu0 0
  %1542 = vmatprep.subr.bf16.mxu0 0
  %1543 = vmatpush1.bf16.msra.mxu0 0
  %1544 = vmatprep.subr.bf16.mxu0 0
  %1545 = vmatpush1.bf16.msra.mxu0 0
  %1546 = vmatprep.subr.bf16.mxu0 0
  %1547 = vmatpush1.bf16.msra.mxu0 0
  %1548 = vmatprep.subr.bf16.mxu0 %v928
  %1549 = vmatpush1.bf16.msra.mxu0 %v927
  %1550 = vmatprep.subr.bf16.mxu0 %v864
  %1551 = vmatpush1.bf16.msra.mxu0 %v863
  %1552 = vmatprep.subr.bf16.mxu0 %v800
  %1553 = vmatpush1.bf16.msra.mxu0 %v799
  %1554 = vmatprep.subr.bf16.mxu0 0
  %1555 = vmatpush2.bf16.msra.mxu0 0
  %1556 = vmatprep.subr.bf16.mxu0 0
  %1557 = vmatpush2.bf16.msra.mxu0 0
  %1558 = vmatprep.subr.bf16.mxu0 0
  %1559 = vmatpush2.bf16.msra.mxu0 0
  %1560 = vmatprep.subr.bf16.mxu0 0
  %1561 = vmatpush2.bf16.msra.mxu0 0
  %1562 = vmatprep.subr.bf16.mxu0 0
  %1563 = vmatpush2.bf16.msra.mxu0 0
  %1564 = vmatprep.subr.bf16.mxu0 0
  %1565 = vmatpush2.bf16.msra.mxu0 0
  %1566 = vmatprep.subr.bf16.mxu0 0
  %1567 = vmatpush2.bf16.msra.mxu0 0
  %1568 = vmatprep.subr.bf16.mxu0 0
  %1569 = vmatpush2.bf16.msra.mxu0 0
  %1570 = vmatprep.mubr.bf16.mxu0 0
  %1571 = vmatmul.mubr.bf16.gmra.mxu0 %v1167
  %v1572 = vpop.f32.mrf.mxu0
  %v1573 = vadd.f32 0.0, %v1572
  %v1574 = vpop.f32.mrf.mxu0
  %v1575 = vadd.f32 0.0, %v1574
  %v1576 = vpop.f32.mrf.mxu0
  %v1577 = vpop.f32.mrf.mxu0
  %1578 = vdwg.mxu0
  %1579 = vmatprep.subr.bf16.mxu0 0
  %1580 = vmatpush1.bf16.msra.mxu0 0
  %1581 = vmatprep.subr.bf16.mxu0 0
  %1582 = vmatpush1.bf16.msra.mxu0 0
  %1583 = vmatprep.subr.bf16.mxu0 0
  %1584 = vmatpush1.bf16.msra.mxu0 0
  %1585 = vmatprep.subr.bf16.mxu0 0
  %1586 = vmatpush1.bf16.msra.mxu0 0
  %1587 = vmatprep.subr.bf16.mxu0 0
  %1588 = vmatpush1.bf16.msra.mxu0 0
  %1589 = vmatprep.subr.bf16.mxu0 %v930
  %1590 = vmatpush1.bf16.msra.mxu0 %v929
  %1591 = vmatprep.subr.bf16.mxu0 %v866
  %1592 = vmatpush1.bf16.msra.mxu0 %v865
  %1593 = vmatprep.subr.bf16.mxu0 %v802
  %1594 = vmatpush1.bf16.msra.mxu0 %v801
  %1595 = vmatprep.subr.bf16.mxu0 0
  %1596 = vmatpush2.bf16.msra.mxu0 0
  %1597 = vmatprep.subr.bf16.mxu0 0
  %1598 = vmatpush2.bf16.msra.mxu0 0
  %1599 = vmatprep.subr.bf16.mxu0 0
  %1600 = vmatpush2.bf16.msra.mxu0 0
  %1601 = vmatprep.subr.bf16.mxu0 0
  %1602 = vmatpush2.bf16.msra.mxu0 0
  %1603 = vmatprep.subr.bf16.mxu0 0
  %1604 = vmatpush2.bf16.msra.mxu0 0
  %1605 = vmatprep.subr.bf16.mxu0 0
  %1606 = vmatpush2.bf16.msra.mxu0 0
  %1607 = vmatprep.subr.bf16.mxu0 0
  %1608 = vmatpush2.bf16.msra.mxu0 0
  %1609 = vmatprep.subr.bf16.mxu0 0
  %1610 = vmatpush2.bf16.msra.mxu0 0
  %1611 = vmatprep.mubr.bf16.mxu0 0
  %1612 = vmatmul.mubr.bf16.gmra.mxu0 %v1167
  %v1613 = vpop.f32.mrf.mxu0
  %v1614 = vadd.f32 0.0, %v1613
  %v1615 = vpop.f32.mrf.mxu0
  %v1616 = vadd.f32 0.0, %v1615
  %v1617 = vpop.f32.mrf.mxu0
  %v1618 = vpop.f32.mrf.mxu0
  %1619 = vdwg.mxu0
  %1620 = vmatprep.subr.bf16.mxu0 0
  %1621 = vmatpush1.bf16.msra.mxu0 0
  %1622 = vmatprep.subr.bf16.mxu0 0
  %1623 = vmatpush1.bf16.msra.mxu0 0
  %1624 = vmatprep.subr.bf16.mxu0 0
  %1625 = vmatpush1.bf16.msra.mxu0 0
  %1626 = vmatprep.subr.bf16.mxu0 0
  %1627 = vmatpush1.bf16.msra.mxu0 0
  %1628 = vmatprep.subr.bf16.mxu0 0
  %1629 = vmatpush1.bf16.msra.mxu0 0
  %1630 = vmatprep.subr.bf16.mxu0 %v932
  %1631 = vmatpush1.bf16.msra.mxu0 %v931
  %1632 = vmatprep.subr.bf16.mxu0 %v868
  %1633 = vmatpush1.bf16.msra.mxu0 %v867
  %1634 = vmatprep.subr.bf16.mxu0 %v804
  %1635 = vmatpush1.bf16.msra.mxu0 %v803
  %1636 = vmatprep.subr.bf16.mxu0 0
  %1637 = vmatpush2.bf16.msra.mxu0 0
  %1638 = vmatprep.subr.bf16.mxu0 0
  %1639 = vmatpush2.bf16.msra.mxu0 0
  %1640 = vmatprep.subr.bf16.mxu0 0
  %1641 = vmatpush2.bf16.msra.mxu0 0
  %1642 = vmatprep.subr.bf16.mxu0 0
  %1643 = vmatpush2.bf16.msra.mxu0 0
  %1644 = vmatprep.subr.bf16.mxu0 0
  %1645 = vmatpush2.bf16.msra.mxu0 0
  %1646 = vmatprep.subr.bf16.mxu0 0
  %1647 = vmatpush2.bf16.msra.mxu0 0
  %1648 = vmatprep.subr.bf16.mxu0 0
  %1649 = vmatpush2.bf16.msra.mxu0 0
  %1650 = vmatprep.subr.bf16.mxu0 0
  %1651 = vmatpush2.bf16.msra.mxu0 0
  %1652 = vmatprep.mubr.bf16.mxu0 0
  %1653 = vmatmul.mubr.bf16.gmra.mxu0 %v1167
  %v1654 = vpop.f32.mrf.mxu0
  %v1655 = vadd.f32 0.0, %v1654
  %v1656 = vpop.f32.mrf.mxu0
  %v1657 = vadd.f32 0.0, %v1656
  %v1658 = vpop.f32.mrf.mxu0
  %v1659 = vpop.f32.mrf.mxu0
  %1660 = vdwg.mxu0
  %1661 = vmatprep.subr.bf16.mxu0 0
  %1662 = vmatpush1.bf16.msra.mxu0 0
  %1663 = vmatprep.subr.bf16.mxu0 0
  %1664 = vmatpush1.bf16.msra.mxu0 0
  %1665 = vmatprep.subr.bf16.mxu0 0
  %1666 = vmatpush1.bf16.msra.mxu0 0
  %1667 = vmatprep.subr.bf16.mxu0 0
  %1668 = vmatpush1.bf16.msra.mxu0 0
  %1669 = vmatprep.subr.bf16.mxu0 0
  %1670 = vmatpush1.bf16.msra.mxu0 0
  %1671 = vmatprep.subr.bf16.mxu0 %v934
  %1672 = vmatpush1.bf16.msra.mxu0 %v933
  %1673 = vmatprep.subr.bf16.mxu0 %v870
  %1674 = vmatpush1.bf16.msra.mxu0 %v869
  %1675 = vmatprep.subr.bf16.mxu0 %v806
  %1676 = vmatpush1.bf16.msra.mxu0 %v805
  %1677 = vmatprep.subr.bf16.mxu0 0
  %1678 = vmatpush2.bf16.msra.mxu0 0
  %1679 = vmatprep.subr.bf16.mxu0 0
  %1680 = vmatpush2.bf16.msra.mxu0 0
  %1681 = vmatprep.subr.bf16.mxu0 0
  %1682 = vmatpush2.bf16.msra.mxu0 0
  %1683 = vmatprep.subr.bf16.mxu0 0
  %1684 = vmatpush2.bf16.msra.mxu0 0
  %1685 = vmatprep.subr.bf16.mxu0 0
  %1686 = vmatpush2.bf16.msra.mxu0 0
  %1687 = vmatprep.subr.bf16.mxu0 0
  %1688 = vmatpush2.bf16.msra.mxu0 0
  %1689 = vmatprep.subr.bf16.mxu0 0
  %1690 = vmatpush2.bf16.msra.mxu0 0
  %1691 = vmatprep.subr.bf16.mxu0 0
  %1692 = vmatpush2.bf16.msra.mxu0 0
  %1693 = vmatprep.mubr.bf16.mxu0 0
  %1694 = vmatmul.mubr.bf16.gmra.mxu0 %v1167
  %v1695 = vpop.f32.mrf.mxu0
  %v1696 = vadd.f32 0.0, %v1695
  %v1697 = vpop.f32.mrf.mxu0
  %v1698 = vadd.f32 0.0, %v1697
  %v1699 = vpop.f32.mrf.mxu0
  %v1700 = vpop.f32.mrf.mxu0
  %1701 = vdwg.mxu0
  %1702 = vmatprep.subr.bf16.mxu0 0
  %1703 = vmatpush1.bf16.msra.mxu0 0
  %1704 = vmatprep.subr.bf16.mxu0 0
  %1705 = vmatpush1.bf16.msra.mxu0 0
  %1706 = vmatprep.subr.bf16.mxu0 0
  %1707 = vmatpush1.bf16.msra.mxu0 0
  %1708 = vmatprep.subr.bf16.mxu0 0
  %1709 = vmatpush1.bf16.msra.mxu0 0
  %1710 = vmatprep.subr.bf16.mxu0 0
  %1711 = vmatpush1.bf16.msra.mxu0 0
  %1712 = vmatprep.subr.bf16.mxu0 %v936
  %1713 = vmatpush1.bf16.msra.mxu0 %v935
  %1714 = vmatprep.subr.bf16.mxu0 %v872
  %1715 = vmatpush1.bf16.msra.mxu0 %v871
  %1716 = vmatprep.subr.bf16.mxu0 %v808
  %1717 = vmatpush1.bf16.msra.mxu0 %v807
  %1718 = vmatprep.subr.bf16.mxu0 0
  %1719 = vmatpush2.bf16.msra.mxu0 0
  %1720 = vmatprep.subr.bf16.mxu0 0
  %1721 = vmatpush2.bf16.msra.mxu0 0
  %1722 = vmatprep.subr.bf16.mxu0 0
  %1723 = vmatpush2.bf16.msra.mxu0 0
  %1724 = vmatprep.subr.bf16.mxu0 0
  %1725 = vmatpush2.bf16.msra.mxu0 0
  %1726 = vmatprep.subr.bf16.mxu0 0
  %1727 = vmatpush2.bf16.msra.mxu0 0
  %1728 = vmatprep.subr.bf16.mxu0 0
  %1729 = vmatpush2.bf16.msra.mxu0 0
  %1730 = vmatprep.subr.bf16.mxu0 0
  %1731 = vmatpush2.bf16.msra.mxu0 0
  %1732 = vmatprep.subr.bf16.mxu0 0
  %1733 = vmatpush2.bf16.msra.mxu0 0
  %1734 = vmatprep.mubr.bf16.mxu0 0
  %1735 = vmatmul.mubr.bf16.gmra.mxu0 %v1167
  %v1736 = vpop.f32.mrf.mxu0
  %v1737 = vadd.f32 0.0, %v1736
  %v1738 = vpop.f32.mrf.mxu0
  %v1739 = vadd.f32 0.0, %v1738
  %v1740 = vpop.f32.mrf.mxu0
  %v1741 = vpop.f32.mrf.mxu0
  %1742 = vdwg.mxu0
  %1743 = vmatprep.subr.bf16.mxu0 0
  %1744 = vmatpush1.bf16.msra.mxu0 0
  %1745 = vmatprep.subr.bf16.mxu0 0
  %1746 = vmatpush1.bf16.msra.mxu0 0
  %1747 = vmatprep.subr.bf16.mxu0 0
  %1748 = vmatpush1.bf16.msra.mxu0 0
  %1749 = vmatprep.subr.bf16.mxu0 0
  %1750 = vmatpush1.bf16.msra.mxu0 0
  %1751 = vmatprep.subr.bf16.mxu0 0
  %1752 = vmatpush1.bf16.msra.mxu0 0
  %1753 = vmatprep.subr.bf16.mxu0 %v938
  %1754 = vmatpush1.bf16.msra.mxu0 %v937
  %1755 = vmatprep.subr.bf16.mxu0 %v874
  %1756 = vmatpush1.bf16.msra.mxu0 %v873
  %1757 = vmatprep.subr.bf16.mxu0 %v810
  %1758 = vmatpush1.bf16.msra.mxu0 %v809
  %1759 = vmatprep.subr.bf16.mxu0 0
  %1760 = vmatpush2.bf16.msra.mxu0 0
  %1761 = vmatprep.subr.bf16.mxu0 0
  %1762 = vmatpush2.bf16.msra.mxu0 0
  %1763 = vmatprep.subr.bf16.mxu0 0
  %1764 = vmatpush2.bf16.msra.mxu0 0
  %1765 = vmatprep.subr.bf16.mxu0 0
  %1766 = vmatpush2.bf16.msra.mxu0 0
  %1767 = vmatprep.subr.bf16.mxu0 0
  %1768 = vmatpush2.bf16.msra.mxu0 0
  %1769 = vmatprep.subr.bf16.mxu0 0
  %1770 = vmatpush2.bf16.msra.mxu0 0
  %1771 = vmatprep.subr.bf16.mxu0 0
  %1772 = vmatpush2.bf16.msra.mxu0 0
  %1773 = vmatprep.subr.bf16.mxu0 0
  %1774 = vmatpush2.bf16.msra.mxu0 0
  %1775 = vmatprep.mubr.bf16.mxu0 0
  %1776 = vmatmul.mubr.bf16.gmra.mxu0 %v1167
  %v1777 = vpop.f32.mrf.mxu0
  %v1778 = vadd.f32 0.0, %v1777
  %v1779 = vpop.f32.mrf.mxu0
  %v1780 = vadd.f32 0.0, %v1779
  %v1781 = vpop.f32.mrf.mxu0
  %v1782 = vpop.f32.mrf.mxu0
  %1783 = vdwg.mxu0
  %1784 = vmatprep.subr.bf16.mxu0 0
  %1785 = vmatpush1.bf16.msra.mxu0 0
  %1786 = vmatprep.subr.bf16.mxu0 0
  %1787 = vmatpush1.bf16.msra.mxu0 0
  %1788 = vmatprep.subr.bf16.mxu0 0
  %1789 = vmatpush1.bf16.msra.mxu0 0
  %1790 = vmatprep.subr.bf16.mxu0 0
  %1791 = vmatpush1.bf16.msra.mxu0 0
  %1792 = vmatprep.subr.bf16.mxu0 0
  %1793 = vmatpush1.bf16.msra.mxu0 0
  %1794 = vmatprep.subr.bf16.mxu0 %v940
  %1795 = vmatpush1.bf16.msra.mxu0 %v939
  %1796 = vmatprep.subr.bf16.mxu0 %v876
  %1797 = vmatpush1.bf16.msra.mxu0 %v875
  %1798 = vmatprep.subr.bf16.mxu0 %v812
  %1799 = vmatpush1.bf16.msra.mxu0 %v811
  %1800 = vmatprep.subr.bf16.mxu0 0
  %1801 = vmatpush2.bf16.msra.mxu0 0
  %1802 = vmatprep.subr.bf16.mxu0 0
  %1803 = vmatpush2.bf16.msra.mxu0 0
  %1804 = vmatprep.subr.bf16.mxu0 0
  %1805 = vmatpush2.bf16.msra.mxu0 0
  %1806 = vmatprep.subr.bf16.mxu0 0
  %1807 = vmatpush2.bf16.msra.mxu0 0
  %1808 = vmatprep.subr.bf16.mxu0 0
  %1809 = vmatpush2.bf16.msra.mxu0 0
  %1810 = vmatprep.subr.bf16.mxu0 0
  %1811 = vmatpush2.bf16.msra.mxu0 0
  %1812 = vmatprep.subr.bf16.mxu0 0
  %1813 = vmatpush2.bf16.msra.mxu0 0
  %1814 = vmatprep.subr.bf16.mxu0 0
  %1815 = vmatpush2.bf16.msra.mxu0 0
  %1816 = vmatprep.mubr.bf16.mxu0 0
  %1817 = vmatmul.mubr.bf16.gmra.mxu0 %v1167
  %v1818 = vpop.f32.mrf.mxu0
  %v1819 = vadd.f32 0.0, %v1818
  %v1820 = vpop.f32.mrf.mxu0
  %v1821 = vadd.f32 0.0, %v1820
  %v1822 = vpop.f32.mrf.mxu0
  %v1823 = vpop.f32.mrf.mxu0
  %1824 = vdwg.mxu0
  %1825 = vmatprep.subr.bf16.mxu0 0
  %1826 = vmatpush1.bf16.msra.mxu0 0
  %1827 = vmatprep.subr.bf16.mxu0 0
  %1828 = vmatpush1.bf16.msra.mxu0 0
  %1829 = vmatprep.subr.bf16.mxu0 0
  %1830 = vmatpush1.bf16.msra.mxu0 0
  %1831 = vmatprep.subr.bf16.mxu0 0
  %1832 = vmatpush1.bf16.msra.mxu0 0
  %1833 = vmatprep.subr.bf16.mxu0 0
  %1834 = vmatpush1.bf16.msra.mxu0 0
  %1835 = vmatprep.subr.bf16.mxu0 %v942
  %1836 = vmatpush1.bf16.msra.mxu0 %v941
  %1837 = vmatprep.subr.bf16.mxu0 %v878
  %1838 = vmatpush1.bf16.msra.mxu0 %v877
  %1839 = vmatprep.subr.bf16.mxu0 %v814
  %1840 = vmatpush1.bf16.msra.mxu0 %v813
  %1841 = vmatprep.subr.bf16.mxu0 0
  %1842 = vmatpush2.bf16.msra.mxu0 0
  %1843 = vmatprep.subr.bf16.mxu0 0
  %1844 = vmatpush2.bf16.msra.mxu0 0
  %1845 = vmatprep.subr.bf16.mxu0 0
  %1846 = vmatpush2.bf16.msra.mxu0 0
  %1847 = vmatprep.subr.bf16.mxu0 0
  %1848 = vmatpush2.bf16.msra.mxu0 0
  %1849 = vmatprep.subr.bf16.mxu0 0
  %1850 = vmatpush2.bf16.msra.mxu0 0
  %1851 = vmatprep.subr.bf16.mxu0 0
  %1852 = vmatpush2.bf16.msra.mxu0 0
  %1853 = vmatprep.subr.bf16.mxu0 0
  %1854 = vmatpush2.bf16.msra.mxu0 0
  %1855 = vmatprep.subr.bf16.mxu0 0
  %1856 = vmatpush2.bf16.msra.mxu0 0
  %1857 = vmatprep.mubr.bf16.mxu0 0
  %1858 = vmatmul.mubr.bf16.gmra.mxu0 %v1167
  %v1859 = vpop.f32.mrf.mxu0
  %v1860 = vadd.f32 0.0, %v1859
  %v1861 = vpop.f32.mrf.mxu0
  %v1862 = vadd.f32 0.0, %v1861
  %v1863 = vpop.f32.mrf.mxu0
  %v1864 = vpop.f32.mrf.mxu0
  %1865 = vdwg.mxu0
  %1866 = vmatprep.subr.bf16.mxu0 0
  %1867 = vmatpush1.bf16.msra.mxu0 0
  %1868 = vmatprep.subr.bf16.mxu0 0
  %1869 = vmatpush1.bf16.msra.mxu0 0
  %1870 = vmatprep.subr.bf16.mxu0 0
  %1871 = vmatpush1.bf16.msra.mxu0 0
  %1872 = vmatprep.subr.bf16.mxu0 0
  %1873 = vmatpush1.bf16.msra.mxu0 0
  %1874 = vmatprep.subr.bf16.mxu0 0
  %1875 = vmatpush1.bf16.msra.mxu0 0
  %1876 = vmatprep.subr.bf16.mxu0 %v944
  %1877 = vmatpush1.bf16.msra.mxu0 %v943
  %1878 = vmatprep.subr.bf16.mxu0 %v880
  %1879 = vmatpush1.bf16.msra.mxu0 %v879
  %1880 = vmatprep.subr.bf16.mxu0 %v816
  %1881 = vmatpush1.bf16.msra.mxu0 %v815
  %1882 = vmatprep.subr.bf16.mxu0 0
  %1883 = vmatpush2.bf16.msra.mxu0 0
  %1884 = vmatprep.subr.bf16.mxu0 0
  %1885 = vmatpush2.bf16.msra.mxu0 0
  %1886 = vmatprep.subr.bf16.mxu0 0
  %1887 = vmatpush2.bf16.msra.mxu0 0
  %1888 = vmatprep.subr.bf16.mxu0 0
  %1889 = vmatpush2.bf16.msra.mxu0 0
  %1890 = vmatprep.subr.bf16.mxu0 0
  %1891 = vmatpush2.bf16.msra.mxu0 0
  %1892 = vmatprep.subr.bf16.mxu0 0
  %1893 = vmatpush2.bf16.msra.mxu0 0
  %1894 = vmatprep.subr.bf16.mxu0 0
  %1895 = vmatpush2.bf16.msra.mxu0 0
  %1896 = vmatprep.subr.bf16.mxu0 0
  %1897 = vmatpush2.bf16.msra.mxu0 0
  %1898 = vmatprep.mubr.bf16.mxu0 0
  %1899 = vmatmul.mubr.bf16.gmra.mxu0 %v1167
  %v1900 = vpop.f32.mrf.mxu0
  %v1901 = vadd.f32 0.0, %v1900
  %v1902 = vpop.f32.mrf.mxu0
  %v1903 = vadd.f32 0.0, %v1902
  %v1904 = vpop.f32.mrf.mxu0
  %v1905 = vpop.f32.mrf.mxu0
  %1906 = vdwg.mxu0
  %1907 = vmatprep.subr.bf16.mxu0 0
  %1908 = vmatpush1.bf16.msra.mxu0 0
  %1909 = vmatprep.subr.bf16.mxu0 0
  %1910 = vmatpush1.bf16.msra.mxu0 0
  %1911 = vmatprep.subr.bf16.mxu0 0
  %1912 = vmatpush1.bf16.msra.mxu0 0
  %1913 = vmatprep.subr.bf16.mxu0 0
  %1914 = vmatpush1.bf16.msra.mxu0 0
  %1915 = vmatprep.subr.bf16.mxu0 0
  %1916 = vmatpush1.bf16.msra.mxu0 0
  %1917 = vmatprep.subr.bf16.mxu0 %v946
  %1918 = vmatpush1.bf16.msra.mxu0 %v945
  %1919 = vmatprep.subr.bf16.mxu0 %v882
  %1920 = vmatpush1.bf16.msra.mxu0 %v881
  %1921 = vmatprep.subr.bf16.mxu0 %v818
  %1922 = vmatpush1.bf16.msra.mxu0 %v817
  %1923 = vmatprep.subr.bf16.mxu0 0
  %1924 = vmatpush2.bf16.msra.mxu0 0
  %1925 = vmatprep.subr.bf16.mxu0 0
  %1926 = vmatpush2.bf16.msra.mxu0 0
  %1927 = vmatprep.subr.bf16.mxu0 0
  %1928 = vmatpush2.bf16.msra.mxu0 0
  %1929 = vmatprep.subr.bf16.mxu0 0
  %1930 = vmatpush2.bf16.msra.mxu0 0
  %1931 = vmatprep.subr.bf16.mxu0 0
  %1932 = vmatpush2.bf16.msra.mxu0 0
  %1933 = vmatprep.subr.bf16.mxu0 0
  %1934 = vmatpush2.bf16.msra.mxu0 0
  %1935 = vmatprep.subr.bf16.mxu0 0
  %1936 = vmatpush2.bf16.msra.mxu0 0
  %1937 = vmatprep.subr.bf16.mxu0 0
  %1938 = vmatpush2.bf16.msra.mxu0 0
  %1939 = vmatprep.mubr.bf16.mxu0 0
  %1940 = vmatmul.mubr.bf16.gmra.mxu0 %v1167
  %v1941 = vpop.f32.mrf.mxu0
  %v1942 = vadd.f32 0.0, %v1941
  %v1943 = vpop.f32.mrf.mxu0
  %v1944 = vadd.f32 0.0, %v1943
  %v1945 = vpop.f32.mrf.mxu0
  %v1946 = vpop.f32.mrf.mxu0
  %1947 = vdwg.mxu0
  %1948 = vmatprep.subr.bf16.mxu0 0
  %1949 = vmatpush1.bf16.msra.mxu0 0
  %1950 = vmatprep.subr.bf16.mxu0 0
  %1951 = vmatpush1.bf16.msra.mxu0 0
  %1952 = vmatprep.subr.bf16.mxu0 0
  %1953 = vmatpush1.bf16.msra.mxu0 0
  %1954 = vmatprep.subr.bf16.mxu0 0
  %1955 = vmatpush1.bf16.msra.mxu0 0
  %1956 = vmatprep.subr.bf16.mxu0 0
  %1957 = vmatpush1.bf16.msra.mxu0 0
  %1958 = vmatprep.subr.bf16.mxu0 %v948
  %1959 = vmatpush1.bf16.msra.mxu0 %v947
  %1960 = vmatprep.subr.bf16.mxu0 %v884
  %1961 = vmatpush1.bf16.msra.mxu0 %v883
  %1962 = vmatprep.subr.bf16.mxu0 %v820
  %1963 = vmatpush1.bf16.msra.mxu0 %v819
  %1964 = vmatprep.subr.bf16.mxu0 0
  %1965 = vmatpush2.bf16.msra.mxu0 0
  %1966 = vmatprep.subr.bf16.mxu0 0
  %1967 = vmatpush2.bf16.msra.mxu0 0
  %1968 = vmatprep.subr.bf16.mxu0 0
  %1969 = vmatpush2.bf16.msra.mxu0 0
  %1970 = vmatprep.subr.bf16.mxu0 0
  %1971 = vmatpush2.bf16.msra.mxu0 0
  %1972 = vmatprep.subr.bf16.mxu0 0
  %1973 = vmatpush2.bf16.msra.mxu0 0
  %1974 = vmatprep.subr.bf16.mxu0 0
  %1975 = vmatpush2.bf16.msra.mxu0 0
  %1976 = vmatprep.subr.bf16.mxu0 0
  %1977 = vmatpush2.bf16.msra.mxu0 0
  %1978 = vmatprep.subr.bf16.mxu0 0
  %1979 = vmatpush2.bf16.msra.mxu0 0
  %1980 = vmatprep.mubr.bf16.mxu0 0
  %1981 = vmatmul.mubr.bf16.gmra.mxu0 %v1167
  %v1982 = vpop.f32.mrf.mxu0
  %v1983 = vadd.f32 0.0, %v1982
  %v1984 = vpop.f32.mrf.mxu0
  %v1985 = vadd.f32 0.0, %v1984
  %v1986 = vpop.f32.mrf.mxu0
  %v1987 = vpop.f32.mrf.mxu0
  %1988 = vdwg.mxu0
  %1989 = vmatprep.subr.bf16.mxu0 0
  %1990 = vmatpush1.bf16.msra.mxu0 0
  %1991 = vmatprep.subr.bf16.mxu0 0
  %1992 = vmatpush1.bf16.msra.mxu0 0
  %1993 = vmatprep.subr.bf16.mxu0 0
  %1994 = vmatpush1.bf16.msra.mxu0 0
  %1995 = vmatprep.subr.bf16.mxu0 0
  %1996 = vmatpush1.bf16.msra.mxu0 0
  %1997 = vmatprep.subr.bf16.mxu0 0
  %1998 = vmatpush1.bf16.msra.mxu0 0
  %1999 = vmatprep.subr.bf16.mxu0 %v950
  %2000 = vmatpush1.bf16.msra.mxu0 %v949
  %2001 = vmatprep.subr.bf16.mxu0 %v886
  %2002 = vmatpush1.bf16.msra.mxu0 %v885
  %2003 = vmatprep.subr.bf16.mxu0 %v822
  %2004 = vmatpush1.bf16.msra.mxu0 %v821
  %2005 = vmatprep.subr.bf16.mxu0 0
  %2006 = vmatpush2.bf16.msra.mxu0 0
  %2007 = vmatprep.subr.bf16.mxu0 0
  %2008 = vmatpush2.bf16.msra.mxu0 0
  %2009 = vmatprep.subr.bf16.mxu0 0
  %2010 = vmatpush2.bf16.msra.mxu0 0
  %2011 = vmatprep.subr.bf16.mxu0 0
  %2012 = vmatpush2.bf16.msra.mxu0 0
  %2013 = vmatprep.subr.bf16.mxu0 0
  %2014 = vmatpush2.bf16.msra.mxu0 0
  %2015 = vmatprep.subr.bf16.mxu0 0
  %2016 = vmatpush2.bf16.msra.mxu0 0
  %2017 = vmatprep.subr.bf16.mxu0 0
  %2018 = vmatpush2.bf16.msra.mxu0 0
  %2019 = vmatprep.subr.bf16.mxu0 0
  %2020 = vmatpush2.bf16.msra.mxu0 0
  %2021 = vmatprep.mubr.bf16.mxu0 0
  %2022 = vmatmul.mubr.bf16.gmra.mxu0 %v1167
  %v2023 = vpop.f32.mrf.mxu0
  %v2024 = vadd.f32 0.0, %v2023
  %v2025 = vpop.f32.mrf.mxu0
  %v2026 = vadd.f32 0.0, %v2025
  %v2027 = vpop.f32.mrf.mxu0
  %v2028 = vpop.f32.mrf.mxu0
  %2029 = vdwg.mxu0
  %2030 = vmatprep.subr.bf16.mxu0 0
  %2031 = vmatpush1.bf16.msra.mxu0 0
  %2032 = vmatprep.subr.bf16.mxu0 0
  %2033 = vmatpush1.bf16.msra.mxu0 0
  %2034 = vmatprep.subr.bf16.mxu0 0
  %2035 = vmatpush1.bf16.msra.mxu0 0
  %2036 = vmatprep.subr.bf16.mxu0 0
  %2037 = vmatpush1.bf16.msra.mxu0 0
  %2038 = vmatprep.subr.bf16.mxu0 0
  %2039 = vmatpush1.bf16.msra.mxu0 0
  %2040 = vmatprep.subr.bf16.mxu0 %v952
  %2041 = vmatpush1.bf16.msra.mxu0 %v951
  %2042 = vmatprep.subr.bf16.mxu0 %v888
  %2043 = vmatpush1.bf16.msra.mxu0 %v887
  %2044 = vmatprep.subr.bf16.mxu0 %v824
  %2045 = vmatpush1.bf16.msra.mxu0 %v823
  %2046 = vmatprep.subr.bf16.mxu0 0
  %2047 = vmatpush2.bf16.msra.mxu0 0
  %2048 = vmatprep.subr.bf16.mxu0 0
  %2049 = vmatpush2.bf16.msra.mxu0 0
  %2050 = vmatprep.subr.bf16.mxu0 0
  %2051 = vmatpush2.bf16.msra.mxu0 0
  %2052 = vmatprep.subr.bf16.mxu0 0
  %2053 = vmatpush2.bf16.msra.mxu0 0
  %2054 = vmatprep.subr.bf16.mxu0 0
  %2055 = vmatpush2.bf16.msra.mxu0 0
  %2056 = vmatprep.subr.bf16.mxu0 0
  %2057 = vmatpush2.bf16.msra.mxu0 0
  %2058 = vmatprep.subr.bf16.mxu0 0
  %2059 = vmatpush2.bf16.msra.mxu0 0
  %2060 = vmatprep.subr.bf16.mxu0 0
  %2061 = vmatpush2.bf16.msra.mxu0 0
  %2062 = vmatprep.mubr.bf16.mxu0 0
  %2063 = vmatmul.mubr.bf16.gmra.mxu0 %v1167
  %v2064 = vpop.f32.mrf.mxu0
  %v2065 = vadd.f32 0.0, %v2064
  %v2066 = vpop.f32.mrf.mxu0
  %v2067 = vadd.f32 0.0, %v2066
  %v2068 = vpop.f32.mrf.mxu0
  %v2069 = vpop.f32.mrf.mxu0
  %2070 = vdwg.mxu0
  %2071 = vmatprep.subr.bf16.mxu0 0
  %2072 = vmatpush1.bf16.msra.mxu0 0
  %2073 = vmatprep.subr.bf16.mxu0 0
  %2074 = vmatpush1.bf16.msra.mxu0 0
  %2075 = vmatprep.subr.bf16.mxu0 0
  %2076 = vmatpush1.bf16.msra.mxu0 0
  %2077 = vmatprep.subr.bf16.mxu0 0
  %2078 = vmatpush1.bf16.msra.mxu0 0
  %2079 = vmatprep.subr.bf16.mxu0 0
  %2080 = vmatpush1.bf16.msra.mxu0 0
  %2081 = vmatprep.subr.bf16.mxu0 %v954
  %2082 = vmatpush1.bf16.msra.mxu0 %v953
  %2083 = vmatprep.subr.bf16.mxu0 %v890
  %2084 = vmatpush1.bf16.msra.mxu0 %v889
  %2085 = vmatprep.subr.bf16.mxu0 %v826
  %2086 = vmatpush1.bf16.msra.mxu0 %v825
  %2087 = vmatprep.subr.bf16.mxu0 0
  %2088 = vmatpush2.bf16.msra.mxu0 0
  %2089 = vmatprep.subr.bf16.mxu0 0
  %2090 = vmatpush2.bf16.msra.mxu0 0
  %2091 = vmatprep.subr.bf16.mxu0 0
  %2092 = vmatpush2.bf16.msra.mxu0 0
  %2093 = vmatprep.subr.bf16.mxu0 0
  %2094 = vmatpush2.bf16.msra.mxu0 0
  %2095 = vmatprep.subr.bf16.mxu0 0
  %2096 = vmatpush2.bf16.msra.mxu0 0
  %2097 = vmatprep.subr.bf16.mxu0 0
  %2098 = vmatpush2.bf16.msra.mxu0 0
  %2099 = vmatprep.subr.bf16.mxu0 0
  %2100 = vmatpush2.bf16.msra.mxu0 0
  %2101 = vmatprep.subr.bf16.mxu0 0
  %2102 = vmatpush2.bf16.msra.mxu0 0
  %2103 = vmatprep.mubr.bf16.mxu0 0
  %2104 = vmatmul.mubr.bf16.gmra.mxu0 %v1167
  %v2105 = vpop.f32.mrf.mxu0
  %v2106 = vadd.f32 0.0, %v2105
  %v2107 = vpop.f32.mrf.mxu0
  %v2108 = vadd.f32 0.0, %v2107
  %v2109 = vpop.f32.mrf.mxu0
  %v2110 = vpop.f32.mrf.mxu0
  %2111 = vdwg.mxu0
  %2112 = vmatprep.subr.bf16.mxu0 0
  %2113 = vmatpush1.bf16.msra.mxu0 0
  %2114 = vmatprep.subr.bf16.mxu0 0
  %2115 = vmatpush1.bf16.msra.mxu0 0
  %2116 = vmatprep.subr.bf16.mxu0 0
  %2117 = vmatpush1.bf16.msra.mxu0 0
  %2118 = vmatprep.subr.bf16.mxu0 0
  %2119 = vmatpush1.bf16.msra.mxu0 0
  %2120 = vmatprep.subr.bf16.mxu0 0
  %2121 = vmatpush1.bf16.msra.mxu0 0
  %2122 = vmatprep.subr.bf16.mxu0 %v956
  %2123 = vmatpush1.bf16.msra.mxu0 %v955
  %2124 = vmatprep.subr.bf16.mxu0 %v892
  %2125 = vmatpush1.bf16.msra.mxu0 %v891
  %2126 = vmatprep.subr.bf16.mxu0 %v828
  %2127 = vmatpush1.bf16.msra.mxu0 %v827
  %2128 = vmatprep.subr.bf16.mxu0 0
  %2129 = vmatpush2.bf16.msra.mxu0 0
  %2130 = vmatprep.subr.bf16.mxu0 0
  %2131 = vmatpush2.bf16.msra.mxu0 0
  %2132 = vmatprep.subr.bf16.mxu0 0
  %2133 = vmatpush2.bf16.msra.mxu0 0
  %2134 = vmatprep.subr.bf16.mxu0 0
  %2135 = vmatpush2.bf16.msra.mxu0 0
  %2136 = vmatprep.subr.bf16.mxu0 0
  %2137 = vmatpush2.bf16.msra.mxu0 0
  %2138 = vmatprep.subr.bf16.mxu0 0
  %2139 = vmatpush2.bf16.msra.mxu0 0
  %2140 = vmatprep.subr.bf16.mxu0 0
  %2141 = vmatpush2.bf16.msra.mxu0 0
  %2142 = vmatprep.subr.bf16.mxu0 0
  %2143 = vmatpush2.bf16.msra.mxu0 0
  %2144 = vmatprep.mubr.bf16.mxu0 0
  %2145 = vmatmul.mubr.bf16.gmra.mxu0 %v1167
  %v2146 = vpop.f32.mrf.mxu0
  %v2147 = vadd.f32 0.0, %v2146
  %v2148 = vpop.f32.mrf.mxu0
  %v2149 = vadd.f32 0.0, %v2148
  %v2150 = vpop.f32.mrf.mxu0
  %v2151 = vpop.f32.mrf.mxu0
  %2152 = vdwg.mxu0
  %2153 = vmatprep.subr.bf16.mxu0 0
  %2154 = vmatpush1.bf16.msra.mxu0 0
  %2155 = vmatprep.subr.bf16.mxu0 0
  %2156 = vmatpush1.bf16.msra.mxu0 0
  %2157 = vmatprep.subr.bf16.mxu0 0
  %2158 = vmatpush1.bf16.msra.mxu0 0
  %2159 = vmatprep.subr.bf16.mxu0 0
  %2160 = vmatpush1.bf16.msra.mxu0 0
  %2161 = vmatprep.subr.bf16.mxu0 0
  %2162 = vmatpush1.bf16.msra.mxu0 0
  %2163 = vmatprep.subr.bf16.mxu0 %v958
  %2164 = vmatpush1.bf16.msra.mxu0 %v957
  %2165 = vmatprep.subr.bf16.mxu0 %v894
  %2166 = vmatpush1.bf16.msra.mxu0 %v893
  %2167 = vmatprep.subr.bf16.mxu0 %v830
  %2168 = vmatpush1.bf16.msra.mxu0 %v829
  %2169 = vmatprep.subr.bf16.mxu0 0
  %2170 = vmatpush2.bf16.msra.mxu0 0
  %2171 = vmatprep.subr.bf16.mxu0 0
  %2172 = vmatpush2.bf16.msra.mxu0 0
  %2173 = vmatprep.subr.bf16.mxu0 0
  %2174 = vmatpush2.bf16.msra.mxu0 0
  %2175 = vmatprep.subr.bf16.mxu0 0
  %2176 = vmatpush2.bf16.msra.mxu0 0
  %2177 = vmatprep.subr.bf16.mxu0 0
  %2178 = vmatpush2.bf16.msra.mxu0 0
  %2179 = vmatprep.subr.bf16.mxu0 0
  %2180 = vmatpush2.bf16.msra.mxu0 0
  %2181 = vmatprep.subr.bf16.mxu0 0
  %2182 = vmatpush2.bf16.msra.mxu0 0
  %2183 = vmatprep.subr.bf16.mxu0 0
  %2184 = vmatpush2.bf16.msra.mxu0 0
  %2185 = vmatprep.mubr.bf16.mxu0 0
  %2186 = vmatmul.mubr.bf16.gmra.mxu0 %v1167
  %v2187 = vpop.f32.mrf.mxu0
  %v2188 = vadd.f32 0.0, %v2187
  %v2189 = vpop.f32.mrf.mxu0
  %v2190 = vadd.f32 0.0, %v2189
  %v2191 = vpop.f32.mrf.mxu0
  %v2192 = vpop.f32.mrf.mxu0
  %2193 = vdwg.mxu0
  %2194 = vmatprep.subr.bf16.mxu0 0
  %2195 = vmatpush1.bf16.msra.mxu0 0
  %2196 = vmatprep.subr.bf16.mxu0 0
  %2197 = vmatpush1.bf16.msra.mxu0 0
  %2198 = vmatprep.subr.bf16.mxu0 0
  %2199 = vmatpush1.bf16.msra.mxu0 0
  %2200 = vmatprep.subr.bf16.mxu0 0
  %2201 = vmatpush1.bf16.msra.mxu0 0
  %2202 = vmatprep.subr.bf16.mxu0 0
  %2203 = vmatpush1.bf16.msra.mxu0 0
  %2204 = vmatprep.subr.bf16.mxu0 %v960
  %2205 = vmatpush1.bf16.msra.mxu0 %v959
  %2206 = vmatprep.subr.bf16.mxu0 %v896
  %2207 = vmatpush1.bf16.msra.mxu0 %v895
  %2208 = vmatprep.subr.bf16.mxu0 %v832
  %2209 = vmatpush1.bf16.msra.mxu0 %v831
  %2210 = vmatprep.subr.bf16.mxu0 0
  %2211 = vmatpush2.bf16.msra.mxu0 0
  %2212 = vmatprep.subr.bf16.mxu0 0
  %2213 = vmatpush2.bf16.msra.mxu0 0
  %2214 = vmatprep.subr.bf16.mxu0 0
  %2215 = vmatpush2.bf16.msra.mxu0 0
  %2216 = vmatprep.subr.bf16.mxu0 0
  %2217 = vmatpush2.bf16.msra.mxu0 0
  %2218 = vmatprep.subr.bf16.mxu0 0
  %2219 = vmatpush2.bf16.msra.mxu0 0
  %2220 = vmatprep.subr.bf16.mxu0 0
  %2221 = vmatpush2.bf16.msra.mxu0 0
  %2222 = vmatprep.subr.bf16.mxu0 0
  %2223 = vmatpush2.bf16.msra.mxu0 0
  %2224 = vmatprep.subr.bf16.mxu0 0
  %2225 = vmatpush2.bf16.msra.mxu0 0
  %2226 = vmatprep.mubr.bf16.mxu0 0
  %2227 = vmatmul.mubr.bf16.gmra.mxu0 %v1167
  %v2228 = vpop.f32.mrf.mxu0
  %v2229 = vadd.f32 0.0, %v2228
  %v2230 = vpop.f32.mrf.mxu0
  %v2231 = vadd.f32 0.0, %v2230
  %v2232 = vpop.f32.mrf.mxu0
  %v2233 = vpop.f32.mrf.mxu0
  %2234 = vdwg.mxu0
  %2235 = vmatprep.subr.bf16.mxu0 0
  %2236 = vmatpush1.bf16.msra.mxu0 0
  %2237 = vmatprep.subr.bf16.mxu0 0
  %2238 = vmatpush1.bf16.msra.mxu0 0
  %2239 = vmatprep.subr.bf16.mxu0 0
  %2240 = vmatpush1.bf16.msra.mxu0 0
  %2241 = vmatprep.subr.bf16.mxu0 0
  %2242 = vmatpush1.bf16.msra.mxu0 0
  %2243 = vmatprep.subr.bf16.mxu0 0
  %2244 = vmatpush1.bf16.msra.mxu0 0
  %2245 = vmatprep.subr.bf16.mxu0 %v962
  %2246 = vmatpush1.bf16.msra.mxu0 %v961
  %2247 = vmatprep.subr.bf16.mxu0 %v898
  %2248 = vmatpush1.bf16.msra.mxu0 %v897
  %2249 = vmatprep.subr.bf16.mxu0 %v834
  %2250 = vmatpush1.bf16.msra.mxu0 %v833
  %2251 = vmatprep.subr.bf16.mxu0 0
  %2252 = vmatpush2.bf16.msra.mxu0 0
  %2253 = vmatprep.subr.bf16.mxu0 0
  %2254 = vmatpush2.bf16.msra.mxu0 0
  %2255 = vmatprep.subr.bf16.mxu0 0
  %2256 = vmatpush2.bf16.msra.mxu0 0
  %2257 = vmatprep.subr.bf16.mxu0 0
  %2258 = vmatpush2.bf16.msra.mxu0 0
  %2259 = vmatprep.subr.bf16.mxu0 0
  %2260 = vmatpush2.bf16.msra.mxu0 0
  %2261 = vmatprep.subr.bf16.mxu0 0
  %2262 = vmatpush2.bf16.msra.mxu0 0
  %2263 = vmatprep.subr.bf16.mxu0 0
  %2264 = vmatpush2.bf16.msra.mxu0 0
  %2265 = vmatprep.subr.bf16.mxu0 0
  %2266 = vmatpush2.bf16.msra.mxu0 0
  %2267 = vmatprep.mubr.bf16.mxu0 0
  %2268 = vmatmul.mubr.bf16.gmra.mxu0 %v1167
  %v2269 = vpop.f32.mrf.mxu0
  %v2270 = vadd.f32 0.0, %v2269
  %v2271 = vpop.f32.mrf.mxu0
  %v2272 = vadd.f32 0.0, %v2271
  %v2273 = vpop.f32.mrf.mxu0
  %v2274 = vpop.f32.mrf.mxu0
  %2275 = vdwg.mxu0
  %2276 = vmatprep.subr.bf16.mxu0 0
  %2277 = vmatpush1.bf16.msra.mxu0 0
  %2278 = vmatprep.subr.bf16.mxu0 0
  %2279 = vmatpush1.bf16.msra.mxu0 0
  %2280 = vmatprep.subr.bf16.mxu0 0
  %2281 = vmatpush1.bf16.msra.mxu0 0
  %2282 = vmatprep.subr.bf16.mxu0 0
  %2283 = vmatpush1.bf16.msra.mxu0 0
  %2284 = vmatprep.subr.bf16.mxu0 0
  %2285 = vmatpush1.bf16.msra.mxu0 0
  %2286 = vmatprep.subr.bf16.mxu0 %v964
  %2287 = vmatpush1.bf16.msra.mxu0 %v963
  %2288 = vmatprep.subr.bf16.mxu0 %v900
  %2289 = vmatpush1.bf16.msra.mxu0 %v899
  %2290 = vmatprep.subr.bf16.mxu0 %v836
  %2291 = vmatpush1.bf16.msra.mxu0 %v835
  %2292 = vmatprep.subr.bf16.mxu0 0
  %2293 = vmatpush2.bf16.msra.mxu0 0
  %2294 = vmatprep.subr.bf16.mxu0 0
  %2295 = vmatpush2.bf16.msra.mxu0 0
  %2296 = vmatprep.subr.bf16.mxu0 0
  %2297 = vmatpush2.bf16.msra.mxu0 0
  %2298 = vmatprep.subr.bf16.mxu0 0
  %2299 = vmatpush2.bf16.msra.mxu0 0
  %2300 = vmatprep.subr.bf16.mxu0 0
  %2301 = vmatpush2.bf16.msra.mxu0 0
  %2302 = vmatprep.subr.bf16.mxu0 0
  %2303 = vmatpush2.bf16.msra.mxu0 0
  %2304 = vmatprep.subr.bf16.mxu0 0
  %2305 = vmatpush2.bf16.msra.mxu0 0
  %2306 = vmatprep.subr.bf16.mxu0 0
  %2307 = vmatpush2.bf16.msra.mxu0 0
  %2308 = vmatprep.mubr.bf16.mxu0 0
  %2309 = vmatmul.mubr.bf16.gmra.mxu0 %v1167
  %v2310 = vpop.f32.mrf.mxu0
  %v2311 = vadd.f32 0.0, %v2310
  %v2312 = vpop.f32.mrf.mxu0
  %v2313 = vadd.f32 0.0, %v2312
  %v2314 = vpop.f32.mrf.mxu0
  %v2315 = vpop.f32.mrf.mxu0
  %2316 = vdwg.mxu0
  %2317 = vmatprep.subr.bf16.mxu0 0
  %2318 = vmatpush1.bf16.msra.mxu0 0
  %2319 = vmatprep.subr.bf16.mxu0 0
  %2320 = vmatpush1.bf16.msra.mxu0 0
  %2321 = vmatprep.subr.bf16.mxu0 0
  %2322 = vmatpush1.bf16.msra.mxu0 0
  %2323 = vmatprep.subr.bf16.mxu0 0
  %2324 = vmatpush1.bf16.msra.mxu0 0
  %2325 = vmatprep.subr.bf16.mxu0 0
  %2326 = vmatpush1.bf16.msra.mxu0 0
  %2327 = vmatprep.subr.bf16.mxu0 %v966
  %2328 = vmatpush1.bf16.msra.mxu0 %v965
  %2329 = vmatprep.subr.bf16.mxu0 %v902
  %2330 = vmatpush1.bf16.msra.mxu0 %v901
  %2331 = vmatprep.subr.bf16.mxu0 %v838
  %2332 = vmatpush1.bf16.msra.mxu0 %v837
  %2333 = vmatprep.subr.bf16.mxu0 0
  %2334 = vmatpush2.bf16.msra.mxu0 0
  %2335 = vmatprep.subr.bf16.mxu0 0
  %2336 = vmatpush2.bf16.msra.mxu0 0
  %2337 = vmatprep.subr.bf16.mxu0 0
  %2338 = vmatpush2.bf16.msra.mxu0 0
  %2339 = vmatprep.subr.bf16.mxu0 0
  %2340 = vmatpush2.bf16.msra.mxu0 0
  %2341 = vmatprep.subr.bf16.mxu0 0
  %2342 = vmatpush2.bf16.msra.mxu0 0
  %2343 = vmatprep.subr.bf16.mxu0 0
  %2344 = vmatpush2.bf16.msra.mxu0 0
  %2345 = vmatprep.subr.bf16.mxu0 0
  %2346 = vmatpush2.bf16.msra.mxu0 0
  %2347 = vmatprep.subr.bf16.mxu0 0
  %2348 = vmatpush2.bf16.msra.mxu0 0
  %2349 = vmatprep.mubr.bf16.mxu0 0
  %2350 = vmatmul.mubr.bf16.gmra.mxu0 %v1167
  %v2351 = vpop.f32.mrf.mxu0
  %v2352 = vadd.f32 0.0, %v2351
  %v2353 = vpop.f32.mrf.mxu0
  %v2354 = vadd.f32 0.0, %v2353
  %v2355 = vpop.f32.mrf.mxu0
  %v2356 = vpop.f32.mrf.mxu0
  %2357 = vdwg.mxu0
  %2358 = vmatprep.subr.bf16.mxu0 0
  %2359 = vmatpush1.bf16.msra.mxu0 0
  %2360 = vmatprep.subr.bf16.mxu0 0
  %2361 = vmatpush1.bf16.msra.mxu0 0
  %2362 = vmatprep.subr.bf16.mxu0 0
  %2363 = vmatpush1.bf16.msra.mxu0 0
  %2364 = vmatprep.subr.bf16.mxu0 0
  %2365 = vmatpush1.bf16.msra.mxu0 0
  %2366 = vmatprep.subr.bf16.mxu0 0
  %2367 = vmatpush1.bf16.msra.mxu0 0
  %2368 = vmatprep.subr.bf16.mxu0 %v968
  %2369 = vmatpush1.bf16.msra.mxu0 %v967
  %2370 = vmatprep.subr.bf16.mxu0 %v904
  %2371 = vmatpush1.bf16.msra.mxu0 %v903
  %2372 = vmatprep.subr.bf16.mxu0 %v840
  %2373 = vmatpush1.bf16.msra.mxu0 %v839
  %2374 = vmatprep.subr.bf16.mxu0 0
  %2375 = vmatpush2.bf16.msra.mxu0 0
  %2376 = vmatprep.subr.bf16.mxu0 0
  %2377 = vmatpush2.bf16.msra.mxu0 0
  %2378 = vmatprep.subr.bf16.mxu0 0
  %2379 = vmatpush2.bf16.msra.mxu0 0
  %2380 = vmatprep.subr.bf16.mxu0 0
  %2381 = vmatpush2.bf16.msra.mxu0 0
  %2382 = vmatprep.subr.bf16.mxu0 0
  %2383 = vmatpush2.bf16.msra.mxu0 0
  %2384 = vmatprep.subr.bf16.mxu0 0
  %2385 = vmatpush2.bf16.msra.mxu0 0
  %2386 = vmatprep.subr.bf16.mxu0 0
  %2387 = vmatpush2.bf16.msra.mxu0 0
  %2388 = vmatprep.subr.bf16.mxu0 0
  %2389 = vmatpush2.bf16.msra.mxu0 0
  %2390 = vmatprep.mubr.bf16.mxu0 0
  %2391 = vmatmul.mubr.bf16.gmra.mxu0 %v1167
  %v2392 = vpop.f32.mrf.mxu0
  %v2393 = vadd.f32 0.0, %v2392
  %v2394 = vpop.f32.mrf.mxu0
  %v2395 = vadd.f32 0.0, %v2394
  %v2396 = vpop.f32.mrf.mxu0
  %v2397 = vpop.f32.mrf.mxu0
  %2398 = vdwg.mxu0
  %2399 = vmatprep.subr.bf16.mxu0 0
  %2400 = vmatpush1.bf16.msra.mxu0 0
  %2401 = vmatprep.subr.bf16.mxu0 0
  %2402 = vmatpush1.bf16.msra.mxu0 0
  %2403 = vmatprep.subr.bf16.mxu0 0
  %2404 = vmatpush1.bf16.msra.mxu0 0
  %2405 = vmatprep.subr.bf16.mxu0 0
  %2406 = vmatpush1.bf16.msra.mxu0 0
  %2407 = vmatprep.subr.bf16.mxu0 0
  %2408 = vmatpush1.bf16.msra.mxu0 0
  %2409 = vmatprep.subr.bf16.mxu0 %v970
  %2410 = vmatpush1.bf16.msra.mxu0 %v969
  %2411 = vmatprep.subr.bf16.mxu0 %v906
  %2412 = vmatpush1.bf16.msra.mxu0 %v905
  %2413 = vmatprep.subr.bf16.mxu0 %v842
  %2414 = vmatpush1.bf16.msra.mxu0 %v841
  %2415 = vmatprep.subr.bf16.mxu0 0
  %2416 = vmatpush2.bf16.msra.mxu0 0
  %2417 = vmatprep.subr.bf16.mxu0 0
  %2418 = vmatpush2.bf16.msra.mxu0 0
  %2419 = vmatprep.subr.bf16.mxu0 0
  %2420 = vmatpush2.bf16.msra.mxu0 0
  %2421 = vmatprep.subr.bf16.mxu0 0
  %2422 = vmatpush2.bf16.msra.mxu0 0
  %2423 = vmatprep.subr.bf16.mxu0 0
  %2424 = vmatpush2.bf16.msra.mxu0 0
  %2425 = vmatprep.subr.bf16.mxu0 0
  %2426 = vmatpush2.bf16.msra.mxu0 0
  %2427 = vmatprep.subr.bf16.mxu0 0
  %2428 = vmatpush2.bf16.msra.mxu0 0
  %2429 = vmatprep.subr.bf16.mxu0 0
  %2430 = vmatpush2.bf16.msra.mxu0 0
  %2431 = vmatprep.mubr.bf16.mxu0 0
  %2432 = vmatmul.mubr.bf16.gmra.mxu0 %v1167
  %v2433 = vpop.f32.mrf.mxu0
  %v2434 = vadd.f32 0.0, %v2433
  %v2435 = vpop.f32.mrf.mxu0
  %v2436 = vadd.f32 0.0, %v2435
  %v2437 = vpop.f32.mrf.mxu0
  %v2438 = vpop.f32.mrf.mxu0
  %2439 = vdwg.mxu0
  %2440 = vmatprep.subr.bf16.mxu0 0
  %2441 = vmatpush1.bf16.msra.mxu0 0
  %2442 = vmatprep.subr.bf16.mxu0 0
  %2443 = vmatpush1.bf16.msra.mxu0 0
  %2444 = vmatprep.subr.bf16.mxu0 0
  %2445 = vmatpush1.bf16.msra.mxu0 0
  %2446 = vmatprep.subr.bf16.mxu0 0
  %2447 = vmatpush1.bf16.msra.mxu0 0
  %2448 = vmatprep.subr.bf16.mxu0 0
  %2449 = vmatpush1.bf16.msra.mxu0 0
  %2450 = vmatprep.subr.bf16.mxu0 %v972
  %2451 = vmatpush1.bf16.msra.mxu0 %v971
  %2452 = vmatprep.subr.bf16.mxu0 %v908
  %2453 = vmatpush1.bf16.msra.mxu0 %v907
  %2454 = vmatprep.subr.bf16.mxu0 %v844
  %2455 = vmatpush1.bf16.msra.mxu0 %v843
  %2456 = vmatprep.subr.bf16.mxu0 0
  %2457 = vmatpush2.bf16.msra.mxu0 0
  %2458 = vmatprep.subr.bf16.mxu0 0
  %2459 = vmatpush2.bf16.msra.mxu0 0
  %2460 = vmatprep.subr.bf16.mxu0 0
  %2461 = vmatpush2.bf16.msra.mxu0 0
  %2462 = vmatprep.subr.bf16.mxu0 0
  %2463 = vmatpush2.bf16.msra.mxu0 0
  %2464 = vmatprep.subr.bf16.mxu0 0
  %2465 = vmatpush2.bf16.msra.mxu0 0
  %2466 = vmatprep.subr.bf16.mxu0 0
  %2467 = vmatpush2.bf16.msra.mxu0 0
  %2468 = vmatprep.subr.bf16.mxu0 0
  %2469 = vmatpush2.bf16.msra.mxu0 0
  %2470 = vmatprep.subr.bf16.mxu0 0
  %2471 = vmatpush2.bf16.msra.mxu0 0
  %2472 = vmatprep.mubr.bf16.mxu0 0
  %2473 = vmatmul.mubr.bf16.gmra.mxu0 %v1167
  %v2474 = vpop.f32.mrf.mxu0
  %v2475 = vadd.f32 0.0, %v2474
  %v2476 = vpop.f32.mrf.mxu0
  %v2477 = vadd.f32 0.0, %v2476
  %v2478 = vpop.f32.mrf.mxu0
  %v2479 = vpop.f32.mrf.mxu0
  %2480 = vdwg.mxu0
  %vm2481 = vcmp.gt.f32.partialorder %v1204, 0.0
  %vm2482 = vcmp.gt.f32.partialorder %v1206, 0.0
  %vm2483 = vcmp.gt.f32.partialorder %v1245, 0.0
  %vm2484 = vcmp.gt.f32.partialorder %v1247, 0.0
  %vm2485 = vcmp.gt.f32.partialorder %v1286, 0.0
  %vm2486 = vcmp.gt.f32.partialorder %v1288, 0.0
  %vm2487 = vcmp.gt.f32.partialorder %v1327, 0.0
  %vm2488 = vcmp.gt.f32.partialorder %v1329, 0.0
  %vm2489 = vcmp.gt.f32.partialorder %v1368, 0.0
  %vm2490 = vcmp.gt.f32.partialorder %v1370, 0.0
  %vm2491 = vcmp.gt.f32.partialorder %v1409, 0.0
  %vm2492 = vcmp.gt.f32.partialorder %v1411, 0.0
  %vm2493 = vcmp.gt.f32.partialorder %v1450, 0.0
  %vm2494 = vcmp.gt.f32.partialorder %v1452, 0.0
  %vm2495 = vcmp.gt.f32.partialorder %v1491, 0.0
  %vm2496 = vcmp.gt.f32.partialorder %v1493, 0.0
  %vm2497 = vcmp.gt.f32.partialorder %v1532, 0.0
  %vm2498 = vcmp.gt.f32.partialorder %v1534, 0.0
  %vm2499 = vcmp.gt.f32.partialorder %v1573, 0.0
  %vm2500 = vcmp.gt.f32.partialorder %v1575, 0.0
  %vm2501 = vcmp.gt.f32.partialorder %v1614, 0.0
  %vm2502 = vcmp.gt.f32.partialorder %v1616, 0.0
  %vm2503 = vcmp.gt.f32.partialorder %v1655, 0.0
  %vm2504 = vcmp.gt.f32.partialorder %v1657, 0.0
  %vm2505 = vcmp.gt.f32.partialorder %v1696, 0.0
  %vm2506 = vcmp.gt.f32.partialorder %v1698, 0.0
  %vm2507 = vcmp.gt.f32.partialorder %v1737, 0.0
  %vm2508 = vcmp.gt.f32.partialorder %v1739, 0.0
  %vm2509 = vcmp.gt.f32.partialorder %v1778, 0.0
  %vm2510 = vcmp.gt.f32.partialorder %v1780, 0.0
  %vm2511 = vcmp.gt.f32.partialorder %v1819, 0.0
  %vm2512 = vcmp.gt.f32.partialorder %v1821, 0.0
  %vm2513 = vcmp.gt.f32.partialorder %v1860, 0.0
  %vm2514 = vcmp.gt.f32.partialorder %v1862, 0.0
  %vm2515 = vcmp.gt.f32.partialorder %v1901, 0.0
  %vm2516 = vcmp.gt.f32.partialorder %v1903, 0.0
  %vm2517 = vcmp.gt.f32.partialorder %v1942, 0.0
  %vm2518 = vcmp.gt.f32.partialorder %v1944, 0.0
  %vm2519 = vcmp.gt.f32.partialorder %v1983, 0.0
  %vm2520 = vcmp.gt.f32.partialorder %v1985, 0.0
  %vm2521 = vcmp.gt.f32.partialorder %v2024, 0.0
  %vm2522 = vcmp.gt.f32.partialorder %v2026, 0.0
  %vm2523 = vcmp.gt.f32.partialorder %v2065, 0.0
  %vm2524 = vcmp.gt.f32.partialorder %v2067, 0.0
  %vm2525 = vcmp.gt.f32.partialorder %v2106, 0.0
  %vm2526 = vcmp.gt.f32.partialorder %v2108, 0.0
  %vm2527 = vcmp.gt.f32.partialorder %v2147, 0.0
  %vm2528 = vcmp.gt.f32.partialorder %v2149, 0.0
  %vm2529 = vcmp.gt.f32.partialorder %v2188, 0.0
  %vm2530 = vcmp.gt.f32.partialorder %v2190, 0.0
  %vm2531 = vcmp.gt.f32.partialorder %v2229, 0.0
  %vm2532 = vcmp.gt.f32.partialorder %v2231, 0.0
  %vm2533 = vcmp.gt.f32.partialorder %v2270, 0.0
  %vm2534 = vcmp.gt.f32.partialorder %v2272, 0.0
  %vm2535 = vcmp.gt.f32.partialorder %v2311, 0.0
  %vm2536 = vcmp.gt.f32.partialorder %v2313, 0.0
  %vm2537 = vcmp.gt.f32.partialorder %v2352, 0.0
  %vm2538 = vcmp.gt.f32.partialorder %v2354, 0.0
  %vm2539 = vcmp.gt.f32.partialorder %v2393, 0.0
  %vm2540 = vcmp.gt.f32.partialorder %v2395, 0.0
  %vm2541 = vcmp.gt.f32.partialorder %v2434, 0.0
  %vm2542 = vcmp.gt.f32.partialorder %v2436, 0.0
  %vm2543 = vcmp.gt.f32.partialorder %v2475, 0.0
  %vm2544 = vcmp.gt.f32.partialorder %v2477, 0.0
  %v2545 = vmul.f32 %v1204, 0.2
  %v2546 = vmul.f32 %v1206, 0.2
  %v2547 = vmul.f32 %v1245, 0.2
  %v2548 = vmul.f32 %v1247, 0.2
  %v2549 = vmul.f32 %v1286, 0.2
  %v2550 = vmul.f32 %v1288, 0.2
  %v2551 = vmul.f32 %v1327, 0.2
  %v2552 = vmul.f32 %v1329, 0.2
  %v2553 = vmul.f32 %v1368, 0.2
  %v2554 = vmul.f32 %v1370, 0.2
  %v2555 = vmul.f32 %v1409, 0.2
  %v2556 = vmul.f32 %v1411, 0.2
  %v2557 = vmul.f32 %v1450, 0.2
  %v2558 = vmul.f32 %v1452, 0.2
  %v2559 = vmul.f32 %v1491, 0.2
  %v2560 = vmul.f32 %v1493, 0.2
  %v2561 = vmul.f32 %v1532, 0.2
  %v2562 = vmul.f32 %v1534, 0.2
  %v2563 = vmul.f32 %v1573, 0.2
  %v2564 = vmul.f32 %v1575, 0.2
  %v2565 = vmul.f32 %v1614, 0.2
  %v2566 = vmul.f32 %v1616, 0.2
  %v2567 = vmul.f32 %v1655, 0.2
  %v2568 = vmul.f32 %v1657, 0.2
  %v2569 = vmul.f32 %v1696, 0.2
  %v2570 = vmul.f32 %v1698, 0.2
  %v2571 = vmul.f32 %v1737, 0.2
  %v2572 = vmul.f32 %v1739, 0.2
  %v2573 = vmul.f32 %v1778, 0.2
  %v2574 = vmul.f32 %v1780, 0.2
  %v2575 = vmul.f32 %v1819, 0.2
  %v2576 = vmul.f32 %v1821, 0.2
  %v2577 = vmul.f32 %v1860, 0.2
  %v2578 = vmul.f32 %v1862, 0.2
  %v2579 = vmul.f32 %v1901, 0.2
  %v2580 = vmul.f32 %v1903, 0.2
  %v2581 = vmul.f32 %v1942, 0.2
  %v2582 = vmul.f32 %v1944, 0.2
  %v2583 = vmul.f32 %v1983, 0.2
  %v2584 = vmul.f32 %v1985, 0.2
  %v2585 = vmul.f32 %v2024, 0.2
  %v2586 = vmul.f32 %v2026, 0.2
  %v2587 = vmul.f32 %v2065, 0.2
  %v2588 = vmul.f32 %v2067, 0.2
  %v2589 = vmul.f32 %v2106, 0.2
  %v2590 = vmul.f32 %v2108, 0.2
  %v2591 = vmul.f32 %v2147, 0.2
  %v2592 = vmul.f32 %v2149, 0.2
  %v2593 = vmul.f32 %v2188, 0.2
  %v2594 = vmul.f32 %v2190, 0.2
  %v2595 = vmul.f32 %v2229, 0.2
  %v2596 = vmul.f32 %v2231, 0.2
  %v2597 = vmul.f32 %v2270, 0.2
  %v2598 = vmul.f32 %v2272, 0.2
  %v2599 = vmul.f32 %v2311, 0.2
  %v2600 = vmul.f32 %v2313, 0.2
  %v2601 = vmul.f32 %v2352, 0.2
  %v2602 = vmul.f32 %v2354, 0.2
  %v2603 = vmul.f32 %v2393, 0.2
  %v2604 = vmul.f32 %v2395, 0.2
  %v2605 = vmul.f32 %v2434, 0.2
  %v2606 = vmul.f32 %v2436, 0.2
  %v2607 = vmul.f32 %v2475, 0.2
  %v2608 = vmul.f32 %v2477, 0.2
  %v2609 = vsel %vm2481, %v1204, %v2545
  %v2610 = vsel %vm2482, %v1206, %v2546
  %v2611 = vsel %vm2483, %v1245, %v2547
  %v2612 = vsel %vm2484, %v1247, %v2548
  %v2613 = vsel %vm2485, %v1286, %v2549
  %v2614 = vsel %vm2486, %v1288, %v2550
  %v2615 = vsel %vm2487, %v1327, %v2551
  %v2616 = vsel %vm2488, %v1329, %v2552
  %v2617 = vsel %vm2489, %v1368, %v2553
  %v2618 = vsel %vm2490, %v1370, %v2554
  %v2619 = vsel %vm2491, %v1409, %v2555
  %v2620 = vsel %vm2492, %v1411, %v2556
  %v2621 = vsel %vm2493, %v1450, %v2557
  %v2622 = vsel %vm2494, %v1452, %v2558
  %v2623 = vsel %vm2495, %v1491, %v2559
  %v2624 = vsel %vm2496, %v1493, %v2560
  %v2625 = vsel %vm2497, %v1532, %v2561
  %v2626 = vsel %vm2498, %v1534, %v2562
  %v2627 = vsel %vm2499, %v1573, %v2563
  %v2628 = vsel %vm2500, %v1575, %v2564
  %v2629 = vsel %vm2501, %v1614, %v2565
  %v2630 = vsel %vm2502, %v1616, %v2566
  %v2631 = vsel %vm2503, %v1655, %v2567
  %v2632 = vsel %vm2504, %v1657, %v2568
  %v2633 = vsel %vm2505, %v1696, %v2569
  %v2634 = vsel %vm2506, %v1698, %v2570
  %v2635 = vsel %vm2507, %v1737, %v2571
  %v2636 = vsel %vm2508, %v1739, %v2572
  %v2637 = vsel %vm2509, %v1778, %v2573
  %v2638 = vsel %vm2510, %v1780, %v2574
  %v2639 = vsel %vm2511, %v1819, %v2575
  %v2640 = vsel %vm2512, %v1821, %v2576
  %v2641 = vsel %vm2513, %v1860, %v2577
  %v2642 = vsel %vm2514, %v1862, %v2578
  %v2643 = vsel %vm2515, %v1901, %v2579
  %v2644 = vsel %vm2516, %v1903, %v2580
  %v2645 = vsel %vm2517, %v1942, %v2581
  %v2646 = vsel %vm2518, %v1944, %v2582
  %v2647 = vsel %vm2519, %v1983, %v2583
  %v2648 = vsel %vm2520, %v1985, %v2584
  %v2649 = vsel %vm2521, %v2024, %v2585
  %v2650 = vsel %vm2522, %v2026, %v2586
  %v2651 = vsel %vm2523, %v2065, %v2587
  %v2652 = vsel %vm2524, %v2067, %v2588
  %v2653 = vsel %vm2525, %v2106, %v2589
  %v2654 = vsel %vm2526, %v2108, %v2590
  %v2655 = vsel %vm2527, %v2147, %v2591
  %v2656 = vsel %vm2528, %v2149, %v2592
  %v2657 = vsel %vm2529, %v2188, %v2593
  %v2658 = vsel %vm2530, %v2190, %v2594
  %v2659 = vsel %vm2531, %v2229, %v2595
  %v2660 = vsel %vm2532, %v2231, %v2596
  %v2661 = vsel %vm2533, %v2270, %v2597
  %v2662 = vsel %vm2534, %v2272, %v2598
  %v2663 = vsel %vm2535, %v2311, %v2599
  %v2664 = vsel %vm2536, %v2313, %v2600
  %v2665 = vsel %vm2537, %v2352, %v2601
  %v2666 = vsel %vm2538, %v2354, %v2602
  %v2667 = vsel %vm2539, %v2393, %v2603
  %v2668 = vsel %vm2540, %v2395, %v2604
  %v2669 = vsel %vm2541, %v2434, %v2605
  %v2670 = vsel %vm2542, %v2436, %v2606
  %v2671 = vsel %vm2543, %v2475, %v2607
  %v2672 = vsel %vm2544, %v2477, %v2608
  %v2673 = vpack.c.bf16 %v2609, %v2609
  %v2674 = vpack.c.bf16 %v2610, %v2610
  %v2675 = vpack.c.bf16 %v2611, %v2611
  %v2676 = vpack.c.bf16 %v2612, %v2612
  %v2677 = vpack.c.bf16 %v2613, %v2613
  %v2678 = vpack.c.bf16 %v2614, %v2614
  %v2679 = vpack.c.bf16 %v2615, %v2615
  %v2680 = vpack.c.bf16 %v2616, %v2616
  %v2681 = vpack.c.bf16 %v2617, %v2617
  %v2682 = vpack.c.bf16 %v2618, %v2618
  %v2683 = vpack.c.bf16 %v2619, %v2619
  %v2684 = vpack.c.bf16 %v2620, %v2620
  %v2685 = vpack.c.bf16 %v2621, %v2621
  %v2686 = vpack.c.bf16 %v2622, %v2622
  %v2687 = vpack.c.bf16 %v2623, %v2623
  %v2688 = vpack.c.bf16 %v2624, %v2624
  %v2689 = vpack.c.bf16 %v2625, %v2625
  %v2690 = vpack.c.bf16 %v2626, %v2626
  %v2691 = vpack.c.bf16 %v2627, %v2627
  %v2692 = vpack.c.bf16 %v2628, %v2628
  %v2693 = vpack.c.bf16 %v2629, %v2629
  %v2694 = vpack.c.bf16 %v2630, %v2630
  %v2695 = vpack.c.bf16 %v2631, %v2631
  %v2696 = vpack.c.bf16 %v2632, %v2632
  %v2697 = vpack.c.bf16 %v2633, %v2633
  %v2698 = vpack.c.bf16 %v2634, %v2634
  %v2699 = vpack.c.bf16 %v2635, %v2635
  %v2700 = vpack.c.bf16 %v2636, %v2636
  %v2701 = vpack.c.bf16 %v2637, %v2637
  %v2702 = vpack.c.bf16 %v2638, %v2638
  %v2703 = vpack.c.bf16 %v2639, %v2639
  %v2704 = vpack.c.bf16 %v2640, %v2640
  %v2705 = vpack.c.bf16 %v2641, %v2641
  %v2706 = vpack.c.bf16 %v2642, %v2642
  %v2707 = vpack.c.bf16 %v2643, %v2643
  %v2708 = vpack.c.bf16 %v2644, %v2644
  %v2709 = vpack.c.bf16 %v2645, %v2645
  %v2710 = vpack.c.bf16 %v2646, %v2646
  %v2711 = vpack.c.bf16 %v2647, %v2647
  %v2712 = vpack.c.bf16 %v2648, %v2648
  %v2713 = vpack.c.bf16 %v2649, %v2649
  %v2714 = vpack.c.bf16 %v2650, %v2650
  %v2715 = vpack.c.bf16 %v2651, %v2651
  %v2716 = vpack.c.bf16 %v2652, %v2652
  %v2717 = vpack.c.bf16 %v2653, %v2653
  %v2718 = vpack.c.bf16 %v2654, %v2654
  %v2719 = vpack.c.bf16 %v2655, %v2655
  %v2720 = vpack.c.bf16 %v2656, %v2656
  %v2721 = vpack.c.bf16 %v2657, %v2657
  %v2722 = vpack.c.bf16 %v2658, %v2658
  %v2723 = vpack.c.bf16 %v2659, %v2659
  %v2724 = vpack.c.bf16 %v2660, %v2660
  %v2725 = vpack.c.bf16 %v2661, %v2661
  %v2726 = vpack.c.bf16 %v2662, %v2662
  %v2727 = vpack.c.bf16 %v2663, %v2663
  %v2728 = vpack.c.bf16 %v2664, %v2664
  %v2729 = vpack.c.bf16 %v2665, %v2665
  %v2730 = vpack.c.bf16 %v2666, %v2666
  %v2731 = vpack.c.bf16 %v2667, %v2667
  %v2732 = vpack.c.bf16 %v2668, %v2668
  %v2733 = vpack.c.bf16 %v2669, %v2669
  %v2734 = vpack.c.bf16 %v2670, %v2670
  %v2735 = vpack.c.bf16 %v2671, %v2671
  %v2736 = vpack.c.bf16 %v2672, %v2672
  %v2801 = vunpack.c.l.b16 %v2673
  %v2802 = vunpack.c.l.b16 %v2674
  %v2803 = vunpack.c.l.b16 %v2675
  %v2804 = vunpack.c.l.b16 %v2676
  %v2805 = vunpack.c.l.b16 %v2677
  %v2806 = vunpack.c.l.b16 %v2678
  %v2807 = vunpack.c.l.b16 %v2679
  %v2808 = vunpack.c.l.b16 %v2680
  %v2809 = vunpack.c.l.b16 %v2681
  %v2810 = vunpack.c.l.b16 %v2682
  %v2811 = vunpack.c.l.b16 %v2683
  %v2812 = vunpack.c.l.b16 %v2684
  %v2813 = vunpack.c.l.b16 %v2685
  %v2814 = vunpack.c.l.b16 %v2686
  %v2815 = vunpack.c.l.b16 %v2687
  %v2816 = vunpack.c.l.b16 %v2688
  %v2817 = vunpack.c.l.b16 %v2689
  %v2818 = vunpack.c.l.b16 %v2690
  %v2819 = vunpack.c.l.b16 %v2691
  %v2820 = vunpack.c.l.b16 %v2692
  %v2821 = vunpack.c.l.b16 %v2693
  %v2822 = vunpack.c.l.b16 %v2694
  %v2823 = vunpack.c.l.b16 %v2695
  %v2824 = vunpack.c.l.b16 %v2696
  %v2825 = vunpack.c.l.b16 %v2697
  %v2826 = vunpack.c.l.b16 %v2698
  %v2827 = vunpack.c.l.b16 %v2699
  %v2828 = vunpack.c.l.b16 %v2700
  %v2829 = vunpack.c.l.b16 %v2701
  %v2830 = vunpack.c.l.b16 %v2702
  %v2831 = vunpack.c.l.b16 %v2703
  %v2832 = vunpack.c.l.b16 %v2704
  %v2833 = vunpack.c.l.b16 %v2705
  %v2834 = vunpack.c.l.b16 %v2706
  %v2835 = vunpack.c.l.b16 %v2707
  %v2836 = vunpack.c.l.b16 %v2708
  %v2837 = vunpack.c.l.b16 %v2709
  %v2838 = vunpack.c.l.b16 %v2710
  %v2839 = vunpack.c.l.b16 %v2711
  %v2840 = vunpack.c.l.b16 %v2712
  %v2841 = vunpack.c.l.b16 %v2713
  %v2842 = vunpack.c.l.b16 %v2714
  %v2843 = vunpack.c.l.b16 %v2715
  %v2844 = vunpack.c.l.b16 %v2716
  %v2845 = vunpack.c.l.b16 %v2717
  %v2846 = vunpack.c.l.b16 %v2718
  %v2847 = vunpack.c.l.b16 %v2719
  %v2848 = vunpack.c.l.b16 %v2720
  %v2849 = vunpack.c.l.b16 %v2721
  %v2850 = vunpack.c.l.b16 %v2722
  %v2851 = vunpack.c.l.b16 %v2723
  %v2852 = vunpack.c.l.b16 %v2724
  %v2853 = vunpack.c.l.b16 %v2725
  %v2854 = vunpack.c.l.b16 %v2726
  %v2855 = vunpack.c.l.b16 %v2727
  %v2856 = vunpack.c.l.b16 %v2728
  %v2857 = vunpack.c.l.b16 %v2729
  %v2858 = vunpack.c.l.b16 %v2730
  %v2859 = vunpack.c.l.b16 %v2731
  %v2860 = vunpack.c.l.b16 %v2732
  %v2861 = vunpack.c.l.b16 %v2733
  %v2862 = vunpack.c.l.b16 %v2734
  %v2863 = vunpack.c.l.b16 %v2735
  %v2864 = vunpack.c.l.b16 %v2736
  %v2865 = vpack.c.b16 %v2802, %v2801
  %v2866 = vpack.c.b16 %v2804, %v2803
  %v2867 = vpack.c.b16 %v2806, %v2805
  %v2868 = vpack.c.b16 %v2808, %v2807
  %v2869 = vpack.c.b16 %v2810, %v2809
  %v2870 = vpack.c.b16 %v2812, %v2811
  %v2871 = vpack.c.b16 %v2814, %v2813
  %v2872 = vpack.c.b16 %v2816, %v2815
  %v2873 = vpack.c.b16 %v2818, %v2817
  %v2874 = vpack.c.b16 %v2820, %v2819
  %v2875 = vpack.c.b16 %v2822, %v2821
  %v2876 = vpack.c.b16 %v2824, %v2823
  %v2877 = vpack.c.b16 %v2826, %v2825
  %v2878 = vpack.c.b16 %v2828, %v2827
  %v2879 = vpack.c.b16 %v2830, %v2829
  %v2880 = vpack.c.b16 %v2832, %v2831
  %v2881 = vpack.c.b16 %v2834, %v2833
  %v2882 = vpack.c.b16 %v2836, %v2835
  %v2883 = vpack.c.b16 %v2838, %v2837
  %v2884 = vpack.c.b16 %v2840, %v2839
  %v2885 = vpack.c.b16 %v2842, %v2841
  %v2886 = vpack.c.b16 %v2844, %v2843
  %v2887 = vpack.c.b16 %v2846, %v2845
  %v2888 = vpack.c.b16 %v2848, %v2847
  %v2889 = vpack.c.b16 %v2850, %v2849
  %v2890 = vpack.c.b16 %v2852, %v2851
  %v2891 = vpack.c.b16 %v2854, %v2853
  %v2892 = vpack.c.b16 %v2856, %v2855
  %v2893 = vpack.c.b16 %v2858, %v2857
  %v2894 = vpack.c.b16 %v2860, %v2859
  %v2895 = vpack.c.b16 %v2862, %v2861
  %v2896 = vpack.c.b16 %v2864, %v2863
  %2929 = vst [vmem:[%s2] sm:$0xff] %v2865
  %2930 = vst [vmem:[%s2 + $0x8] sm:$0xff] %v2866
  %2931 = vst [vmem:[%s2 + $0x10] sm:$0xff] %v2867
  %2932 = vst [vmem:[%s2 + $0x18] sm:$0xff] %v2868
  %2933 = vst [vmem:[%s2 + $0x20] sm:$0xff] %v2869
  %2934 = vst [vmem:[%s2 + $0x28] sm:$0xff] %v2870
  %2935 = vst [vmem:[%s2 + $0x30] sm:$0xff] %v2871
  %2936 = vst [vmem:[%s2 + $0x38] sm:$0xff] %v2872
  %2937 = vst [vmem:[%s2 + $0x40] sm:$0xff] %v2873
  %2938 = vst [vmem:[%s2 + $0x48] sm:$0xff] %v2874
  %2939 = vst [vmem:[%s2 + $0x50] sm:$0xff] %v2875
  %2940 = vst [vmem:[%s2 + $0x58] sm:$0xff] %v2876
  %2941 = vst [vmem:[%s2 + $0x60] sm:$0xff] %v2877
  %2942 = vst [vmem:[%s2 + $0x68] sm:$0xff] %v2878
  %2943 = vst [vmem:[%s2 + $0x70] sm:$0xff] %v2879
  %2944 = vst [vmem:[%s2 + $0x78] sm:$0xff] %v2880
  %2945 = vst [vmem:[%s2 + $0x80] sm:$0xff] %v2881
  %2946 = vst [vmem:[%s2 + $0x88] sm:$0xff] %v2882
  %2947 = vst [vmem:[%s2 + $0x90] sm:$0xff] %v2883
  %2948 = vst [vmem:[%s2 + $0x98] sm:$0xff] %v2884
  %2949 = vst [vmem:[%s2 + $0xa0] sm:$0xff] %v2885
  %2950 = vst [vmem:[%s2 + $0xa8] sm:$0xff] %v2886
  %2951 = vst [vmem:[%s2 + $0xb0] sm:$0xff] %v2887
  %2952 = vst [vmem:[%s2 + $0xb8] sm:$0xff] %v2888
  %2953 = vst [vmem:[%s2 + $0xc0] sm:$0xff] %v2889
  %2954 = vst [vmem:[%s2 + $0xc8] sm:$0xff] %v2890
  %2955 = vst [vmem:[%s2 + $0xd0] sm:$0xff] %v2891
  %2956 = vst [vmem:[%s2 + $0xd8] sm:$0xff] %v2892
  %2957 = vst [vmem:[%s2 + $0xe0] sm:$0xff] %v2893
  %2958 = vst [vmem:[%s2 + $0xe8] sm:$0xff] %v2894
  %2959 = vst [vmem:[%s2 + $0xf0] sm:$0xff] %v2895
  %2960 = vst [vmem:[%s2 + $0xf8] sm:$0xff] %v2896
  // Predicated region
  $region10: #{discriminator_forward.6} parent=0 // pred_check
    _
  $region11: #{discriminator_forward.6} parent=0 // pred_check_branch
    %2962 = sbr.rel (0) target = $region13
  $region12: #{discriminator_forward.6} parent=0 // pred_region
    _
  $region13: #{discriminator_forward.6} parent=0 // pred_fallthru
    _
  // Predicated region
  $region14: #{discriminator_forward.6} parent=0 // pred_check
    _
  $region15: #{discriminator_forward.6} parent=0 // pred_check_branch
    %2964 = sbr.rel (0) target = $region17
  $region16: #{discriminator_forward.6} parent=0 // pred_region
    _
  $region17: #{discriminator_forward.6} parent=0 // pred_fallthru
    _

// kernel: discriminator_forward.7
$region0: #{discriminator_forward.7}
  #allocation0 [shape = 'u32[]', space=smem, size = 0x4, offset = 0x4, fixed_abs, tag = 'smem constant byte address 0x4 - core index']
  #allocation1 [shape = 'u32[144,128]{1,0:T(1,128)}', space=vmem, size = 0x12000, scoped, tag = 'internal scratch']
  %s0 = inlined_call_operand.vmem [shape: bf16[16,128], index: 0, kind: input, shape index: {}]
  %s1 = inlined_call_operand.vmem [shape: bf16[128,2048], index: 1, kind: input, shape index: {}]
  %s2 = inlined_call_operand.vmem [shape: bf16[16,2048], index: 2, kind: output, shape index: {}]
  %s3 = sld [smem:[#allocation0]]
  $region18: #{discriminator_forward.7} parent=0
    _
  %s5 = ssub.s32 1, %s3
  %s6 = scalar_select 0, %s5, %s3
  // Predicated region
  $region2: #{discriminator_forward.7} parent=0 // pred_check
    _
  $region3: #{discriminator_forward.7} parent=0 // pred_check_branch
    %8 = sbr.rel (0) target = $region5
  $region4: #{discriminator_forward.7} parent=0 // pred_region
    _
  $region5: #{discriminator_forward.7} parent=0 // pred_fallthru
    _
  // Predicated region
  $region6: #{discriminator_forward.7} parent=0 // pred_check
    _
  $region7: #{discriminator_forward.7} parent=0 // pred_check_branch
    %10 = sbr.rel (0) target = $region9
  $region8: #{discriminator_forward.7} parent=0 // pred_region
    _
  $region9: #{discriminator_forward.7} parent=0 // pred_fallthru
    _
  %v12 = vld [vmem:[%s0] sm:$0xf]
  %v13 = vld [vmem:[%s0 + $0x4] sm:$0xf]
  %v14 = vld [vmem:[%s1] sm:$0xff]
  %v15 = vld [vmem:[%s1 + $0x8] sm:$0xff]
  %v16 = vld [vmem:[%s1 + $0x10] sm:$0xff]
  %v17 = vld [vmem:[%s1 + $0x18] sm:$0xff]
  %v18 = vld [vmem:[%s1 + $0x20] sm:$0xff]
  %v19 = vld [vmem:[%s1 + $0x28] sm:$0xff]
  %v20 = vld [vmem:[%s1 + $0x30] sm:$0xff]
  %v21 = vld [vmem:[%s1 + $0x38] sm:$0xff]
  %v22 = vld [vmem:[%s1 + $0x40] sm:$0xff]
  %v23 = vld [vmem:[%s1 + $0x48] sm:$0xff]
  %v24 = vld [vmem:[%s1 + $0x50] sm:$0xff]
  %v25 = vld [vmem:[%s1 + $0x58] sm:$0xff]
  %v26 = vld [vmem:[%s1 + $0x60] sm:$0xff]
  %v27 = vld [vmem:[%s1 + $0x68] sm:$0xff]
  %v28 = vld [vmem:[%s1 + $0x70] sm:$0xff]
  %v29 = vld [vmem:[%s1 + $0x78] sm:$0xff]
  %v30 = vld [vmem:[%s1 + $0x80] sm:$0xff]
  %v31 = vld [vmem:[%s1 + $0x88] sm:$0xff]
  %v32 = vld [vmem:[%s1 + $0x90] sm:$0xff]
  %v33 = vld [vmem:[%s1 + $0x98] sm:$0xff]
  %v34 = vld [vmem:[%s1 + $0xa0] sm:$0xff]
  %v35 = vld [vmem:[%s1 + $0xa8] sm:$0xff]
  %v36 = vld [vmem:[%s1 + $0xb0] sm:$0xff]
  %v37 = vld [vmem:[%s1 + $0xb8] sm:$0xff]
  %v38 = vld [vmem:[%s1 + $0xc0] sm:$0xff]
  %v39 = vld [vmem:[%s1 + $0xc8] sm:$0xff]
  %v40 = vld [vmem:[%s1 + $0xd0] sm:$0xff]
  %v41 = vld [vmem:[%s1 + $0xd8] sm:$0xff]
  %v42 = vld [vmem:[%s1 + $0xe0] sm:$0xff]
  %v43 = vld [vmem:[%s1 + $0xe8] sm:$0xff]
  %v44 = vld [vmem:[%s1 + $0xf0] sm:$0xff]
  %v45 = vld [vmem:[%s1 + $0xf8] sm:$0xff]
  %v46 = vld [vmem:[%s1 + $0x100] sm:$0xff]
  %v47 = vld [vmem:[%s1 + $0x108] sm:$0xff]
  %v48 = vld [vmem:[%s1 + $0x110] sm:$0xff]
  %v49 = vld [vmem:[%s1 + $0x118] sm:$0xff]
  %v50 = vld [vmem:[%s1 + $0x120] sm:$0xff]
  %v51 = vld [vmem:[%s1 + $0x128] sm:$0xff]
  %v52 = vld [vmem:[%s1 + $0x130] sm:$0xff]
  %v53 = vld [vmem:[%s1 + $0x138] sm:$0xff]
  %v54 = vld [vmem:[%s1 + $0x140] sm:$0xff]
  %v55 = vld [vmem:[%s1 + $0x148] sm:$0xff]
  %v56 = vld [vmem:[%s1 + $0x150] sm:$0xff]
  %v57 = vld [vmem:[%s1 + $0x158] sm:$0xff]
  %v58 = vld [vmem:[%s1 + $0x160] sm:$0xff]
  %v59 = vld [vmem:[%s1 + $0x168] sm:$0xff]
  %v60 = vld [vmem:[%s1 + $0x170] sm:$0xff]
  %v61 = vld [vmem:[%s1 + $0x178] sm:$0xff]
  %v62 = vld [vmem:[%s1 + $0x180] sm:$0xff]
  %v63 = vld [vmem:[%s1 + $0x188] sm:$0xff]
  %v64 = vld [vmem:[%s1 + $0x190] sm:$0xff]
  %v65 = vld [vmem:[%s1 + $0x198] sm:$0xff]
  %v66 = vld [vmem:[%s1 + $0x1a0] sm:$0xff]
  %v67 = vld [vmem:[%s1 + $0x1a8] sm:$0xff]
  %v68 = vld [vmem:[%s1 + $0x1b0] sm:$0xff]
  %v69 = vld [vmem:[%s1 + $0x1b8] sm:$0xff]
  %v70 = vld [vmem:[%s1 + $0x1c0] sm:$0xff]
  %v71 = vld [vmem:[%s1 + $0x1c8] sm:$0xff]
  %v72 = vld [vmem:[%s1 + $0x1d0] sm:$0xff]
  %v73 = vld [vmem:[%s1 + $0x1d8] sm:$0xff]
  %v74 = vld [vmem:[%s1 + $0x1e0] sm:$0xff]
  %v75 = vld [vmem:[%s1 + $0x1e8] sm:$0xff]
  %v76 = vld [vmem:[%s1 + $0x1f0] sm:$0xff]
  %v77 = vld [vmem:[%s1 + $0x1f8] sm:$0xff]
  %v78 = vld [vmem:[%s1 + $0x200] sm:$0xff]
  %v79 = vld [vmem:[%s1 + $0x208] sm:$0xff]
  %v80 = vld [vmem:[%s1 + $0x210] sm:$0xff]
  %v81 = vld [vmem:[%s1 + $0x218] sm:$0xff]
  %v82 = vld [vmem:[%s1 + $0x220] sm:$0xff]
  %v83 = vld [vmem:[%s1 + $0x228] sm:$0xff]
  %v84 = vld [vmem:[%s1 + $0x230] sm:$0xff]
  %v85 = vld [vmem:[%s1 + $0x238] sm:$0xff]
  %v86 = vld [vmem:[%s1 + $0x240] sm:$0xff]
  %v87 = vld [vmem:[%s1 + $0x248] sm:$0xff]
  %v88 = vld [vmem:[%s1 + $0x250] sm:$0xff]
  %v89 = vld [vmem:[%s1 + $0x258] sm:$0xff]
  %v90 = vld [vmem:[%s1 + $0x260] sm:$0xff]
  %v91 = vld [vmem:[%s1 + $0x268] sm:$0xff]
  %v92 = vld [vmem:[%s1 + $0x270] sm:$0xff]
  %v93 = vld [vmem:[%s1 + $0x278] sm:$0xff]
  %v94 = vld [vmem:[%s1 + $0x280] sm:$0xff]
  %v95 = vld [vmem:[%s1 + $0x288] sm:$0xff]
  %v96 = vld [vmem:[%s1 + $0x290] sm:$0xff]
  %v97 = vld [vmem:[%s1 + $0x298] sm:$0xff]
  %v98 = vld [vmem:[%s1 + $0x2a0] sm:$0xff]
  %v99 = vld [vmem:[%s1 + $0x2a8] sm:$0xff]
  %v100 = vld [vmem:[%s1 + $0x2b0] sm:$0xff]
  %v101 = vld [vmem:[%s1 + $0x2b8] sm:$0xff]
  %v102 = vld [vmem:[%s1 + $0x2c0] sm:$0xff]
  %v103 = vld [vmem:[%s1 + $0x2c8] sm:$0xff]
  %v104 = vld [vmem:[%s1 + $0x2d0] sm:$0xff]
  %v105 = vld [vmem:[%s1 + $0x2d8] sm:$0xff]
  %v106 = vld [vmem:[%s1 + $0x2e0] sm:$0xff]
  %v107 = vld [vmem:[%s1 + $0x2e8] sm:$0xff]
  %v108 = vld [vmem:[%s1 + $0x2f0] sm:$0xff]
  %v109 = vld [vmem:[%s1 + $0x2f8] sm:$0xff]
  %v110 = vld [vmem:[%s1 + $0x300] sm:$0xff]
  %v111 = vld [vmem:[%s1 + $0x308] sm:$0xff]
  %v112 = vld [vmem:[%s1 + $0x310] sm:$0xff]
  %v113 = vld [vmem:[%s1 + $0x318] sm:$0xff]
  %v114 = vld [vmem:[%s1 + $0x320] sm:$0xff]
  %v115 = vld [vmem:[%s1 + $0x328] sm:$0xff]
  %v116 = vld [vmem:[%s1 + $0x330] sm:$0xff]
  %v117 = vld [vmem:[%s1 + $0x338] sm:$0xff]
  %v118 = vld [vmem:[%s1 + $0x340] sm:$0xff]
  %v119 = vld [vmem:[%s1 + $0x348] sm:$0xff]
  %v120 = vld [vmem:[%s1 + $0x350] sm:$0xff]
  %v121 = vld [vmem:[%s1 + $0x358] sm:$0xff]
  %v122 = vld [vmem:[%s1 + $0x360] sm:$0xff]
  %v123 = vld [vmem:[%s1 + $0x368] sm:$0xff]
  %v124 = vld [vmem:[%s1 + $0x370] sm:$0xff]
  %v125 = vld [vmem:[%s1 + $0x378] sm:$0xff]
  %v126 = vld [vmem:[%s1 + $0x380] sm:$0xff]
  %v127 = vld [vmem:[%s1 + $0x388] sm:$0xff]
  %v128 = vld [vmem:[%s1 + $0x390] sm:$0xff]
  %v129 = vld [vmem:[%s1 + $0x398] sm:$0xff]
  %v130 = vld [vmem:[%s1 + $0x3a0] sm:$0xff]
  %v131 = vld [vmem:[%s1 + $0x3a8] sm:$0xff]
  %v132 = vld [vmem:[%s1 + $0x3b0] sm:$0xff]
  %v133 = vld [vmem:[%s1 + $0x3b8] sm:$0xff]
  %v134 = vld [vmem:[%s1 + $0x3c0] sm:$0xff]
  %v135 = vld [vmem:[%s1 + $0x3c8] sm:$0xff]
  %v136 = vld [vmem:[%s1 + $0x3d0] sm:$0xff]
  %v137 = vld [vmem:[%s1 + $0x3d8] sm:$0xff]
  %v138 = vld [vmem:[%s1 + $0x3e0] sm:$0xff]
  %v139 = vld [vmem:[%s1 + $0x3e8] sm:$0xff]
  %v140 = vld [vmem:[%s1 + $0x3f0] sm:$0xff]
  %v141 = vld [vmem:[%s1 + $0x3f8] sm:$0xff]
  %v144 = vunpack.c.l.b16 %v12
  %v145 = vunpack.c.l.b16 %v13
  %v146 = vpack.c.b16 %v145, %v144
  %v276 = vunpack.c.l.b16 %v14
  %v277 = vunpack.c.h.b16 %v14
  %v278 = vunpack.c.l.b16 %v15
  %v279 = vunpack.c.h.b16 %v15
  %v280 = vunpack.c.l.b16 %v16
  %v281 = vunpack.c.h.b16 %v16
  %v282 = vunpack.c.l.b16 %v17
  %v283 = vunpack.c.h.b16 %v17
  %v284 = vunpack.c.l.b16 %v18
  %v285 = vunpack.c.h.b16 %v18
  %v286 = vunpack.c.l.b16 %v19
  %v287 = vunpack.c.h.b16 %v19
  %v288 = vunpack.c.l.b16 %v20
  %v289 = vunpack.c.h.b16 %v20
  %v290 = vunpack.c.l.b16 %v21
  %v291 = vunpack.c.h.b16 %v21
  %v292 = vunpack.c.l.b16 %v22
  %v293 = vunpack.c.h.b16 %v22
  %v294 = vunpack.c.l.b16 %v23
  %v295 = vunpack.c.h.b16 %v23
  %v296 = vunpack.c.l.b16 %v24
  %v297 = vunpack.c.h.b16 %v24
  %v298 = vunpack.c.l.b16 %v25
  %v299 = vunpack.c.h.b16 %v25
  %v300 = vunpack.c.l.b16 %v26
  %v301 = vunpack.c.h.b16 %v26
  %v302 = vunpack.c.l.b16 %v27
  %v303 = vunpack.c.h.b16 %v27
  %v304 = vunpack.c.l.b16 %v28
  %v305 = vunpack.c.h.b16 %v28
  %v306 = vunpack.c.l.b16 %v29
  %v307 = vunpack.c.h.b16 %v29
  %v308 = vunpack.c.l.b16 %v30
  %v309 = vunpack.c.h.b16 %v30
  %v310 = vunpack.c.l.b16 %v31
  %v311 = vunpack.c.h.b16 %v31
  %v312 = vunpack.c.l.b16 %v32
  %v313 = vunpack.c.h.b16 %v32
  %v314 = vunpack.c.l.b16 %v33
  %v315 = vunpack.c.h.b16 %v33
  %v316 = vunpack.c.l.b16 %v34
  %v317 = vunpack.c.h.b16 %v34
  %v318 = vunpack.c.l.b16 %v35
  %v319 = vunpack.c.h.b16 %v35
  %v320 = vunpack.c.l.b16 %v36
  %v321 = vunpack.c.h.b16 %v36
  %v322 = vunpack.c.l.b16 %v37
  %v323 = vunpack.c.h.b16 %v37
  %v324 = vunpack.c.l.b16 %v38
  %v325 = vunpack.c.h.b16 %v38
  %v326 = vunpack.c.l.b16 %v39
  %v327 = vunpack.c.h.b16 %v39
  %v328 = vunpack.c.l.b16 %v40
  %v329 = vunpack.c.h.b16 %v40
  %v330 = vunpack.c.l.b16 %v41
  %v331 = vunpack.c.h.b16 %v41
  %v332 = vunpack.c.l.b16 %v42
  %v333 = vunpack.c.h.b16 %v42
  %v334 = vunpack.c.l.b16 %v43
  %v335 = vunpack.c.h.b16 %v43
  %v336 = vunpack.c.l.b16 %v44
  %v337 = vunpack.c.h.b16 %v44
  %v338 = vunpack.c.l.b16 %v45
  %v339 = vunpack.c.h.b16 %v45
  %v340 = vunpack.c.l.b16 %v46
  %v341 = vunpack.c.h.b16 %v46
  %v342 = vunpack.c.l.b16 %v47
  %v343 = vunpack.c.h.b16 %v47
  %v344 = vunpack.c.l.b16 %v48
  %v345 = vunpack.c.h.b16 %v48
  %v346 = vunpack.c.l.b16 %v49
  %v347 = vunpack.c.h.b16 %v49
  %v348 = vunpack.c.l.b16 %v50
  %v349 = vunpack.c.h.b16 %v50
  %v350 = vunpack.c.l.b16 %v51
  %v351 = vunpack.c.h.b16 %v51
  %v352 = vunpack.c.l.b16 %v52
  %v353 = vunpack.c.h.b16 %v52
  %v354 = vunpack.c.l.b16 %v53
  %v355 = vunpack.c.h.b16 %v53
  %v356 = vunpack.c.l.b16 %v54
  %v357 = vunpack.c.h.b16 %v54
  %v358 = vunpack.c.l.b16 %v55
  %v359 = vunpack.c.h.b16 %v55
  %v360 = vunpack.c.l.b16 %v56
  %v361 = vunpack.c.h.b16 %v56
  %v362 = vunpack.c.l.b16 %v57
  %v363 = vunpack.c.h.b16 %v57
  %v364 = vunpack.c.l.b16 %v58
  %v365 = vunpack.c.h.b16 %v58
  %v366 = vunpack.c.l.b16 %v59
  %v367 = vunpack.c.h.b16 %v59
  %v368 = vunpack.c.l.b16 %v60
  %v369 = vunpack.c.h.b16 %v60
  %v370 = vunpack.c.l.b16 %v61
  %v371 = vunpack.c.h.b16 %v61
  %v372 = vunpack.c.l.b16 %v62
  %v373 = vunpack.c.h.b16 %v62
  %v374 = vunpack.c.l.b16 %v63
  %v375 = vunpack.c.h.b16 %v63
  %v376 = vunpack.c.l.b16 %v64
  %v377 = vunpack.c.h.b16 %v64
  %v378 = vunpack.c.l.b16 %v65
  %v379 = vunpack.c.h.b16 %v65
  %v380 = vunpack.c.l.b16 %v66
  %v381 = vunpack.c.h.b16 %v66
  %v382 = vunpack.c.l.b16 %v67
  %v383 = vunpack.c.h.b16 %v67
  %v384 = vunpack.c.l.b16 %v68
  %v385 = vunpack.c.h.b16 %v68
  %v386 = vunpack.c.l.b16 %v69
  %v387 = vunpack.c.h.b16 %v69
  %v388 = vunpack.c.l.b16 %v70
  %v389 = vunpack.c.h.b16 %v70
  %v390 = vunpack.c.l.b16 %v71
  %v391 = vunpack.c.h.b16 %v71
  %v392 = vunpack.c.l.b16 %v72
  %v393 = vunpack.c.h.b16 %v72
  %v394 = vunpack.c.l.b16 %v73
  %v395 = vunpack.c.h.b16 %v73
  %v396 = vunpack.c.l.b16 %v74
  %v397 = vunpack.c.h.b16 %v74
  %v398 = vunpack.c.l.b16 %v75
  %v399 = vunpack.c.h.b16 %v75
  %v400 = vunpack.c.l.b16 %v76
  %v401 = vunpack.c.h.b16 %v76
  %v402 = vunpack.c.l.b16 %v77
  %v403 = vunpack.c.h.b16 %v77
  %v404 = vunpack.c.l.b16 %v78
  %v405 = vunpack.c.h.b16 %v78
  %v406 = vunpack.c.l.b16 %v79
  %v407 = vunpack.c.h.b16 %v79
  %v408 = vunpack.c.l.b16 %v80
  %v409 = vunpack.c.h.b16 %v80
  %v410 = vunpack.c.l.b16 %v81
  %v411 = vunpack.c.h.b16 %v81
  %v412 = vunpack.c.l.b16 %v82
  %v413 = vunpack.c.h.b16 %v82
  %v414 = vunpack.c.l.b16 %v83
  %v415 = vunpack.c.h.b16 %v83
  %v416 = vunpack.c.l.b16 %v84
  %v417 = vunpack.c.h.b16 %v84
  %v418 = vunpack.c.l.b16 %v85
  %v419 = vunpack.c.h.b16 %v85
  %v420 = vunpack.c.l.b16 %v86
  %v421 = vunpack.c.h.b16 %v86
  %v422 = vunpack.c.l.b16 %v87
  %v423 = vunpack.c.h.b16 %v87
  %v424 = vunpack.c.l.b16 %v88
  %v425 = vunpack.c.h.b16 %v88
  %v426 = vunpack.c.l.b16 %v89
  %v427 = vunpack.c.h.b16 %v89
  %v428 = vunpack.c.l.b16 %v90
  %v429 = vunpack.c.h.b16 %v90
  %v430 = vunpack.c.l.b16 %v91
  %v431 = vunpack.c.h.b16 %v91
  %v432 = vunpack.c.l.b16 %v92
  %v433 = vunpack.c.h.b16 %v92
  %v434 = vunpack.c.l.b16 %v93
  %v435 = vunpack.c.h.b16 %v93
  %v436 = vunpack.c.l.b16 %v94
  %v437 = vunpack.c.h.b16 %v94
  %v438 = vunpack.c.l.b16 %v95
  %v439 = vunpack.c.h.b16 %v95
  %v440 = vunpack.c.l.b16 %v96
  %v441 = vunpack.c.h.b16 %v96
  %v442 = vunpack.c.l.b16 %v97
  %v443 = vunpack.c.h.b16 %v97
  %v444 = vunpack.c.l.b16 %v98
  %v445 = vunpack.c.h.b16 %v98
  %v446 = vunpack.c.l.b16 %v99
  %v447 = vunpack.c.h.b16 %v99
  %v448 = vunpack.c.l.b16 %v100
  %v449 = vunpack.c.h.b16 %v100
  %v450 = vunpack.c.l.b16 %v101
  %v451 = vunpack.c.h.b16 %v101
  %v452 = vunpack.c.l.b16 %v102
  %v453 = vunpack.c.h.b16 %v102
  %v454 = vunpack.c.l.b16 %v103
  %v455 = vunpack.c.h.b16 %v103
  %v456 = vunpack.c.l.b16 %v104
  %v457 = vunpack.c.h.b16 %v104
  %v458 = vunpack.c.l.b16 %v105
  %v459 = vunpack.c.h.b16 %v105
  %v460 = vunpack.c.l.b16 %v106
  %v461 = vunpack.c.h.b16 %v106
  %v462 = vunpack.c.l.b16 %v107
  %v463 = vunpack.c.h.b16 %v107
  %v464 = vunpack.c.l.b16 %v108
  %v465 = vunpack.c.h.b16 %v108
  %v466 = vunpack.c.l.b16 %v109
  %v467 = vunpack.c.h.b16 %v109
  %v468 = vunpack.c.l.b16 %v110
  %v469 = vunpack.c.h.b16 %v110
  %v470 = vunpack.c.l.b16 %v111
  %v471 = vunpack.c.h.b16 %v111
  %v472 = vunpack.c.l.b16 %v112
  %v473 = vunpack.c.h.b16 %v112
  %v474 = vunpack.c.l.b16 %v113
  %v475 = vunpack.c.h.b16 %v113
  %v476 = vunpack.c.l.b16 %v114
  %v477 = vunpack.c.h.b16 %v114
  %v478 = vunpack.c.l.b16 %v115
  %v479 = vunpack.c.h.b16 %v115
  %v480 = vunpack.c.l.b16 %v116
  %v481 = vunpack.c.h.b16 %v116
  %v482 = vunpack.c.l.b16 %v117
  %v483 = vunpack.c.h.b16 %v117
  %v484 = vunpack.c.l.b16 %v118
  %v485 = vunpack.c.h.b16 %v118
  %v486 = vunpack.c.l.b16 %v119
  %v487 = vunpack.c.h.b16 %v119
  %v488 = vunpack.c.l.b16 %v120
  %v489 = vunpack.c.h.b16 %v120
  %v490 = vunpack.c.l.b16 %v121
  %v491 = vunpack.c.h.b16 %v121
  %v492 = vunpack.c.l.b16 %v122
  %v493 = vunpack.c.h.b16 %v122
  %v494 = vunpack.c.l.b16 %v123
  %v495 = vunpack.c.h.b16 %v123
  %v496 = vunpack.c.l.b16 %v124
  %v497 = vunpack.c.h.b16 %v124
  %v498 = vunpack.c.l.b16 %v125
  %v499 = vunpack.c.h.b16 %v125
  %v500 = vunpack.c.l.b16 %v126
  %v501 = vunpack.c.h.b16 %v126
  %v502 = vunpack.c.l.b16 %v127
  %v503 = vunpack.c.h.b16 %v127
  %v504 = vunpack.c.l.b16 %v128
  %v505 = vunpack.c.h.b16 %v128
  %v506 = vunpack.c.l.b16 %v129
  %v507 = vunpack.c.h.b16 %v129
  %v508 = vunpack.c.l.b16 %v130
  %v509 = vunpack.c.h.b16 %v130
  %v510 = vunpack.c.l.b16 %v131
  %v511 = vunpack.c.h.b16 %v131
  %v512 = vunpack.c.l.b16 %v132
  %v513 = vunpack.c.h.b16 %v132
  %v514 = vunpack.c.l.b16 %v133
  %v515 = vunpack.c.h.b16 %v133
  %v516 = vunpack.c.l.b16 %v134
  %v517 = vunpack.c.h.b16 %v134
  %v518 = vunpack.c.l.b16 %v135
  %v519 = vunpack.c.h.b16 %v135
  %v520 = vunpack.c.l.b16 %v136
  %v521 = vunpack.c.h.b16 %v136
  %v522 = vunpack.c.l.b16 %v137
  %v523 = vunpack.c.h.b16 %v137
  %v524 = vunpack.c.l.b16 %v138
  %v525 = vunpack.c.h.b16 %v138
  %v526 = vunpack.c.l.b16 %v139
  %v527 = vunpack.c.h.b16 %v139
  %v528 = vunpack.c.l.b16 %v140
  %v529 = vunpack.c.h.b16 %v140
  %v530 = vunpack.c.l.b16 %v141
  %v531 = vunpack.c.h.b16 %v141
  %v532 = vpack.c.b16 %v292, %v276
  %v533 = vpack.c.b16 %v293, %v277
  %v534 = vpack.c.b16 %v294, %v278
  %v535 = vpack.c.b16 %v295, %v279
  %v536 = vpack.c.b16 %v296, %v280
  %v537 = vpack.c.b16 %v297, %v281
  %v538 = vpack.c.b16 %v298, %v282
  %v539 = vpack.c.b16 %v299, %v283
  %v540 = vpack.c.b16 %v300, %v284
  %v541 = vpack.c.b16 %v301, %v285
  %v542 = vpack.c.b16 %v302, %v286
  %v543 = vpack.c.b16 %v303, %v287
  %v544 = vpack.c.b16 %v304, %v288
  %v545 = vpack.c.b16 %v305, %v289
  %v546 = vpack.c.b16 %v306, %v290
  %v547 = vpack.c.b16 %v307, %v291
  %v548 = vpack.c.b16 %v324, %v308
  %v549 = vpack.c.b16 %v325, %v309
  %v550 = vpack.c.b16 %v326, %v310
  %v551 = vpack.c.b16 %v327, %v311
  %v552 = vpack.c.b16 %v328, %v312
  %v553 = vpack.c.b16 %v329, %v313
  %v554 = vpack.c.b16 %v330, %v314
  %v555 = vpack.c.b16 %v331, %v315
  %v556 = vpack.c.b16 %v332, %v316
  %v557 = vpack.c.b16 %v333, %v317
  %v558 = vpack.c.b16 %v334, %v318
  %v559 = vpack.c.b16 %v335, %v319
  %v560 = vpack.c.b16 %v336, %v320
  %v561 = vpack.c.b16 %v337, %v321
  %v562 = vpack.c.b16 %v338, %v322
  %v563 = vpack.c.b16 %v339, %v323
  %v564 = vpack.c.b16 %v356, %v340
  %v565 = vpack.c.b16 %v357, %v341
  %v566 = vpack.c.b16 %v358, %v342
  %v567 = vpack.c.b16 %v359, %v343
  %v568 = vpack.c.b16 %v360, %v344
  %v569 = vpack.c.b16 %v361, %v345
  %v570 = vpack.c.b16 %v362, %v346
  %v571 = vpack.c.b16 %v363, %v347
  %v572 = vpack.c.b16 %v364, %v348
  %v573 = vpack.c.b16 %v365, %v349
  %v574 = vpack.c.b16 %v366, %v350
  %v575 = vpack.c.b16 %v367, %v351
  %v576 = vpack.c.b16 %v368, %v352
  %v577 = vpack.c.b16 %v369, %v353
  %v578 = vpack.c.b16 %v370, %v354
  %v579 = vpack.c.b16 %v371, %v355
  %v580 = vpack.c.b16 %v388, %v372
  %v581 = vpack.c.b16 %v389, %v373
  %v582 = vpack.c.b16 %v390, %v374
  %v583 = vpack.c.b16 %v391, %v375
  %v584 = vpack.c.b16 %v392, %v376
  %v585 = vpack.c.b16 %v393, %v377
  %v586 = vpack.c.b16 %v394, %v378
  %v587 = vpack.c.b16 %v395, %v379
  %v588 = vpack.c.b16 %v396, %v380
  %v589 = vpack.c.b16 %v397, %v381
  %v590 = vpack.c.b16 %v398, %v382
  %v591 = vpack.c.b16 %v399, %v383
  %v592 = vpack.c.b16 %v400, %v384
  %v593 = vpack.c.b16 %v401, %v385
  %v594 = vpack.c.b16 %v402, %v386
  %v595 = vpack.c.b16 %v403, %v387
  %v596 = vpack.c.b16 %v420, %v404
  %v597 = vpack.c.b16 %v421, %v405
  %v598 = vpack.c.b16 %v422, %v406
  %v599 = vpack.c.b16 %v423, %v407
  %v600 = vpack.c.b16 %v424, %v408
  %v601 = vpack.c.b16 %v425, %v409
  %v602 = vpack.c.b16 %v426, %v410
  %v603 = vpack.c.b16 %v427, %v411
  %v604 = vpack.c.b16 %v428, %v412
  %v605 = vpack.c.b16 %v429, %v413
  %v606 = vpack.c.b16 %v430, %v414
  %v607 = vpack.c.b16 %v431, %v415
  %v608 = vpack.c.b16 %v432, %v416
  %v609 = vpack.c.b16 %v433, %v417
  %v610 = vpack.c.b16 %v434, %v418
  %v611 = vpack.c.b16 %v435, %v419
  %v612 = vpack.c.b16 %v452, %v436
  %v613 = vpack.c.b16 %v453, %v437
  %v614 = vpack.c.b16 %v454, %v438
  %v615 = vpack.c.b16 %v455, %v439
  %v616 = vpack.c.b16 %v456, %v440
  %v617 = vpack.c.b16 %v457, %v441
  %v618 = vpack.c.b16 %v458, %v442
  %v619 = vpack.c.b16 %v459, %v443
  %v620 = vpack.c.b16 %v460, %v444
  %v621 = vpack.c.b16 %v461, %v445
  %v622 = vpack.c.b16 %v462, %v446
  %v623 = vpack.c.b16 %v463, %v447
  %v624 = vpack.c.b16 %v464, %v448
  %v625 = vpack.c.b16 %v465, %v449
  %v626 = vpack.c.b16 %v466, %v450
  %v627 = vpack.c.b16 %v467, %v451
  %v628 = vpack.c.b16 %v484, %v468
  %v629 = vpack.c.b16 %v485, %v469
  %v630 = vpack.c.b16 %v486, %v470
  %v631 = vpack.c.b16 %v487, %v471
  %v632 = vpack.c.b16 %v488, %v472
  %v633 = vpack.c.b16 %v489, %v473
  %v634 = vpack.c.b16 %v490, %v474
  %v635 = vpack.c.b16 %v491, %v475
  %v636 = vpack.c.b16 %v492, %v476
  %v637 = vpack.c.b16 %v493, %v477
  %v638 = vpack.c.b16 %v494, %v478
  %v639 = vpack.c.b16 %v495, %v479
  %v640 = vpack.c.b16 %v496, %v480
  %v641 = vpack.c.b16 %v497, %v481
  %v642 = vpack.c.b16 %v498, %v482
  %v643 = vpack.c.b16 %v499, %v483
  %v644 = vpack.c.b16 %v516, %v500
  %v645 = vpack.c.b16 %v517, %v501
  %v646 = vpack.c.b16 %v518, %v502
  %v647 = vpack.c.b16 %v519, %v503
  %v648 = vpack.c.b16 %v520, %v504
  %v649 = vpack.c.b16 %v521, %v505
  %v650 = vpack.c.b16 %v522, %v506
  %v651 = vpack.c.b16 %v523, %v507
  %v652 = vpack.c.b16 %v524, %v508
  %v653 = vpack.c.b16 %v525, %v509
  %v654 = vpack.c.b16 %v526, %v510
  %v655 = vpack.c.b16 %v527, %v511
  %v656 = vpack.c.b16 %v528, %v512
  %v657 = vpack.c.b16 %v529, %v513
  %v658 = vpack.c.b16 %v530, %v514
  %v659 = vpack.c.b16 %v531, %v515
  %788 = vmatprep.subr.bf16.mxu0 %v645
  %789 = vmatpush1.bf16.msra.mxu0 %v644
  %790 = vmatprep.subr.bf16.mxu0 %v629
  %791 = vmatpush1.bf16.msra.mxu0 %v628
  %792 = vmatprep.subr.bf16.mxu0 %v613
  %793 = vmatpush1.bf16.msra.mxu0 %v612
  %794 = vmatprep.subr.bf16.mxu0 %v597
  %795 = vmatpush1.bf16.msra.mxu0 %v596
  %796 = vmatprep.subr.bf16.mxu0 %v581
  %797 = vmatpush1.bf16.msra.mxu0 %v580
  %798 = vmatprep.subr.bf16.mxu0 %v565
  %799 = vmatpush1.bf16.msra.mxu0 %v564
  %800 = vmatprep.subr.bf16.mxu0 %v549
  %801 = vmatpush1.bf16.msra.mxu0 %v548
  %802 = vmatprep.subr.bf16.mxu0 %v533
  %803 = vmatpush1.bf16.msra.mxu0 %v532
  %804 = vmatprep.subr.bf16.mxu0 0
  %805 = vmatpush2.bf16.msra.mxu0 0
  %806 = vmatprep.subr.bf16.mxu0 0
  %807 = vmatpush2.bf16.msra.mxu0 0
  %808 = vmatprep.subr.bf16.mxu0 0
  %809 = vmatpush2.bf16.msra.mxu0 0
  %810 = vmatprep.subr.bf16.mxu0 0
  %811 = vmatpush2.bf16.msra.mxu0 0
  %812 = vmatprep.subr.bf16.mxu0 0
  %813 = vmatpush2.bf16.msra.mxu0 0
  %814 = vmatprep.subr.bf16.mxu0 0
  %815 = vmatpush2.bf16.msra.mxu0 0
  %816 = vmatprep.subr.bf16.mxu0 0
  %817 = vmatpush2.bf16.msra.mxu0 0
  %818 = vmatprep.subr.bf16.mxu0 0
  %819 = vmatpush2.bf16.msra.mxu0 0
  %820 = vmatprep.mubr.bf16.mxu0 0
  %821 = vmatmul.mubr.bf16.gmra.mxu0 %v146
  %v822 = vpop.f32.mrf.mxu0
  %v823 = vadd.f32 0.0, %v822
  %v824 = vpop.f32.mrf.mxu0
  %v825 = vadd.f32 0.0, %v824
  %v826 = vpop.f32.mrf.mxu0
  %v827 = vadd.f32 0.0, %v826
  %v828 = vpop.f32.mrf.mxu0
  %v829 = vadd.f32 0.0, %v828
  %830 = vdwg.mxu0
  %831 = vmatprep.subr.bf16.mxu0 %v647
  %832 = vmatpush1.bf16.msra.mxu0 %v646
  %833 = vmatprep.subr.bf16.mxu0 %v631
  %834 = vmatpush1.bf16.msra.mxu0 %v630
  %835 = vmatprep.subr.bf16.mxu0 %v615
  %836 = vmatpush1.bf16.msra.mxu0 %v614
  %837 = vmatprep.subr.bf16.mxu0 %v599
  %838 = vmatpush1.bf16.msra.mxu0 %v598
  %839 = vmatprep.subr.bf16.mxu0 %v583
  %840 = vmatpush1.bf16.msra.mxu0 %v582
  %841 = vmatprep.subr.bf16.mxu0 %v567
  %842 = vmatpush1.bf16.msra.mxu0 %v566
  %843 = vmatprep.subr.bf16.mxu0 %v551
  %844 = vmatpush1.bf16.msra.mxu0 %v550
  %845 = vmatprep.subr.bf16.mxu0 %v535
  %846 = vmatpush1.bf16.msra.mxu0 %v534
  %847 = vmatprep.subr.bf16.mxu0 0
  %848 = vmatpush2.bf16.msra.mxu0 0
  %849 = vmatprep.subr.bf16.mxu0 0
  %850 = vmatpush2.bf16.msra.mxu0 0
  %851 = vmatprep.subr.bf16.mxu0 0
  %852 = vmatpush2.bf16.msra.mxu0 0
  %853 = vmatprep.subr.bf16.mxu0 0
  %854 = vmatpush2.bf16.msra.mxu0 0
  %855 = vmatprep.subr.bf16.mxu0 0
  %856 = vmatpush2.bf16.msra.mxu0 0
  %857 = vmatprep.subr.bf16.mxu0 0
  %858 = vmatpush2.bf16.msra.mxu0 0
  %859 = vmatprep.subr.bf16.mxu0 0
  %860 = vmatpush2.bf16.msra.mxu0 0
  %861 = vmatprep.subr.bf16.mxu0 0
  %862 = vmatpush2.bf16.msra.mxu0 0
  %863 = vmatprep.mubr.bf16.mxu0 0
  %864 = vmatmul.mubr.bf16.gmra.mxu0 %v146
  %v865 = vpop.f32.mrf.mxu0
  %v866 = vadd.f32 0.0, %v865
  %v867 = vpop.f32.mrf.mxu0
  %v868 = vadd.f32 0.0, %v867
  %v869 = vpop.f32.mrf.mxu0
  %v870 = vadd.f32 0.0, %v869
  %v871 = vpop.f32.mrf.mxu0
  %v872 = vadd.f32 0.0, %v871
  %873 = vdwg.mxu0
  %874 = vmatprep.subr.bf16.mxu0 %v649
  %875 = vmatpush1.bf16.msra.mxu0 %v648
  %876 = vmatprep.subr.bf16.mxu0 %v633
  %877 = vmatpush1.bf16.msra.mxu0 %v632
  %878 = vmatprep.subr.bf16.mxu0 %v617
  %879 = vmatpush1.bf16.msra.mxu0 %v616
  %880 = vmatprep.subr.bf16.mxu0 %v601
  %881 = vmatpush1.bf16.msra.mxu0 %v600
  %882 = vmatprep.subr.bf16.mxu0 %v585
  %883 = vmatpush1.bf16.msra.mxu0 %v584
  %884 = vmatprep.subr.bf16.mxu0 %v569
  %885 = vmatpush1.bf16.msra.mxu0 %v568
  %886 = vmatprep.subr.bf16.mxu0 %v553
  %887 = vmatpush1.bf16.msra.mxu0 %v552
  %888 = vmatprep.subr.bf16.mxu0 %v537
  %889 = vmatpush1.bf16.msra.mxu0 %v536
  %890 = vmatprep.subr.bf16.mxu0 0
  %891 = vmatpush2.bf16.msra.mxu0 0
  %892 = vmatprep.subr.bf16.mxu0 0
  %893 = vmatpush2.bf16.msra.mxu0 0
  %894 = vmatprep.subr.bf16.mxu0 0
  %895 = vmatpush2.bf16.msra.mxu0 0
  %896 = vmatprep.subr.bf16.mxu0 0
  %897 = vmatpush2.bf16.msra.mxu0 0
  %898 = vmatprep.subr.bf16.mxu0 0
  %899 = vmatpush2.bf16.msra.mxu0 0
  %900 = vmatprep.subr.bf16.mxu0 0
  %901 = vmatpush2.bf16.msra.mxu0 0
  %902 = vmatprep.subr.bf16.mxu0 0
  %903 = vmatpush2.bf16.msra.mxu0 0
  %904 = vmatprep.subr.bf16.mxu0 0
  %905 = vmatpush2.bf16.msra.mxu0 0
  %906 = vmatprep.mubr.bf16.mxu0 0
  %907 = vmatmul.mubr.bf16.gmra.mxu0 %v146
  %v908 = vpop.f32.mrf.mxu0
  %v909 = vadd.f32 0.0, %v908
  %v910 = vpop.f32.mrf.mxu0
  %v911 = vadd.f32 0.0, %v910
  %v912 = vpop.f32.mrf.mxu0
  %v913 = vadd.f32 0.0, %v912
  %v914 = vpop.f32.mrf.mxu0
  %v915 = vadd.f32 0.0, %v914
  %916 = vdwg.mxu0
  %917 = vmatprep.subr.bf16.mxu0 %v651
  %918 = vmatpush1.bf16.msra.mxu0 %v650
  %919 = vmatprep.subr.bf16.mxu0 %v635
  %920 = vmatpush1.bf16.msra.mxu0 %v634
  %921 = vmatprep.subr.bf16.mxu0 %v619
  %922 = vmatpush1.bf16.msra.mxu0 %v618
  %923 = vmatprep.subr.bf16.mxu0 %v603
  %924 = vmatpush1.bf16.msra.mxu0 %v602
  %925 = vmatprep.subr.bf16.mxu0 %v587
  %926 = vmatpush1.bf16.msra.mxu0 %v586
  %927 = vmatprep.subr.bf16.mxu0 %v571
  %928 = vmatpush1.bf16.msra.mxu0 %v570
  %929 = vmatprep.subr.bf16.mxu0 %v555
  %930 = vmatpush1.bf16.msra.mxu0 %v554
  %931 = vmatprep.subr.bf16.mxu0 %v539
  %932 = vmatpush1.bf16.msra.mxu0 %v538
  %933 = vmatprep.subr.bf16.mxu0 0
  %934 = vmatpush2.bf16.msra.mxu0 0
  %935 = vmatprep.subr.bf16.mxu0 0
  %936 = vmatpush2.bf16.msra.mxu0 0
  %937 = vmatprep.subr.bf16.mxu0 0
  %938 = vmatpush2.bf16.msra.mxu0 0
  %939 = vmatprep.subr.bf16.mxu0 0
  %940 = vmatpush2.bf16.msra.mxu0 0
  %941 = vmatprep.subr.bf16.mxu0 0
  %942 = vmatpush2.bf16.msra.mxu0 0
  %943 = vmatprep.subr.bf16.mxu0 0
  %944 = vmatpush2.bf16.msra.mxu0 0
  %945 = vmatprep.subr.bf16.mxu0 0
  %946 = vmatpush2.bf16.msra.mxu0 0
  %947 = vmatprep.subr.bf16.mxu0 0
  %948 = vmatpush2.bf16.msra.mxu0 0
  %949 = vmatprep.mubr.bf16.mxu0 0
  %950 = vmatmul.mubr.bf16.gmra.mxu0 %v146
  %v951 = vpop.f32.mrf.mxu0
  %v952 = vadd.f32 0.0, %v951
  %v953 = vpop.f32.mrf.mxu0
  %v954 = vadd.f32 0.0, %v953
  %v955 = vpop.f32.mrf.mxu0
  %v956 = vadd.f32 0.0, %v955
  %v957 = vpop.f32.mrf.mxu0
  %v958 = vadd.f32 0.0, %v957
  %959 = vdwg.mxu0
  %960 = vmatprep.subr.bf16.mxu0 %v653
  %961 = vmatpush1.bf16.msra.mxu0 %v652
  %962 = vmatprep.subr.bf16.mxu0 %v637
  %963 = vmatpush1.bf16.msra.mxu0 %v636
  %964 = vmatprep.subr.bf16.mxu0 %v621
  %965 = vmatpush1.bf16.msra.mxu0 %v620
  %966 = vmatprep.subr.bf16.mxu0 %v605
  %967 = vmatpush1.bf16.msra.mxu0 %v604
  %968 = vmatprep.subr.bf16.mxu0 %v589
  %969 = vmatpush1.bf16.msra.mxu0 %v588
  %970 = vmatprep.subr.bf16.mxu0 %v573
  %971 = vmatpush1.bf16.msra.mxu0 %v572
  %972 = vmatprep.subr.bf16.mxu0 %v557
  %973 = vmatpush1.bf16.msra.mxu0 %v556
  %974 = vmatprep.subr.bf16.mxu0 %v541
  %975 = vmatpush1.bf16.msra.mxu0 %v540
  %976 = vmatprep.subr.bf16.mxu0 0
  %977 = vmatpush2.bf16.msra.mxu0 0
  %978 = vmatprep.subr.bf16.mxu0 0
  %979 = vmatpush2.bf16.msra.mxu0 0
  %980 = vmatprep.subr.bf16.mxu0 0
  %981 = vmatpush2.bf16.msra.mxu0 0
  %982 = vmatprep.subr.bf16.mxu0 0
  %983 = vmatpush2.bf16.msra.mxu0 0
  %984 = vmatprep.subr.bf16.mxu0 0
  %985 = vmatpush2.bf16.msra.mxu0 0
  %986 = vmatprep.subr.bf16.mxu0 0
  %987 = vmatpush2.bf16.msra.mxu0 0
  %988 = vmatprep.subr.bf16.mxu0 0
  %989 = vmatpush2.bf16.msra.mxu0 0
  %990 = vmatprep.subr.bf16.mxu0 0
  %991 = vmatpush2.bf16.msra.mxu0 0
  %992 = vmatprep.mubr.bf16.mxu0 0
  %993 = vmatmul.mubr.bf16.gmra.mxu0 %v146
  %v994 = vpop.f32.mrf.mxu0
  %v995 = vadd.f32 0.0, %v994
  %v996 = vpop.f32.mrf.mxu0
  %v997 = vadd.f32 0.0, %v996
  %v998 = vpop.f32.mrf.mxu0
  %v999 = vadd.f32 0.0, %v998
  %v1000 = vpop.f32.mrf.mxu0
  %v1001 = vadd.f32 0.0, %v1000
  %1002 = vdwg.mxu0
  %1003 = vmatprep.subr.bf16.mxu0 %v655
  %1004 = vmatpush1.bf16.msra.mxu0 %v654
  %1005 = vmatprep.subr.bf16.mxu0 %v639
  %1006 = vmatpush1.bf16.msra.mxu0 %v638
  %1007 = vmatprep.subr.bf16.mxu0 %v623
  %1008 = vmatpush1.bf16.msra.mxu0 %v622
  %1009 = vmatprep.subr.bf16.mxu0 %v607
  %1010 = vmatpush1.bf16.msra.mxu0 %v606
  %1011 = vmatprep.subr.bf16.mxu0 %v591
  %1012 = vmatpush1.bf16.msra.mxu0 %v590
  %1013 = vmatprep.subr.bf16.mxu0 %v575
  %1014 = vmatpush1.bf16.msra.mxu0 %v574
  %1015 = vmatprep.subr.bf16.mxu0 %v559
  %1016 = vmatpush1.bf16.msra.mxu0 %v558
  %1017 = vmatprep.subr.bf16.mxu0 %v543
  %1018 = vmatpush1.bf16.msra.mxu0 %v542
  %1019 = vmatprep.subr.bf16.mxu0 0
  %1020 = vmatpush2.bf16.msra.mxu0 0
  %1021 = vmatprep.subr.bf16.mxu0 0
  %1022 = vmatpush2.bf16.msra.mxu0 0
  %1023 = vmatprep.subr.bf16.mxu0 0
  %1024 = vmatpush2.bf16.msra.mxu0 0
  %1025 = vmatprep.subr.bf16.mxu0 0
  %1026 = vmatpush2.bf16.msra.mxu0 0
  %1027 = vmatprep.subr.bf16.mxu0 0
  %1028 = vmatpush2.bf16.msra.mxu0 0
  %1029 = vmatprep.subr.bf16.mxu0 0
  %1030 = vmatpush2.bf16.msra.mxu0 0
  %1031 = vmatprep.subr.bf16.mxu0 0
  %1032 = vmatpush2.bf16.msra.mxu0 0
  %1033 = vmatprep.subr.bf16.mxu0 0
  %1034 = vmatpush2.bf16.msra.mxu0 0
  %1035 = vmatprep.mubr.bf16.mxu0 0
  %1036 = vmatmul.mubr.bf16.gmra.mxu0 %v146
  %v1037 = vpop.f32.mrf.mxu0
  %v1038 = vadd.f32 0.0, %v1037
  %v1039 = vpop.f32.mrf.mxu0
  %v1040 = vadd.f32 0.0, %v1039
  %v1041 = vpop.f32.mrf.mxu0
  %v1042 = vadd.f32 0.0, %v1041
  %v1043 = vpop.f32.mrf.mxu0
  %v1044 = vadd.f32 0.0, %v1043
  %1045 = vdwg.mxu0
  %1046 = vmatprep.subr.bf16.mxu0 %v657
  %1047 = vmatpush1.bf16.msra.mxu0 %v656
  %1048 = vmatprep.subr.bf16.mxu0 %v641
  %1049 = vmatpush1.bf16.msra.mxu0 %v640
  %1050 = vmatprep.subr.bf16.mxu0 %v625
  %1051 = vmatpush1.bf16.msra.mxu0 %v624
  %1052 = vmatprep.subr.bf16.mxu0 %v609
  %1053 = vmatpush1.bf16.msra.mxu0 %v608
  %1054 = vmatprep.subr.bf16.mxu0 %v593
  %1055 = vmatpush1.bf16.msra.mxu0 %v592
  %1056 = vmatprep.subr.bf16.mxu0 %v577
  %1057 = vmatpush1.bf16.msra.mxu0 %v576
  %1058 = vmatprep.subr.bf16.mxu0 %v561
  %1059 = vmatpush1.bf16.msra.mxu0 %v560
  %1060 = vmatprep.subr.bf16.mxu0 %v545
  %1061 = vmatpush1.bf16.msra.mxu0 %v544
  %1062 = vmatprep.subr.bf16.mxu0 0
  %1063 = vmatpush2.bf16.msra.mxu0 0
  %1064 = vmatprep.subr.bf16.mxu0 0
  %1065 = vmatpush2.bf16.msra.mxu0 0
  %1066 = vmatprep.subr.bf16.mxu0 0
  %1067 = vmatpush2.bf16.msra.mxu0 0
  %1068 = vmatprep.subr.bf16.mxu0 0
  %1069 = vmatpush2.bf16.msra.mxu0 0
  %1070 = vmatprep.subr.bf16.mxu0 0
  %1071 = vmatpush2.bf16.msra.mxu0 0
  %1072 = vmatprep.subr.bf16.mxu0 0
  %1073 = vmatpush2.bf16.msra.mxu0 0
  %1074 = vmatprep.subr.bf16.mxu0 0
  %1075 = vmatpush2.bf16.msra.mxu0 0
  %1076 = vmatprep.subr.bf16.mxu0 0
  %1077 = vmatpush2.bf16.msra.mxu0 0
  %1078 = vmatprep.mubr.bf16.mxu0 0
  %1079 = vmatmul.mubr.bf16.gmra.mxu0 %v146
  %v1080 = vpop.f32.mrf.mxu0
  %v1081 = vadd.f32 0.0, %v1080
  %v1082 = vpop.f32.mrf.mxu0
  %v1083 = vadd.f32 0.0, %v1082
  %v1084 = vpop.f32.mrf.mxu0
  %v1085 = vadd.f32 0.0, %v1084
  %v1086 = vpop.f32.mrf.mxu0
  %v1087 = vadd.f32 0.0, %v1086
  %1088 = vdwg.mxu0
  %1089 = vmatprep.subr.bf16.mxu0 %v659
  %1090 = vmatpush1.bf16.msra.mxu0 %v658
  %1091 = vmatprep.subr.bf16.mxu0 %v643
  %1092 = vmatpush1.bf16.msra.mxu0 %v642
  %1093 = vmatprep.subr.bf16.mxu0 %v627
  %1094 = vmatpush1.bf16.msra.mxu0 %v626
  %1095 = vmatprep.subr.bf16.mxu0 %v611
  %1096 = vmatpush1.bf16.msra.mxu0 %v610
  %1097 = vmatprep.subr.bf16.mxu0 %v595
  %1098 = vmatpush1.bf16.msra.mxu0 %v594
  %1099 = vmatprep.subr.bf16.mxu0 %v579
  %1100 = vmatpush1.bf16.msra.mxu0 %v578
  %1101 = vmatprep.subr.bf16.mxu0 %v563
  %1102 = vmatpush1.bf16.msra.mxu0 %v562
  %1103 = vmatprep.subr.bf16.mxu0 %v547
  %1104 = vmatpush1.bf16.msra.mxu0 %v546
  %1105 = vmatprep.subr.bf16.mxu0 0
  %1106 = vmatpush2.bf16.msra.mxu0 0
  %1107 = vmatprep.subr.bf16.mxu0 0
  %1108 = vmatpush2.bf16.msra.mxu0 0
  %1109 = vmatprep.subr.bf16.mxu0 0
  %1110 = vmatpush2.bf16.msra.mxu0 0
  %1111 = vmatprep.subr.bf16.mxu0 0
  %1112 = vmatpush2.bf16.msra.mxu0 0
  %1113 = vmatprep.subr.bf16.mxu0 0
  %1114 = vmatpush2.bf16.msra.mxu0 0
  %1115 = vmatprep.subr.bf16.mxu0 0
  %1116 = vmatpush2.bf16.msra.mxu0 0
  %1117 = vmatprep.subr.bf16.mxu0 0
  %1118 = vmatpush2.bf16.msra.mxu0 0
  %1119 = vmatprep.subr.bf16.mxu0 0
  %1120 = vmatpush2.bf16.msra.mxu0 0
  %1121 = vmatprep.mubr.bf16.mxu0 0
  %1122 = vmatmul.mubr.bf16.gmra.mxu0 %v146
  %v1123 = vpop.f32.mrf.mxu0
  %v1124 = vadd.f32 0.0, %v1123
  %v1125 = vpop.f32.mrf.mxu0
  %v1126 = vadd.f32 0.0, %v1125
  %v1127 = vpop.f32.mrf.mxu0
  %v1128 = vadd.f32 0.0, %v1127
  %v1129 = vpop.f32.mrf.mxu0
  %v1130 = vadd.f32 0.0, %v1129
  %1131 = vdwg.mxu0
  %v1132 = vadd.f32 %v823, %v825
  %v1133 = vadd.f32 %v1132, %v866
  %v1134 = vadd.f32 %v1133, %v868
  %v1135 = vadd.f32 %v1134, %v909
  %v1136 = vadd.f32 %v1135, %v911
  %v1137 = vadd.f32 %v1136, %v952
  %v1138 = vadd.f32 %v1137, %v954
  %v1139 = vadd.f32 %v1138, %v995
  %v1140 = vadd.f32 %v1139, %v997
  %v1141 = vadd.f32 %v1140, %v1038
  %v1142 = vadd.f32 %v1141, %v1040
  %v1143 = vadd.f32 %v1142, %v1081
  %v1144 = vadd.f32 %v1143, %v1083
  %v1145 = vadd.f32 %v1144, %v1124
  %v1146 = vadd.f32 %v1145, %v1126
  %1147 = vadd.xlane.f32.xlu0 %v1146
  %v1148 = vpop.xlane.xlu0 %1147
  %v1149 = vadd.f32 %v827, %v829
  %v1150 = vadd.f32 %v1149, %v870
  %v1151 = vadd.f32 %v1150, %v872
  %v1152 = vadd.f32 %v1151, %v913
  %v1153 = vadd.f32 %v1152, %v915
  %v1154 = vadd.f32 %v1153, %v956
  %v1155 = vadd.f32 %v1154, %v958
  %v1156 = vadd.f32 %v1155, %v999
  %v1157 = vadd.f32 %v1156, %v1001
  %v1158 = vadd.f32 %v1157, %v1042
  %v1159 = vadd.f32 %v1158, %v1044
  %v1160 = vadd.f32 %v1159, %v1085
  %v1161 = vadd.f32 %v1160, %v1087
  %v1162 = vadd.f32 %v1161, %v1128
  %v1163 = vadd.f32 %v1162, %v1130
  %1164 = vadd.xlane.f32.xlu0 %v1163
  %v1165 = vpop.xlane.xlu0 %1164
  %v1166 = vrcp.pop 2048.0
  %v1167 = vmul.f32 %v1148, %v1166
  %v1168 = vmul.f32 %v1165, %v1166
  %v1169 = vsub.f32 %v823, %v1167
  %v1170 = vsub.f32 %v825, %v1167
  %v1171 = vsub.f32 %v866, %v1167
  %v1172 = vsub.f32 %v868, %v1167
  %v1173 = vsub.f32 %v909, %v1167
  %v1174 = vsub.f32 %v911, %v1167
  %v1175 = vsub.f32 %v952, %v1167
  %v1176 = vsub.f32 %v954, %v1167
  %v1177 = vsub.f32 %v995, %v1167
  %v1178 = vsub.f32 %v997, %v1167
  %v1179 = vsub.f32 %v1038, %v1167
  %v1180 = vsub.f32 %v1040, %v1167
  %v1181 = vsub.f32 %v1081, %v1167
  %v1182 = vsub.f32 %v1083, %v1167
  %v1183 = vsub.f32 %v1124, %v1167
  %v1184 = vsub.f32 %v1126, %v1167
  %v1185 = vsub.f32 %v827, %v1168
  %v1186 = vsub.f32 %v829, %v1168
  %v1187 = vsub.f32 %v870, %v1168
  %v1188 = vsub.f32 %v872, %v1168
  %v1189 = vsub.f32 %v913, %v1168
  %v1190 = vsub.f32 %v915, %v1168
  %v1191 = vsub.f32 %v956, %v1168
  %v1192 = vsub.f32 %v958, %v1168
  %v1193 = vsub.f32 %v999, %v1168
  %v1194 = vsub.f32 %v1001, %v1168
  %v1195 = vsub.f32 %v1042, %v1168
  %v1196 = vsub.f32 %v1044, %v1168
  %v1197 = vsub.f32 %v1085, %v1168
  %v1198 = vsub.f32 %v1087, %v1168
  %v1199 = vsub.f32 %v1128, %v1168
  %v1200 = vsub.f32 %v1130, %v1168
  %v1201 = vmul.f32 %v1169, %v1169
  %v1202 = vmul.f32 %v1170, %v1170
  %v1203 = vmul.f32 %v1171, %v1171
  %v1204 = vmul.f32 %v1172, %v1172
  %v1205 = vmul.f32 %v1173, %v1173
  %v1206 = vmul.f32 %v1174, %v1174
  %v1207 = vmul.f32 %v1175, %v1175
  %v1208 = vmul.f32 %v1176, %v1176
  %v1209 = vmul.f32 %v1177, %v1177
  %v1210 = vmul.f32 %v1178, %v1178
  %v1211 = vmul.f32 %v1179, %v1179
  %v1212 = vmul.f32 %v1180, %v1180
  %v1213 = vmul.f32 %v1181, %v1181
  %v1214 = vmul.f32 %v1182, %v1182
  %v1215 = vmul.f32 %v1183, %v1183
  %v1216 = vmul.f32 %v1184, %v1184
  %v1217 = vmul.f32 %v1185, %v1185
  %v1218 = vmul.f32 %v1186, %v1186
  %v1219 = vmul.f32 %v1187, %v1187
  %v1220 = vmul.f32 %v1188, %v1188
  %v1221 = vmul.f32 %v1189, %v1189
  %v1222 = vmul.f32 %v1190, %v1190
  %v1223 = vmul.f32 %v1191, %v1191
  %v1224 = vmul.f32 %v1192, %v1192
  %v1225 = vmul.f32 %v1193, %v1193
  %v1226 = vmul.f32 %v1194, %v1194
  %v1227 = vmul.f32 %v1195, %v1195
  %v1228 = vmul.f32 %v1196, %v1196
  %v1229 = vmul.f32 %v1197, %v1197
  %v1230 = vmul.f32 %v1198, %v1198
  %v1231 = vmul.f32 %v1199, %v1199
  %v1232 = vmul.f32 %v1200, %v1200
  %v1233 = vadd.f32 %v1201, %v1202
  %v1234 = vadd.f32 %v1233, %v1203
  %v1235 = vadd.f32 %v1234, %v1204
  %v1236 = vadd.f32 %v1235, %v1205
  %v1237 = vadd.f32 %v1236, %v1206
  %v1238 = vadd.f32 %v1237, %v1207
  %v1239 = vadd.f32 %v1238, %v1208
  %v1240 = vadd.f32 %v1239, %v1209
  %v1241 = vadd.f32 %v1240, %v1210
  %v1242 = vadd.f32 %v1241, %v1211
  %v1243 = vadd.f32 %v1242, %v1212
  %v1244 = vadd.f32 %v1243, %v1213
  %v1245 = vadd.f32 %v1244, %v1214
  %v1246 = vadd.f32 %v1245, %v1215
  %v1247 = vadd.f32 %v1246, %v1216
  %1248 = vadd.xlane.f32.xlu0 %v1247
  %v1249 = vpop.xlane.xlu0 %1248
  %v1250 = vadd.f32 %v1217, %v1218
  %v1251 = vadd.f32 %v1250, %v1219
  %v1252 = vadd.f32 %v1251, %v1220
  %v1253 = vadd.f32 %v1252, %v1221
  %v1254 = vadd.f32 %v1253, %v1222
  %v1255 = vadd.f32 %v1254, %v1223
  %v1256 = vadd.f32 %v1255, %v1224
  %v1257 = vadd.f32 %v1256, %v1225
  %v1258 = vadd.f32 %v1257, %v1226
  %v1259 = vadd.f32 %v1258, %v1227
  %v1260 = vadd.f32 %v1259, %v1228
  %v1261 = vadd.f32 %v1260, %v1229
  %v1262 = vadd.f32 %v1261, %v1230
  %v1263 = vadd.f32 %v1262, %v1231
  %v1264 = vadd.f32 %v1263, %v1232
  %1265 = vadd.xlane.f32.xlu0 %v1264
  %v1266 = vpop.xlane.xlu0 %1265
  %v1267 = vmul.f32 %v1249, %v1166
  %v1268 = vmul.f32 %v1266, %v1166
  %v1269 = vadd.f32 %v1267, 1e-05
  %v1270 = vadd.f32 %v1268, 1e-05
  %v1271 = vrsqrt.pop %v1269
  %v1272 = vrsqrt.pop %v1270
  %v1273 = vmul.f32 %v1169, %v1271
  %v1274 = vmul.f32 %v1170, %v1271
  %v1275 = vmul.f32 %v1171, %v1271
  %v1276 = vmul.f32 %v1172, %v1271
  %v1277 = vmul.f32 %v1173, %v1271
  %v1278 = vmul.f32 %v1174, %v1271
  %v1279 = vmul.f32 %v1175, %v1271
  %v1280 = vmul.f32 %v1176, %v1271
  %v1281 = vmul.f32 %v1177, %v1271
  %v1282 = vmul.f32 %v1178, %v1271
  %v1283 = vmul.f32 %v1179, %v1271
  %v1284 = vmul.f32 %v1180, %v1271
  %v1285 = vmul.f32 %v1181, %v1271
  %v1286 = vmul.f32 %v1182, %v1271
  %v1287 = vmul.f32 %v1183, %v1271
  %v1288 = vmul.f32 %v1184, %v1271
  %v1289 = vmul.f32 %v1185, %v1272
  %v1290 = vmul.f32 %v1186, %v1272
  %v1291 = vmul.f32 %v1187, %v1272
  %v1292 = vmul.f32 %v1188, %v1272
  %v1293 = vmul.f32 %v1189, %v1272
  %v1294 = vmul.f32 %v1190, %v1272
  %v1295 = vmul.f32 %v1191, %v1272
  %v1296 = vmul.f32 %v1192, %v1272
  %v1297 = vmul.f32 %v1193, %v1272
  %v1298 = vmul.f32 %v1194, %v1272
  %v1299 = vmul.f32 %v1195, %v1272
  %v1300 = vmul.f32 %v1196, %v1272
  %v1301 = vmul.f32 %v1197, %v1272
  %v1302 = vmul.f32 %v1198, %v1272
  %v1303 = vmul.f32 %v1199, %v1272
  %v1304 = vmul.f32 %v1200, %v1272
  %vm1305 = vcmp.gt.f32.partialorder %v1273, 0.0
  %vm1306 = vcmp.gt.f32.partialorder %v1274, 0.0
  %vm1307 = vcmp.gt.f32.partialorder %v1275, 0.0
  %vm1308 = vcmp.gt.f32.partialorder %v1276, 0.0
  %vm1309 = vcmp.gt.f32.partialorder %v1277, 0.0
  %vm1310 = vcmp.gt.f32.partialorder %v1278, 0.0
  %vm1311 = vcmp.gt.f32.partialorder %v1279, 0.0
  %vm1312 = vcmp.gt.f32.partialorder %v1280, 0.0
  %vm1313 = vcmp.gt.f32.partialorder %v1281, 0.0
  %vm1314 = vcmp.gt.f32.partialorder %v1282, 0.0
  %vm1315 = vcmp.gt.f32.partialorder %v1283, 0.0
  %vm1316 = vcmp.gt.f32.partialorder %v1284, 0.0
  %vm1317 = vcmp.gt.f32.partialorder %v1285, 0.0
  %vm1318 = vcmp.gt.f32.partialorder %v1286, 0.0
  %vm1319 = vcmp.gt.f32.partialorder %v1287, 0.0
  %vm1320 = vcmp.gt.f32.partialorder %v1288, 0.0
  %vm1321 = vcmp.gt.f32.partialorder %v1289, 0.0
  %vm1322 = vcmp.gt.f32.partialorder %v1290, 0.0
  %vm1323 = vcmp.gt.f32.partialorder %v1291, 0.0
  %vm1324 = vcmp.gt.f32.partialorder %v1292, 0.0
  %vm1325 = vcmp.gt.f32.partialorder %v1293, 0.0
  %vm1326 = vcmp.gt.f32.partialorder %v1294, 0.0
  %vm1327 = vcmp.gt.f32.partialorder %v1295, 0.0
  %vm1328 = vcmp.gt.f32.partialorder %v1296, 0.0
  %vm1329 = vcmp.gt.f32.partialorder %v1297, 0.0
  %vm1330 = vcmp.gt.f32.partialorder %v1298, 0.0
  %vm1331 = vcmp.gt.f32.partialorder %v1299, 0.0
  %vm1332 = vcmp.gt.f32.partialorder %v1300, 0.0
  %vm1333 = vcmp.gt.f32.partialorder %v1301, 0.0
  %vm1334 = vcmp.gt.f32.partialorder %v1302, 0.0
  %vm1335 = vcmp.gt.f32.partialorder %v1303, 0.0
  %vm1336 = vcmp.gt.f32.partialorder %v1304, 0.0
  %v1337 = vmul.f32 %v1273, 0.2
  %v1338 = vmul.f32 %v1274, 0.2
  %v1339 = vmul.f32 %v1275, 0.2
  %v1340 = vmul.f32 %v1276, 0.2
  %v1341 = vmul.f32 %v1277, 0.2
  %v1342 = vmul.f32 %v1278, 0.2
  %v1343 = vmul.f32 %v1279, 0.2
  %v1344 = vmul.f32 %v1280, 0.2
  %v1345 = vmul.f32 %v1281, 0.2
  %v1346 = vmul.f32 %v1282, 0.2
  %v1347 = vmul.f32 %v1283, 0.2
  %v1348 = vmul.f32 %v1284, 0.2
  %v1349 = vmul.f32 %v1285, 0.2
  %v1350 = vmul.f32 %v1286, 0.2
  %v1351 = vmul.f32 %v1287, 0.2
  %v1352 = vmul.f32 %v1288, 0.2
  %v1353 = vmul.f32 %v1289, 0.2
  %v1354 = vmul.f32 %v1290, 0.2
  %v1355 = vmul.f32 %v1291, 0.2
  %v1356 = vmul.f32 %v1292, 0.2
  %v1357 = vmul.f32 %v1293, 0.2
  %v1358 = vmul.f32 %v1294, 0.2
  %v1359 = vmul.f32 %v1295, 0.2
  %v1360 = vmul.f32 %v1296, 0.2
  %v1361 = vmul.f32 %v1297, 0.2
  %v1362 = vmul.f32 %v1298, 0.2
  %v1363 = vmul.f32 %v1299, 0.2
  %v1364 = vmul.f32 %v1300, 0.2
  %v1365 = vmul.f32 %v1301, 0.2
  %v1366 = vmul.f32 %v1302, 0.2
  %v1367 = vmul.f32 %v1303, 0.2
  %v1368 = vmul.f32 %v1304, 0.2
  %v1369 = vsel %vm1305, %v1273, %v1337
  %v1370 = vsel %vm1306, %v1274, %v1338
  %v1371 = vsel %vm1307, %v1275, %v1339
  %v1372 = vsel %vm1308, %v1276, %v1340
  %v1373 = vsel %vm1309, %v1277, %v1341
  %v1374 = vsel %vm1310, %v1278, %v1342
  %v1375 = vsel %vm1311, %v1279, %v1343
  %v1376 = vsel %vm1312, %v1280, %v1344
  %v1377 = vsel %vm1313, %v1281, %v1345
  %v1378 = vsel %vm1314, %v1282, %v1346
  %v1379 = vsel %vm1315, %v1283, %v1347
  %v1380 = vsel %vm1316, %v1284, %v1348
  %v1381 = vsel %vm1317, %v1285, %v1349
  %v1382 = vsel %vm1318, %v1286, %v1350
  %v1383 = vsel %vm1319, %v1287, %v1351
  %v1384 = vsel %vm1320, %v1288, %v1352
  %v1385 = vsel %vm1321, %v1289, %v1353
  %v1386 = vsel %vm1322, %v1290, %v1354
  %v1387 = vsel %vm1323, %v1291, %v1355
  %v1388 = vsel %vm1324, %v1292, %v1356
  %v1389 = vsel %vm1325, %v1293, %v1357
  %v1390 = vsel %vm1326, %v1294, %v1358
  %v1391 = vsel %vm1327, %v1295, %v1359
  %v1392 = vsel %vm1328, %v1296, %v1360
  %v1393 = vsel %vm1329, %v1297, %v1361
  %v1394 = vsel %vm1330, %v1298, %v1362
  %v1395 = vsel %vm1331, %v1299, %v1363
  %v1396 = vsel %vm1332, %v1300, %v1364
  %v1397 = vsel %vm1333, %v1301, %v1365
  %v1398 = vsel %vm1334, %v1302, %v1366
  %v1399 = vsel %vm1335, %v1303, %v1367
  %v1400 = vsel %vm1336, %v1304, %v1368
  %v1401 = vpack.c.bf16 %v1385, %v1369
  %v1402 = vpack.c.bf16 %v1386, %v1370
  %v1403 = vpack.c.bf16 %v1387, %v1371
  %v1404 = vpack.c.bf16 %v1388, %v1372
  %v1405 = vpack.c.bf16 %v1389, %v1373
  %v1406 = vpack.c.bf16 %v1390, %v1374
  %v1407 = vpack.c.bf16 %v1391, %v1375
  %v1408 = vpack.c.bf16 %v1392, %v1376
  %v1409 = vpack.c.bf16 %v1393, %v1377
  %v1410 = vpack.c.bf16 %v1394, %v1378
  %v1411 = vpack.c.bf16 %v1395, %v1379
  %v1412 = vpack.c.bf16 %v1396, %v1380
  %v1413 = vpack.c.bf16 %v1397, %v1381
  %v1414 = vpack.c.bf16 %v1398, %v1382
  %v1415 = vpack.c.bf16 %v1399, %v1383
  %v1416 = vpack.c.bf16 %v1400, %v1384
  %v1433 = vunpack.c.l.b16 %v1401
  %v1434 = vunpack.c.l.b16 %v1402
  %v1435 = vunpack.c.l.b16 %v1403
  %v1436 = vunpack.c.l.b16 %v1404
  %v1437 = vunpack.c.l.b16 %v1405
  %v1438 = vunpack.c.l.b16 %v1406
  %v1439 = vunpack.c.l.b16 %v1407
  %v1440 = vunpack.c.l.b16 %v1408
  %v1441 = vunpack.c.l.b16 %v1409
  %v1442 = vunpack.c.l.b16 %v1410
  %v1443 = vunpack.c.l.b16 %v1411
  %v1444 = vunpack.c.l.b16 %v1412
  %v1445 = vunpack.c.l.b16 %v1413
  %v1446 = vunpack.c.l.b16 %v1414
  %v1447 = vunpack.c.l.b16 %v1415
  %v1448 = vunpack.c.l.b16 %v1416
  %v1449 = vunpack.c.h.b16 %v1401
  %v1450 = vunpack.c.h.b16 %v1402
  %v1451 = vunpack.c.h.b16 %v1403
  %v1452 = vunpack.c.h.b16 %v1404
  %v1453 = vunpack.c.h.b16 %v1405
  %v1454 = vunpack.c.h.b16 %v1406
  %v1455 = vunpack.c.h.b16 %v1407
  %v1456 = vunpack.c.h.b16 %v1408
  %v1457 = vunpack.c.h.b16 %v1409
  %v1458 = vunpack.c.h.b16 %v1410
  %v1459 = vunpack.c.h.b16 %v1411
  %v1460 = vunpack.c.h.b16 %v1412
  %v1461 = vunpack.c.h.b16 %v1413
  %v1462 = vunpack.c.h.b16 %v1414
  %v1463 = vunpack.c.h.b16 %v1415
  %v1464 = vunpack.c.h.b16 %v1416
  %v1465 = vpack.c.b16 %v1434, %v1433
  %v1466 = vpack.c.b16 %v1436, %v1435
  %v1467 = vpack.c.b16 %v1438, %v1437
  %v1468 = vpack.c.b16 %v1440, %v1439
  %v1469 = vpack.c.b16 %v1442, %v1441
  %v1470 = vpack.c.b16 %v1444, %v1443
  %v1471 = vpack.c.b16 %v1446, %v1445
  %v1472 = vpack.c.b16 %v1448, %v1447
  %v1473 = vpack.c.b16 %v1450, %v1449
  %v1474 = vpack.c.b16 %v1452, %v1451
  %v1475 = vpack.c.b16 %v1454, %v1453
  %v1476 = vpack.c.b16 %v1456, %v1455
  %v1477 = vpack.c.b16 %v1458, %v1457
  %v1478 = vpack.c.b16 %v1460, %v1459
  %v1479 = vpack.c.b16 %v1462, %v1461
  %v1480 = vpack.c.b16 %v1464, %v1463
  %1497 = vst [vmem:[%s2] sm:$0xff] %v1465
  %1498 = vst [vmem:[%s2 + $0x8] sm:$0xff] %v1466
  %1499 = vst [vmem:[%s2 + $0x10] sm:$0xff] %v1467
  %1500 = vst [vmem:[%s2 + $0x18] sm:$0xff] %v1468
  %1501 = vst [vmem:[%s2 + $0x20] sm:$0xff] %v1469
  %1502 = vst [vmem:[%s2 + $0x28] sm:$0xff] %v1470
  %1503 = vst [vmem:[%s2 + $0x30] sm:$0xff] %v1471
  %1504 = vst [vmem:[%s2 + $0x38] sm:$0xff] %v1472
  %1505 = vst [vmem:[%s2 + $0x40] sm:$0xff] %v1473
  %1506 = vst [vmem:[%s2 + $0x48] sm:$0xff] %v1474
  %1507 = vst [vmem:[%s2 + $0x50] sm:$0xff] %v1475
  %1508 = vst [vmem:[%s2 + $0x58] sm:$0xff] %v1476
  %1509 = vst [vmem:[%s2 + $0x60] sm:$0xff] %v1477
  %1510 = vst [vmem:[%s2 + $0x68] sm:$0xff] %v1478
  %1511 = vst [vmem:[%s2 + $0x70] sm:$0xff] %v1479
  %1512 = vst [vmem:[%s2 + $0x78] sm:$0xff] %v1480
  // Predicated region
  $region10: #{discriminator_forward.7} parent=0 // pred_check
    _
  $region11: #{discriminator_forward.7} parent=0 // pred_check_branch
    %1514 = sbr.rel (0) target = $region13
  $region12: #{discriminator_forward.7} parent=0 // pred_region
    _
  $region13: #{discriminator_forward.7} parent=0 // pred_fallthru
    _
  // Predicated region
  $region14: #{discriminator_forward.7} parent=0 // pred_check
    _
  $region15: #{discriminator_forward.7} parent=0 // pred_check_branch
    %1516 = sbr.rel (0) target = $region17
  $region16: #{discriminator_forward.7} parent=0 // pred_region
    _
  $region17: #{discriminator_forward.7} parent=0 // pred_fallthru
    _

// kernel: discriminator_forward.8
$region0: #{discriminator_forward.8}
  #allocation0 [shape = 'u32[]', space=smem, size = 0x4, offset = 0x4, fixed_abs, tag = 'smem constant byte address 0x4 - core index']
  #allocation1 [shape = 'u32[144,128]{1,0:T(1,128)}', space=vmem, size = 0x12000, scoped, tag = 'internal scratch']
  %s0 = inlined_call_operand.vmem [shape: bf16[32,256], index: 0, kind: input, shape index: {}]
  %s1 = inlined_call_operand.vmem [shape: bf16[256,512], index: 1, kind: input, shape index: {}]
  %s2 = inlined_call_operand.vmem [shape: bf16[32,512], index: 2, kind: output, shape index: {}]
  %s3 = sld [smem:[#allocation0]]
  $region18: #{discriminator_forward.8} parent=0
    _
  %s5 = ssub.s32 1, %s3
  %s6 = scalar_select 0, %s5, %s3
  // Predicated region
  $region2: #{discriminator_forward.8} parent=0 // pred_check
    _
  $region3: #{discriminator_forward.8} parent=0 // pred_check_branch
    %8 = sbr.rel (0) target = $region5
  $region4: #{discriminator_forward.8} parent=0 // pred_region
    _
  $region5: #{discriminator_forward.8} parent=0 // pred_fallthru
    _
  // Predicated region
  $region6: #{discriminator_forward.8} parent=0 // pred_check
    _
  $region7: #{discriminator_forward.8} parent=0 // pred_check_branch
    %10 = sbr.rel (0) target = $region9
  $region8: #{discriminator_forward.8} parent=0 // pred_region
    _
  $region9: #{discriminator_forward.8} parent=0 // pred_fallthru
    _
  %v11 = vld [vmem:[%s0] sm:$0xff]
  %v12 = vld [vmem:[%s0 + $0x8] sm:$0xff]
  %v13 = vld [vmem:[%s0 + $0x10] sm:$0xff]
  %v14 = vld [vmem:[%s0 + $0x18] sm:$0xff]
  %v15 = vld [vmem:[%s1] sm:$0xff]
  %v16 = vld [vmem:[%s1 + $0x8] sm:$0xff]
  %v17 = vld [vmem:[%s1 + $0x10] sm:$0xff]
  %v18 = vld [vmem:[%s1 + $0x18] sm:$0xff]
  %v19 = vld [vmem:[%s1 + $0x20] sm:$0xff]
  %v20 = vld [vmem:[%s1 + $0x28] sm:$0xff]
  %v21 = vld [vmem:[%s1 + $0x30] sm:$0xff]
  %v22 = vld [vmem:[%s1 + $0x38] sm:$0xff]
  %v23 = vld [vmem:[%s1 + $0x40] sm:$0xff]
  %v24 = vld [vmem:[%s1 + $0x48] sm:$0xff]
  %v25 = vld [vmem:[%s1 + $0x50] sm:$0xff]
  %v26 = vld [vmem:[%s1 + $0x58] sm:$0xff]
  %v27 = vld [vmem:[%s1 + $0x60] sm:$0xff]
  %v28 = vld [vmem:[%s1 + $0x68] sm:$0xff]
  %v29 = vld [vmem:[%s1 + $0x70] sm:$0xff]
  %v30 = vld [vmem:[%s1 + $0x78] sm:$0xff]
  %v31 = vld [vmem:[%s1 + $0x80] sm:$0xff]
  %v32 = vld [vmem:[%s1 + $0x88] sm:$0xff]
  %v33 = vld [vmem:[%s1 + $0x90] sm:$0xff]
  %v34 = vld [vmem:[%s1 + $0x98] sm:$0xff]
  %v35 = vld [vmem:[%s1 + $0xa0] sm:$0xff]
  %v36 = vld [vmem:[%s1 + $0xa8] sm:$0xff]
  %v37 = vld [vmem:[%s1 + $0xb0] sm:$0xff]
  %v38 = vld [vmem:[%s1 + $0xb8] sm:$0xff]
  %v39 = vld [vmem:[%s1 + $0xc0] sm:$0xff]
  %v40 = vld [vmem:[%s1 + $0xc8] sm:$0xff]
  %v41 = vld [vmem:[%s1 + $0xd0] sm:$0xff]
  %v42 = vld [vmem:[%s1 + $0xd8] sm:$0xff]
  %v43 = vld [vmem:[%s1 + $0xe0] sm:$0xff]
  %v44 = vld [vmem:[%s1 + $0xe8] sm:$0xff]
  %v45 = vld [vmem:[%s1 + $0xf0] sm:$0xff]
  %v46 = vld [vmem:[%s1 + $0xf8] sm:$0xff]
  %v47 = vld [vmem:[%s1 + $0x100] sm:$0xff]
  %v48 = vld [vmem:[%s1 + $0x108] sm:$0xff]
  %v49 = vld [vmem:[%s1 + $0x110] sm:$0xff]
  %v50 = vld [vmem:[%s1 + $0x118] sm:$0xff]
  %v51 = vld [vmem:[%s1 + $0x120] sm:$0xff]
  %v52 = vld [vmem:[%s1 + $0x128] sm:$0xff]
  %v53 = vld [vmem:[%s1 + $0x130] sm:$0xff]
  %v54 = vld [vmem:[%s1 + $0x138] sm:$0xff]
  %v55 = vld [vmem:[%s1 + $0x140] sm:$0xff]
  %v56 = vld [vmem:[%s1 + $0x148] sm:$0xff]
  %v57 = vld [vmem:[%s1 + $0x150] sm:$0xff]
  %v58 = vld [vmem:[%s1 + $0x158] sm:$0xff]
  %v59 = vld [vmem:[%s1 + $0x160] sm:$0xff]
  %v60 = vld [vmem:[%s1 + $0x168] sm:$0xff]
  %v61 = vld [vmem:[%s1 + $0x170] sm:$0xff]
  %v62 = vld [vmem:[%s1 + $0x178] sm:$0xff]
  %v63 = vld [vmem:[%s1 + $0x180] sm:$0xff]
  %v64 = vld [vmem:[%s1 + $0x188] sm:$0xff]
  %v65 = vld [vmem:[%s1 + $0x190] sm:$0xff]
  %v66 = vld [vmem:[%s1 + $0x198] sm:$0xff]
  %v67 = vld [vmem:[%s1 + $0x1a0] sm:$0xff]
  %v68 = vld [vmem:[%s1 + $0x1a8] sm:$0xff]
  %v69 = vld [vmem:[%s1 + $0x1b0] sm:$0xff]
  %v70 = vld [vmem:[%s1 + $0x1b8] sm:$0xff]
  %v71 = vld [vmem:[%s1 + $0x1c0] sm:$0xff]
  %v72 = vld [vmem:[%s1 + $0x1c8] sm:$0xff]
  %v73 = vld [vmem:[%s1 + $0x1d0] sm:$0xff]
  %v74 = vld [vmem:[%s1 + $0x1d8] sm:$0xff]
  %v75 = vld [vmem:[%s1 + $0x1e0] sm:$0xff]
  %v76 = vld [vmem:[%s1 + $0x1e8] sm:$0xff]
  %v77 = vld [vmem:[%s1 + $0x1f0] sm:$0xff]
  %v78 = vld [vmem:[%s1 + $0x1f8] sm:$0xff]
  %v83 = vunpack.c.l.b16 %v11
  %v84 = vunpack.c.h.b16 %v11
  %v85 = vunpack.c.l.b16 %v12
  %v86 = vunpack.c.h.b16 %v12
  %v87 = vunpack.c.l.b16 %v13
  %v88 = vunpack.c.h.b16 %v13
  %v89 = vunpack.c.l.b16 %v14
  %v90 = vunpack.c.h.b16 %v14
  %v91 = vpack.c.b16 %v85, %v83
  %v92 = vpack.c.b16 %v86, %v84
  %v93 = vpack.c.b16 %v89, %v87
  %v94 = vpack.c.b16 %v90, %v88
  %v163 = vunpack.c.l.b16 %v15
  %v164 = vunpack.c.h.b16 %v15
  %v165 = vunpack.c.l.b16 %v16
  %v166 = vunpack.c.h.b16 %v16
  %v167 = vunpack.c.l.b16 %v17
  %v168 = vunpack.c.h.b16 %v17
  %v169 = vunpack.c.l.b16 %v18
  %v170 = vunpack.c.h.b16 %v18
  %v171 = vunpack.c.l.b16 %v19
  %v172 = vunpack.c.h.b16 %v19
  %v173 = vunpack.c.l.b16 %v20
  %v174 = vunpack.c.h.b16 %v20
  %v175 = vunpack.c.l.b16 %v21
  %v176 = vunpack.c.h.b16 %v21
  %v177 = vunpack.c.l.b16 %v22
  %v178 = vunpack.c.h.b16 %v22
  %v179 = vunpack.c.l.b16 %v23
  %v180 = vunpack.c.h.b16 %v23
  %v181 = vunpack.c.l.b16 %v24
  %v182 = vunpack.c.h.b16 %v24
  %v183 = vunpack.c.l.b16 %v25
  %v184 = vunpack.c.h.b16 %v25
  %v185 = vunpack.c.l.b16 %v26
  %v186 = vunpack.c.h.b16 %v26
  %v187 = vunpack.c.l.b16 %v27
  %v188 = vunpack.c.h.b16 %v27
  %v189 = vunpack.c.l.b16 %v28
  %v190 = vunpack.c.h.b16 %v28
  %v191 = vunpack.c.l.b16 %v29
  %v192 = vunpack.c.h.b16 %v29
  %v193 = vunpack.c.l.b16 %v30
  %v194 = vunpack.c.h.b16 %v30
  %v195 = vunpack.c.l.b16 %v31
  %v196 = vunpack.c.h.b16 %v31
  %v197 = vunpack.c.l.b16 %v32
  %v198 = vunpack.c.h.b16 %v32
  %v199 = vunpack.c.l.b16 %v33
  %v200 = vunpack.c.h.b16 %v33
  %v201 = vunpack.c.l.b16 %v34
  %v202 = vunpack.c.h.b16 %v34
  %v203 = vunpack.c.l.b16 %v35
  %v204 = vunpack.c.h.b16 %v35
  %v205 = vunpack.c.l.b16 %v36
  %v206 = vunpack.c.h.b16 %v36
  %v207 = vunpack.c.l.b16 %v37
  %v208 = vunpack.c.h.b16 %v37
  %v209 = vunpack.c.l.b16 %v38
  %v210 = vunpack.c.h.b16 %v38
  %v211 = vunpack.c.l.b16 %v39
  %v212 = vunpack.c.h.b16 %v39
  %v213 = vunpack.c.l.b16 %v40
  %v214 = vunpack.c.h.b16 %v40
  %v215 = vunpack.c.l.b16 %v41
  %v216 = vunpack.c.h.b16 %v41
  %v217 = vunpack.c.l.b16 %v42
  %v218 = vunpack.c.h.b16 %v42
  %v219 = vunpack.c.l.b16 %v43
  %v220 = vunpack.c.h.b16 %v43
  %v221 = vunpack.c.l.b16 %v44
  %v222 = vunpack.c.h.b16 %v44
  %v223 = vunpack.c.l.b16 %v45
  %v224 = vunpack.c.h.b16 %v45
  %v225 = vunpack.c.l.b16 %v46
  %v226 = vunpack.c.h.b16 %v46
  %v227 = vunpack.c.l.b16 %v47
  %v228 = vunpack.c.h.b16 %v47
  %v229 = vunpack.c.l.b16 %v48
  %v230 = vunpack.c.h.b16 %v48
  %v231 = vunpack.c.l.b16 %v49
  %v232 = vunpack.c.h.b16 %v49
  %v233 = vunpack.c.l.b16 %v50
  %v234 = vunpack.c.h.b16 %v50
  %v235 = vunpack.c.l.b16 %v51
  %v236 = vunpack.c.h.b16 %v51
  %v237 = vunpack.c.l.b16 %v52
  %v238 = vunpack.c.h.b16 %v52
  %v239 = vunpack.c.l.b16 %v53
  %v240 = vunpack.c.h.b16 %v53
  %v241 = vunpack.c.l.b16 %v54
  %v242 = vunpack.c.h.b16 %v54
  %v243 = vunpack.c.l.b16 %v55
  %v244 = vunpack.c.h.b16 %v55
  %v245 = vunpack.c.l.b16 %v56
  %v246 = vunpack.c.h.b16 %v56
  %v247 = vunpack.c.l.b16 %v57
  %v248 = vunpack.c.h.b16 %v57
  %v249 = vunpack.c.l.b16 %v58
  %v250 = vunpack.c.h.b16 %v58
  %v251 = vunpack.c.l.b16 %v59
  %v252 = vunpack.c.h.b16 %v59
  %v253 = vunpack.c.l.b16 %v60
  %v254 = vunpack.c.h.b16 %v60
  %v255 = vunpack.c.l.b16 %v61
  %v256 = vunpack.c.h.b16 %v61
  %v257 = vunpack.c.l.b16 %v62
  %v258 = vunpack.c.h.b16 %v62
  %v259 = vunpack.c.l.b16 %v63
  %v260 = vunpack.c.h.b16 %v63
  %v261 = vunpack.c.l.b16 %v64
  %v262 = vunpack.c.h.b16 %v64
  %v263 = vunpack.c.l.b16 %v65
  %v264 = vunpack.c.h.b16 %v65
  %v265 = vunpack.c.l.b16 %v66
  %v266 = vunpack.c.h.b16 %v66
  %v267 = vunpack.c.l.b16 %v67
  %v268 = vunpack.c.h.b16 %v67
  %v269 = vunpack.c.l.b16 %v68
  %v270 = vunpack.c.h.b16 %v68
  %v271 = vunpack.c.l.b16 %v69
  %v272 = vunpack.c.h.b16 %v69
  %v273 = vunpack.c.l.b16 %v70
  %v274 = vunpack.c.h.b16 %v70
  %v275 = vunpack.c.l.b16 %v71
  %v276 = vunpack.c.h.b16 %v71
  %v277 = vunpack.c.l.b16 %v72
  %v278 = vunpack.c.h.b16 %v72
  %v279 = vunpack.c.l.b16 %v73
  %v280 = vunpack.c.h.b16 %v73
  %v281 = vunpack.c.l.b16 %v74
  %v282 = vunpack.c.h.b16 %v74
  %v283 = vunpack.c.l.b16 %v75
  %v284 = vunpack.c.h.b16 %v75
  %v285 = vunpack.c.l.b16 %v76
  %v286 = vunpack.c.h.b16 %v76
  %v287 = vunpack.c.l.b16 %v77
  %v288 = vunpack.c.h.b16 %v77
  %v289 = vunpack.c.l.b16 %v78
  %v290 = vunpack.c.h.b16 %v78
  %v291 = vpack.c.b16 %v167, %v163
  %v292 = vpack.c.b16 %v168, %v164
  %v293 = vpack.c.b16 %v169, %v165
  %v294 = vpack.c.b16 %v170, %v166
  %v295 = vpack.c.b16 %v175, %v171
  %v296 = vpack.c.b16 %v176, %v172
  %v297 = vpack.c.b16 %v177, %v173
  %v298 = vpack.c.b16 %v178, %v174
  %v299 = vpack.c.b16 %v183, %v179
  %v300 = vpack.c.b16 %v184, %v180
  %v301 = vpack.c.b16 %v185, %v181
  %v302 = vpack.c.b16 %v186, %v182
  %v303 = vpack.c.b16 %v191, %v187
  %v304 = vpack.c.b16 %v192, %v188
  %v305 = vpack.c.b16 %v193, %v189
  %v306 = vpack.c.b16 %v194, %v190
  %v307 = vpack.c.b16 %v199, %v195
  %v308 = vpack.c.b16 %v200, %v196
  %v309 = vpack.c.b16 %v201, %v197
  %v310 = vpack.c.b16 %v202, %v198
  %v311 = vpack.c.b16 %v207, %v203
  %v312 = vpack.c.b16 %v208, %v204
  %v313 = vpack.c.b16 %v209, %v205
  %v314 = vpack.c.b16 %v210, %v206
  %v315 = vpack.c.b16 %v215, %v211
  %v316 = vpack.c.b16 %v216, %v212
  %v317 = vpack.c.b16 %v217, %v213
  %v318 = vpack.c.b16 %v218, %v214
  %v319 = vpack.c.b16 %v223, %v219
  %v320 = vpack.c.b16 %v224, %v220
  %v321 = vpack.c.b16 %v225, %v221
  %v322 = vpack.c.b16 %v226, %v222
  %v323 = vpack.c.b16 %v231, %v227
  %v324 = vpack.c.b16 %v232, %v228
  %v325 = vpack.c.b16 %v233, %v229
  %v326 = vpack.c.b16 %v234, %v230
  %v327 = vpack.c.b16 %v239, %v235
  %v328 = vpack.c.b16 %v240, %v236
  %v329 = vpack.c.b16 %v241, %v237
  %v330 = vpack.c.b16 %v242, %v238
  %v331 = vpack.c.b16 %v247, %v243
  %v332 = vpack.c.b16 %v248, %v244
  %v333 = vpack.c.b16 %v249, %v245
  %v334 = vpack.c.b16 %v250, %v246
  %v335 = vpack.c.b16 %v255, %v251
  %v336 = vpack.c.b16 %v256, %v252
  %v337 = vpack.c.b16 %v257, %v253
  %v338 = vpack.c.b16 %v258, %v254
  %v339 = vpack.c.b16 %v263, %v259
  %v340 = vpack.c.b16 %v264, %v260
  %v341 = vpack.c.b16 %v265, %v261
  %v342 = vpack.c.b16 %v266, %v262
  %v343 = vpack.c.b16 %v271, %v267
  %v344 = vpack.c.b16 %v272, %v268
  %v345 = vpack.c.b16 %v273, %v269
  %v346 = vpack.c.b16 %v274, %v270
  %v347 = vpack.c.b16 %v279, %v275
  %v348 = vpack.c.b16 %v280, %v276
  %v349 = vpack.c.b16 %v281, %v277
  %v350 = vpack.c.b16 %v282, %v278
  %v351 = vpack.c.b16 %v287, %v283
  %v352 = vpack.c.b16 %v288, %v284
  %v353 = vpack.c.b16 %v289, %v285
  %v354 = vpack.c.b16 %v290, %v286
  %419 = vmatprep.subr.bf16.mxu0 %v320
  %420 = vmatpush1.bf16.msra.mxu0 %v319
  %421 = vmatprep.subr.bf16.mxu0 %v316
  %422 = vmatpush1.bf16.msra.mxu0 %v315
  %423 = vmatprep.subr.bf16.mxu0 %v312
  %424 = vmatpush1.bf16.msra.mxu0 %v311
  %425 = vmatprep.subr.bf16.mxu0 %v308
  %426 = vmatpush1.bf16.msra.mxu0 %v307
  %427 = vmatprep.subr.bf16.mxu0 %v304
  %428 = vmatpush1.bf16.msra.mxu0 %v303
  %429 = vmatprep.subr.bf16.mxu0 %v300
  %430 = vmatpush1.bf16.msra.mxu0 %v299
  %431 = vmatprep.subr.bf16.mxu0 %v296
  %432 = vmatpush1.bf16.msra.mxu0 %v295
  %433 = vmatprep.subr.bf16.mxu0 %v292
  %434 = vmatpush1.bf16.msra.mxu0 %v291
  %435 = vmatprep.subr.bf16.mxu0 %v352
  %436 = vmatpush2.bf16.msra.mxu0 %v351
  %437 = vmatprep.subr.bf16.mxu0 %v348
  %438 = vmatpush2.bf16.msra.mxu0 %v347
  %439 = vmatprep.subr.bf16.mxu0 %v344
  %440 = vmatpush2.bf16.msra.mxu0 %v343
  %441 = vmatprep.subr.bf16.mxu0 %v340
  %442 = vmatpush2.bf16.msra.mxu0 %v339
  %443 = vmatprep.subr.bf16.mxu0 %v336
  %444 = vmatpush2.bf16.msra.mxu0 %v335
  %445 = vmatprep.subr.bf16.mxu0 %v332
  %446 = vmatpush2.bf16.msra.mxu0 %v331
  %447 = vmatprep.subr.bf16.mxu0 %v328
  %448 = vmatpush2.bf16.msra.mxu0 %v327
  %449 = vmatprep.subr.bf16.mxu0 %v324
  %450 = vmatpush2.bf16.msra.mxu0 %v323
  %451 = vmatprep.mubr.bf16.mxu0 %v92
  %452 = vmatmul.mubr.bf16.gmra.mxu0 %v91
  %v453 = vpop.f32.mrf.mxu0
  %v454 = vadd.f32 0.0, %v453
  %v455 = vpop.f32.mrf.mxu0
  %v456 = vadd.f32 0.0, %v455
  %v457 = vpop.f32.mrf.mxu0
  %v458 = vadd.f32 0.0, %v457
  %v459 = vpop.f32.mrf.mxu0
  %v460 = vadd.f32 0.0, %v459
  %461 = vmatprep.mubr.bf16.mxu0 %v94
  %462 = vmatmul.mubr.bf16.gmra.mxu0 %v93
  %v463 = vpop.f32.mrf.mxu0
  %v464 = vadd.f32 0.0, %v463
  %v465 = vpop.f32.mrf.mxu0
  %v466 = vadd.f32 0.0, %v465
  %v467 = vpop.f32.mrf.mxu0
  %v468 = vadd.f32 0.0, %v467
  %v469 = vpop.f32.mrf.mxu0
  %v470 = vadd.f32 0.0, %v469
  %471 = vdwg.mxu0
  %472 = vmatprep.subr.bf16.mxu0 %v322
  %473 = vmatpush1.bf16.msra.mxu0 %v321
  %474 = vmatprep.subr.bf16.mxu0 %v318
  %475 = vmatpush1.bf16.msra.mxu0 %v317
  %476 = vmatprep.subr.bf16.mxu0 %v314
  %477 = vmatpush1.bf16.msra.mxu0 %v313
  %478 = vmatprep.subr.bf16.mxu0 %v310
  %479 = vmatpush1.bf16.msra.mxu0 %v309
  %480 = vmatprep.subr.bf16.mxu0 %v306
  %481 = vmatpush1.bf16.msra.mxu0 %v305
  %482 = vmatprep.subr.bf16.mxu0 %v302
  %483 = vmatpush1.bf16.msra.mxu0 %v301
  %484 = vmatprep.subr.bf16.mxu0 %v298
  %485 = vmatpush1.bf16.msra.mxu0 %v297
  %486 = vmatprep.subr.bf16.mxu0 %v294
  %487 = vmatpush1.bf16.msra.mxu0 %v293
  %488 = vmatprep.subr.bf16.mxu0 %v354
  %489 = vmatpush2.bf16.msra.mxu0 %v353
  %490 = vmatprep.subr.bf16.mxu0 %v350
  %491 = vmatpush2.bf16.msra.mxu0 %v349
  %492 = vmatprep.subr.bf16.mxu0 %v346
  %493 = vmatpush2.bf16.msra.mxu0 %v345
  %494 = vmatprep.subr.bf16.mxu0 %v342
  %495 = vmatpush2.bf16.msra.mxu0 %v341
  %496 = vmatprep.subr.bf16.mxu0 %v338
  %497 = vmatpush2.bf16.msra.mxu0 %v337
  %498 = vmatprep.subr.bf16.mxu0 %v334
  %499 = vmatpush2.bf16.msra.mxu0 %v333
  %500 = vmatprep.subr.bf16.mxu0 %v330
  %501 = vmatpush2.bf16.msra.mxu0 %v329
  %502 = vmatprep.subr.bf16.mxu0 %v326
  %503 = vmatpush2.bf16.msra.mxu0 %v325
  %504 = vmatprep.mubr.bf16.mxu0 %v92
  %505 = vmatmul.mubr.bf16.gmra.mxu0 %v91
  %v506 = vpop.f32.mrf.mxu0
  %v507 = vadd.f32 0.0, %v506
  %v508 = vpop.f32.mrf.mxu0
  %v509 = vadd.f32 0.0, %v508
  %v510 = vpop.f32.mrf.mxu0
  %v511 = vadd.f32 0.0, %v510
  %v512 = vpop.f32.mrf.mxu0
  %v513 = vadd.f32 0.0, %v512
  %514 = vmatprep.mubr.bf16.mxu0 %v94
  %515 = vmatmul.mubr.bf16.gmra.mxu0 %v93
  %v516 = vpop.f32.mrf.mxu0
  %v517 = vadd.f32 0.0, %v516
  %v518 = vpop.f32.mrf.mxu0
  %v519 = vadd.f32 0.0, %v518
  %v520 = vpop.f32.mrf.mxu0
  %v521 = vadd.f32 0.0, %v520
  %v522 = vpop.f32.mrf.mxu0
  %v523 = vadd.f32 0.0, %v522
  %524 = vdwg.mxu0
  %v525 = vadd.f32 %v454, %v456
  %v526 = vadd.f32 %v525, %v507
  %v527 = vadd.f32 %v526, %v509
  %528 = vadd.xlane.f32.xlu0 %v527
  %v529 = vpop.xlane.xlu0 %528
  %v530 = vadd.f32 %v458, %v460
  %v531 = vadd.f32 %v530, %v511
  %v532 = vadd.f32 %v531, %v513
  %533 = vadd.xlane.f32.xlu0 %v532
  %v534 = vpop.xlane.xlu0 %533
  %v535 = vadd.f32 %v464, %v466
  %v536 = vadd.f32 %v535, %v517
  %v537 = vadd.f32 %v536, %v519
  %538 = vadd.xlane.f32.xlu0 %v537
  %v539 = vpop.xlane.xlu0 %538
  %v540 = vadd.f32 %v468, %v470
  %v541 = vadd.f32 %v540, %v521
  %v542 = vadd.f32 %v541, %v523
  %543 = vadd.xlane.f32.xlu0 %v542
  %v544 = vpop.xlane.xlu0 %543
  %v545 = vrcp.pop 512.0
  %v546 = vmul.f32 %v529, %v545
  %v547 = vmul.f32 %v534, %v545
  %v548 = vmul.f32 %v539, %v545
  %v549 = vmul.f32 %v544, %v545
  %v550 = vsub.f32 %v454, %v546
  %v551 = vsub.f32 %v456, %v546
  %v552 = vsub.f32 %v507, %v546
  %v553 = vsub.f32 %v509, %v546
  %v554 = vsub.f32 %v458, %v547
  %v555 = vsub.f32 %v460, %v547
  %v556 = vsub.f32 %v511, %v547
  %v557 = vsub.f32 %v513, %v547
  %v558 = vsub.f32 %v464, %v548
  %v559 = vsub.f32 %v466, %v548
  %v560 = vsub.f32 %v517, %v548
  %v561 = vsub.f32 %v519, %v548
  %v562 = vsub.f32 %v468, %v549
  %v563 = vsub.f32 %v470, %v549
  %v564 = vsub.f32 %v521, %v549
  %v565 = vsub.f32 %v523, %v549
  %v566 = vmul.f32 %v550, %v550
  %v567 = vmul.f32 %v551, %v551
  %v568 = vmul.f32 %v552, %v552
  %v569 = vmul.f32 %v553, %v553
  %v570 = vmul.f32 %v554, %v554
  %v571 = vmul.f32 %v555, %v555
  %v572 = vmul.f32 %v556, %v556
  %v573 = vmul.f32 %v557, %v557
  %v574 = vmul.f32 %v558, %v558
  %v575 = vmul.f32 %v559, %v559
  %v576 = vmul.f32 %v560, %v560
  %v577 = vmul.f32 %v561, %v561
  %v578 = vmul.f32 %v562, %v562
  %v579 = vmul.f32 %v563, %v563
  %v580 = vmul.f32 %v564, %v564
  %v581 = vmul.f32 %v565, %v565
  %v582 = vadd.f32 %v566, %v567
  %v583 = vadd.f32 %v582, %v568
  %v584 = vadd.f32 %v583, %v569
  %585 = vadd.xlane.f32.xlu0 %v584
  %v586 = vpop.xlane.xlu0 %585
  %v587 = vadd.f32 %v570, %v571
  %v588 = vadd.f32 %v587, %v572
  %v589 = vadd.f32 %v588, %v573
  %590 = vadd.xlane.f32.xlu0 %v589
  %v591 = vpop.xlane.xlu0 %590
  %v592 = vadd.f32 %v574, %v575
  %v593 = vadd.f32 %v592, %v576
  %v594 = vadd.f32 %v593, %v577
  %595 = vadd.xlane.f32.xlu0 %v594
  %v596 = vpop.xlane.xlu0 %595
  %v597 = vadd.f32 %v578, %v579
  %v598 = vadd.f32 %v597, %v580
  %v599 = vadd.f32 %v598, %v581
  %600 = vadd.xlane.f32.xlu0 %v599
  %v601 = vpop.xlane.xlu0 %600
  %v602 = vmul.f32 %v586, %v545
  %v603 = vmul.f32 %v591, %v545
  %v604 = vmul.f32 %v596, %v545
  %v605 = vmul.f32 %v601, %v545
  %v606 = vadd.f32 %v602, 1e-05
  %v607 = vadd.f32 %v603, 1e-05
  %v608 = vadd.f32 %v604, 1e-05
  %v609 = vadd.f32 %v605, 1e-05
  %v610 = vrsqrt.pop %v606
  %v611 = vrsqrt.pop %v607
  %v612 = vrsqrt.pop %v608
  %v613 = vrsqrt.pop %v609
  %v614 = vmul.f32 %v550, %v610
  %v615 = vmul.f32 %v551, %v610
  %v616 = vmul.f32 %v552, %v610
  %v617 = vmul.f32 %v553, %v610
  %v618 = vmul.f32 %v554, %v611
  %v619 = vmul.f32 %v555, %v611
  %v620 = vmul.f32 %v556, %v611
  %v621 = vmul.f32 %v557, %v611
  %v622 = vmul.f32 %v558, %v612
  %v623 = vmul.f32 %v559, %v612
  %v624 = vmul.f32 %v560, %v612
  %v625 = vmul.f32 %v561, %v612
  %v626 = vmul.f32 %v562, %v613
  %v627 = vmul.f32 %v563, %v613
  %v628 = vmul.f32 %v564, %v613
  %v629 = vmul.f32 %v565, %v613
  %vm630 = vcmp.gt.f32.partialorder %v614, 0.0
  %vm631 = vcmp.gt.f32.partialorder %v615, 0.0
  %vm632 = vcmp.gt.f32.partialorder %v616, 0.0
  %vm633 = vcmp.gt.f32.partialorder %v617, 0.0
  %vm634 = vcmp.gt.f32.partialorder %v618, 0.0
  %vm635 = vcmp.gt.f32.partialorder %v619, 0.0
  %vm636 = vcmp.gt.f32.partialorder %v620, 0.0
  %vm637 = vcmp.gt.f32.partialorder %v621, 0.0
  %vm638 = vcmp.gt.f32.partialorder %v622, 0.0
  %vm639 = vcmp.gt.f32.partialorder %v623, 0.0
  %vm640 = vcmp.gt.f32.partialorder %v624, 0.0
  %vm641 = vcmp.gt.f32.partialorder %v625, 0.0
  %vm642 = vcmp.gt.f32.partialorder %v626, 0.0
  %vm643 = vcmp.gt.f32.partialorder %v627, 0.0
  %vm644 = vcmp.gt.f32.partialorder %v628, 0.0
  %vm645 = vcmp.gt.f32.partialorder %v629, 0.0
  %v646 = vmul.f32 %v614, 0.2
  %v647 = vmul.f32 %v615, 0.2
  %v648 = vmul.f32 %v616, 0.2
  %v649 = vmul.f32 %v617, 0.2
  %v650 = vmul.f32 %v618, 0.2
  %v651 = vmul.f32 %v619, 0.2
  %v652 = vmul.f32 %v620, 0.2
  %v653 = vmul.f32 %v621, 0.2
  %v654 = vmul.f32 %v622, 0.2
  %v655 = vmul.f32 %v623, 0.2
  %v656 = vmul.f32 %v624, 0.2
  %v657 = vmul.f32 %v625, 0.2
  %v658 = vmul.f32 %v626, 0.2
  %v659 = vmul.f32 %v627, 0.2
  %v660 = vmul.f32 %v628, 0.2
  %v661 = vmul.f32 %v629, 0.2
  %v662 = vsel %vm630, %v614, %v646
  %v663 = vsel %vm631, %v615, %v647
  %v664 = vsel %vm632, %v616, %v648
  %v665 = vsel %vm633, %v617, %v649
  %v666 = vsel %vm634, %v618, %v650
  %v667 = vsel %vm635, %v619, %v651
  %v668 = vsel %vm636, %v620, %v652
  %v669 = vsel %vm637, %v621, %v653
  %v670 = vsel %vm638, %v622, %v654
  %v671 = vsel %vm639, %v623, %v655
  %v672 = vsel %vm640, %v624, %v656
  %v673 = vsel %vm641, %v625, %v657
  %v674 = vsel %vm642, %v626, %v658
  %v675 = vsel %vm643, %v627, %v659
  %v676 = vsel %vm644, %v628, %v660
  %v677 = vsel %vm645, %v629, %v661
  %v678 = vpack.c.bf16 %v666, %v662
  %v679 = vpack.c.bf16 %v667, %v663
  %v680 = vpack.c.bf16 %v668, %v664
  %v681 = vpack.c.bf16 %v669, %v665
  %v682 = vpack.c.bf16 %v674, %v670
  %v683 = vpack.c.bf16 %v675, %v671
  %v684 = vpack.c.bf16 %v676, %v672
  %v685 = vpack.c.bf16 %v677, %v673
  %v694 = vunpack.c.l.b16 %v678
  %v695 = vunpack.c.l.b16 %v679
  %v696 = vunpack.c.l.b16 %v680
  %v697 = vunpack.c.l.b16 %v681
  %v698 = vunpack.c.h.b16 %v678
  %v699 = vunpack.c.h.b16 %v679
  %v700 = vunpack.c.h.b16 %v680
  %v701 = vunpack.c.h.b16 %v681
  %v702 = vunpack.c.l.b16 %v682
  %v703 = vunpack.c.l.b16 %v683
  %v704 = vunpack.c.l.b16 %v684
  %v705 = vunpack.c.l.b16 %v685
  %v706 = vunpack.c.h.b16 %v682
  %v707 = vunpack.c.h.b16 %v683
  %v708 = vunpack.c.h.b16 %v684
  %v709 = vunpack.c.h.b16 %v685
  %v710 = vpack.c.b16 %v695, %v694
  %v711 = vpack.c.b16 %v697, %v696
  %v712 = vpack.c.b16 %v699, %v698
  %v713 = vpack.c.b16 %v701, %v700
  %v714 = vpack.c.b16 %v703, %v702
  %v715 = vpack.c.b16 %v705, %v704
  %v716 = vpack.c.b16 %v707, %v706
  %v717 = vpack.c.b16 %v709, %v708
  %726 = vst [vmem:[%s2] sm:$0xff] %v710
  %727 = vst [vmem:[%s2 + $0x8] sm:$0xff] %v711
  %728 = vst [vmem:[%s2 + $0x10] sm:$0xff] %v712
  %729 = vst [vmem:[%s2 + $0x18] sm:$0xff] %v713
  %730 = vst [vmem:[%s2 + $0x20] sm:$0xff] %v714
  %731 = vst [vmem:[%s2 + $0x28] sm:$0xff] %v715
  %732 = vst [vmem:[%s2 + $0x30] sm:$0xff] %v716
  %733 = vst [vmem:[%s2 + $0x38] sm:$0xff] %v717
  // Predicated region
  $region10: #{discriminator_forward.8} parent=0 // pred_check
    _
  $region11: #{discriminator_forward.8} parent=0 // pred_check_branch
    %735 = sbr.rel (0) target = $region13
  $region12: #{discriminator_forward.8} parent=0 // pred_region
    _
  $region13: #{discriminator_forward.8} parent=0 // pred_fallthru
    _
  // Predicated region
  $region14: #{discriminator_forward.8} parent=0 // pred_check
    _
  $region15: #{discriminator_forward.8} parent=0 // pred_check_branch
    %737 = sbr.rel (0) target = $region17
  $region16: #{discriminator_forward.8} parent=0 // pred_region
    _
  $region17: #{discriminator_forward.8} parent=0 // pred_fallthru
    _

// kernel: discriminator_forward.9
$region0: #{discriminator_forward.9}
  #allocation0 [shape = 'u32[]', space=smem, size = 0x4, offset = 0x4, fixed_abs, tag = 'smem constant byte address 0x4 - core index']
  #allocation1 [shape = 'u32[144,128]{1,0:T(1,128)}', space=vmem, size = 0x12000, scoped, tag = 'internal scratch']
  %s0 = inlined_call_operand.vmem [shape: bf16[64,512], index: 0, kind: input, shape index: {}]
  %s1 = inlined_call_operand.vmem [shape: bf16[512,128], index: 1, kind: input, shape index: {}]
  %s2 = inlined_call_operand.vmem [shape: bf16[64,128], index: 2, kind: output, shape index: {}]
  %s3 = sld [smem:[#allocation0]]
  $region18: #{discriminator_forward.9} parent=0
    _
  %s5 = ssub.s32 1, %s3
  %s6 = scalar_select 0, %s5, %s3
  // Predicated region
  $region2: #{discriminator_forward.9} parent=0 // pred_check
    _
  $region3: #{discriminator_forward.9} parent=0 // pred_check_branch
    %8 = sbr.rel (0) target = $region5
  $region4: #{discriminator_forward.9} parent=0 // pred_region
    _
  $region5: #{discriminator_forward.9} parent=0 // pred_fallthru
    _
  // Predicated region
  $region6: #{discriminator_forward.9} parent=0 // pred_check
    _
  $region7: #{discriminator_forward.9} parent=0 // pred_check_branch
    %10 = sbr.rel (0) target = $region9
  $region8: #{discriminator_forward.9} parent=0 // pred_region
    _
  $region9: #{discriminator_forward.9} parent=0 // pred_fallthru
    _
  %v12 = vld [vmem:[%s0] sm:$0xff]
  %v13 = vld [vmem:[%s0 + $0x8] sm:$0xff]
  %v14 = vld [vmem:[%s0 + $0x10] sm:$0xff]
  %v15 = vld [vmem:[%s0 + $0x18] sm:$0xff]
  %v16 = vld [vmem:[%s0 + $0x20] sm:$0xff]
  %v17 = vld [vmem:[%s0 + $0x28] sm:$0xff]
  %v18 = vld [vmem:[%s0 + $0x30] sm:$0xff]
  %v19 = vld [vmem:[%s0 + $0x38] sm:$0xff]
  %v20 = vld [vmem:[%s0 + $0x40] sm:$0xff]
  %v21 = vld [vmem:[%s0 + $0x48] sm:$0xff]
  %v22 = vld [vmem:[%s0 + $0x50] sm:$0xff]
  %v23 = vld [vmem:[%s0 + $0x58] sm:$0xff]
  %v24 = vld [vmem:[%s0 + $0x60] sm:$0xff]
  %v25 = vld [vmem:[%s0 + $0x68] sm:$0xff]
  %v26 = vld [vmem:[%s0 + $0x70] sm:$0xff]
  %v27 = vld [vmem:[%s0 + $0x78] sm:$0xff]
  %v28 = vld [vmem:[%s1] sm:$0xf]
  %v29 = vld [vmem:[%s1 + $0x4] sm:$0xf]
  %v30 = vld [vmem:[%s1 + $0x8] sm:$0xf]
  %v31 = vld [vmem:[%s1 + $0xc] sm:$0xf]
  %v32 = vld [vmem:[%s1 + $0x10] sm:$0xf]
  %v33 = vld [vmem:[%s1 + $0x14] sm:$0xf]
  %v34 = vld [vmem:[%s1 + $0x18] sm:$0xf]
  %v35 = vld [vmem:[%s1 + $0x1c] sm:$0xf]
  %v36 = vld [vmem:[%s1 + $0x20] sm:$0xf]
  %v37 = vld [vmem:[%s1 + $0x24] sm:$0xf]
  %v38 = vld [vmem:[%s1 + $0x28] sm:$0xf]
  %v39 = vld [vmem:[%s1 + $0x2c] sm:$0xf]
  %v40 = vld [vmem:[%s1 + $0x30] sm:$0xf]
  %v41 = vld [vmem:[%s1 + $0x34] sm:$0xf]
  %v42 = vld [vmem:[%s1 + $0x38] sm:$0xf]
  %v43 = vld [vmem:[%s1 + $0x3c] sm:$0xf]
  %v44 = vld [vmem:[%s1 + $0x40] sm:$0xf]
  %v45 = vld [vmem:[%s1 + $0x44] sm:$0xf]
  %v46 = vld [vmem:[%s1 + $0x48] sm:$0xf]
  %v47 = vld [vmem:[%s1 + $0x4c] sm:$0xf]
  %v48 = vld [vmem:[%s1 + $0x50] sm:$0xf]
  %v49 = vld [vmem:[%s1 + $0x54] sm:$0xf]
  %v50 = vld [vmem:[%s1 + $0x58] sm:$0xf]
  %v51 = vld [vmem:[%s1 + $0x5c] sm:$0xf]
  %v52 = vld [vmem:[%s1 + $0x60] sm:$0xf]
  %v53 = vld [vmem:[%s1 + $0x64] sm:$0xf]
  %v54 = vld [vmem:[%s1 + $0x68] sm:$0xf]
  %v55 = vld [vmem:[%s1 + $0x6c] sm:$0xf]
  %v56 = vld [vmem:[%s1 + $0x70] sm:$0xf]
  %v57 = vld [vmem:[%s1 + $0x74] sm:$0xf]
  %v58 = vld [vmem:[%s1 + $0x78] sm:$0xf]
  %v59 = vld [vmem:[%s1 + $0x7c] sm:$0xf]
  %v60 = vld [vmem:[%s1 + $0x80] sm:$0xf]
  %v61 = vld [vmem:[%s1 + $0x84] sm:$0xf]
  %v62 = vld [vmem:[%s1 + $0x88] sm:$0xf]
  %v63 = vld [vmem:[%s1 + $0x8c] sm:$0xf]
  %v64 = vld [vmem:[%s1 + $0x90] sm:$0xf]
  %v65 = vld [vmem:[%s1 + $0x94] sm:$0xf]
  %v66 = vld [vmem:[%s1 + $0x98] sm:$0xf]
  %v67 = vld [vmem:[%s1 + $0x9c] sm:$0xf]
  %v68 = vld [vmem:[%s1 + $0xa0] sm:$0xf]
  %v69 = vld [vmem:[%s1 + $0xa4] sm:$0xf]
  %v70 = vld [vmem:[%s1 + $0xa8] sm:$0xf]
  %v71 = vld [vmem:[%s1 + $0xac] sm:$0xf]
  %v72 = vld [vmem:[%s1 + $0xb0] sm:$0xf]
  %v73 = vld [vmem:[%s1 + $0xb4] sm:$0xf]
  %v74 = vld [vmem:[%s1 + $0xb8] sm:$0xf]
  %v75 = vld [vmem:[%s1 + $0xbc] sm:$0xf]
  %v76 = vld [vmem:[%s1 + $0xc0] sm:$0xf]
  %v77 = vld [vmem:[%s1 + $0xc4] sm:$0xf]
  %v78 = vld [vmem:[%s1 + $0xc8] sm:$0xf]
  %v79 = vld [vmem:[%s1 + $0xcc] sm:$0xf]
  %v80 = vld [vmem:[%s1 + $0xd0] sm:$0xf]
  %v81 = vld [vmem:[%s1 + $0xd4] sm:$0xf]
  %v82 = vld [vmem:[%s1 + $0xd8] sm:$0xf]
  %v83 = vld [vmem:[%s1 + $0xdc] sm:$0xf]
  %v84 = vld [vmem:[%s1 + $0xe0] sm:$0xf]
  %v85 = vld [vmem:[%s1 + $0xe4] sm:$0xf]
  %v86 = vld [vmem:[%s1 + $0xe8] sm:$0xf]
  %v87 = vld [vmem:[%s1 + $0xec] sm:$0xf]
  %v88 = vld [vmem:[%s1 + $0xf0] sm:$0xf]
  %v89 = vld [vmem:[%s1 + $0xf4] sm:$0xf]
  %v90 = vld [vmem:[%s1 + $0xf8] sm:$0xf]
  %v91 = vld [vmem:[%s1 + $0xfc] sm:$0xf]
  %v108 = vunpack.c.l.b16 %v12
  %v109 = vunpack.c.h.b16 %v12
  %v110 = vunpack.c.l.b16 %v13
  %v111 = vunpack.c.h.b16 %v13
  %v112 = vunpack.c.l.b16 %v14
  %v113 = vunpack.c.h.b16 %v14
  %v114 = vunpack.c.l.b16 %v15
  %v115 = vunpack.c.h.b16 %v15
  %v116 = vunpack.c.l.b16 %v16
  %v117 = vunpack.c.h.b16 %v16
  %v118 = vunpack.c.l.b16 %v17
  %v119 = vunpack.c.h.b16 %v17
  %v120 = vunpack.c.l.b16 %v18
  %v121 = vunpack.c.h.b16 %v18
  %v122 = vunpack.c.l.b16 %v19
  %v123 = vunpack.c.h.b16 %v19
  %v124 = vunpack.c.l.b16 %v20
  %v125 = vunpack.c.h.b16 %v20
  %v126 = vunpack.c.l.b16 %v21
  %v127 = vunpack.c.h.b16 %v21
  %v128 = vunpack.c.l.b16 %v22
  %v129 = vunpack.c.h.b16 %v22
  %v130 = vunpack.c.l.b16 %v23
  %v131 = vunpack.c.h.b16 %v23
  %v132 = vunpack.c.l.b16 %v24
  %v133 = vunpack.c.h.b16 %v24
  %v134 = vunpack.c.l.b16 %v25
  %v135 = vunpack.c.h.b16 %v25
  %v136 = vunpack.c.l.b16 %v26
  %v137 = vunpack.c.h.b16 %v26
  %v138 = vunpack.c.l.b16 %v27
  %v139 = vunpack.c.h.b16 %v27
  %v140 = vpack.c.b16 %v112, %v108
  %v141 = vpack.c.b16 %v113, %v109
  %v142 = vpack.c.b16 %v114, %v110
  %v143 = vpack.c.b16 %v115, %v111
  %v144 = vpack.c.b16 %v120, %v116
  %v145 = vpack.c.b16 %v121, %v117
  %v146 = vpack.c.b16 %v122, %v118
  %v147 = vpack.c.b16 %v123, %v119
  %v148 = vpack.c.b16 %v128, %v124
  %v149 = vpack.c.b16 %v129, %v125
  %v150 = vpack.c.b16 %v130, %v126
  %v151 = vpack.c.b16 %v131, %v127
  %v152 = vpack.c.b16 %v136, %v132
  %v153 = vpack.c.b16 %v137, %v133
  %v154 = vpack.c.b16 %v138, %v134
  %v155 = vpack.c.b16 %v139, %v135
  %v236 = vunpack.c.l.b16 %v28
  %v237 = vunpack.c.l.b16 %v29
  %v238 = vunpack.c.l.b16 %v30
  %v239 = vunpack.c.l.b16 %v31
  %v240 = vunpack.c.l.b16 %v32
  %v241 = vunpack.c.l.b16 %v33
  %v242 = vunpack.c.l.b16 %v34
  %v243 = vunpack.c.l.b16 %v35
  %v244 = vunpack.c.l.b16 %v36
  %v245 = vunpack.c.l.b16 %v37
  %v246 = vunpack.c.l.b16 %v38
  %v247 = vunpack.c.l.b16 %v39
  %v248 = vunpack.c.l.b16 %v40
  %v249 = vunpack.c.l.b16 %v41
  %v250 = vunpack.c.l.b16 %v42
  %v251 = vunpack.c.l.b16 %v43
  %v252 = vunpack.c.l.b16 %v44
  %v253 = vunpack.c.l.b16 %v45
  %v254 = vunpack.c.l.b16 %v46
  %v255 = vunpack.c.l.b16 %v47
  %v256 = vunpack.c.l.b16 %v48
  %v257 = vunpack.c.l.b16 %v49
  %v258 = vunpack.c.l.b16 %v50
  %v259 = vunpack.c.l.b16 %v51
  %v260 = vunpack.c.l.b16 %v52
  %v261 = vunpack.c.l.b16 %v53
  %v262 = vunpack.c.l.b16 %v54
  %v263 = vunpack.c.l.b16 %v55
  %v264 = vunpack.c.l.b16 %v56
  %v265 = vunpack.c.l.b16 %v57
  %v266 = vunpack.c.l.b16 %v58
  %v267 = vunpack.c.l.b16 %v59
  %v268 = vunpack.c.l.b16 %v60
  %v269 = vunpack.c.l.b16 %v61
  %v270 = vunpack.c.l.b16 %v62
  %v271 = vunpack.c.l.b16 %v63
  %v272 = vunpack.c.l.b16 %v64
  %v273 = vunpack.c.l.b16 %v65
  %v274 = vunpack.c.l.b16 %v66
  %v275 = vunpack.c.l.b16 %v67
  %v276 = vunpack.c.l.b16 %v68
  %v277 = vunpack.c.l.b16 %v69
  %v278 = vunpack.c.l.b16 %v70
  %v279 = vunpack.c.l.b16 %v71
  %v280 = vunpack.c.l.b16 %v72
  %v281 = vunpack.c.l.b16 %v73
  %v282 = vunpack.c.l.b16 %v74
  %v283 = vunpack.c.l.b16 %v75
  %v284 = vunpack.c.l.b16 %v76
  %v285 = vunpack.c.l.b16 %v77
  %v286 = vunpack.c.l.b16 %v78
  %v287 = vunpack.c.l.b16 %v79
  %v288 = vunpack.c.l.b16 %v80
  %v289 = vunpack.c.l.b16 %v81
  %v290 = vunpack.c.l.b16 %v82
  %v291 = vunpack.c.l.b16 %v83
  %v292 = vunpack.c.l.b16 %v84
  %v293 = vunpack.c.l.b16 %v85
  %v294 = vunpack.c.l.b16 %v86
  %v295 = vunpack.c.l.b16 %v87
  %v296 = vunpack.c.l.b16 %v88
  %v297 = vunpack.c.l.b16 %v89
  %v298 = vunpack.c.l.b16 %v90
  %v299 = vunpack.c.l.b16 %v91
  %v300 = vpack.c.b16 %v237, %v236
  %v301 = vpack.c.b16 %v239, %v238
  %v302 = vpack.c.b16 %v241, %v240
  %v303 = vpack.c.b16 %v243, %v242
  %v304 = vpack.c.b16 %v245, %v244
  %v305 = vpack.c.b16 %v247, %v246
  %v306 = vpack.c.b16 %v249, %v248
  %v307 = vpack.c.b16 %v251, %v250
  %v308 = vpack.c.b16 %v253, %v252
  %v309 = vpack.c.b16 %v255, %v254
  %v310 = vpack.c.b16 %v257, %v256
  %v311 = vpack.c.b16 %v259, %v258
  %v312 = vpack.c.b16 %v261, %v260
  %v313 = vpack.c.b16 %v263, %v262
  %v314 = vpack.c.b16 %v265, %v264
  %v315 = vpack.c.b16 %v267, %v266
  %v316 = vpack.c.b16 %v269, %v268
  %v317 = vpack.c.b16 %v271, %v270
  %v318 = vpack.c.b16 %v273, %v272
  %v319 = vpack.c.b16 %v275, %v274
  %v320 = vpack.c.b16 %v277, %v276
  %v321 = vpack.c.b16 %v279, %v278
  %v322 = vpack.c.b16 %v281, %v280
  %v323 = vpack.c.b16 %v283, %v282
  %v324 = vpack.c.b16 %v285, %v284
  %v325 = vpack.c.b16 %v287, %v286
  %v326 = vpack.c.b16 %v289, %v288
  %v327 = vpack.c.b16 %v291, %v290
  %v328 = vpack.c.b16 %v293, %v292
  %v329 = vpack.c.b16 %v295, %v294
  %v330 = vpack.c.b16 %v297, %v296
  %v331 = vpack.c.b16 %v299, %v298
  %364 = vmatprep.subr.bf16.mxu0 0
  %365 = vmatpush1.bf16.msra.mxu0 %v307
  %366 = vmatprep.subr.bf16.mxu0 0
  %367 = vmatpush1.bf16.msra.mxu0 %v306
  %368 = vmatprep.subr.bf16.mxu0 0
  %369 = vmatpush1.bf16.msra.mxu0 %v305
  %370 = vmatprep.subr.bf16.mxu0 0
  %371 = vmatpush1.bf16.msra.mxu0 %v304
  %372 = vmatprep.subr.bf16.mxu0 0
  %373 = vmatpush1.bf16.msra.mxu0 %v303
  %374 = vmatprep.subr.bf16.mxu0 0
  %375 = vmatpush1.bf16.msra.mxu0 %v302
  %376 = vmatprep.subr.bf16.mxu0 0
  %377 = vmatpush1.bf16.msra.mxu0 %v301
  %378 = vmatprep.subr.bf16.mxu0 0
  %379 = vmatpush1.bf16.msra.mxu0 %v300
  %380 = vmatprep.subr.bf16.mxu0 0
  %381 = vmatpush2.bf16.msra.mxu0 %v315
  %382 = vmatprep.subr.bf16.mxu0 0
  %383 = vmatpush2.bf16.msra.mxu0 %v314
  %384 = vmatprep.subr.bf16.mxu0 0
  %385 = vmatpush2.bf16.msra.mxu0 %v313
  %386 = vmatprep.subr.bf16.mxu0 0
  %387 = vmatpush2.bf16.msra.mxu0 %v312
  %388 = vmatprep.subr.bf16.mxu0 0
  %389 = vmatpush2.bf16.msra.mxu0 %v311
  %390 = vmatprep.subr.bf16.mxu0 0
  %391 = vmatpush2.bf16.msra.mxu0 %v310
  %392 = vmatprep.subr.bf16.mxu0 0
  %393 = vmatpush2.bf16.msra.mxu0 %v309
  %394 = vmatprep.subr.bf16.mxu0 0
  %395 = vmatpush2.bf16.msra.mxu0 %v308
  %396 = vmatprep.mubr.bf16.mxu0 %v141
  %397 = vmatmul.mubr.bf16.gmra.mxu0 %v140
  %v398 = vpop.f32.mrf.mxu0
  %v399 = vadd.f32 0.0, %v398
  %v400 = vpop.f32.mrf.mxu0
  %v401 = vpop.f32.mrf.mxu0
  %v402 = vadd.f32 0.0, %v401
  %v403 = vpop.f32.mrf.mxu0
  %404 = vmatprep.mubr.bf16.mxu0 %v145
  %405 = vmatmul.mubr.bf16.gmra.mxu0 %v144
  %v406 = vpop.f32.mrf.mxu0
  %v407 = vadd.f32 0.0, %v406
  %v408 = vpop.f32.mrf.mxu0
  %v409 = vpop.f32.mrf.mxu0
  %v410 = vadd.f32 0.0, %v409
  %v411 = vpop.f32.mrf.mxu0
  %412 = vmatprep.mubr.bf16.mxu0 %v149
  %413 = vmatmul.mubr.bf16.gmra.mxu0 %v148
  %v414 = vpop.f32.mrf.mxu0
  %v415 = vadd.f32 0.0, %v414
  %v416 = vpop.f32.mrf.mxu0
  %v417 = vpop.f32.mrf.mxu0
  %v418 = vadd.f32 0.0, %v417
  %v419 = vpop.f32.mrf.mxu0
  %420 = vmatprep.mubr.bf16.mxu0 %v153
  %421 = vmatmul.mubr.bf16.gmra.mxu0 %v152
  %v422 = vpop.f32.mrf.mxu0
  %v423 = vadd.f32 0.0, %v422
  %v424 = vpop.f32.mrf.mxu0
  %v425 = vpop.f32.mrf.mxu0
  %v426 = vadd.f32 0.0, %v425
  %v427 = vpop.f32.mrf.mxu0
  %428 = vdwg.mxu0
  %429 = vmatprep.subr.bf16.mxu0 0
  %430 = vmatpush1.bf16.msra.mxu0 %v323
  %431 = vmatprep.subr.bf16.mxu0 0
  %432 = vmatpush1.bf16.msra.mxu0 %v322
  %433 = vmatprep.subr.bf16.mxu0 0
  %434 = vmatpush1.bf16.msra.mxu0 %v321
  %435 = vmatprep.subr.bf16.mxu0 0
  %436 = vmatpush1.bf16.msra.mxu0 %v320
  %437 = vmatprep.subr.bf16.mxu0 0
  %438 = vmatpush1.bf16.msra.mxu0 %v319
  %439 = vmatprep.subr.bf16.mxu0 0
  %440 = vmatpush1.bf16.msra.mxu0 %v318
  %441 = vmatprep.subr.bf16.mxu0 0
  %442 = vmatpush1.bf16.msra.mxu0 %v317
  %443 = vmatprep.subr.bf16.mxu0 0
  %444 = vmatpush1.bf16.msra.mxu0 %v316
  %445 = vmatprep.subr.bf16.mxu0 0
  %446 = vmatpush2.bf16.msra.mxu0 %v331
  %447 = vmatprep.subr.bf16.mxu0 0
  %448 = vmatpush2.bf16.msra.mxu0 %v330
  %449 = vmatprep.subr.bf16.mxu0 0
  %450 = vmatpush2.bf16.msra.mxu0 %v329
  %451 = vmatprep.subr.bf16.mxu0 0
  %452 = vmatpush2.bf16.msra.mxu0 %v328
  %453 = vmatprep.subr.bf16.mxu0 0
  %454 = vmatpush2.bf16.msra.mxu0 %v327
  %455 = vmatprep.subr.bf16.mxu0 0
  %456 = vmatpush2.bf16.msra.mxu0 %v326
  %457 = vmatprep.subr.bf16.mxu0 0
  %458 = vmatpush2.bf16.msra.mxu0 %v325
  %459 = vmatprep.subr.bf16.mxu0 0
  %460 = vmatpush2.bf16.msra.mxu0 %v324
  %461 = vmatprep.mubr.bf16.mxu0 %v143
  %462 = vmatmul.mubr.bf16.gmra.mxu0 %v142
  %v463 = vpop.f32.mrf.mxu0
  %v464 = vadd.f32 %v399, %v463
  %v465 = vpop.f32.mrf.mxu0
  %v466 = vpop.f32.mrf.mxu0
  %v467 = vadd.f32 %v402, %v466
  %v468 = vpop.f32.mrf.mxu0
  %469 = vmatprep.mubr.bf16.mxu0 %v147
  %470 = vmatmul.mubr.bf16.gmra.mxu0 %v146
  %v471 = vpop.f32.mrf.mxu0
  %v472 = vadd.f32 %v407, %v471
  %v473 = vpop.f32.mrf.mxu0
  %v474 = vpop.f32.mrf.mxu0
  %v475 = vadd.f32 %v410, %v474
  %v476 = vpop.f32.mrf.mxu0
  %477 = vmatprep.mubr.bf16.mxu0 %v151
  %478 = vmatmul.mubr.bf16.gmra.mxu0 %v150
  %v479 = vpop.f32.mrf.mxu0
  %v480 = vadd.f32 %v415, %v479
  %v481 = vpop.f32.mrf.mxu0
  %v482 = vpop.f32.mrf.mxu0
  %v483 = vadd.f32 %v418, %v482
  %v484 = vpop.f32.mrf.mxu0
  %485 = vmatprep.mubr.bf16.mxu0 %v155
  %486 = vmatmul.mubr.bf16.gmra.mxu0 %v154
  %v487 = vpop.f32.mrf.mxu0
  %v488 = vadd.f32 %v423, %v487
  %v489 = vpop.f32.mrf.mxu0
  %v490 = vpop.f32.mrf.mxu0
  %v491 = vadd.f32 %v426, %v490
  %v492 = vpop.f32.mrf.mxu0
  %493 = vdwg.mxu0
  %494 = vadd.xlane.f32.xlu0 %v464
  %v495 = vpop.xlane.xlu0 %494
  %496 = vadd.xlane.f32.xlu0 %v467
  %v497 = vpop.xlane.xlu0 %496
  %498 = vadd.xlane.f32.xlu0 %v472
  %v499 = vpop.xlane.xlu0 %498
  %500 = vadd.xlane.f32.xlu0 %v475
  %v501 = vpop.xlane.xlu0 %500
  %502 = vadd.xlane.f32.xlu0 %v480
  %v503 = vpop.xlane.xlu0 %502
  %504 = vadd.xlane.f32.xlu0 %v483
  %v505 = vpop.xlane.xlu0 %504
  %506 = vadd.xlane.f32.xlu0 %v488
  %v507 = vpop.xlane.xlu0 %506
  %508 = vadd.xlane.f32.xlu0 %v491
  %v509 = vpop.xlane.xlu0 %508
  %v510 = vrcp.pop 128.0
  %v511 = vmul.f32 %v495, %v510
  %v512 = vmul.f32 %v497, %v510
  %v513 = vmul.f32 %v499, %v510
  %v514 = vmul.f32 %v501, %v510
  %v515 = vmul.f32 %v503, %v510
  %v516 = vmul.f32 %v505, %v510
  %v517 = vmul.f32 %v507, %v510
  %v518 = vmul.f32 %v509, %v510
  %v519 = vsub.f32 %v464, %v511
  %v520 = vsub.f32 %v467, %v512
  %v521 = vsub.f32 %v472, %v513
  %v522 = vsub.f32 %v475, %v514
  %v523 = vsub.f32 %v480, %v515
  %v524 = vsub.f32 %v483, %v516
  %v525 = vsub.f32 %v488, %v517
  %v526 = vsub.f32 %v491, %v518
  %v527 = vmul.f32 %v519, %v519
  %v528 = vmul.f32 %v520, %v520
  %v529 = vmul.f32 %v521, %v521
  %v530 = vmul.f32 %v522, %v522
  %v531 = vmul.f32 %v523, %v523
  %v532 = vmul.f32 %v524, %v524
  %v533 = vmul.f32 %v525, %v525
  %v534 = vmul.f32 %v526, %v526
  %535 = vadd.xlane.f32.xlu0 %v527
  %v536 = vpop.xlane.xlu0 %535
  %537 = vadd.xlane.f32.xlu0 %v528
  %v538 = vpop.xlane.xlu0 %537
  %539 = vadd.xlane.f32.xlu0 %v529
  %v540 = vpop.xlane.xlu0 %539
  %541 = vadd.xlane.f32.xlu0 %v530
  %v542 = vpop.xlane.xlu0 %541
  %543 = vadd.xlane.f32.xlu0 %v531
  %v544 = vpop.xlane.xlu0 %543
  %545 = vadd.xlane.f32.xlu0 %v532
  %v546 = vpop.xlane.xlu0 %545
  %547 = vadd.xlane.f32.xlu0 %v533
  %v548 = vpop.xlane.xlu0 %547
  %549 = vadd.xlane.f32.xlu0 %v534
  %v550 = vpop.xlane.xlu0 %549
  %v551 = vmul.f32 %v536, %v510
  %v552 = vmul.f32 %v538, %v510
  %v553 = vmul.f32 %v540, %v510
  %v554 = vmul.f32 %v542, %v510
  %v555 = vmul.f32 %v544, %v510
  %v556 = vmul.f32 %v546, %v510
  %v557 = vmul.f32 %v548, %v510
  %v558 = vmul.f32 %v550, %v510
  %v559 = vadd.f32 %v551, 1e-05
  %v560 = vadd.f32 %v552, 1e-05
  %v561 = vadd.f32 %v553, 1e-05
  %v562 = vadd.f32 %v554, 1e-05
  %v563 = vadd.f32 %v555, 1e-05
  %v564 = vadd.f32 %v556, 1e-05
  %v565 = vadd.f32 %v557, 1e-05
  %v566 = vadd.f32 %v558, 1e-05
  %v567 = vrsqrt.pop %v559
  %v568 = vrsqrt.pop %v560
  %v569 = vrsqrt.pop %v561
  %v570 = vrsqrt.pop %v562
  %v571 = vrsqrt.pop %v563
  %v572 = vrsqrt.pop %v564
  %v573 = vrsqrt.pop %v565
  %v574 = vrsqrt.pop %v566
  %v575 = vmul.f32 %v519, %v567
  %v576 = vmul.f32 %v520, %v568
  %v577 = vmul.f32 %v521, %v569
  %v578 = vmul.f32 %v522, %v570
  %v579 = vmul.f32 %v523, %v571
  %v580 = vmul.f32 %v524, %v572
  %v581 = vmul.f32 %v525, %v573
  %v582 = vmul.f32 %v526, %v574
  %vm583 = vcmp.gt.f32.partialorder %v575, 0.0
  %vm584 = vcmp.gt.f32.partialorder %v576, 0.0
  %vm585 = vcmp.gt.f32.partialorder %v577, 0.0
  %vm586 = vcmp.gt.f32.partialorder %v578, 0.0
  %vm587 = vcmp.gt.f32.partialorder %v579, 0.0
  %vm588 = vcmp.gt.f32.partialorder %v580, 0.0
  %vm589 = vcmp.gt.f32.partialorder %v581, 0.0
  %vm590 = vcmp.gt.f32.partialorder %v582, 0.0
  %v591 = vmul.f32 %v575, 0.2
  %v592 = vmul.f32 %v576, 0.2
  %v593 = vmul.f32 %v577, 0.2
  %v594 = vmul.f32 %v578, 0.2
  %v595 = vmul.f32 %v579, 0.2
  %v596 = vmul.f32 %v580, 0.2
  %v597 = vmul.f32 %v581, 0.2
  %v598 = vmul.f32 %v582, 0.2
  %v599 = vsel %vm583, %v575, %v591
  %v600 = vsel %vm584, %v576, %v592
  %v601 = vsel %vm585, %v577, %v593
  %v602 = vsel %vm586, %v578, %v594
  %v603 = vsel %vm587, %v579, %v595
  %v604 = vsel %vm588, %v580, %v596
  %v605 = vsel %vm589, %v581, %v597
  %v606 = vsel %vm590, %v582, %v598
  %v607 = vpack.c.bf16 %v600, %v599
  %v608 = vpack.c.bf16 %v602, %v601
  %v609 = vpack.c.bf16 %v604, %v603
  %v610 = vpack.c.bf16 %v606, %v605
  %v615 = vunpack.c.l.b16 %v607
  %v616 = vunpack.c.h.b16 %v607
  %v617 = vunpack.c.l.b16 %v608
  %v618 = vunpack.c.h.b16 %v608
  %v619 = vunpack.c.l.b16 %v609
  %v620 = vunpack.c.h.b16 %v609
  %v621 = vunpack.c.l.b16 %v610
  %v622 = vunpack.c.h.b16 %v610
  %v623 = vpack.c.b16 %v615, %v615
  %v624 = vpack.c.b16 %v616, %v616
  %v625 = vpack.c.b16 %v617, %v617
  %v626 = vpack.c.b16 %v618, %v618
  %v627 = vpack.c.b16 %v619, %v619
  %v628 = vpack.c.b16 %v620, %v620
  %v629 = vpack.c.b16 %v621, %v621
  %v630 = vpack.c.b16 %v622, %v622
  %639 = vst [vmem:[%s2] sm:$0xf] %v623
  %640 = vst [vmem:[%s2 + $0x4] sm:$0xf] %v624
  %641 = vst [vmem:[%s2 + $0x8] sm:$0xf] %v625
  %642 = vst [vmem:[%s2 + $0xc] sm:$0xf] %v626
  %643 = vst [vmem:[%s2 + $0x10] sm:$0xf] %v627
  %644 = vst [vmem:[%s2 + $0x14] sm:$0xf] %v628
  %645 = vst [vmem:[%s2 + $0x18] sm:$0xf] %v629
  %646 = vst [vmem:[%s2 + $0x1c] sm:$0xf] %v630
  // Predicated region
  $region10: #{discriminator_forward.9} parent=0 // pred_check
    _
  $region11: #{discriminator_forward.9} parent=0 // pred_check_branch
    %648 = sbr.rel (0) target = $region13
  $region12: #{discriminator_forward.9} parent=0 // pred_region
    _
  $region13: #{discriminator_forward.9} parent=0 // pred_fallthru
    _
  // Predicated region
  $region14: #{discriminator_forward.9} parent=0 // pred_check
    _
  $region15: #{discriminator_forward.9} parent=0 // pred_check_branch
    %650 = sbr.rel (0) target = $region17
  $region16: #{discriminator_forward.9} parent=0 // pred_region
    _
  $region17: #{discriminator_forward.9} parent=0 // pred_fallthru
    _

// kernel: discriminator_forward.10
$region0: #{discriminator_forward.10}
  #allocation0 [shape = 'u32[]', space=smem, size = 0x4, offset = 0x4, fixed_abs, tag = 'smem constant byte address 0x4 - core index']
  #allocation1 [shape = 'u32[144,128]{1,0:T(1,128)}', space=vmem, size = 0x12000, scoped, tag = 'internal scratch']
  %s0 = inlined_call_operand.vmem [shape: bf16[128,1024], index: 0, kind: input, shape index: {}]
  %s1 = inlined_call_operand.vmem [shape: bf16[1024,32], index: 1, kind: input, shape index: {}]
  %s2 = inlined_call_operand.vmem [shape: bf16[128,32], index: 2, kind: output, shape index: {}]
  %s3 = sld [smem:[#allocation0]]
  $region18: #{discriminator_forward.10} parent=0
    _
  %s5 = ssub.s32 1, %s3
  %s6 = scalar_select 0, %s5, %s3
  // Predicated region
  $region2: #{discriminator_forward.10} parent=0 // pred_check
    _
  $region3: #{discriminator_forward.10} parent=0 // pred_check_branch
    %8 = sbr.rel (0) target = $region5
  $region4: #{discriminator_forward.10} parent=0 // pred_region
    _
  $region5: #{discriminator_forward.10} parent=0 // pred_fallthru
    _
  // Predicated region
  $region6: #{discriminator_forward.10} parent=0 // pred_check
    _
  $region7: #{discriminator_forward.10} parent=0 // pred_check_branch
    %10 = sbr.rel (0) target = $region9
  $region8: #{discriminator_forward.10} parent=0 // pred_region
    _
  $region9: #{discriminator_forward.10} parent=0 // pred_fallthru
    _
  %v12 = vld [vmem:[%s0] sm:$0xff]
  %v13 = vld [vmem:[%s0 + $0x8] sm:$0xff]
  %v14 = vld [vmem:[%s0 + $0x10] sm:$0xff]
  %v15 = vld [vmem:[%s0 + $0x18] sm:$0xff]
  %v16 = vld [vmem:[%s0 + $0x20] sm:$0xff]
  %v17 = vld [vmem:[%s0 + $0x28] sm:$0xff]
  %v18 = vld [vmem:[%s0 + $0x30] sm:$0xff]
  %v19 = vld [vmem:[%s0 + $0x38] sm:$0xff]
  %v20 = vld [vmem:[%s0 + $0x40] sm:$0xff]
  %v21 = vld [vmem:[%s0 + $0x48] sm:$0xff]
  %v22 = vld [vmem:[%s0 + $0x50] sm:$0xff]
  %v23 = vld [vmem:[%s0 + $0x58] sm:$0xff]
  %v24 = vld [vmem:[%s0 + $0x60] sm:$0xff]
  %v25 = vld [vmem:[%s0 + $0x68] sm:$0xff]
  %v26 = vld [vmem:[%s0 + $0x70] sm:$0xff]
  %v27 = vld [vmem:[%s0 + $0x78] sm:$0xff]
  %v28 = vld [vmem:[%s0 + $0x80] sm:$0xff]
  %v29 = vld [vmem:[%s0 + $0x88] sm:$0xff]
  %v30 = vld [vmem:[%s0 + $0x90] sm:$0xff]
  %v31 = vld [vmem:[%s0 + $0x98] sm:$0xff]
  %v32 = vld [vmem:[%s0 + $0xa0] sm:$0xff]
  %v33 = vld [vmem:[%s0 + $0xa8] sm:$0xff]
  %v34 = vld [vmem:[%s0 + $0xb0] sm:$0xff]
  %v35 = vld [vmem:[%s0 + $0xb8] sm:$0xff]
  %v36 = vld [vmem:[%s0 + $0xc0] sm:$0xff]
  %v37 = vld [vmem:[%s0 + $0xc8] sm:$0xff]
  %v38 = vld [vmem:[%s0 + $0xd0] sm:$0xff]
  %v39 = vld [vmem:[%s0 + $0xd8] sm:$0xff]
  %v40 = vld [vmem:[%s0 + $0xe0] sm:$0xff]
  %v41 = vld [vmem:[%s0 + $0xe8] sm:$0xff]
  %v42 = vld [vmem:[%s0 + $0xf0] sm:$0xff]
  %v43 = vld [vmem:[%s0 + $0xf8] sm:$0xff]
  %v44 = vld [vmem:[%s0 + $0x100] sm:$0xff]
  %v45 = vld [vmem:[%s0 + $0x108] sm:$0xff]
  %v46 = vld [vmem:[%s0 + $0x110] sm:$0xff]
  %v47 = vld [vmem:[%s0 + $0x118] sm:$0xff]
  %v48 = vld [vmem:[%s0 + $0x120] sm:$0xff]
  %v49 = vld [vmem:[%s0 + $0x128] sm:$0xff]
  %v50 = vld [vmem:[%s0 + $0x130] sm:$0xff]
  %v51 = vld [vmem:[%s0 + $0x138] sm:$0xff]
  %v52 = vld [vmem:[%s0 + $0x140] sm:$0xff]
  %v53 = vld [vmem:[%s0 + $0x148] sm:$0xff]
  %v54 = vld [vmem:[%s0 + $0x150] sm:$0xff]
  %v55 = vld [vmem:[%s0 + $0x158] sm:$0xff]
  %v56 = vld [vmem:[%s0 + $0x160] sm:$0xff]
  %v57 = vld [vmem:[%s0 + $0x168] sm:$0xff]
  %v58 = vld [vmem:[%s0 + $0x170] sm:$0xff]
  %v59 = vld [vmem:[%s0 + $0x178] sm:$0xff]
  %v60 = vld [vmem:[%s0 + $0x180] sm:$0xff]
  %v61 = vld [vmem:[%s0 + $0x188] sm:$0xff]
  %v62 = vld [vmem:[%s0 + $0x190] sm:$0xff]
  %v63 = vld [vmem:[%s0 + $0x198] sm:$0xff]
  %v64 = vld [vmem:[%s0 + $0x1a0] sm:$0xff]
  %v65 = vld [vmem:[%s0 + $0x1a8] sm:$0xff]
  %v66 = vld [vmem:[%s0 + $0x1b0] sm:$0xff]
  %v67 = vld [vmem:[%s0 + $0x1b8] sm:$0xff]
  %v68 = vld [vmem:[%s0 + $0x1c0] sm:$0xff]
  %v69 = vld [vmem:[%s0 + $0x1c8] sm:$0xff]
  %v70 = vld [vmem:[%s0 + $0x1d0] sm:$0xff]
  %v71 = vld [vmem:[%s0 + $0x1d8] sm:$0xff]
  %v72 = vld [vmem:[%s0 + $0x1e0] sm:$0xff]
  %v73 = vld [vmem:[%s0 + $0x1e8] sm:$0xff]
  %v74 = vld [vmem:[%s0 + $0x1f0] sm:$0xff]
  %v75 = vld [vmem:[%s0 + $0x1f8] sm:$0xff]
  %v76 = vld [vmem:[%s1] sm:$0xf]
  %v77 = vld [vmem:[%s1 + $0x4] sm:$0xf]
  %v78 = vld [vmem:[%s1 + $0x8] sm:$0xf]
  %v79 = vld [vmem:[%s1 + $0xc] sm:$0xf]
  %v80 = vld [vmem:[%s1 + $0x10] sm:$0xf]
  %v81 = vld [vmem:[%s1 + $0x14] sm:$0xf]
  %v82 = vld [vmem:[%s1 + $0x18] sm:$0xf]
  %v83 = vld [vmem:[%s1 + $0x1c] sm:$0xf]
  %v84 = vld [vmem:[%s1 + $0x20] sm:$0xf]
  %v85 = vld [vmem:[%s1 + $0x24] sm:$0xf]
  %v86 = vld [vmem:[%s1 + $0x28] sm:$0xf]
  %v87 = vld [vmem:[%s1 + $0x2c] sm:$0xf]
  %v88 = vld [vmem:[%s1 + $0x30] sm:$0xf]
  %v89 = vld [vmem:[%s1 + $0x34] sm:$0xf]
  %v90 = vld [vmem:[%s1 + $0x38] sm:$0xf]
  %v91 = vld [vmem:[%s1 + $0x3c] sm:$0xf]
  %v92 = vld [vmem:[%s1 + $0x40] sm:$0xf]
  %v93 = vld [vmem:[%s1 + $0x44] sm:$0xf]
  %v94 = vld [vmem:[%s1 + $0x48] sm:$0xf]
  %v95 = vld [vmem:[%s1 + $0x4c] sm:$0xf]
  %v96 = vld [vmem:[%s1 + $0x50] sm:$0xf]
  %v97 = vld [vmem:[%s1 + $0x54] sm:$0xf]
  %v98 = vld [vmem:[%s1 + $0x58] sm:$0xf]
  %v99 = vld [vmem:[%s1 + $0x5c] sm:$0xf]
  %v100 = vld [vmem:[%s1 + $0x60] sm:$0xf]
  %v101 = vld [vmem:[%s1 + $0x64] sm:$0xf]
  %v102 = vld [vmem:[%s1 + $0x68] sm:$0xf]
  %v103 = vld [vmem:[%s1 + $0x6c] sm:$0xf]
  %v104 = vld [vmem:[%s1 + $0x70] sm:$0xf]
  %v105 = vld [vmem:[%s1 + $0x74] sm:$0xf]
  %v106 = vld [vmem:[%s1 + $0x78] sm:$0xf]
  %v107 = vld [vmem:[%s1 + $0x7c] sm:$0xf]
  %v108 = vld [vmem:[%s1 + $0x80] sm:$0xf]
  %v109 = vld [vmem:[%s1 + $0x84] sm:$0xf]
  %v110 = vld [vmem:[%s1 + $0x88] sm:$0xf]
  %v111 = vld [vmem:[%s1 + $0x8c] sm:$0xf]
  %v112 = vld [vmem:[%s1 + $0x90] sm:$0xf]
  %v113 = vld [vmem:[%s1 + $0x94] sm:$0xf]
  %v114 = vld [vmem:[%s1 + $0x98] sm:$0xf]
  %v115 = vld [vmem:[%s1 + $0x9c] sm:$0xf]
  %v116 = vld [vmem:[%s1 + $0xa0] sm:$0xf]
  %v117 = vld [vmem:[%s1 + $0xa4] sm:$0xf]
  %v118 = vld [vmem:[%s1 + $0xa8] sm:$0xf]
  %v119 = vld [vmem:[%s1 + $0xac] sm:$0xf]
  %v120 = vld [vmem:[%s1 + $0xb0] sm:$0xf]
  %v121 = vld [vmem:[%s1 + $0xb4] sm:$0xf]
  %v122 = vld [vmem:[%s1 + $0xb8] sm:$0xf]
  %v123 = vld [vmem:[%s1 + $0xbc] sm:$0xf]
  %v124 = vld [vmem:[%s1 + $0xc0] sm:$0xf]
  %v125 = vld [vmem:[%s1 + $0xc4] sm:$0xf]
  %v126 = vld [vmem:[%s1 + $0xc8] sm:$0xf]
  %v127 = vld [vmem:[%s1 + $0xcc] sm:$0xf]
  %v128 = vld [vmem:[%s1 + $0xd0] sm:$0xf]
  %v129 = vld [vmem:[%s1 + $0xd4] sm:$0xf]
  %v130 = vld [vmem:[%s1 + $0xd8] sm:$0xf]
  %v131 = vld [vmem:[%s1 + $0xdc] sm:$0xf]
  %v132 = vld [vmem:[%s1 + $0xe0] sm:$0xf]
  %v133 = vld [vmem:[%s1 + $0xe4] sm:$0xf]
  %v134 = vld [vmem:[%s1 + $0xe8] sm:$0xf]
  %v135 = vld [vmem:[%s1 + $0xec] sm:$0xf]
  %v136 = vld [vmem:[%s1 + $0xf0] sm:$0xf]
  %v137 = vld [vmem:[%s1 + $0xf4] sm:$0xf]
  %v138 = vld [vmem:[%s1 + $0xf8] sm:$0xf]
  %v139 = vld [vmem:[%s1 + $0xfc] sm:$0xf]
  %v140 = vld [vmem:[%s1 + $0x100] sm:$0xf]
  %v141 = vld [vmem:[%s1 + $0x104] sm:$0xf]
  %v142 = vld [vmem:[%s1 + $0x108] sm:$0xf]
  %v143 = vld [vmem:[%s1 + $0x10c] sm:$0xf]
  %v144 = vld [vmem:[%s1 + $0x110] sm:$0xf]
  %v145 = vld [vmem:[%s1 + $0x114] sm:$0xf]
  %v146 = vld [vmem:[%s1 + $0x118] sm:$0xf]
  %v147 = vld [vmem:[%s1 + $0x11c] sm:$0xf]
  %v148 = vld [vmem:[%s1 + $0x120] sm:$0xf]
  %v149 = vld [vmem:[%s1 + $0x124] sm:$0xf]
  %v150 = vld [vmem:[%s1 + $0x128] sm:$0xf]
  %v151 = vld [vmem:[%s1 + $0x12c] sm:$0xf]
  %v152 = vld [vmem:[%s1 + $0x130] sm:$0xf]
  %v153 = vld [vmem:[%s1 + $0x134] sm:$0xf]
  %v154 = vld [vmem:[%s1 + $0x138] sm:$0xf]
  %v155 = vld [vmem:[%s1 + $0x13c] sm:$0xf]
  %v156 = vld [vmem:[%s1 + $0x140] sm:$0xf]
  %v157 = vld [vmem:[%s1 + $0x144] sm:$0xf]
  %v158 = vld [vmem:[%s1 + $0x148] sm:$0xf]
  %v159 = vld [vmem:[%s1 + $0x14c] sm:$0xf]
  %v160 = vld [vmem:[%s1 + $0x150] sm:$0xf]
  %v161 = vld [vmem:[%s1 + $0x154] sm:$0xf]
  %v162 = vld [vmem:[%s1 + $0x158] sm:$0xf]
  %v163 = vld [vmem:[%s1 + $0x15c] sm:$0xf]
  %v164 = vld [vmem:[%s1 + $0x160] sm:$0xf]
  %v165 = vld [vmem:[%s1 + $0x164] sm:$0xf]
  %v166 = vld [vmem:[%s1 + $0x168] sm:$0xf]
  %v167 = vld [vmem:[%s1 + $0x16c] sm:$0xf]
  %v168 = vld [vmem:[%s1 + $0x170] sm:$0xf]
  %v169 = vld [vmem:[%s1 + $0x174] sm:$0xf]
  %v170 = vld [vmem:[%s1 + $0x178] sm:$0xf]
  %v171 = vld [vmem:[%s1 + $0x17c] sm:$0xf]
  %v172 = vld [vmem:[%s1 + $0x180] sm:$0xf]
  %v173 = vld [vmem:[%s1 + $0x184] sm:$0xf]
  %v174 = vld [vmem:[%s1 + $0x188] sm:$0xf]
  %v175 = vld [vmem:[%s1 + $0x18c] sm:$0xf]
  %v176 = vld [vmem:[%s1 + $0x190] sm:$0xf]
  %v177 = vld [vmem:[%s1 + $0x194] sm:$0xf]
  %v178 = vld [vmem:[%s1 + $0x198] sm:$0xf]
  %v179 = vld [vmem:[%s1 + $0x19c] sm:$0xf]
  %v180 = vld [vmem:[%s1 + $0x1a0] sm:$0xf]
  %v181 = vld [vmem:[%s1 + $0x1a4] sm:$0xf]
  %v182 = vld [vmem:[%s1 + $0x1a8] sm:$0xf]
  %v183 = vld [vmem:[%s1 + $0x1ac] sm:$0xf]
  %v184 = vld [vmem:[%s1 + $0x1b0] sm:$0xf]
  %v185 = vld [vmem:[%s1 + $0x1b4] sm:$0xf]
  %v186 = vld [vmem:[%s1 + $0x1b8] sm:$0xf]
  %v187 = vld [vmem:[%s1 + $0x1bc] sm:$0xf]
  %v188 = vld [vmem:[%s1 + $0x1c0] sm:$0xf]
  %v189 = vld [vmem:[%s1 + $0x1c4] sm:$0xf]
  %v190 = vld [vmem:[%s1 + $0x1c8] sm:$0xf]
  %v191 = vld [vmem:[%s1 + $0x1cc] sm:$0xf]
  %v192 = vld [vmem:[%s1 + $0x1d0] sm:$0xf]
  %v193 = vld [vmem:[%s1 + $0x1d4] sm:$0xf]
  %v194 = vld [vmem:[%s1 + $0x1d8] sm:$0xf]
  %v195 = vld [vmem:[%s1 + $0x1dc] sm:$0xf]
  %v196 = vld [vmem:[%s1 + $0x1e0] sm:$0xf]
  %v197 = vld [vmem:[%s1 + $0x1e4] sm:$0xf]
  %v198 = vld [vmem:[%s1 + $0x1e8] sm:$0xf]
  %v199 = vld [vmem:[%s1 + $0x1ec] sm:$0xf]
  %v200 = vld [vmem:[%s1 + $0x1f0] sm:$0xf]
  %v201 = vld [vmem:[%s1 + $0x1f4] sm:$0xf]
  %v202 = vld [vmem:[%s1 + $0x1f8] sm:$0xf]
  %v203 = vld [vmem:[%s1 + $0x1fc] sm:$0xf]
  %v268 = vunpack.c.l.b16 %v12
  %v269 = vunpack.c.h.b16 %v12
  %v270 = vunpack.c.l.b16 %v13
  %v271 = vunpack.c.h.b16 %v13
  %v272 = vunpack.c.l.b16 %v14
  %v273 = vunpack.c.h.b16 %v14
  %v274 = vunpack.c.l.b16 %v15
  %v275 = vunpack.c.h.b16 %v15
  %v276 = vunpack.c.l.b16 %v16
  %v277 = vunpack.c.h.b16 %v16
  %v278 = vunpack.c.l.b16 %v17
  %v279 = vunpack.c.h.b16 %v17
  %v280 = vunpack.c.l.b16 %v18
  %v281 = vunpack.c.h.b16 %v18
  %v282 = vunpack.c.l.b16 %v19
  %v283 = vunpack.c.h.b16 %v19
  %v284 = vunpack.c.l.b16 %v20
  %v285 = vunpack.c.h.b16 %v20
  %v286 = vunpack.c.l.b16 %v21
  %v287 = vunpack.c.h.b16 %v21
  %v288 = vunpack.c.l.b16 %v22
  %v289 = vunpack.c.h.b16 %v22
  %v290 = vunpack.c.l.b16 %v23
  %v291 = vunpack.c.h.b16 %v23
  %v292 = vunpack.c.l.b16 %v24
  %v293 = vunpack.c.h.b16 %v24
  %v294 = vunpack.c.l.b16 %v25
  %v295 = vunpack.c.h.b16 %v25
  %v296 = vunpack.c.l.b16 %v26
  %v297 = vunpack.c.h.b16 %v26
  %v298 = vunpack.c.l.b16 %v27
  %v299 = vunpack.c.h.b16 %v27
  %v300 = vunpack.c.l.b16 %v28
  %v301 = vunpack.c.h.b16 %v28
  %v302 = vunpack.c.l.b16 %v29
  %v303 = vunpack.c.h.b16 %v29
  %v304 = vunpack.c.l.b16 %v30
  %v305 = vunpack.c.h.b16 %v30
  %v306 = vunpack.c.l.b16 %v31
  %v307 = vunpack.c.h.b16 %v31
  %v308 = vunpack.c.l.b16 %v32
  %v309 = vunpack.c.h.b16 %v32
  %v310 = vunpack.c.l.b16 %v33
  %v311 = vunpack.c.h.b16 %v33
  %v312 = vunpack.c.l.b16 %v34
  %v313 = vunpack.c.h.b16 %v34
  %v314 = vunpack.c.l.b16 %v35
  %v315 = vunpack.c.h.b16 %v35
  %v316 = vunpack.c.l.b16 %v36
  %v317 = vunpack.c.h.b16 %v36
  %v318 = vunpack.c.l.b16 %v37
  %v319 = vunpack.c.h.b16 %v37
  %v320 = vunpack.c.l.b16 %v38
  %v321 = vunpack.c.h.b16 %v38
  %v322 = vunpack.c.l.b16 %v39
  %v323 = vunpack.c.h.b16 %v39
  %v324 = vunpack.c.l.b16 %v40
  %v325 = vunpack.c.h.b16 %v40
  %v326 = vunpack.c.l.b16 %v41
  %v327 = vunpack.c.h.b16 %v41
  %v328 = vunpack.c.l.b16 %v42
  %v329 = vunpack.c.h.b16 %v42
  %v330 = vunpack.c.l.b16 %v43
  %v331 = vunpack.c.h.b16 %v43
  %v332 = vunpack.c.l.b16 %v44
  %v333 = vunpack.c.h.b16 %v44
  %v334 = vunpack.c.l.b16 %v45
  %v335 = vunpack.c.h.b16 %v45
  %v336 = vunpack.c.l.b16 %v46
  %v337 = vunpack.c.h.b16 %v46
  %v338 = vunpack.c.l.b16 %v47
  %v339 = vunpack.c.h.b16 %v47
  %v340 = vunpack.c.l.b16 %v48
  %v341 = vunpack.c.h.b16 %v48
  %v342 = vunpack.c.l.b16 %v49
  %v343 = vunpack.c.h.b16 %v49
  %v344 = vunpack.c.l.b16 %v50
  %v345 = vunpack.c.h.b16 %v50
  %v346 = vunpack.c.l.b16 %v51
  %v347 = vunpack.c.h.b16 %v51
  %v348 = vunpack.c.l.b16 %v52
  %v349 = vunpack.c.h.b16 %v52
  %v350 = vunpack.c.l.b16 %v53
  %v351 = vunpack.c.h.b16 %v53
  %v352 = vunpack.c.l.b16 %v54
  %v353 = vunpack.c.h.b16 %v54
  %v354 = vunpack.c.l.b16 %v55
  %v355 = vunpack.c.h.b16 %v55
  %v356 = vunpack.c.l.b16 %v56
  %v357 = vunpack.c.h.b16 %v56
  %v358 = vunpack.c.l.b16 %v57
  %v359 = vunpack.c.h.b16 %v57
  %v360 = vunpack.c.l.b16 %v58
  %v361 = vunpack.c.h.b16 %v58
  %v362 = vunpack.c.l.b16 %v59
  %v363 = vunpack.c.h.b16 %v59
  %v364 = vunpack.c.l.b16 %v60
  %v365 = vunpack.c.h.b16 %v60
  %v366 = vunpack.c.l.b16 %v61
  %v367 = vunpack.c.h.b16 %v61
  %v368 = vunpack.c.l.b16 %v62
  %v369 = vunpack.c.h.b16 %v62
  %v370 = vunpack.c.l.b16 %v63
  %v371 = vunpack.c.h.b16 %v63
  %v372 = vunpack.c.l.b16 %v64
  %v373 = vunpack.c.h.b16 %v64
  %v374 = vunpack.c.l.b16 %v65
  %v375 = vunpack.c.h.b16 %v65
  %v376 = vunpack.c.l.b16 %v66
  %v377 = vunpack.c.h.b16 %v66
  %v378 = vunpack.c.l.b16 %v67
  %v379 = vunpack.c.h.b16 %v67
  %v380 = vunpack.c.l.b16 %v68
  %v381 = vunpack.c.h.b16 %v68
  %v382 = vunpack.c.l.b16 %v69
  %v383 = vunpack.c.h.b16 %v69
  %v384 = vunpack.c.l.b16 %v70
  %v385 = vunpack.c.h.b16 %v70
  %v386 = vunpack.c.l.b16 %v71
  %v387 = vunpack.c.h.b16 %v71
  %v388 = vunpack.c.l.b16 %v72
  %v389 = vunpack.c.h.b16 %v72
  %v390 = vunpack.c.l.b16 %v73
  %v391 = vunpack.c.h.b16 %v73
  %v392 = vunpack.c.l.b16 %v74
  %v393 = vunpack.c.h.b16 %v74
  %v394 = vunpack.c.l.b16 %v75
  %v395 = vunpack.c.h.b16 %v75
  %v396 = vpack.c.b16 %v276, %v268
  %v397 = vpack.c.b16 %v277, %v269
  %v398 = vpack.c.b16 %v278, %v270
  %v399 = vpack.c.b16 %v279, %v271
  %v400 = vpack.c.b16 %v280, %v272
  %v401 = vpack.c.b16 %v281, %v273
  %v402 = vpack.c.b16 %v282, %v274
  %v403 = vpack.c.b16 %v283, %v275
  %v404 = vpack.c.b16 %v292, %v284
  %v405 = vpack.c.b16 %v293, %v285
  %v406 = vpack.c.b16 %v294, %v286
  %v407 = vpack.c.b16 %v295, %v287
  %v408 = vpack.c.b16 %v296, %v288
  %v409 = vpack.c.b16 %v297, %v289
  %v410 = vpack.c.b16 %v298, %v290
  %v411 = vpack.c.b16 %v299, %v291
  %v412 = vpack.c.b16 %v308, %v300
  %v413 = vpack.c.b16 %v309, %v301
  %v414 = vpack.c.b16 %v310, %v302
  %v415 = vpack.c.b16 %v311, %v303
  %v416 = vpack.c.b16 %v312, %v304
  %v417 = vpack.c.b16 %v313, %v305
  %v418 = vpack.c.b16 %v314, %v306
  %v419 = vpack.c.b16 %v315, %v307
  %v420 = vpack.c.b16 %v324, %v316
  %v421 = vpack.c.b16 %v325, %v317
  %v422 = vpack.c.b16 %v326, %v318
  %v423 = vpack.c.b16 %v327, %v319
  %v424 = vpack.c.b16 %v328, %v320
  %v425 = vpack.c.b16 %v329, %v321
  %v426 = vpack.c.b16 %v330, %v322
  %v427 = vpack.c.b16 %v331, %v323
  %v428 = vpack.c.b16 %v340, %v332
  %v429 = vpack.c.b16 %v341, %v333
  %v430 = vpack.c.b16 %v342, %v334
  %v431 = vpack.c.b16 %v343, %v335
  %v432 = vpack.c.b16 %v344, %v336
  %v433 = vpack.c.b16 %v345, %v337
  %v434 = vpack.c.b16 %v346, %v338
  %v435 = vpack.c.b16 %v347, %v339
  %v436 = vpack.c.b16 %v356, %v348
  %v437 = vpack.c.b16 %v357, %v349
  %v438 = vpack.c.b16 %v358, %v350
  %v439 = vpack.c.b16 %v359, %v351
  %v440 = vpack.c.b16 %v360, %v352
  %v441 = vpack.c.b16 %v361, %v353
  %v442 = vpack.c.b16 %v362, %v354
  %v443 = vpack.c.b16 %v363, %v355
  %v444 = vpack.c.b16 %v372, %v364
  %v445 = vpack.c.b16 %v373, %v365
  %v446 = vpack.c.b16 %v374, %v366
  %v447 = vpack.c.b16 %v375, %v367
  %v448 = vpack.c.b16 %v376, %v368
  %v449 = vpack.c.b16 %v377, %v369
  %v450 = vpack.c.b16 %v378, %v370
  %v451 = vpack.c.b16 %v379, %v371
  %v452 = vpack.c.b16 %v388, %v380
  %v453 = vpack.c.b16 %v389, %v381
  %v454 = vpack.c.b16 %v390, %v382
  %v455 = vpack.c.b16 %v391, %v383
  %v456 = vpack.c.b16 %v392, %v384
  %v457 = vpack.c.b16 %v393, %v385
  %v458 = vpack.c.b16 %v394, %v386
  %v459 = vpack.c.b16 %v395, %v387
  %v652 = vunpack.c.l.b16 %v76
  %v653 = vunpack.c.l.b16 %v77
  %v654 = vunpack.c.l.b16 %v78
  %v655 = vunpack.c.l.b16 %v79
  %v656 = vunpack.c.l.b16 %v80
  %v657 = vunpack.c.l.b16 %v81
  %v658 = vunpack.c.l.b16 %v82
  %v659 = vunpack.c.l.b16 %v83
  %v660 = vunpack.c.l.b16 %v84
  %v661 = vunpack.c.l.b16 %v85
  %v662 = vunpack.c.l.b16 %v86
  %v663 = vunpack.c.l.b16 %v87
  %v664 = vunpack.c.l.b16 %v88
  %v665 = vunpack.c.l.b16 %v89
  %v666 = vunpack.c.l.b16 %v90
  %v667 = vunpack.c.l.b16 %v91
  %v668 = vunpack.c.l.b16 %v92
  %v669 = vunpack.c.l.b16 %v93
  %v670 = vunpack.c.l.b16 %v94
  %v671 = vunpack.c.l.b16 %v95
  %v672 = vunpack.c.l.b16 %v96
  %v673 = vunpack.c.l.b16 %v97
  %v674 = vunpack.c.l.b16 %v98
  %v675 = vunpack.c.l.b16 %v99
  %v676 = vunpack.c.l.b16 %v100
  %v677 = vunpack.c.l.b16 %v101
  %v678 = vunpack.c.l.b16 %v102
  %v679 = vunpack.c.l.b16 %v103
  %v680 = vunpack.c.l.b16 %v104
  %v681 = vunpack.c.l.b16 %v105
  %v682 = vunpack.c.l.b16 %v106
  %v683 = vunpack.c.l.b16 %v107
  %v684 = vunpack.c.l.b16 %v108
  %v685 = vunpack.c.l.b16 %v109
  %v686 = vunpack.c.l.b16 %v110
  %v687 = vunpack.c.l.b16 %v111
  %v688 = vunpack.c.l.b16 %v112
  %v689 = vunpack.c.l.b16 %v113
  %v690 = vunpack.c.l.b16 %v114
  %v691 = vunpack.c.l.b16 %v115
  %v692 = vunpack.c.l.b16 %v116
  %v693 = vunpack.c.l.b16 %v117
  %v694 = vunpack.c.l.b16 %v118
  %v695 = vunpack.c.l.b16 %v119
  %v696 = vunpack.c.l.b16 %v120
  %v697 = vunpack.c.l.b16 %v121
  %v698 = vunpack.c.l.b16 %v122
  %v699 = vunpack.c.l.b16 %v123
  %v700 = vunpack.c.l.b16 %v124
  %v701 = vunpack.c.l.b16 %v125
  %v702 = vunpack.c.l.b16 %v126
  %v703 = vunpack.c.l.b16 %v127
  %v704 = vunpack.c.l.b16 %v128
  %v705 = vunpack.c.l.b16 %v129
  %v706 = vunpack.c.l.b16 %v130
  %v707 = vunpack.c.l.b16 %v131
  %v708 = vunpack.c.l.b16 %v132
  %v709 = vunpack.c.l.b16 %v133
  %v710 = vunpack.c.l.b16 %v134
  %v711 = vunpack.c.l.b16 %v135
  %v712 = vunpack.c.l.b16 %v136
  %v713 = vunpack.c.l.b16 %v137
  %v714 = vunpack.c.l.b16 %v138
  %v715 = vunpack.c.l.b16 %v139
  %v716 = vunpack.c.l.b16 %v140
  %v717 = vunpack.c.l.b16 %v141
  %v718 = vunpack.c.l.b16 %v142
  %v719 = vunpack.c.l.b16 %v143
  %v720 = vunpack.c.l.b16 %v144
  %v721 = vunpack.c.l.b16 %v145
  %v722 = vunpack.c.l.b16 %v146
  %v723 = vunpack.c.l.b16 %v147
  %v724 = vunpack.c.l.b16 %v148
  %v725 = vunpack.c.l.b16 %v149
  %v726 = vunpack.c.l.b16 %v150
  %v727 = vunpack.c.l.b16 %v151
  %v728 = vunpack.c.l.b16 %v152
  %v729 = vunpack.c.l.b16 %v153
  %v730 = vunpack.c.l.b16 %v154
  %v731 = vunpack.c.l.b16 %v155
  %v732 = vunpack.c.l.b16 %v156
  %v733 = vunpack.c.l.b16 %v157
  %v734 = vunpack.c.l.b16 %v158
  %v735 = vunpack.c.l.b16 %v159
  %v736 = vunpack.c.l.b16 %v160
  %v737 = vunpack.c.l.b16 %v161
  %v738 = vunpack.c.l.b16 %v162
  %v739 = vunpack.c.l.b16 %v163
  %v740 = vunpack.c.l.b16 %v164
  %v741 = vunpack.c.l.b16 %v165
  %v742 = vunpack.c.l.b16 %v166
  %v743 = vunpack.c.l.b16 %v167
  %v744 = vunpack.c.l.b16 %v168
  %v745 = vunpack.c.l.b16 %v169
  %v746 = vunpack.c.l.b16 %v170
  %v747 = vunpack.c.l.b16 %v171
  %v748 = vunpack.c.l.b16 %v172
  %v749 = vunpack.c.l.b16 %v173
  %v750 = vunpack.c.l.b16 %v174
  %v751 = vunpack.c.l.b16 %v175
  %v752 = vunpack.c.l.b16 %v176
  %v753 = vunpack.c.l.b16 %v177
  %v754 = vunpack.c.l.b16 %v178
  %v755 = vunpack.c.l.b16 %v179
  %v756 = vunpack.c.l.b16 %v180
  %v757 = vunpack.c.l.b16 %v181
  %v758 = vunpack.c.l.b16 %v182
  %v759 = vunpack.c.l.b16 %v183
  %v760 = vunpack.c.l.b16 %v184
  %v761 = vunpack.c.l.b16 %v185
  %v762 = vunpack.c.l.b16 %v186
  %v763 = vunpack.c.l.b16 %v187
  %v764 = vunpack.c.l.b16 %v188
  %v765 = vunpack.c.l.b16 %v189
  %v766 = vunpack.c.l.b16 %v190
  %v767 = vunpack.c.l.b16 %v191
  %v768 = vunpack.c.l.b16 %v192
  %v769 = vunpack.c.l.b16 %v193
  %v770 = vunpack.c.l.b16 %v194
  %v771 = vunpack.c.l.b16 %v195
  %v772 = vunpack.c.l.b16 %v196
  %v773 = vunpack.c.l.b16 %v197
  %v774 = vunpack.c.l.b16 %v198
  %v775 = vunpack.c.l.b16 %v199
  %v776 = vunpack.c.l.b16 %v200
  %v777 = vunpack.c.l.b16 %v201
  %v778 = vunpack.c.l.b16 %v202
  %v779 = vunpack.c.l.b16 %v203
  %v780 = vpack.c.b16 %v653, %v652
  %v781 = vpack.c.b16 %v655, %v654
  %v782 = vpack.c.b16 %v657, %v656
  %v783 = vpack.c.b16 %v659, %v658
  %v784 = vpack.c.b16 %v661, %v660
  %v785 = vpack.c.b16 %v663, %v662
  %v786 = vpack.c.b16 %v665, %v664
  %v787 = vpack.c.b16 %v667, %v666
  %v788 = vpack.c.b16 %v669, %v668
  %v789 = vpack.c.b16 %v671, %v670
  %v790 = vpack.c.b16 %v673, %v672
  %v791 = vpack.c.b16 %v675, %v674
  %v792 = vpack.c.b16 %v677, %v676
  %v793 = vpack.c.b16 %v679, %v678
  %v794 = vpack.c.b16 %v681, %v680
  %v795 = vpack.c.b16 %v683, %v682
  %v796 = vpack.c.b16 %v685, %v684
  %v797 = vpack.c.b16 %v687, %v686
  %v798 = vpack.c.b16 %v689, %v688
  %v799 = vpack.c.b16 %v691, %v690
  %v800 = vpack.c.b16 %v693, %v692
  %v801 = vpack.c.b16 %v695, %v694
  %v802 = vpack.c.b16 %v697, %v696
  %v803 = vpack.c.b16 %v699, %v698
  %v804 = vpack.c.b16 %v701, %v700
  %v805 = vpack.c.b16 %v703, %v702
  %v806 = vpack.c.b16 %v705, %v704
  %v807 = vpack.c.b16 %v707, %v706
  %v808 = vpack.c.b16 %v709, %v708
  %v809 = vpack.c.b16 %v711, %v710
  %v810 = vpack.c.b16 %v713, %v712
  %v811 = vpack.c.b16 %v715, %v714
  %v812 = vpack.c.b16 %v717, %v716
  %v813 = vpack.c.b16 %v719, %v718
  %v814 = vpack.c.b16 %v721, %v720
  %v815 = vpack.c.b16 %v723, %v722
  %v816 = vpack.c.b16 %v725, %v724
  %v817 = vpack.c.b16 %v727, %v726
  %v818 = vpack.c.b16 %v729, %v728
  %v819 = vpack.c.b16 %v731, %v730
  %v820 = vpack.c.b16 %v733, %v732
  %v821 = vpack.c.b16 %v735, %v734
  %v822 = vpack.c.b16 %v737, %v736
  %v823 = vpack.c.b16 %v739, %v738
  %v824 = vpack.c.b16 %v741, %v740
  %v825 = vpack.c.b16 %v743, %v742
  %v826 = vpack.c.b16 %v745, %v744
  %v827 = vpack.c.b16 %v747, %v746
  %v828 = vpack.c.b16 %v749, %v748
  %v829 = vpack.c.b16 %v751, %v750
  %v830 = vpack.c.b16 %v753, %v752
  %v831 = vpack.c.b16 %v755, %v754
  %v832 = vpack.c.b16 %v757, %v756
  %v833 = vpack.c.b16 %v759, %v758
  %v834 = vpack.c.b16 %v761, %v760
  %v835 = vpack.c.b16 %v763, %v762
  %v836 = vpack.c.b16 %v765, %v764
  %v837 = vpack.c.b16 %v767, %v766
  %v838 = vpack.c.b16 %v769, %v768
  %v839 = vpack.c.b16 %v771, %v770
  %v840 = vpack.c.b16 %v773, %v772
  %v841 = vpack.c.b16 %v775, %v774
  %v842 = vpack.c.b16 %v777, %v776
  %v843 = vpack.c.b16 %v779, %v778
  %908 = vmatprep.subr.bf16.mxu0 0
  %909 = vmatpush1.bf16.msra.mxu0 %v787
  %910 = vmatprep.subr.bf16.mxu0 0
  %911 = vmatpush1.bf16.msra.mxu0 %v786
  %912 = vmatprep.subr.bf16.mxu0 0
  %913 = vmatpush1.bf16.msra.mxu0 %v785
  %914 = vmatprep.subr.bf16.mxu0 0
  %915 = vmatpush1.bf16.msra.mxu0 %v784
  %916 = vmatprep.subr.bf16.mxu0 0
  %917 = vmatpush1.bf16.msra.mxu0 %v783
  %918 = vmatprep.subr.bf16.mxu0 0
  %919 = vmatpush1.bf16.msra.mxu0 %v782
  %920 = vmatprep.subr.bf16.mxu0 0
  %921 = vmatpush1.bf16.msra.mxu0 %v781
  %922 = vmatprep.subr.bf16.mxu0 0
  %923 = vmatpush1.bf16.msra.mxu0 %v780
  %924 = vmatprep.subr.bf16.mxu0 0
  %925 = vmatpush2.bf16.msra.mxu0 %v795
  %926 = vmatprep.subr.bf16.mxu0 0
  %927 = vmatpush2.bf16.msra.mxu0 %v794
  %928 = vmatprep.subr.bf16.mxu0 0
  %929 = vmatpush2.bf16.msra.mxu0 %v793
  %930 = vmatprep.subr.bf16.mxu0 0
  %931 = vmatpush2.bf16.msra.mxu0 %v792
  %932 = vmatprep.subr.bf16.mxu0 0
  %933 = vmatpush2.bf16.msra.mxu0 %v791
  %934 = vmatprep.subr.bf16.mxu0 0
  %935 = vmatpush2.bf16.msra.mxu0 %v790
  %936 = vmatprep.subr.bf16.mxu0 0
  %937 = vmatpush2.bf16.msra.mxu0 %v789
  %938 = vmatprep.subr.bf16.mxu0 0
  %939 = vmatpush2.bf16.msra.mxu0 %v788
  %940 = vmatprep.mubr.bf16.mxu0 %v397
  %941 = vmatmul.mubr.bf16.gmra.mxu0 %v396
  %v942 = vpop.f32.mrf.mxu0
  %v943 = vadd.f32 0.0, %v942
  %v944 = vpop.f32.mrf.mxu0
  %v945 = vpop.f32.mrf.mxu0
  %v946 = vadd.f32 0.0, %v945
  %v947 = vpop.f32.mrf.mxu0
  %948 = vmatprep.mubr.bf16.mxu0 %v405
  %949 = vmatmul.mubr.bf16.gmra.mxu0 %v404
  %v950 = vpop.f32.mrf.mxu0
  %v951 = vadd.f32 0.0, %v950
  %v952 = vpop.f32.mrf.mxu0
  %v953 = vpop.f32.mrf.mxu0
  %v954 = vadd.f32 0.0, %v953
  %v955 = vpop.f32.mrf.mxu0
  %956 = vmatprep.mubr.bf16.mxu0 %v413
  %957 = vmatmul.mubr.bf16.gmra.mxu0 %v412
  %v958 = vpop.f32.mrf.mxu0
  %v959 = vadd.f32 0.0, %v958
  %v960 = vpop.f32.mrf.mxu0
  %v961 = vpop.f32.mrf.mxu0
  %v962 = vadd.f32 0.0, %v961
  %v963 = vpop.f32.mrf.mxu0
  %964 = vmatprep.mubr.bf16.mxu0 %v421
  %965 = vmatmul.mubr.bf16.gmra.mxu0 %v420
  %v966 = vpop.f32.mrf.mxu0
  %v967 = vadd.f32 0.0, %v966
  %v968 = vpop.f32.mrf.mxu0
  %v969 = vpop.f32.mrf.mxu0
  %v970 = vadd.f32 0.0, %v969
  %v971 = vpop.f32.mrf.mxu0
  %972 = vmatprep.mubr.bf16.mxu0 %v429
  %973 = vmatmul.mubr.bf16.gmra.mxu0 %v428
  %v974 = vpop.f32.mrf.mxu0
  %v975 = vadd.f32 0.0, %v974
  %v976 = vpop.f32.mrf.mxu0
  %v977 = vpop.f32.mrf.mxu0
  %v978 = vadd.f32 0.0, %v977
  %v979 = vpop.f32.mrf.mxu0
  %980 = vmatprep.mubr.bf16.mxu0 %v437
  %981 = vmatmul.mubr.bf16.gmra.mxu0 %v436
  %v982 = vpop.f32.mrf.mxu0
  %v983 = vadd.f32 0.0, %v982
  %v984 = vpop.f32.mrf.mxu0
  %v985 = vpop.f32.mrf.mxu0
  %v986 = vadd.f32 0.0, %v985
  %v987 = vpop.f32.mrf.mxu0
  %988 = vmatprep.mubr.bf16.mxu0 %v445
  %989 = vmatmul.mubr.bf16.gmra.mxu0 %v444
  %v990 = vpop.f32.mrf.mxu0
  %v991 = vadd.f32 0.0, %v990
  %v992 = vpop.f32.mrf.mxu0
  %v993 = vpop.f32.mrf.mxu0
  %v994 = vadd.f32 0.0, %v993
  %v995 = vpop.f32.mrf.mxu0
  %996 = vmatprep.mubr.bf16.mxu0 %v453
  %997 = vmatmul.mubr.bf16.gmra.mxu0 %v452
  %v998 = vpop.f32.mrf.mxu0
  %v999 = vadd.f32 0.0, %v998
  %v1000 = vpop.f32.mrf.mxu0
  %v1001 = vpop.f32.mrf.mxu0
  %v1002 = vadd.f32 0.0, %v1001
  %v1003 = vpop.f32.mrf.mxu0
  %1004 = vdwg.mxu0
  %1005 = vmatprep.subr.bf16.mxu0 0
  %1006 = vmatpush1.bf16.msra.mxu0 %v803
  %1007 = vmatprep.subr.bf16.mxu0 0
  %1008 = vmatpush1.bf16.msra.mxu0 %v802
  %1009 = vmatprep.subr.bf16.mxu0 0
  %1010 = vmatpush1.bf16.msra.mxu0 %v801
  %1011 = vmatprep.subr.bf16.mxu0 0
  %1012 = vmatpush1.bf16.msra.mxu0 %v800
  %1013 = vmatprep.subr.bf16.mxu0 0
  %1014 = vmatpush1.bf16.msra.mxu0 %v799
  %1015 = vmatprep.subr.bf16.mxu0 0
  %1016 = vmatpush1.bf16.msra.mxu0 %v798
  %1017 = vmatprep.subr.bf16.mxu0 0
  %1018 = vmatpush1.bf16.msra.mxu0 %v797
  %1019 = vmatprep.subr.bf16.mxu0 0
  %1020 = vmatpush1.bf16.msra.mxu0 %v796
  %1021 = vmatprep.subr.bf16.mxu0 0
  %1022 = vmatpush2.bf16.msra.mxu0 %v811
  %1023 = vmatprep.subr.bf16.mxu0 0
  %1024 = vmatpush2.bf16.msra.mxu0 %v810
  %1025 = vmatprep.subr.bf16.mxu0 0
  %1026 = vmatpush2.bf16.msra.mxu0 %v809
  %1027 = vmatprep.subr.bf16.mxu0 0
  %1028 = vmatpush2.bf16.msra.mxu0 %v808
  %1029 = vmatprep.subr.bf16.mxu0 0
  %1030 = vmatpush2.bf16.msra.mxu0 %v807
  %1031 = vmatprep.subr.bf16.mxu0 0
  %1032 = vmatpush2.bf16.msra.mxu0 %v806
  %1033 = vmatprep.subr.bf16.mxu0 0
  %1034 = vmatpush2.bf16.msra.mxu0 %v805
  %1035 = vmatprep.subr.bf16.mxu0 0
  %1036 = vmatpush2.bf16.msra.mxu0 %v804
  %1037 = vmatprep.mubr.bf16.mxu0 %v399
  %1038 = vmatmul.mubr.bf16.gmra.mxu0 %v398
  %v1039 = vpop.f32.mrf.mxu0
  %v1040 = vadd.f32 %v943, %v1039
  %v1041 = vpop.f32.mrf.mxu0
  %v1042 = vpop.f32.mrf.mxu0
  %v1043 = vadd.f32 %v946, %v1042
  %v1044 = vpop.f32.mrf.mxu0
  %1045 = vmatprep.mubr.bf16.mxu0 %v407
  %1046 = vmatmul.mubr.bf16.gmra.mxu0 %v406
  %v1047 = vpop.f32.mrf.mxu0
  %v1048 = vadd.f32 %v951, %v1047
  %v1049 = vpop.f32.mrf.mxu0
  %v1050 = vpop.f32.mrf.mxu0
  %v1051 = vadd.f32 %v954, %v1050
  %v1052 = vpop.f32.mrf.mxu0
  %1053 = vmatprep.mubr.bf16.mxu0 %v415
  %1054 = vmatmul.mubr.bf16.gmra.mxu0 %v414
  %v1055 = vpop.f32.mrf.mxu0
  %v1056 = vadd.f32 %v959, %v1055
  %v1057 = vpop.f32.mrf.mxu0
  %v1058 = vpop.f32.mrf.mxu0
  %v1059 = vadd.f32 %v962, %v1058
  %v1060 = vpop.f32.mrf.mxu0
  %1061 = vmatprep.mubr.bf16.mxu0 %v423
  %1062 = vmatmul.mubr.bf16.gmra.mxu0 %v422
  %v1063 = vpop.f32.mrf.mxu0
  %v1064 = vadd.f32 %v967, %v1063
  %v1065 = vpop.f32.mrf.mxu0
  %v1066 = vpop.f32.mrf.mxu0
  %v1067 = vadd.f32 %v970, %v1066
  %v1068 = vpop.f32.mrf.mxu0
  %1069 = vmatprep.mubr.bf16.mxu0 %v431
  %1070 = vmatmul.mubr.bf16.gmra.mxu0 %v430
  %v1071 = vpop.f32.mrf.mxu0
  %v1072 = vadd.f32 %v975, %v1071
  %v1073 = vpop.f32.mrf.mxu0
  %v1074 = vpop.f32.mrf.mxu0
  %v1075 = vadd.f32 %v978, %v1074
  %v1076 = vpop.f32.mrf.mxu0
  %1077 = vmatprep.mubr.bf16.mxu0 %v439
  %1078 = vmatmul.mubr.bf16.gmra.mxu0 %v438
  %v1079 = vpop.f32.mrf.mxu0
  %v1080 = vadd.f32 %v983, %v1079
  %v1081 = vpop.f32.mrf.mxu0
  %v1082 = vpop.f32.mrf.mxu0
  %v1083 = vadd.f32 %v986, %v1082
  %v1084 = vpop.f32.mrf.mxu0
  %1085 = vmatprep.mubr.bf16.mxu0 %v447
  %1086 = vmatmul.mubr.bf16.gmra.mxu0 %v446
  %v1087 = vpop.f32.mrf.mxu0
  %v1088 = vadd.f32 %v991, %v1087
  %v1089 = vpop.f32.mrf.mxu0
  %v1090 = vpop.f32.mrf.mxu0
  %v1091 = vadd.f32 %v994, %v1090
  %v1092 = vpop.f32.mrf.mxu0
  %1093 = vmatprep.mubr.bf16.mxu0 %v455
  %1094 = vmatmul.mubr.bf16.gmra.mxu0 %v454
  %v1095 = vpop.f32.mrf.mxu0
  %v1096 = vadd.f32 %v999, %v1095
  %v1097 = vpop.f32.mrf.mxu0
  %v1098 = vpop.f32.mrf.mxu0
  %v1099 = vadd.f32 %v1002, %v1098
  %v1100 = vpop.f32.mrf.mxu0
  %1101 = vdwg.mxu0
  %1102 = vmatprep.subr.bf16.mxu0 0
  %1103 = vmatpush1.bf16.msra.mxu0 %v819
  %1104 = vmatprep.subr.bf16.mxu0 0
  %1105 = vmatpush1.bf16.msra.mxu0 %v818
  %1106 = vmatprep.subr.bf16.mxu0 0
  %1107 = vmatpush1.bf16.msra.mxu0 %v817
  %1108 = vmatprep.subr.bf16.mxu0 0
  %1109 = vmatpush1.bf16.msra.mxu0 %v816
  %1110 = vmatprep.subr.bf16.mxu0 0
  %1111 = vmatpush1.bf16.msra.mxu0 %v815
  %1112 = vmatprep.subr.bf16.mxu0 0
  %1113 = vmatpush1.bf16.msra.mxu0 %v814
  %1114 = vmatprep.subr.bf16.mxu0 0
  %1115 = vmatpush1.bf16.msra.mxu0 %v813
  %1116 = vmatprep.subr.bf16.mxu0 0
  %1117 = vmatpush1.bf16.msra.mxu0 %v812
  %1118 = vmatprep.subr.bf16.mxu0 0
  %1119 = vmatpush2.bf16.msra.mxu0 %v827
  %1120 = vmatprep.subr.bf16.mxu0 0
  %1121 = vmatpush2.bf16.msra.mxu0 %v826
  %1122 = vmatprep.subr.bf16.mxu0 0
  %1123 = vmatpush2.bf16.msra.mxu0 %v825
  %1124 = vmatprep.subr.bf16.mxu0 0
  %1125 = vmatpush2.bf16.msra.mxu0 %v824
  %1126 = vmatprep.subr.bf16.mxu0 0
  %1127 = vmatpush2.bf16.msra.mxu0 %v823
  %1128 = vmatprep.subr.bf16.mxu0 0
  %1129 = vmatpush2.bf16.msra.mxu0 %v822
  %1130 = vmatprep.subr.bf16.mxu0 0
  %1131 = vmatpush2.bf16.msra.mxu0 %v821
  %1132 = vmatprep.subr.bf16.mxu0 0
  %1133 = vmatpush2.bf16.msra.mxu0 %v820
  %1134 = vmatprep.mubr.bf16.mxu0 %v401
  %1135 = vmatmul.mubr.bf16.gmra.mxu0 %v400
  %v1136 = vpop.f32.mrf.mxu0
  %v1137 = vadd.f32 %v1040, %v1136
  %v1138 = vpop.f32.mrf.mxu0
  %v1139 = vpop.f32.mrf.mxu0
  %v1140 = vadd.f32 %v1043, %v1139
  %v1141 = vpop.f32.mrf.mxu0
  %1142 = vmatprep.mubr.bf16.mxu0 %v409
  %1143 = vmatmul.mubr.bf16.gmra.mxu0 %v408
  %v1144 = vpop.f32.mrf.mxu0
  %v1145 = vadd.f32 %v1048, %v1144
  %v1146 = vpop.f32.mrf.mxu0
  %v1147 = vpop.f32.mrf.mxu0
  %v1148 = vadd.f32 %v1051, %v1147
  %v1149 = vpop.f32.mrf.mxu0
  %1150 = vmatprep.mubr.bf16.mxu0 %v417
  %1151 = vmatmul.mubr.bf16.gmra.mxu0 %v416
  %v1152 = vpop.f32.mrf.mxu0
  %v1153 = vadd.f32 %v1056, %v1152
  %v1154 = vpop.f32.mrf.mxu0
  %v1155 = vpop.f32.mrf.mxu0
  %v1156 = vadd.f32 %v1059, %v1155
  %v1157 = vpop.f32.mrf.mxu0
  %1158 = vmatprep.mubr.bf16.mxu0 %v425
  %1159 = vmatmul.mubr.bf16.gmra.mxu0 %v424
  %v1160 = vpop.f32.mrf.mxu0
  %v1161 = vadd.f32 %v1064, %v1160
  %v1162 = vpop.f32.mrf.mxu0
  %v1163 = vpop.f32.mrf.mxu0
  %v1164 = vadd.f32 %v1067, %v1163
  %v1165 = vpop.f32.mrf.mxu0
  %1166 = vmatprep.mubr.bf16.mxu0 %v433
  %1167 = vmatmul.mubr.bf16.gmra.mxu0 %v432
  %v1168 = vpop.f32.mrf.mxu0
  %v1169 = vadd.f32 %v1072, %v1168
  %v1170 = vpop.f32.mrf.mxu0
  %v1171 = vpop.f32.mrf.mxu0
  %v1172 = vadd.f32 %v1075, %v1171
  %v1173 = vpop.f32.mrf.mxu0
  %1174 = vmatprep.mubr.bf16.mxu0 %v441
  %1175 = vmatmul.mubr.bf16.gmra.mxu0 %v440
  %v1176 = vpop.f32.mrf.mxu0
  %v1177 = vadd.f32 %v1080, %v1176
  %v1178 = vpop.f32.mrf.mxu0
  %v1179 = vpop.f32.mrf.mxu0
  %v1180 = vadd.f32 %v1083, %v1179
  %v1181 = vpop.f32.mrf.mxu0
  %1182 = vmatprep.mubr.bf16.mxu0 %v449
  %1183 = vmatmul.mubr.bf16.gmra.mxu0 %v448
  %v1184 = vpop.f32.mrf.mxu0
  %v1185 = vadd.f32 %v1088, %v1184
  %v1186 = vpop.f32.mrf.mxu0
  %v1187 = vpop.f32.mrf.mxu0
  %v1188 = vadd.f32 %v1091, %v1187
  %v1189 = vpop.f32.mrf.mxu0
  %1190 = vmatprep.mubr.bf16.mxu0 %v457
  %1191 = vmatmul.mubr.bf16.gmra.mxu0 %v456
  %v1192 = vpop.f32.mrf.mxu0
  %v1193 = vadd.f32 %v1096, %v1192
  %v1194 = vpop.f32.mrf.mxu0
  %v1195 = vpop.f32.mrf.mxu0
  %v1196 = vadd.f32 %v1099, %v1195
  %v1197 = vpop.f32.mrf.mxu0
  %1198 = vdwg.mxu0
  %1199 = vmatprep.subr.bf16.mxu0 0
  %1200 = vmatpush1.bf16.msra.mxu0 %v835
  %1201 = vmatprep.subr.bf16.mxu0 0
  %1202 = vmatpush1.bf16.msra.mxu0 %v834
  %1203 = vmatprep.subr.bf16.mxu0 0
  %1204 = vmatpush1.bf16.msra.mxu0 %v833
  %1205 = vmatprep.subr.bf16.mxu0 0
  %1206 = vmatpush1.bf16.msra.mxu0 %v832
  %1207 = vmatprep.subr.bf16.mxu0 0
  %1208 = vmatpush1.bf16.msra.mxu0 %v831
  %1209 = vmatprep.subr.bf16.mxu0 0
  %1210 = vmatpush1.bf16.msra.mxu0 %v830
  %1211 = vmatprep.subr.bf16.mxu0 0
  %1212 = vmatpush1.bf16.msra.mxu0 %v829
  %1213 = vmatprep.subr.bf16.mxu0 0
  %1214 = vmatpush1.bf16.msra.mxu0 %v828
  %1215 = vmatprep.subr.bf16.mxu0 0
  %1216 = vmatpush2.bf16.msra.mxu0 %v843
  %1217 = vmatprep.subr.bf16.mxu0 0
  %1218 = vmatpush2.bf16.msra.mxu0 %v842
  %1219 = vmatprep.subr.bf16.mxu0 0
  %1220 = vmatpush2.bf16.msra.mxu0 %v841
  %1221 = vmatprep.subr.bf16.mxu0 0
  %1222 = vmatpush2.bf16.msra.mxu0 %v840
  %1223 = vmatprep.subr.bf16.mxu0 0
  %1224 = vmatpush2.bf16.msra.mxu0 %v839
  %1225 = vmatprep.subr.bf16.mxu0 0
  %1226 = vmatpush2.bf16.msra.mxu0 %v838
  %1227 = vmatprep.subr.bf16.mxu0 0
  %1228 = vmatpush2.bf16.msra.mxu0 %v837
  %1229 = vmatprep.subr.bf16.mxu0 0
  %1230 = vmatpush2.bf16.msra.mxu0 %v836
  %1231 = vmatprep.mubr.bf16.mxu0 %v403
  %1232 = vmatmul.mubr.bf16.gmra.mxu0 %v402
  %v1233 = vpop.f32.mrf.mxu0
  %v1234 = vadd.f32 %v1137, %v1233
  %v1235 = vpop.f32.mrf.mxu0
  %v1236 = vpop.f32.mrf.mxu0
  %v1237 = vadd.f32 %v1140, %v1236
  %v1238 = vpop.f32.mrf.mxu0
  %1239 = vmatprep.mubr.bf16.mxu0 %v411
  %1240 = vmatmul.mubr.bf16.gmra.mxu0 %v410
  %v1241 = vpop.f32.mrf.mxu0
  %v1242 = vadd.f32 %v1145, %v1241
  %v1243 = vpop.f32.mrf.mxu0
  %v1244 = vpop.f32.mrf.mxu0
  %v1245 = vadd.f32 %v1148, %v1244
  %v1246 = vpop.f32.mrf.mxu0
  %1247 = vmatprep.mubr.bf16.mxu0 %v419
  %1248 = vmatmul.mubr.bf16.gmra.mxu0 %v418
  %v1249 = vpop.f32.mrf.mxu0
  %v1250 = vadd.f32 %v1153, %v1249
  %v1251 = vpop.f32.mrf.mxu0
  %v1252 = vpop.f32.mrf.mxu0
  %v1253 = vadd.f32 %v1156, %v1252
  %v1254 = vpop.f32.mrf.mxu0
  %1255 = vmatprep.mubr.bf16.mxu0 %v427
  %1256 = vmatmul.mubr.bf16.gmra.mxu0 %v426
  %v1257 = vpop.f32.mrf.mxu0
  %v1258 = vadd.f32 %v1161, %v1257
  %v1259 = vpop.f32.mrf.mxu0
  %v1260 = vpop.f32.mrf.mxu0
  %v1261 = vadd.f32 %v1164, %v1260
  %v1262 = vpop.f32.mrf.mxu0
  %1263 = vmatprep.mubr.bf16.mxu0 %v435
  %1264 = vmatmul.mubr.bf16.gmra.mxu0 %v434
  %v1265 = vpop.f32.mrf.mxu0
  %v1266 = vadd.f32 %v1169, %v1265
  %v1267 = vpop.f32.mrf.mxu0
  %v1268 = vpop.f32.mrf.mxu0
  %v1269 = vadd.f32 %v1172, %v1268
  %v1270 = vpop.f32.mrf.mxu0
  %1271 = vmatprep.mubr.bf16.mxu0 %v443
  %1272 = vmatmul.mubr.bf16.gmra.mxu0 %v442
  %v1273 = vpop.f32.mrf.mxu0
  %v1274 = vadd.f32 %v1177, %v1273
  %v1275 = vpop.f32.mrf.mxu0
  %v1276 = vpop.f32.mrf.mxu0
  %v1277 = vadd.f32 %v1180, %v1276
  %v1278 = vpop.f32.mrf.mxu0
  %1279 = vmatprep.mubr.bf16.mxu0 %v451
  %1280 = vmatmul.mubr.bf16.gmra.mxu0 %v450
  %v1281 = vpop.f32.mrf.mxu0
  %v1282 = vadd.f32 %v1185, %v1281
  %v1283 = vpop.f32.mrf.mxu0
  %v1284 = vpop.f32.mrf.mxu0
  %v1285 = vadd.f32 %v1188, %v1284
  %v1286 = vpop.f32.mrf.mxu0
  %1287 = vmatprep.mubr.bf16.mxu0 %v459
  %1288 = vmatmul.mubr.bf16.gmra.mxu0 %v458
  %v1289 = vpop.f32.mrf.mxu0
  %v1290 = vadd.f32 %v1193, %v1289
  %v1291 = vpop.f32.mrf.mxu0
  %v1292 = vpop.f32.mrf.mxu0
  %v1293 = vadd.f32 %v1196, %v1292
  %v1294 = vpop.f32.mrf.mxu0
  %1295 = vdwg.mxu0
  %vm1296 = vcmask 261120
  %v1297 = vsel %vm1296, %v1234, 0.0
  %1298 = vadd.xlane.f32.xlu0 %v1297
  %v1299 = vpop.xlane.xlu0 %1298
  %v1300 = vsel %vm1296, %v1237, 0.0
  %1301 = vadd.xlane.f32.xlu0 %v1300
  %v1302 = vpop.xlane.xlu0 %1301
  %v1303 = vsel %vm1296, %v1242, 0.0
  %1304 = vadd.xlane.f32.xlu0 %v1303
  %v1305 = vpop.xlane.xlu0 %1304
  %v1306 = vsel %vm1296, %v1245, 0.0
  %1307 = vadd.xlane.f32.xlu0 %v1306
  %v1308 = vpop.xlane.xlu0 %1307
  %v1309 = vsel %vm1296, %v1250, 0.0
  %1310 = vadd.xlane.f32.xlu0 %v1309
  %v1311 = vpop.xlane.xlu0 %1310
  %v1312 = vsel %vm1296, %v1253, 0.0
  %1313 = vadd.xlane.f32.xlu0 %v1312
  %v1314 = vpop.xlane.xlu0 %1313
  %v1315 = vsel %vm1296, %v1258, 0.0
  %1316 = vadd.xlane.f32.xlu0 %v1315
  %v1317 = vpop.xlane.xlu0 %1316
  %v1318 = vsel %vm1296, %v1261, 0.0
  %1319 = vadd.xlane.f32.xlu0 %v1318
  %v1320 = vpop.xlane.xlu0 %1319
  %v1321 = vsel %vm1296, %v1266, 0.0
  %1322 = vadd.xlane.f32.xlu0 %v1321
  %v1323 = vpop.xlane.xlu0 %1322
  %v1324 = vsel %vm1296, %v1269, 0.0
  %1325 = vadd.xlane.f32.xlu0 %v1324
  %v1326 = vpop.xlane.xlu0 %1325
  %v1327 = vsel %vm1296, %v1274, 0.0
  %1328 = vadd.xlane.f32.xlu0 %v1327
  %v1329 = vpop.xlane.xlu0 %1328
  %v1330 = vsel %vm1296, %v1277, 0.0
  %1331 = vadd.xlane.f32.xlu0 %v1330
  %v1332 = vpop.xlane.xlu0 %1331
  %v1333 = vsel %vm1296, %v1282, 0.0
  %1334 = vadd.xlane.f32.xlu0 %v1333
  %v1335 = vpop.xlane.xlu0 %1334
  %v1336 = vsel %vm1296, %v1285, 0.0
  %1337 = vadd.xlane.f32.xlu0 %v1336
  %v1338 = vpop.xlane.xlu0 %1337
  %v1339 = vsel %vm1296, %v1290, 0.0
  %1340 = vadd.xlane.f32.xlu0 %v1339
  %v1341 = vpop.xlane.xlu0 %1340
  %v1342 = vsel %vm1296, %v1293, 0.0
  %1343 = vadd.xlane.f32.xlu0 %v1342
  %v1344 = vpop.xlane.xlu0 %1343
  %v1345 = vrcp.pop 32.0
  %v1346 = vmul.f32 %v1299, %v1345
  %v1347 = vmul.f32 %v1302, %v1345
  %v1348 = vmul.f32 %v1305, %v1345
  %v1349 = vmul.f32 %v1308, %v1345
  %v1350 = vmul.f32 %v1311, %v1345
  %v1351 = vmul.f32 %v1314, %v1345
  %v1352 = vmul.f32 %v1317, %v1345
  %v1353 = vmul.f32 %v1320, %v1345
  %v1354 = vmul.f32 %v1323, %v1345
  %v1355 = vmul.f32 %v1326, %v1345
  %v1356 = vmul.f32 %v1329, %v1345
  %v1357 = vmul.f32 %v1332, %v1345
  %v1358 = vmul.f32 %v1335, %v1345
  %v1359 = vmul.f32 %v1338, %v1345
  %v1360 = vmul.f32 %v1341, %v1345
  %v1361 = vmul.f32 %v1344, %v1345
  %v1362 = vsub.f32 %v1234, %v1346
  %v1363 = vsub.f32 %v1237, %v1347
  %v1364 = vsub.f32 %v1242, %v1348
  %v1365 = vsub.f32 %v1245, %v1349
  %v1366 = vsub.f32 %v1250, %v1350
  %v1367 = vsub.f32 %v1253, %v1351
  %v1368 = vsub.f32 %v1258, %v1352
  %v1369 = vsub.f32 %v1261, %v1353
  %v1370 = vsub.f32 %v1266, %v1354
  %v1371 = vsub.f32 %v1269, %v1355
  %v1372 = vsub.f32 %v1274, %v1356
  %v1373 = vsub.f32 %v1277, %v1357
  %v1374 = vsub.f32 %v1282, %v1358
  %v1375 = vsub.f32 %v1285, %v1359
  %v1376 = vsub.f32 %v1290, %v1360
  %v1377 = vsub.f32 %v1293, %v1361
  %v1378 = vmul.f32 %v1362, %v1362
  %v1379 = vmul.f32 %v1363, %v1363
  %v1380 = vmul.f32 %v1364, %v1364
  %v1381 = vmul.f32 %v1365, %v1365
  %v1382 = vmul.f32 %v1366, %v1366
  %v1383 = vmul.f32 %v1367, %v1367
  %v1384 = vmul.f32 %v1368, %v1368
  %v1385 = vmul.f32 %v1369, %v1369
  %v1386 = vmul.f32 %v1370, %v1370
  %v1387 = vmul.f32 %v1371, %v1371
  %v1388 = vmul.f32 %v1372, %v1372
  %v1389 = vmul.f32 %v1373, %v1373
  %v1390 = vmul.f32 %v1374, %v1374
  %v1391 = vmul.f32 %v1375, %v1375
  %v1392 = vmul.f32 %v1376, %v1376
  %v1393 = vmul.f32 %v1377, %v1377
  %v1394 = vsel %vm1296, %v1378, 0.0
  %1395 = vadd.xlane.f32.xlu0 %v1394
  %v1396 = vpop.xlane.xlu0 %1395
  %v1397 = vsel %vm1296, %v1379, 0.0
  %1398 = vadd.xlane.f32.xlu0 %v1397
  %v1399 = vpop.xlane.xlu0 %1398
  %v1400 = vsel %vm1296, %v1380, 0.0
  %1401 = vadd.xlane.f32.xlu0 %v1400
  %v1402 = vpop.xlane.xlu0 %1401
  %v1403 = vsel %vm1296, %v1381, 0.0
  %1404 = vadd.xlane.f32.xlu0 %v1403
  %v1405 = vpop.xlane.xlu0 %1404
  %v1406 = vsel %vm1296, %v1382, 0.0
  %1407 = vadd.xlane.f32.xlu0 %v1406
  %v1408 = vpop.xlane.xlu0 %1407
  %v1409 = vsel %vm1296, %v1383, 0.0
  %1410 = vadd.xlane.f32.xlu0 %v1409
  %v1411 = vpop.xlane.xlu0 %1410
  %v1412 = vsel %vm1296, %v1384, 0.0
  %1413 = vadd.xlane.f32.xlu0 %v1412
  %v1414 = vpop.xlane.xlu0 %1413
  %v1415 = vsel %vm1296, %v1385, 0.0
  %1416 = vadd.xlane.f32.xlu0 %v1415
  %v1417 = vpop.xlane.xlu0 %1416
  %v1418 = vsel %vm1296, %v1386, 0.0
  %1419 = vadd.xlane.f32.xlu0 %v1418
  %v1420 = vpop.xlane.xlu0 %1419
  %v1421 = vsel %vm1296, %v1387, 0.0
  %1422 = vadd.xlane.f32.xlu0 %v1421
  %v1423 = vpop.xlane.xlu0 %1422
  %v1424 = vsel %vm1296, %v1388, 0.0
  %1425 = vadd.xlane.f32.xlu0 %v1424
  %v1426 = vpop.xlane.xlu0 %1425
  %v1427 = vsel %vm1296, %v1389, 0.0
  %1428 = vadd.xlane.f32.xlu0 %v1427
  %v1429 = vpop.xlane.xlu0 %1428
  %v1430 = vsel %vm1296, %v1390, 0.0
  %1431 = vadd.xlane.f32.xlu0 %v1430
  %v1432 = vpop.xlane.xlu0 %1431
  %v1433 = vsel %vm1296, %v1391, 0.0
  %1434 = vadd.xlane.f32.xlu0 %v1433
  %v1435 = vpop.xlane.xlu0 %1434
  %v1436 = vsel %vm1296, %v1392, 0.0
  %1437 = vadd.xlane.f32.xlu0 %v1436
  %v1438 = vpop.xlane.xlu0 %1437
  %v1439 = vsel %vm1296, %v1393, 0.0
  %1440 = vadd.xlane.f32.xlu0 %v1439
  %v1441 = vpop.xlane.xlu0 %1440
  %v1442 = vmul.f32 %v1396, %v1345
  %v1443 = vmul.f32 %v1399, %v1345
  %v1444 = vmul.f32 %v1402, %v1345
  %v1445 = vmul.f32 %v1405, %v1345
  %v1446 = vmul.f32 %v1408, %v1345
  %v1447 = vmul.f32 %v1411, %v1345
  %v1448 = vmul.f32 %v1414, %v1345
  %v1449 = vmul.f32 %v1417, %v1345
  %v1450 = vmul.f32 %v1420, %v1345
  %v1451 = vmul.f32 %v1423, %v1345
  %v1452 = vmul.f32 %v1426, %v1345
  %v1453 = vmul.f32 %v1429, %v1345
  %v1454 = vmul.f32 %v1432, %v1345
  %v1455 = vmul.f32 %v1435, %v1345
  %v1456 = vmul.f32 %v1438, %v1345
  %v1457 = vmul.f32 %v1441, %v1345
  %v1458 = vadd.f32 %v1442, 1e-05
  %v1459 = vadd.f32 %v1443, 1e-05
  %v1460 = vadd.f32 %v1444, 1e-05
  %v1461 = vadd.f32 %v1445, 1e-05
  %v1462 = vadd.f32 %v1446, 1e-05
  %v1463 = vadd.f32 %v1447, 1e-05
  %v1464 = vadd.f32 %v1448, 1e-05
  %v1465 = vadd.f32 %v1449, 1e-05
  %v1466 = vadd.f32 %v1450, 1e-05
  %v1467 = vadd.f32 %v1451, 1e-05
  %v1468 = vadd.f32 %v1452, 1e-05
  %v1469 = vadd.f32 %v1453, 1e-05
  %v1470 = vadd.f32 %v1454, 1e-05
  %v1471 = vadd.f32 %v1455, 1e-05
  %v1472 = vadd.f32 %v1456, 1e-05
  %v1473 = vadd.f32 %v1457, 1e-05
  %v1474 = vrsqrt.pop %v1458
  %v1475 = vrsqrt.pop %v1459
  %v1476 = vrsqrt.pop %v1460
  %v1477 = vrsqrt.pop %v1461
  %v1478 = vrsqrt.pop %v1462
  %v1479 = vrsqrt.pop %v1463
  %v1480 = vrsqrt.pop %v1464
  %v1481 = vrsqrt.pop %v1465
  %v1482 = vrsqrt.pop %v1466
  %v1483 = vrsqrt.pop %v1467
  %v1484 = vrsqrt.pop %v1468
  %v1485 = vrsqrt.pop %v1469
  %v1486 = vrsqrt.pop %v1470
  %v1487 = vrsqrt.pop %v1471
  %v1488 = vrsqrt.pop %v1472
  %v1489 = vrsqrt.pop %v1473
  %v1490 = vmul.f32 %v1362, %v1474
  %v1491 = vmul.f32 %v1363, %v1475
  %v1492 = vmul.f32 %v1364, %v1476
  %v1493 = vmul.f32 %v1365, %v1477
  %v1494 = vmul.f32 %v1366, %v1478
  %v1495 = vmul.f32 %v1367, %v1479
  %v1496 = vmul.f32 %v1368, %v1480
  %v1497 = vmul.f32 %v1369, %v1481
  %v1498 = vmul.f32 %v1370, %v1482
  %v1499 = vmul.f32 %v1371, %v1483
  %v1500 = vmul.f32 %v1372, %v1484
  %v1501 = vmul.f32 %v1373, %v1485
  %v1502 = vmul.f32 %v1374, %v1486
  %v1503 = vmul.f32 %v1375, %v1487
  %v1504 = vmul.f32 %v1376, %v1488
  %v1505 = vmul.f32 %v1377, %v1489
  %vm1506 = vcmp.gt.f32.partialorder %v1490, 0.0
  %vm1507 = vcmp.gt.f32.partialorder %v1491, 0.0
  %vm1508 = vcmp.gt.f32.partialorder %v1492, 0.0
  %vm1509 = vcmp.gt.f32.partialorder %v1493, 0.0
  %vm1510 = vcmp.gt.f32.partialorder %v1494, 0.0
  %vm1511 = vcmp.gt.f32.partialorder %v1495, 0.0
  %vm1512 = vcmp.gt.f32.partialorder %v1496, 0.0
  %vm1513 = vcmp.gt.f32.partialorder %v1497, 0.0
  %vm1514 = vcmp.gt.f32.partialorder %v1498, 0.0
  %vm1515 = vcmp.gt.f32.partialorder %v1499, 0.0
  %vm1516 = vcmp.gt.f32.partialorder %v1500, 0.0
  %vm1517 = vcmp.gt.f32.partialorder %v1501, 0.0
  %vm1518 = vcmp.gt.f32.partialorder %v1502, 0.0
  %vm1519 = vcmp.gt.f32.partialorder %v1503, 0.0
  %vm1520 = vcmp.gt.f32.partialorder %v1504, 0.0
  %vm1521 = vcmp.gt.f32.partialorder %v1505, 0.0
  %v1522 = vmul.f32 %v1490, 0.2
  %v1523 = vmul.f32 %v1491, 0.2
  %v1524 = vmul.f32 %v1492, 0.2
  %v1525 = vmul.f32 %v1493, 0.2
  %v1526 = vmul.f32 %v1494, 0.2
  %v1527 = vmul.f32 %v1495, 0.2
  %v1528 = vmul.f32 %v1496, 0.2
  %v1529 = vmul.f32 %v1497, 0.2
  %v1530 = vmul.f32 %v1498, 0.2
  %v1531 = vmul.f32 %v1499, 0.2
  %v1532 = vmul.f32 %v1500, 0.2
  %v1533 = vmul.f32 %v1501, 0.2
  %v1534 = vmul.f32 %v1502, 0.2
  %v1535 = vmul.f32 %v1503, 0.2
  %v1536 = vmul.f32 %v1504, 0.2
  %v1537 = vmul.f32 %v1505, 0.2
  %v1538 = vsel %vm1506, %v1490, %v1522
  %v1539 = vsel %vm1507, %v1491, %v1523
  %v1540 = vsel %vm1508, %v1492, %v1524
  %v1541 = vsel %vm1509, %v1493, %v1525
  %v1542 = vsel %vm1510, %v1494, %v1526
  %v1543 = vsel %vm1511, %v1495, %v1527
  %v1544 = vsel %vm1512, %v1496, %v1528
  %v1545 = vsel %vm1513, %v1497, %v1529
  %v1546 = vsel %vm1514, %v1498, %v1530
  %v1547 = vsel %vm1515, %v1499, %v1531
  %v1548 = vsel %vm1516, %v1500, %v1532
  %v1549 = vsel %vm1517, %v1501, %v1533
  %v1550 = vsel %vm1518, %v1502, %v1534
  %v1551 = vsel %vm1519, %v1503, %v1535
  %v1552 = vsel %vm1520, %v1504, %v1536
  %v1553 = vsel %vm1521, %v1505, %v1537
  %v1554 = vpack.c.bf16 %v1539, %v1538
  %v1555 = vpack.c.bf16 %v1541, %v1540
  %v1556 = vpack.c.bf16 %v1543, %v1542
  %v1557 = vpack.c.bf16 %v1545, %v1544
  %v1558 = vpack.c.bf16 %v1547, %v1546
  %v1559 = vpack.c.bf16 %v1549, %v1548
  %v1560 = vpack.c.bf16 %v1551, %v1550
  %v1561 = vpack.c.bf16 %v1553, %v1552
  %v1570 = vunpack.c.l.b16 %v1554
  %v1571 = vunpack.c.h.b16 %v1554
  %v1572 = vunpack.c.l.b16 %v1555
  %v1573 = vunpack.c.h.b16 %v1555
  %v1574 = vunpack.c.l.b16 %v1556
  %v1575 = vunpack.c.h.b16 %v1556
  %v1576 = vunpack.c.l.b16 %v1557
  %v1577 = vunpack.c.h.b16 %v1557
  %v1578 = vunpack.c.l.b16 %v1558
  %v1579 = vunpack.c.h.b16 %v1558
  %v1580 = vunpack.c.l.b16 %v1559
  %v1581 = vunpack.c.h.b16 %v1559
  %v1582 = vunpack.c.l.b16 %v1560
  %v1583 = vunpack.c.h.b16 %v1560
  %v1584 = vunpack.c.l.b16 %v1561
  %v1585 = vunpack.c.h.b16 %v1561
  %v1586 = vpack.c.b16 %v1570, %v1570
  %v1587 = vpack.c.b16 %v1571, %v1571
  %v1588 = vpack.c.b16 %v1572, %v1572
  %v1589 = vpack.c.b16 %v1573, %v1573
  %v1590 = vpack.c.b16 %v1574, %v1574
  %v1591 = vpack.c.b16 %v1575, %v1575
  %v1592 = vpack.c.b16 %v1576, %v1576
  %v1593 = vpack.c.b16 %v1577, %v1577
  %v1594 = vpack.c.b16 %v1578, %v1578
  %v1595 = vpack.c.b16 %v1579, %v1579
  %v1596 = vpack.c.b16 %v1580, %v1580
  %v1597 = vpack.c.b16 %v1581, %v1581
  %v1598 = vpack.c.b16 %v1582, %v1582
  %v1599 = vpack.c.b16 %v1583, %v1583
  %v1600 = vpack.c.b16 %v1584, %v1584
  %v1601 = vpack.c.b16 %v1585, %v1585
  %vm1618 = vcmask 257024
  %1619 = vst.msk [vmem:[%s2] sm:$0xf] %vm1618, %v1586
  %1620 = vst.msk [vmem:[%s2 + $0x4] sm:$0xf] %vm1618, %v1587
  %1621 = vst.msk [vmem:[%s2 + $0x8] sm:$0xf] %vm1618, %v1588
  %1622 = vst.msk [vmem:[%s2 + $0xc] sm:$0xf] %vm1618, %v1589
  %1623 = vst.msk [vmem:[%s2 + $0x10] sm:$0xf] %vm1618, %v1590
  %1624 = vst.msk [vmem:[%s2 + $0x14] sm:$0xf] %vm1618, %v1591
  %1625 = vst.msk [vmem:[%s2 + $0x18] sm:$0xf] %vm1618, %v1592
  %1626 = vst.msk [vmem:[%s2 + $0x1c] sm:$0xf] %vm1618, %v1593
  %1627 = vst.msk [vmem:[%s2 + $0x20] sm:$0xf] %vm1618, %v1594
  %1628 = vst.msk [vmem:[%s2 + $0x24] sm:$0xf] %vm1618, %v1595
  %1629 = vst.msk [vmem:[%s2 + $0x28] sm:$0xf] %vm1618, %v1596
  %1630 = vst.msk [vmem:[%s2 + $0x2c] sm:$0xf] %vm1618, %v1597
  %1631 = vst.msk [vmem:[%s2 + $0x30] sm:$0xf] %vm1618, %v1598
  %1632 = vst.msk [vmem:[%s2 + $0x34] sm:$0xf] %vm1618, %v1599
  %1633 = vst.msk [vmem:[%s2 + $0x38] sm:$0xf] %vm1618, %v1600
  %1634 = vst.msk [vmem:[%s2 + $0x3c] sm:$0xf] %vm1618, %v1601
  // Predicated region
  $region10: #{discriminator_forward.10} parent=0 // pred_check
    _
  $region11: #{discriminator_forward.10} parent=0 // pred_check_branch
    %1636 = sbr.rel (0) target = $region13
  $region12: #{discriminator_forward.10} parent=0 // pred_region
    _
  $region13: #{discriminator_forward.10} parent=0 // pred_fallthru
    _
  // Predicated region
  $region14: #{discriminator_forward.10} parent=0 // pred_check
    _
  $region15: #{discriminator_forward.10} parent=0 // pred_check_branch
    %1638 = sbr.rel (0) target = $region17
  $region16: #{discriminator_forward.10} parent=0 // pred_region
    _
  $region17: #{discriminator_forward.10} parent=0 // pred_fallthru
    _

// kernel: discriminator_forward.11
$region0: #{discriminator_forward.11}
  #allocation0 [shape = 'u32[]', space=smem, size = 0x4, offset = 0x4, fixed_abs, tag = 'smem constant byte address 0x4 - core index']
  #allocation1 [shape = 'u32[144,128]{1,0:T(1,128)}', space=vmem, size = 0x12000, scoped, tag = 'internal scratch']
  %s0 = inlined_call_operand.vmem [shape: bf16[1,2048], index: 0, kind: input, shape index: {}]
  %s1 = inlined_call_operand.vmem [shape: bf16[2048,2], index: 1, kind: input, shape index: {}]
  %s2 = inlined_call_operand.hbm [shape: f32[1,2], index: 2, kind: output, shape index: {}]
  %s3 = sld [smem:[#allocation0]]
  $region18: #{discriminator_forward.11} parent=0
    _
  %s5 = ssub.s32 1, %s3
  %s6 = scalar_select 0, %s5, %s3
  $region1: #{discriminator_forward.11} parent=0
    #allocation2 [shape = 'u8[512]{0}', space=vmem, size = 0x400, scoped, tag = 'output window, operand 0, single buffered']
    #allocation3 [shape = 's32[1]{0}', space=sflag, size = 0x4, scoped, tag = 'scoped memory for discriminator_forward.11']
    %7 = vsyncpa [#allocation3], 0
    // Predicated region
    $region2: #{discriminator_forward.11} parent=1 // pred_check
      _
    $region3: #{discriminator_forward.11} parent=1 // pred_check_branch
      %9 = sbr.rel (0) target = $region5
    $region4: #{discriminator_forward.11} parent=1 // pred_region
      _
    $region5: #{discriminator_forward.11} parent=1 // pred_fallthru
      _
    // Predicated region
    $region6: #{discriminator_forward.11} parent=1 // pred_check
      _
    $region7: #{discriminator_forward.11} parent=1 // pred_check_branch
      %11 = sbr.rel (0) target = $region9
    $region8: #{discriminator_forward.11} parent=1 // pred_region
      _
    $region9: #{discriminator_forward.11} parent=1 // pred_fallthru
      _
    %v13 = vld [vmem:[%s0] sm:$0xff]
    %v14 = vld [vmem:[%s0 + $0x8] sm:$0xff]
    %v15 = vld [vmem:[%s1] sm:$0xf]
    %v16 = vld [vmem:[%s1 + $0x4] sm:$0xf]
    %v17 = vld [vmem:[%s1 + $0x8] sm:$0xf]
    %v18 = vld [vmem:[%s1 + $0xc] sm:$0xf]
    %v19 = vld [vmem:[%s1 + $0x10] sm:$0xf]
    %v20 = vld [vmem:[%s1 + $0x14] sm:$0xf]
    %v21 = vld [vmem:[%s1 + $0x18] sm:$0xf]
    %v22 = vld [vmem:[%s1 + $0x1c] sm:$0xf]
    %v23 = vld [vmem:[%s1 + $0x20] sm:$0xf]
    %v24 = vld [vmem:[%s1 + $0x24] sm:$0xf]
    %v25 = vld [vmem:[%s1 + $0x28] sm:$0xf]
    %v26 = vld [vmem:[%s1 + $0x2c] sm:$0xf]
    %v27 = vld [vmem:[%s1 + $0x30] sm:$0xf]
    %v28 = vld [vmem:[%s1 + $0x34] sm:$0xf]
    %v29 = vld [vmem:[%s1 + $0x38] sm:$0xf]
    %v30 = vld [vmem:[%s1 + $0x3c] sm:$0xf]
    %v31 = vld [vmem:[%s1 + $0x40] sm:$0xf]
    %v32 = vld [vmem:[%s1 + $0x44] sm:$0xf]
    %v33 = vld [vmem:[%s1 + $0x48] sm:$0xf]
    %v34 = vld [vmem:[%s1 + $0x4c] sm:$0xf]
    %v35 = vld [vmem:[%s1 + $0x50] sm:$0xf]
    %v36 = vld [vmem:[%s1 + $0x54] sm:$0xf]
    %v37 = vld [vmem:[%s1 + $0x58] sm:$0xf]
    %v38 = vld [vmem:[%s1 + $0x5c] sm:$0xf]
    %v39 = vld [vmem:[%s1 + $0x60] sm:$0xf]
    %v40 = vld [vmem:[%s1 + $0x64] sm:$0xf]
    %v41 = vld [vmem:[%s1 + $0x68] sm:$0xf]
    %v42 = vld [vmem:[%s1 + $0x6c] sm:$0xf]
    %v43 = vld [vmem:[%s1 + $0x70] sm:$0xf]
    %v44 = vld [vmem:[%s1 + $0x74] sm:$0xf]
    %v45 = vld [vmem:[%s1 + $0x78] sm:$0xf]
    %v46 = vld [vmem:[%s1 + $0x7c] sm:$0xf]
    %v47 = vld [vmem:[%s1 + $0x80] sm:$0xf]
    %v48 = vld [vmem:[%s1 + $0x84] sm:$0xf]
    %v49 = vld [vmem:[%s1 + $0x88] sm:$0xf]
    %v50 = vld [vmem:[%s1 + $0x8c] sm:$0xf]
    %v51 = vld [vmem:[%s1 + $0x90] sm:$0xf]
    %v52 = vld [vmem:[%s1 + $0x94] sm:$0xf]
    %v53 = vld [vmem:[%s1 + $0x98] sm:$0xf]
    %v54 = vld [vmem:[%s1 + $0x9c] sm:$0xf]
    %v55 = vld [vmem:[%s1 + $0xa0] sm:$0xf]
    %v56 = vld [vmem:[%s1 + $0xa4] sm:$0xf]
    %v57 = vld [vmem:[%s1 + $0xa8] sm:$0xf]
    %v58 = vld [vmem:[%s1 + $0xac] sm:$0xf]
    %v59 = vld [vmem:[%s1 + $0xb0] sm:$0xf]
    %v60 = vld [vmem:[%s1 + $0xb4] sm:$0xf]
    %v61 = vld [vmem:[%s1 + $0xb8] sm:$0xf]
    %v62 = vld [vmem:[%s1 + $0xbc] sm:$0xf]
    %v63 = vld [vmem:[%s1 + $0xc0] sm:$0xf]
    %v64 = vld [vmem:[%s1 + $0xc4] sm:$0xf]
    %v65 = vld [vmem:[%s1 + $0xc8] sm:$0xf]
    %v66 = vld [vmem:[%s1 + $0xcc] sm:$0xf]
    %v67 = vld [vmem:[%s1 + $0xd0] sm:$0xf]
    %v68 = vld [vmem:[%s1 + $0xd4] sm:$0xf]
    %v69 = vld [vmem:[%s1 + $0xd8] sm:$0xf]
    %v70 = vld [vmem:[%s1 + $0xdc] sm:$0xf]
    %v71 = vld [vmem:[%s1 + $0xe0] sm:$0xf]
    %v72 = vld [vmem:[%s1 + $0xe4] sm:$0xf]
    %v73 = vld [vmem:[%s1 + $0xe8] sm:$0xf]
    %v74 = vld [vmem:[%s1 + $0xec] sm:$0xf]
    %v75 = vld [vmem:[%s1 + $0xf0] sm:$0xf]
    %v76 = vld [vmem:[%s1 + $0xf4] sm:$0xf]
    %v77 = vld [vmem:[%s1 + $0xf8] sm:$0xf]
    %v78 = vld [vmem:[%s1 + $0xfc] sm:$0xf]
    %v79 = vld [vmem:[%s1 + $0x100] sm:$0xf]
    %v80 = vld [vmem:[%s1 + $0x104] sm:$0xf]
    %v81 = vld [vmem:[%s1 + $0x108] sm:$0xf]
    %v82 = vld [vmem:[%s1 + $0x10c] sm:$0xf]
    %v83 = vld [vmem:[%s1 + $0x110] sm:$0xf]
    %v84 = vld [vmem:[%s1 + $0x114] sm:$0xf]
    %v85 = vld [vmem:[%s1 + $0x118] sm:$0xf]
    %v86 = vld [vmem:[%s1 + $0x11c] sm:$0xf]
    %v87 = vld [vmem:[%s1 + $0x120] sm:$0xf]
    %v88 = vld [vmem:[%s1 + $0x124] sm:$0xf]
    %v89 = vld [vmem:[%s1 + $0x128] sm:$0xf]
    %v90 = vld [vmem:[%s1 + $0x12c] sm:$0xf]
    %v91 = vld [vmem:[%s1 + $0x130] sm:$0xf]
    %v92 = vld [vmem:[%s1 + $0x134] sm:$0xf]
    %v93 = vld [vmem:[%s1 + $0x138] sm:$0xf]
    %v94 = vld [vmem:[%s1 + $0x13c] sm:$0xf]
    %v95 = vld [vmem:[%s1 + $0x140] sm:$0xf]
    %v96 = vld [vmem:[%s1 + $0x144] sm:$0xf]
    %v97 = vld [vmem:[%s1 + $0x148] sm:$0xf]
    %v98 = vld [vmem:[%s1 + $0x14c] sm:$0xf]
    %v99 = vld [vmem:[%s1 + $0x150] sm:$0xf]
    %v100 = vld [vmem:[%s1 + $0x154] sm:$0xf]
    %v101 = vld [vmem:[%s1 + $0x158] sm:$0xf]
    %v102 = vld [vmem:[%s1 + $0x15c] sm:$0xf]
    %v103 = vld [vmem:[%s1 + $0x160] sm:$0xf]
    %v104 = vld [vmem:[%s1 + $0x164] sm:$0xf]
    %v105 = vld [vmem:[%s1 + $0x168] sm:$0xf]
    %v106 = vld [vmem:[%s1 + $0x16c] sm:$0xf]
    %v107 = vld [vmem:[%s1 + $0x170] sm:$0xf]
    %v108 = vld [vmem:[%s1 + $0x174] sm:$0xf]
    %v109 = vld [vmem:[%s1 + $0x178] sm:$0xf]
    %v110 = vld [vmem:[%s1 + $0x17c] sm:$0xf]
    %v111 = vld [vmem:[%s1 + $0x180] sm:$0xf]
    %v112 = vld [vmem:[%s1 + $0x184] sm:$0xf]
    %v113 = vld [vmem:[%s1 + $0x188] sm:$0xf]
    %v114 = vld [vmem:[%s1 + $0x18c] sm:$0xf]
    %v115 = vld [vmem:[%s1 + $0x190] sm:$0xf]
    %v116 = vld [vmem:[%s1 + $0x194] sm:$0xf]
    %v117 = vld [vmem:[%s1 + $0x198] sm:$0xf]
    %v118 = vld [vmem:[%s1 + $0x19c] sm:$0xf]
    %v119 = vld [vmem:[%s1 + $0x1a0] sm:$0xf]
    %v120 = vld [vmem:[%s1 + $0x1a4] sm:$0xf]
    %v121 = vld [vmem:[%s1 + $0x1a8] sm:$0xf]
    %v122 = vld [vmem:[%s1 + $0x1ac] sm:$0xf]
    %v123 = vld [vmem:[%s1 + $0x1b0] sm:$0xf]
    %v124 = vld [vmem:[%s1 + $0x1b4] sm:$0xf]
    %v125 = vld [vmem:[%s1 + $0x1b8] sm:$0xf]
    %v126 = vld [vmem:[%s1 + $0x1bc] sm:$0xf]
    %v127 = vld [vmem:[%s1 + $0x1c0] sm:$0xf]
    %v128 = vld [vmem:[%s1 + $0x1c4] sm:$0xf]
    %v129 = vld [vmem:[%s1 + $0x1c8] sm:$0xf]
    %v130 = vld [vmem:[%s1 + $0x1cc] sm:$0xf]
    %v131 = vld [vmem:[%s1 + $0x1d0] sm:$0xf]
    %v132 = vld [vmem:[%s1 + $0x1d4] sm:$0xf]
    %v133 = vld [vmem:[%s1 + $0x1d8] sm:$0xf]
    %v134 = vld [vmem:[%s1 + $0x1dc] sm:$0xf]
    %v135 = vld [vmem:[%s1 + $0x1e0] sm:$0xf]
    %v136 = vld [vmem:[%s1 + $0x1e4] sm:$0xf]
    %v137 = vld [vmem:[%s1 + $0x1e8] sm:$0xf]
    %v138 = vld [vmem:[%s1 + $0x1ec] sm:$0xf]
    %v139 = vld [vmem:[%s1 + $0x1f0] sm:$0xf]
    %v140 = vld [vmem:[%s1 + $0x1f4] sm:$0xf]
    %v141 = vld [vmem:[%s1 + $0x1f8] sm:$0xf]
    %v142 = vld [vmem:[%s1 + $0x1fc] sm:$0xf]
    %v143 = vld [vmem:[%s1 + $0x200] sm:$0xf]
    %v144 = vld [vmem:[%s1 + $0x204] sm:$0xf]
    %v145 = vld [vmem:[%s1 + $0x208] sm:$0xf]
    %v146 = vld [vmem:[%s1 + $0x20c] sm:$0xf]
    %v147 = vld [vmem:[%s1 + $0x210] sm:$0xf]
    %v148 = vld [vmem:[%s1 + $0x214] sm:$0xf]
    %v149 = vld [vmem:[%s1 + $0x218] sm:$0xf]
    %v150 = vld [vmem:[%s1 + $0x21c] sm:$0xf]
    %v151 = vld [vmem:[%s1 + $0x220] sm:$0xf]
    %v152 = vld [vmem:[%s1 + $0x224] sm:$0xf]
    %v153 = vld [vmem:[%s1 + $0x228] sm:$0xf]
    %v154 = vld [vmem:[%s1 + $0x22c] sm:$0xf]
    %v155 = vld [vmem:[%s1 + $0x230] sm:$0xf]
    %v156 = vld [vmem:[%s1 + $0x234] sm:$0xf]
    %v157 = vld [vmem:[%s1 + $0x238] sm:$0xf]
    %v158 = vld [vmem:[%s1 + $0x23c] sm:$0xf]
    %v159 = vld [vmem:[%s1 + $0x240] sm:$0xf]
    %v160 = vld [vmem:[%s1 + $0x244] sm:$0xf]
    %v161 = vld [vmem:[%s1 + $0x248] sm:$0xf]
    %v162 = vld [vmem:[%s1 + $0x24c] sm:$0xf]
    %v163 = vld [vmem:[%s1 + $0x250] sm:$0xf]
    %v164 = vld [vmem:[%s1 + $0x254] sm:$0xf]
    %v165 = vld [vmem:[%s1 + $0x258] sm:$0xf]
    %v166 = vld [vmem:[%s1 + $0x25c] sm:$0xf]
    %v167 = vld [vmem:[%s1 + $0x260] sm:$0xf]
    %v168 = vld [vmem:[%s1 + $0x264] sm:$0xf]
    %v169 = vld [vmem:[%s1 + $0x268] sm:$0xf]
    %v170 = vld [vmem:[%s1 + $0x26c] sm:$0xf]
    %v171 = vld [vmem:[%s1 + $0x270] sm:$0xf]
    %v172 = vld [vmem:[%s1 + $0x274] sm:$0xf]
    %v173 = vld [vmem:[%s1 + $0x278] sm:$0xf]
    %v174 = vld [vmem:[%s1 + $0x27c] sm:$0xf]
    %v175 = vld [vmem:[%s1 + $0x280] sm:$0xf]
    %v176 = vld [vmem:[%s1 + $0x284] sm:$0xf]
    %v177 = vld [vmem:[%s1 + $0x288] sm:$0xf]
    %v178 = vld [vmem:[%s1 + $0x28c] sm:$0xf]
    %v179 = vld [vmem:[%s1 + $0x290] sm:$0xf]
    %v180 = vld [vmem:[%s1 + $0x294] sm:$0xf]
    %v181 = vld [vmem:[%s1 + $0x298] sm:$0xf]
    %v182 = vld [vmem:[%s1 + $0x29c] sm:$0xf]
    %v183 = vld [vmem:[%s1 + $0x2a0] sm:$0xf]
    %v184 = vld [vmem:[%s1 + $0x2a4] sm:$0xf]
    %v185 = vld [vmem:[%s1 + $0x2a8] sm:$0xf]
    %v186 = vld [vmem:[%s1 + $0x2ac] sm:$0xf]
    %v187 = vld [vmem:[%s1 + $0x2b0] sm:$0xf]
    %v188 = vld [vmem:[%s1 + $0x2b4] sm:$0xf]
    %v189 = vld [vmem:[%s1 + $0x2b8] sm:$0xf]
    %v190 = vld [vmem:[%s1 + $0x2bc] sm:$0xf]
    %v191 = vld [vmem:[%s1 + $0x2c0] sm:$0xf]
    %v192 = vld [vmem:[%s1 + $0x2c4] sm:$0xf]
    %v193 = vld [vmem:[%s1 + $0x2c8] sm:$0xf]
    %v194 = vld [vmem:[%s1 + $0x2cc] sm:$0xf]
    %v195 = vld [vmem:[%s1 + $0x2d0] sm:$0xf]
    %v196 = vld [vmem:[%s1 + $0x2d4] sm:$0xf]
    %v197 = vld [vmem:[%s1 + $0x2d8] sm:$0xf]
    %v198 = vld [vmem:[%s1 + $0x2dc] sm:$0xf]
    %v199 = vld [vmem:[%s1 + $0x2e0] sm:$0xf]
    %v200 = vld [vmem:[%s1 + $0x2e4] sm:$0xf]
    %v201 = vld [vmem:[%s1 + $0x2e8] sm:$0xf]
    %v202 = vld [vmem:[%s1 + $0x2ec] sm:$0xf]
    %v203 = vld [vmem:[%s1 + $0x2f0] sm:$0xf]
    %v204 = vld [vmem:[%s1 + $0x2f4] sm:$0xf]
    %v205 = vld [vmem:[%s1 + $0x2f8] sm:$0xf]
    %v206 = vld [vmem:[%s1 + $0x2fc] sm:$0xf]
    %v207 = vld [vmem:[%s1 + $0x300] sm:$0xf]
    %v208 = vld [vmem:[%s1 + $0x304] sm:$0xf]
    %v209 = vld [vmem:[%s1 + $0x308] sm:$0xf]
    %v210 = vld [vmem:[%s1 + $0x30c] sm:$0xf]
    %v211 = vld [vmem:[%s1 + $0x310] sm:$0xf]
    %v212 = vld [vmem:[%s1 + $0x314] sm:$0xf]
    %v213 = vld [vmem:[%s1 + $0x318] sm:$0xf]
    %v214 = vld [vmem:[%s1 + $0x31c] sm:$0xf]
    %v215 = vld [vmem:[%s1 + $0x320] sm:$0xf]
    %v216 = vld [vmem:[%s1 + $0x324] sm:$0xf]
    %v217 = vld [vmem:[%s1 + $0x328] sm:$0xf]
    %v218 = vld [vmem:[%s1 + $0x32c] sm:$0xf]
    %v219 = vld [vmem:[%s1 + $0x330] sm:$0xf]
    %v220 = vld [vmem:[%s1 + $0x334] sm:$0xf]
    %v221 = vld [vmem:[%s1 + $0x338] sm:$0xf]
    %v222 = vld [vmem:[%s1 + $0x33c] sm:$0xf]
    %v223 = vld [vmem:[%s1 + $0x340] sm:$0xf]
    %v224 = vld [vmem:[%s1 + $0x344] sm:$0xf]
    %v225 = vld [vmem:[%s1 + $0x348] sm:$0xf]
    %v226 = vld [vmem:[%s1 + $0x34c] sm:$0xf]
    %v227 = vld [vmem:[%s1 + $0x350] sm:$0xf]
    %v228 = vld [vmem:[%s1 + $0x354] sm:$0xf]
    %v229 = vld [vmem:[%s1 + $0x358] sm:$0xf]
    %v230 = vld [vmem:[%s1 + $0x35c] sm:$0xf]
    %v231 = vld [vmem:[%s1 + $0x360] sm:$0xf]
    %v232 = vld [vmem:[%s1 + $0x364] sm:$0xf]
    %v233 = vld [vmem:[%s1 + $0x368] sm:$0xf]
    %v234 = vld [vmem:[%s1 + $0x36c] sm:$0xf]
    %v235 = vld [vmem:[%s1 + $0x370] sm:$0xf]
    %v236 = vld [vmem:[%s1 + $0x374] sm:$0xf]
    %v237 = vld [vmem:[%s1 + $0x378] sm:$0xf]
    %v238 = vld [vmem:[%s1 + $0x37c] sm:$0xf]
    %v239 = vld [vmem:[%s1 + $0x380] sm:$0xf]
    %v240 = vld [vmem:[%s1 + $0x384] sm:$0xf]
    %v241 = vld [vmem:[%s1 + $0x388] sm:$0xf]
    %v242 = vld [vmem:[%s1 + $0x38c] sm:$0xf]
    %v243 = vld [vmem:[%s1 + $0x390] sm:$0xf]
    %v244 = vld [vmem:[%s1 + $0x394] sm:$0xf]
    %v245 = vld [vmem:[%s1 + $0x398] sm:$0xf]
    %v246 = vld [vmem:[%s1 + $0x39c] sm:$0xf]
    %v247 = vld [vmem:[%s1 + $0x3a0] sm:$0xf]
    %v248 = vld [vmem:[%s1 + $0x3a4] sm:$0xf]
    %v249 = vld [vmem:[%s1 + $0x3a8] sm:$0xf]
    %v250 = vld [vmem:[%s1 + $0x3ac] sm:$0xf]
    %v251 = vld [vmem:[%s1 + $0x3b0] sm:$0xf]
    %v252 = vld [vmem:[%s1 + $0x3b4] sm:$0xf]
    %v253 = vld [vmem:[%s1 + $0x3b8] sm:$0xf]
    %v254 = vld [vmem:[%s1 + $0x3bc] sm:$0xf]
    %v255 = vld [vmem:[%s1 + $0x3c0] sm:$0xf]
    %v256 = vld [vmem:[%s1 + $0x3c4] sm:$0xf]
    %v257 = vld [vmem:[%s1 + $0x3c8] sm:$0xf]
    %v258 = vld [vmem:[%s1 + $0x3cc] sm:$0xf]
    %v259 = vld [vmem:[%s1 + $0x3d0] sm:$0xf]
    %v260 = vld [vmem:[%s1 + $0x3d4] sm:$0xf]
    %v261 = vld [vmem:[%s1 + $0x3d8] sm:$0xf]
    %v262 = vld [vmem:[%s1 + $0x3dc] sm:$0xf]
    %v263 = vld [vmem:[%s1 + $0x3e0] sm:$0xf]
    %v264 = vld [vmem:[%s1 + $0x3e4] sm:$0xf]
    %v265 = vld [vmem:[%s1 + $0x3e8] sm:$0xf]
    %v266 = vld [vmem:[%s1 + $0x3ec] sm:$0xf]
    %v267 = vld [vmem:[%s1 + $0x3f0] sm:$0xf]
    %v268 = vld [vmem:[%s1 + $0x3f4] sm:$0xf]
    %v269 = vld [vmem:[%s1 + $0x3f8] sm:$0xf]
    %v270 = vld [vmem:[%s1 + $0x3fc] sm:$0xf]
    %v273 = vcombine.high %v13, %v13
    %v275 = vunpack.c.l.s4 1966171168
    %v276 = vunpack.c.0.s8 %v275
    %v277 = vlaneseq
    %v278 = vshrl.u32 %v277, 7
    %v279 = vsub.s32 %v276, %v278
    %v280 = vrot.slane %v13, %v279
    %v282 = vunpack.c.l.s4 1966171168
    %v283 = vunpack.c.0.s8 %v282
    %v284 = vlaneseq
    %v285 = vshrl.u32 %v284, 7
    %v286 = vsub.s32 %v283, %v285
    %v287 = vrot.slane %v273, %v286
    %v288 = vcombine.high %v280, %v280
    %v289 = vcombine.high %v287, %v287
    %v291 = vunpack.c.l.s4 1966171168
    %v292 = vunpack.c.0.s8 %v291
    %v293 = vlaneseq
    %v294 = vshrl.u32 %v293, 7
    %v295 = vsub.s32 %v292, %v294
    %v296 = vrot.slane %v280, %v295
    %v298 = vunpack.c.l.s4 1966171168
    %v299 = vunpack.c.0.s8 %v298
    %v300 = vlaneseq
    %v301 = vshrl.u32 %v300, 7
    %v302 = vsub.s32 %v299, %v301
    %v303 = vrot.slane %v287, %v302
    %v305 = vunpack.c.l.s4 1966171168
    %v306 = vunpack.c.0.s8 %v305
    %v307 = vlaneseq
    %v308 = vshrl.u32 %v307, 7
    %v309 = vsub.s32 %v306, %v308
    %v310 = vrot.slane %v288, %v309
    %v312 = vunpack.c.l.s4 1966171168
    %v313 = vunpack.c.0.s8 %v312
    %v314 = vlaneseq
    %v315 = vshrl.u32 %v314, 7
    %v316 = vsub.s32 %v313, %v315
    %v317 = vrot.slane %v289, %v316
    %v318 = vcombine.high %v296, %v296
    %v319 = vcombine.high %v303, %v303
    %v320 = vcombine.high %v310, %v310
    %v321 = vcombine.high %v317, %v317
    %v322 = vcombine.high %v14, %v14
    %v324 = vunpack.c.l.s4 1966171168
    %v325 = vunpack.c.0.s8 %v324
    %v326 = vlaneseq
    %v327 = vshrl.u32 %v326, 7
    %v328 = vsub.s32 %v325, %v327
    %v329 = vrot.slane %v14, %v328
    %v331 = vunpack.c.l.s4 1966171168
    %v332 = vunpack.c.0.s8 %v331
    %v333 = vlaneseq
    %v334 = vshrl.u32 %v333, 7
    %v335 = vsub.s32 %v332, %v334
    %v336 = vrot.slane %v322, %v335
    %v337 = vcombine.high %v329, %v329
    %v338 = vcombine.high %v336, %v336
    %v340 = vunpack.c.l.s4 1966171168
    %v341 = vunpack.c.0.s8 %v340
    %v342 = vlaneseq
    %v343 = vshrl.u32 %v342, 7
    %v344 = vsub.s32 %v341, %v343
    %v345 = vrot.slane %v329, %v344
    %v347 = vunpack.c.l.s4 1966171168
    %v348 = vunpack.c.0.s8 %v347
    %v349 = vlaneseq
    %v350 = vshrl.u32 %v349, 7
    %v351 = vsub.s32 %v348, %v350
    %v352 = vrot.slane %v336, %v351
    %v354 = vunpack.c.l.s4 1966171168
    %v355 = vunpack.c.0.s8 %v354
    %v356 = vlaneseq
    %v357 = vshrl.u32 %v356, 7
    %v358 = vsub.s32 %v355, %v357
    %v359 = vrot.slane %v337, %v358
    %v361 = vunpack.c.l.s4 1966171168
    %v362 = vunpack.c.0.s8 %v361
    %v363 = vlaneseq
    %v364 = vshrl.u32 %v363, 7
    %v365 = vsub.s32 %v362, %v364
    %v366 = vrot.slane %v338, %v365
    %v367 = vcombine.high %v345, %v345
    %v368 = vcombine.high %v352, %v352
    %v369 = vcombine.high %v359, %v359
    %v370 = vcombine.high %v366, %v366
    %v643 = vunpack.c.l.b16 %v15
    %v644 = vunpack.c.l.b16 %v16
    %v645 = vunpack.c.l.b16 %v17
    %v646 = vunpack.c.l.b16 %v18
    %v647 = vunpack.c.l.b16 %v19
    %v648 = vunpack.c.l.b16 %v20
    %v649 = vunpack.c.l.b16 %v21
    %v650 = vunpack.c.l.b16 %v22
    %v651 = vunpack.c.l.b16 %v23
    %v652 = vunpack.c.l.b16 %v24
    %v653 = vunpack.c.l.b16 %v25
    %v654 = vunpack.c.l.b16 %v26
    %v655 = vunpack.c.l.b16 %v27
    %v656 = vunpack.c.l.b16 %v28
    %v657 = vunpack.c.l.b16 %v29
    %v658 = vunpack.c.l.b16 %v30
    %v659 = vunpack.c.l.b16 %v31
    %v660 = vunpack.c.l.b16 %v32
    %v661 = vunpack.c.l.b16 %v33
    %v662 = vunpack.c.l.b16 %v34
    %v663 = vunpack.c.l.b16 %v35
    %v664 = vunpack.c.l.b16 %v36
    %v665 = vunpack.c.l.b16 %v37
    %v666 = vunpack.c.l.b16 %v38
    %v667 = vunpack.c.l.b16 %v39
    %v668 = vunpack.c.l.b16 %v40
    %v669 = vunpack.c.l.b16 %v41
    %v670 = vunpack.c.l.b16 %v42
    %v671 = vunpack.c.l.b16 %v43
    %v672 = vunpack.c.l.b16 %v44
    %v673 = vunpack.c.l.b16 %v45
    %v674 = vunpack.c.l.b16 %v46
    %v675 = vunpack.c.l.b16 %v47
    %v676 = vunpack.c.l.b16 %v48
    %v677 = vunpack.c.l.b16 %v49
    %v678 = vunpack.c.l.b16 %v50
    %v679 = vunpack.c.l.b16 %v51
    %v680 = vunpack.c.l.b16 %v52
    %v681 = vunpack.c.l.b16 %v53
    %v682 = vunpack.c.l.b16 %v54
    %v683 = vunpack.c.l.b16 %v55
    %v684 = vunpack.c.l.b16 %v56
    %v685 = vunpack.c.l.b16 %v57
    %v686 = vunpack.c.l.b16 %v58
    %v687 = vunpack.c.l.b16 %v59
    %v688 = vunpack.c.l.b16 %v60
    %v689 = vunpack.c.l.b16 %v61
    %v690 = vunpack.c.l.b16 %v62
    %v691 = vunpack.c.l.b16 %v63
    %v692 = vunpack.c.l.b16 %v64
    %v693 = vunpack.c.l.b16 %v65
    %v694 = vunpack.c.l.b16 %v66
    %v695 = vunpack.c.l.b16 %v67
    %v696 = vunpack.c.l.b16 %v68
    %v697 = vunpack.c.l.b16 %v69
    %v698 = vunpack.c.l.b16 %v70
    %v699 = vunpack.c.l.b16 %v71
    %v700 = vunpack.c.l.b16 %v72
    %v701 = vunpack.c.l.b16 %v73
    %v702 = vunpack.c.l.b16 %v74
    %v703 = vunpack.c.l.b16 %v75
    %v704 = vunpack.c.l.b16 %v76
    %v705 = vunpack.c.l.b16 %v77
    %v706 = vunpack.c.l.b16 %v78
    %v707 = vunpack.c.l.b16 %v79
    %v708 = vunpack.c.l.b16 %v80
    %v709 = vunpack.c.l.b16 %v81
    %v710 = vunpack.c.l.b16 %v82
    %v711 = vunpack.c.l.b16 %v83
    %v712 = vunpack.c.l.b16 %v84
    %v713 = vunpack.c.l.b16 %v85
    %v714 = vunpack.c.l.b16 %v86
    %v715 = vunpack.c.l.b16 %v87
    %v716 = vunpack.c.l.b16 %v88
    %v717 = vunpack.c.l.b16 %v89
    %v718 = vunpack.c.l.b16 %v90
    %v719 = vunpack.c.l.b16 %v91
    %v720 = vunpack.c.l.b16 %v92
    %v721 = vunpack.c.l.b16 %v93
    %v722 = vunpack.c.l.b16 %v94
    %v723 = vunpack.c.l.b16 %v95
    %v724 = vunpack.c.l.b16 %v96
    %v725 = vunpack.c.l.b16 %v97
    %v726 = vunpack.c.l.b16 %v98
    %v727 = vunpack.c.l.b16 %v99
    %v728 = vunpack.c.l.b16 %v100
    %v729 = vunpack.c.l.b16 %v101
    %v730 = vunpack.c.l.b16 %v102
    %v731 = vunpack.c.l.b16 %v103
    %v732 = vunpack.c.l.b16 %v104
    %v733 = vunpack.c.l.b16 %v105
    %v734 = vunpack.c.l.b16 %v106
    %v735 = vunpack.c.l.b16 %v107
    %v736 = vunpack.c.l.b16 %v108
    %v737 = vunpack.c.l.b16 %v109
    %v738 = vunpack.c.l.b16 %v110
    %v739 = vunpack.c.l.b16 %v111
    %v740 = vunpack.c.l.b16 %v112
    %v741 = vunpack.c.l.b16 %v113
    %v742 = vunpack.c.l.b16 %v114
    %v743 = vunpack.c.l.b16 %v115
    %v744 = vunpack.c.l.b16 %v116
    %v745 = vunpack.c.l.b16 %v117
    %v746 = vunpack.c.l.b16 %v118
    %v747 = vunpack.c.l.b16 %v119
    %v748 = vunpack.c.l.b16 %v120
    %v749 = vunpack.c.l.b16 %v121
    %v750 = vunpack.c.l.b16 %v122
    %v751 = vunpack.c.l.b16 %v123
    %v752 = vunpack.c.l.b16 %v124
    %v753 = vunpack.c.l.b16 %v125
    %v754 = vunpack.c.l.b16 %v126
    %v755 = vunpack.c.l.b16 %v127
    %v756 = vunpack.c.l.b16 %v128
    %v757 = vunpack.c.l.b16 %v129
    %v758 = vunpack.c.l.b16 %v130
    %v759 = vunpack.c.l.b16 %v131
    %v760 = vunpack.c.l.b16 %v132
    %v761 = vunpack.c.l.b16 %v133
    %v762 = vunpack.c.l.b16 %v134
    %v763 = vunpack.c.l.b16 %v135
    %v764 = vunpack.c.l.b16 %v136
    %v765 = vunpack.c.l.b16 %v137
    %v766 = vunpack.c.l.b16 %v138
    %v767 = vunpack.c.l.b16 %v139
    %v768 = vunpack.c.l.b16 %v140
    %v769 = vunpack.c.l.b16 %v141
    %v770 = vunpack.c.l.b16 %v142
    %v771 = vunpack.c.l.b16 %v143
    %v772 = vunpack.c.l.b16 %v144
    %v773 = vunpack.c.l.b16 %v145
    %v774 = vunpack.c.l.b16 %v146
    %v775 = vunpack.c.l.b16 %v147
    %v776 = vunpack.c.l.b16 %v148
    %v777 = vunpack.c.l.b16 %v149
    %v778 = vunpack.c.l.b16 %v150
    %v779 = vunpack.c.l.b16 %v151
    %v780 = vunpack.c.l.b16 %v152
    %v781 = vunpack.c.l.b16 %v153
    %v782 = vunpack.c.l.b16 %v154
    %v783 = vunpack.c.l.b16 %v155
    %v784 = vunpack.c.l.b16 %v156
    %v785 = vunpack.c.l.b16 %v157
    %v786 = vunpack.c.l.b16 %v158
    %v787 = vunpack.c.l.b16 %v159
    %v788 = vunpack.c.l.b16 %v160
    %v789 = vunpack.c.l.b16 %v161
    %v790 = vunpack.c.l.b16 %v162
    %v791 = vunpack.c.l.b16 %v163
    %v792 = vunpack.c.l.b16 %v164
    %v793 = vunpack.c.l.b16 %v165
    %v794 = vunpack.c.l.b16 %v166
    %v795 = vunpack.c.l.b16 %v167
    %v796 = vunpack.c.l.b16 %v168
    %v797 = vunpack.c.l.b16 %v169
    %v798 = vunpack.c.l.b16 %v170
    %v799 = vunpack.c.l.b16 %v171
    %v800 = vunpack.c.l.b16 %v172
    %v801 = vunpack.c.l.b16 %v173
    %v802 = vunpack.c.l.b16 %v174
    %v803 = vunpack.c.l.b16 %v175
    %v804 = vunpack.c.l.b16 %v176
    %v805 = vunpack.c.l.b16 %v177
    %v806 = vunpack.c.l.b16 %v178
    %v807 = vunpack.c.l.b16 %v179
    %v808 = vunpack.c.l.b16 %v180
    %v809 = vunpack.c.l.b16 %v181
    %v810 = vunpack.c.l.b16 %v182
    %v811 = vunpack.c.l.b16 %v183
    %v812 = vunpack.c.l.b16 %v184
    %v813 = vunpack.c.l.b16 %v185
    %v814 = vunpack.c.l.b16 %v186
    %v815 = vunpack.c.l.b16 %v187
    %v816 = vunpack.c.l.b16 %v188
    %v817 = vunpack.c.l.b16 %v189
    %v818 = vunpack.c.l.b16 %v190
    %v819 = vunpack.c.l.b16 %v191
    %v820 = vunpack.c.l.b16 %v192
    %v821 = vunpack.c.l.b16 %v193
    %v822 = vunpack.c.l.b16 %v194
    %v823 = vunpack.c.l.b16 %v195
    %v824 = vunpack.c.l.b16 %v196
    %v825 = vunpack.c.l.b16 %v197
    %v826 = vunpack.c.l.b16 %v198
    %v827 = vunpack.c.l.b16 %v199
    %v828 = vunpack.c.l.b16 %v200
    %v829 = vunpack.c.l.b16 %v201
    %v830 = vunpack.c.l.b16 %v202
    %v831 = vunpack.c.l.b16 %v203
    %v832 = vunpack.c.l.b16 %v204
    %v833 = vunpack.c.l.b16 %v205
    %v834 = vunpack.c.l.b16 %v206
    %v835 = vunpack.c.l.b16 %v207
    %v836 = vunpack.c.l.b16 %v208
    %v837 = vunpack.c.l.b16 %v209
    %v838 = vunpack.c.l.b16 %v210
    %v839 = vunpack.c.l.b16 %v211
    %v840 = vunpack.c.l.b16 %v212
    %v841 = vunpack.c.l.b16 %v213
    %v842 = vunpack.c.l.b16 %v214
    %v843 = vunpack.c.l.b16 %v215
    %v844 = vunpack.c.l.b16 %v216
    %v845 = vunpack.c.l.b16 %v217
    %v846 = vunpack.c.l.b16 %v218
    %v847 = vunpack.c.l.b16 %v219
    %v848 = vunpack.c.l.b16 %v220
    %v849 = vunpack.c.l.b16 %v221
    %v850 = vunpack.c.l.b16 %v222
    %v851 = vunpack.c.l.b16 %v223
    %v852 = vunpack.c.l.b16 %v224
    %v853 = vunpack.c.l.b16 %v225
    %v854 = vunpack.c.l.b16 %v226
    %v855 = vunpack.c.l.b16 %v227
    %v856 = vunpack.c.l.b16 %v228
    %v857 = vunpack.c.l.b16 %v229
    %v858 = vunpack.c.l.b16 %v230
    %v859 = vunpack.c.l.b16 %v231
    %v860 = vunpack.c.l.b16 %v232
    %v861 = vunpack.c.l.b16 %v233
    %v862 = vunpack.c.l.b16 %v234
    %v863 = vunpack.c.l.b16 %v235
    %v864 = vunpack.c.l.b16 %v236
    %v865 = vunpack.c.l.b16 %v237
    %v866 = vunpack.c.l.b16 %v238
    %v867 = vunpack.c.l.b16 %v239
    %v868 = vunpack.c.l.b16 %v240
    %v869 = vunpack.c.l.b16 %v241
    %v870 = vunpack.c.l.b16 %v242
    %v871 = vunpack.c.l.b16 %v243
    %v872 = vunpack.c.l.b16 %v244
    %v873 = vunpack.c.l.b16 %v245
    %v874 = vunpack.c.l.b16 %v246
    %v875 = vunpack.c.l.b16 %v247
    %v876 = vunpack.c.l.b16 %v248
    %v877 = vunpack.c.l.b16 %v249
    %v878 = vunpack.c.l.b16 %v250
    %v879 = vunpack.c.l.b16 %v251
    %v880 = vunpack.c.l.b16 %v252
    %v881 = vunpack.c.l.b16 %v253
    %v882 = vunpack.c.l.b16 %v254
    %v883 = vunpack.c.l.b16 %v255
    %v884 = vunpack.c.l.b16 %v256
    %v885 = vunpack.c.l.b16 %v257
    %v886 = vunpack.c.l.b16 %v258
    %v887 = vunpack.c.l.b16 %v259
    %v888 = vunpack.c.l.b16 %v260
    %v889 = vunpack.c.l.b16 %v261
    %v890 = vunpack.c.l.b16 %v262
    %v891 = vunpack.c.l.b16 %v263
    %v892 = vunpack.c.l.b16 %v264
    %v893 = vunpack.c.l.b16 %v265
    %v894 = vunpack.c.l.b16 %v266
    %v895 = vunpack.c.l.b16 %v267
    %v896 = vunpack.c.l.b16 %v268
    %v897 = vunpack.c.l.b16 %v269
    %v898 = vunpack.c.l.b16 %v270
    %v899 = vpack.c.b16 %v644, %v643
    %v900 = vpack.c.b16 %v646, %v645
    %v901 = vpack.c.b16 %v648, %v647
    %v902 = vpack.c.b16 %v650, %v649
    %v903 = vpack.c.b16 %v652, %v651
    %v904 = vpack.c.b16 %v654, %v653
    %v905 = vpack.c.b16 %v656, %v655
    %v906 = vpack.c.b16 %v658, %v657
    %v907 = vpack.c.b16 %v660, %v659
    %v908 = vpack.c.b16 %v662, %v661
    %v909 = vpack.c.b16 %v664, %v663
    %v910 = vpack.c.b16 %v666, %v665
    %v911 = vpack.c.b16 %v668, %v667
    %v912 = vpack.c.b16 %v670, %v669
    %v913 = vpack.c.b16 %v672, %v671
    %v914 = vpack.c.b16 %v674, %v673
    %v915 = vpack.c.b16 %v676, %v675
    %v916 = vpack.c.b16 %v678, %v677
    %v917 = vpack.c.b16 %v680, %v679
    %v918 = vpack.c.b16 %v682, %v681
    %v919 = vpack.c.b16 %v684, %v683
    %v920 = vpack.c.b16 %v686, %v685
    %v921 = vpack.c.b16 %v688, %v687
    %v922 = vpack.c.b16 %v690, %v689
    %v923 = vpack.c.b16 %v692, %v691
    %v924 = vpack.c.b16 %v694, %v693
    %v925 = vpack.c.b16 %v696, %v695
    %v926 = vpack.c.b16 %v698, %v697
    %v927 = vpack.c.b16 %v700, %v699
    %v928 = vpack.c.b16 %v702, %v701
    %v929 = vpack.c.b16 %v704, %v703
    %v930 = vpack.c.b16 %v706, %v705
    %v931 = vpack.c.b16 %v708, %v707
    %v932 = vpack.c.b16 %v710, %v709
    %v933 = vpack.c.b16 %v712, %v711
    %v934 = vpack.c.b16 %v714, %v713
    %v935 = vpack.c.b16 %v716, %v715
    %v936 = vpack.c.b16 %v718, %v717
    %v937 = vpack.c.b16 %v720, %v719
    %v938 = vpack.c.b16 %v722, %v721
    %v939 = vpack.c.b16 %v724, %v723
    %v940 = vpack.c.b16 %v726, %v725
    %v941 = vpack.c.b16 %v728, %v727
    %v942 = vpack.c.b16 %v730, %v729
    %v943 = vpack.c.b16 %v732, %v731
    %v944 = vpack.c.b16 %v734, %v733
    %v945 = vpack.c.b16 %v736, %v735
    %v946 = vpack.c.b16 %v738, %v737
    %v947 = vpack.c.b16 %v740, %v739
    %v948 = vpack.c.b16 %v742, %v741
    %v949 = vpack.c.b16 %v744, %v743
    %v950 = vpack.c.b16 %v746, %v745
    %v951 = vpack.c.b16 %v748, %v747
    %v952 = vpack.c.b16 %v750, %v749
    %v953 = vpack.c.b16 %v752, %v751
    %v954 = vpack.c.b16 %v754, %v753
    %v955 = vpack.c.b16 %v756, %v755
    %v956 = vpack.c.b16 %v758, %v757
    %v957 = vpack.c.b16 %v760, %v759
    %v958 = vpack.c.b16 %v762, %v761
    %v959 = vpack.c.b16 %v764, %v763
    %v960 = vpack.c.b16 %v766, %v765
    %v961 = vpack.c.b16 %v768, %v767
    %v962 = vpack.c.b16 %v770, %v769
    %v963 = vpack.c.b16 %v772, %v771
    %v964 = vpack.c.b16 %v774, %v773
    %v965 = vpack.c.b16 %v776, %v775
    %v966 = vpack.c.b16 %v778, %v777
    %v967 = vpack.c.b16 %v780, %v779
    %v968 = vpack.c.b16 %v782, %v781
    %v969 = vpack.c.b16 %v784, %v783
    %v970 = vpack.c.b16 %v786, %v785
    %v971 = vpack.c.b16 %v788, %v787
    %v972 = vpack.c.b16 %v790, %v789
    %v973 = vpack.c.b16 %v792, %v791
    %v974 = vpack.c.b16 %v794, %v793
    %v975 = vpack.c.b16 %v796, %v795
    %v976 = vpack.c.b16 %v798, %v797
    %v977 = vpack.c.b16 %v800, %v799
    %v978 = vpack.c.b16 %v802, %v801
    %v979 = vpack.c.b16 %v804, %v803
    %v980 = vpack.c.b16 %v806, %v805
    %v981 = vpack.c.b16 %v808, %v807
    %v982 = vpack.c.b16 %v810, %v809
    %v983 = vpack.c.b16 %v812, %v811
    %v984 = vpack.c.b16 %v814, %v813
    %v985 = vpack.c.b16 %v816, %v815
    %v986 = vpack.c.b16 %v818, %v817
    %v987 = vpack.c.b16 %v820, %v819
    %v988 = vpack.c.b16 %v822, %v821
    %v989 = vpack.c.b16 %v824, %v823
    %v990 = vpack.c.b16 %v826, %v825
    %v991 = vpack.c.b16 %v828, %v827
    %v992 = vpack.c.b16 %v830, %v829
    %v993 = vpack.c.b16 %v832, %v831
    %v994 = vpack.c.b16 %v834, %v833
    %v995 = vpack.c.b16 %v836, %v835
    %v996 = vpack.c.b16 %v838, %v837
    %v997 = vpack.c.b16 %v840, %v839
    %v998 = vpack.c.b16 %v842, %v841
    %v999 = vpack.c.b16 %v844, %v843
    %v1000 = vpack.c.b16 %v846, %v845
    %v1001 = vpack.c.b16 %v848, %v847
    %v1002 = vpack.c.b16 %v850, %v849
    %v1003 = vpack.c.b16 %v852, %v851
    %v1004 = vpack.c.b16 %v854, %v853
    %v1005 = vpack.c.b16 %v856, %v855
    %v1006 = vpack.c.b16 %v858, %v857
    %v1007 = vpack.c.b16 %v860, %v859
    %v1008 = vpack.c.b16 %v862, %v861
    %v1009 = vpack.c.b16 %v864, %v863
    %v1010 = vpack.c.b16 %v866, %v865
    %v1011 = vpack.c.b16 %v868, %v867
    %v1012 = vpack.c.b16 %v870, %v869
    %v1013 = vpack.c.b16 %v872, %v871
    %v1014 = vpack.c.b16 %v874, %v873
    %v1015 = vpack.c.b16 %v876, %v875
    %v1016 = vpack.c.b16 %v878, %v877
    %v1017 = vpack.c.b16 %v880, %v879
    %v1018 = vpack.c.b16 %v882, %v881
    %v1019 = vpack.c.b16 %v884, %v883
    %v1020 = vpack.c.b16 %v886, %v885
    %v1021 = vpack.c.b16 %v888, %v887
    %v1022 = vpack.c.b16 %v890, %v889
    %v1023 = vpack.c.b16 %v892, %v891
    %v1024 = vpack.c.b16 %v894, %v893
    %v1025 = vpack.c.b16 %v896, %v895
    %v1026 = vpack.c.b16 %v898, %v897
    %1155 = vmatprep.subr.bf16.mxu0 0
    %1156 = vmatpush1.bf16.msra.mxu0 %v906
    %1157 = vmatprep.subr.bf16.mxu0 0
    %1158 = vmatpush1.bf16.msra.mxu0 %v905
    %1159 = vmatprep.subr.bf16.mxu0 0
    %1160 = vmatpush1.bf16.msra.mxu0 %v904
    %1161 = vmatprep.subr.bf16.mxu0 0
    %1162 = vmatpush1.bf16.msra.mxu0 %v903
    %1163 = vmatprep.subr.bf16.mxu0 0
    %1164 = vmatpush1.bf16.msra.mxu0 %v902
    %1165 = vmatprep.subr.bf16.mxu0 0
    %1166 = vmatpush1.bf16.msra.mxu0 %v901
    %1167 = vmatprep.subr.bf16.mxu0 0
    %1168 = vmatpush1.bf16.msra.mxu0 %v900
    %1169 = vmatprep.subr.bf16.mxu0 0
    %1170 = vmatpush1.bf16.msra.mxu0 %v899
    %1171 = vmatprep.subr.bf16.mxu0 0
    %1172 = vmatpush2.bf16.msra.mxu0 %v914
    %1173 = vmatprep.subr.bf16.mxu0 0
    %1174 = vmatpush2.bf16.msra.mxu0 %v913
    %1175 = vmatprep.subr.bf16.mxu0 0
    %1176 = vmatpush2.bf16.msra.mxu0 %v912
    %1177 = vmatprep.subr.bf16.mxu0 0
    %1178 = vmatpush2.bf16.msra.mxu0 %v911
    %1179 = vmatprep.subr.bf16.mxu0 0
    %1180 = vmatpush2.bf16.msra.mxu0 %v910
    %1181 = vmatprep.subr.bf16.mxu0 0
    %1182 = vmatpush2.bf16.msra.mxu0 %v909
    %1183 = vmatprep.subr.bf16.mxu0 0
    %1184 = vmatpush2.bf16.msra.mxu0 %v908
    %1185 = vmatprep.subr.bf16.mxu0 0
    %1186 = vmatpush2.bf16.msra.mxu0 %v907
    %1187 = vmatprep.mubr.bf16.mxu0 %v310
    %1188 = vmatmul.mubr.bf16.gmra.mxu0 %v296
    %v1189 = vpop.f32.mrf.mxu0
    %v1190 = vadd.f32 0.0, %v1189
    %v1191 = vpop.f32.mrf.mxu0
    %v1192 = vpop.f32.mrf.mxu0
    %v1193 = vpop.f32.mrf.mxu0
    %1194 = vdwg.mxu0
    %1195 = vmatprep.subr.bf16.mxu0 0
    %1196 = vmatpush1.bf16.msra.mxu0 %v922
    %1197 = vmatprep.subr.bf16.mxu0 0
    %1198 = vmatpush1.bf16.msra.mxu0 %v921
    %1199 = vmatprep.subr.bf16.mxu0 0
    %1200 = vmatpush1.bf16.msra.mxu0 %v920
    %1201 = vmatprep.subr.bf16.mxu0 0
    %1202 = vmatpush1.bf16.msra.mxu0 %v919
    %1203 = vmatprep.subr.bf16.mxu0 0
    %1204 = vmatpush1.bf16.msra.mxu0 %v918
    %1205 = vmatprep.subr.bf16.mxu0 0
    %1206 = vmatpush1.bf16.msra.mxu0 %v917
    %1207 = vmatprep.subr.bf16.mxu0 0
    %1208 = vmatpush1.bf16.msra.mxu0 %v916
    %1209 = vmatprep.subr.bf16.mxu0 0
    %1210 = vmatpush1.bf16.msra.mxu0 %v915
    %1211 = vmatprep.subr.bf16.mxu0 0
    %1212 = vmatpush2.bf16.msra.mxu0 %v930
    %1213 = vmatprep.subr.bf16.mxu0 0
    %1214 = vmatpush2.bf16.msra.mxu0 %v929
    %1215 = vmatprep.subr.bf16.mxu0 0
    %1216 = vmatpush2.bf16.msra.mxu0 %v928
    %1217 = vmatprep.subr.bf16.mxu0 0
    %1218 = vmatpush2.bf16.msra.mxu0 %v927
    %1219 = vmatprep.subr.bf16.mxu0 0
    %1220 = vmatpush2.bf16.msra.mxu0 %v926
    %1221 = vmatprep.subr.bf16.mxu0 0
    %1222 = vmatpush2.bf16.msra.mxu0 %v925
    %1223 = vmatprep.subr.bf16.mxu0 0
    %1224 = vmatpush2.bf16.msra.mxu0 %v924
    %1225 = vmatprep.subr.bf16.mxu0 0
    %1226 = vmatpush2.bf16.msra.mxu0 %v923
    %1227 = vmatprep.mubr.bf16.mxu0 %v320
    %1228 = vmatmul.mubr.bf16.gmra.mxu0 %v318
    %v1229 = vpop.f32.mrf.mxu0
    %v1230 = vadd.f32 %v1190, %v1229
    %v1231 = vpop.f32.mrf.mxu0
    %v1232 = vpop.f32.mrf.mxu0
    %v1233 = vpop.f32.mrf.mxu0
    %1234 = vdwg.mxu0
    %1235 = vmatprep.subr.bf16.mxu0 0
    %1236 = vmatpush1.bf16.msra.mxu0 %v938
    %1237 = vmatprep.subr.bf16.mxu0 0
    %1238 = vmatpush1.bf16.msra.mxu0 %v937
    %1239 = vmatprep.subr.bf16.mxu0 0
    %1240 = vmatpush1.bf16.msra.mxu0 %v936
    %1241 = vmatprep.subr.bf16.mxu0 0
    %1242 = vmatpush1.bf16.msra.mxu0 %v935
    %1243 = vmatprep.subr.bf16.mxu0 0
    %1244 = vmatpush1.bf16.msra.mxu0 %v934
    %1245 = vmatprep.subr.bf16.mxu0 0
    %1246 = vmatpush1.bf16.msra.mxu0 %v933
    %1247 = vmatprep.subr.bf16.mxu0 0
    %1248 = vmatpush1.bf16.msra.mxu0 %v932
    %1249 = vmatprep.subr.bf16.mxu0 0
    %1250 = vmatpush1.bf16.msra.mxu0 %v931
    %1251 = vmatprep.subr.bf16.mxu0 0
    %1252 = vmatpush2.bf16.msra.mxu0 %v946
    %1253 = vmatprep.subr.bf16.mxu0 0
    %1254 = vmatpush2.bf16.msra.mxu0 %v945
    %1255 = vmatprep.subr.bf16.mxu0 0
    %1256 = vmatpush2.bf16.msra.mxu0 %v944
    %1257 = vmatprep.subr.bf16.mxu0 0
    %1258 = vmatpush2.bf16.msra.mxu0 %v943
    %1259 = vmatprep.subr.bf16.mxu0 0
    %1260 = vmatpush2.bf16.msra.mxu0 %v942
    %1261 = vmatprep.subr.bf16.mxu0 0
    %1262 = vmatpush2.bf16.msra.mxu0 %v941
    %1263 = vmatprep.subr.bf16.mxu0 0
    %1264 = vmatpush2.bf16.msra.mxu0 %v940
    %1265 = vmatprep.subr.bf16.mxu0 0
    %1266 = vmatpush2.bf16.msra.mxu0 %v939
    %1267 = vmatprep.mubr.bf16.mxu0 %v317
    %1268 = vmatmul.mubr.bf16.gmra.mxu0 %v303
    %v1269 = vpop.f32.mrf.mxu0
    %v1270 = vadd.f32 %v1230, %v1269
    %v1271 = vpop.f32.mrf.mxu0
    %v1272 = vpop.f32.mrf.mxu0
    %v1273 = vpop.f32.mrf.mxu0
    %1274 = vdwg.mxu0
    %1275 = vmatprep.subr.bf16.mxu0 0
    %1276 = vmatpush1.bf16.msra.mxu0 %v954
    %1277 = vmatprep.subr.bf16.mxu0 0
    %1278 = vmatpush1.bf16.msra.mxu0 %v953
    %1279 = vmatprep.subr.bf16.mxu0 0
    %1280 = vmatpush1.bf16.msra.mxu0 %v952
    %1281 = vmatprep.subr.bf16.mxu0 0
    %1282 = vmatpush1.bf16.msra.mxu0 %v951
    %1283 = vmatprep.subr.bf16.mxu0 0
    %1284 = vmatpush1.bf16.msra.mxu0 %v950
    %1285 = vmatprep.subr.bf16.mxu0 0
    %1286 = vmatpush1.bf16.msra.mxu0 %v949
    %1287 = vmatprep.subr.bf16.mxu0 0
    %1288 = vmatpush1.bf16.msra.mxu0 %v948
    %1289 = vmatprep.subr.bf16.mxu0 0
    %1290 = vmatpush1.bf16.msra.mxu0 %v947
    %1291 = vmatprep.subr.bf16.mxu0 0
    %1292 = vmatpush2.bf16.msra.mxu0 %v962
    %1293 = vmatprep.subr.bf16.mxu0 0
    %1294 = vmatpush2.bf16.msra.mxu0 %v961
    %1295 = vmatprep.subr.bf16.mxu0 0
    %1296 = vmatpush2.bf16.msra.mxu0 %v960
    %1297 = vmatprep.subr.bf16.mxu0 0
    %1298 = vmatpush2.bf16.msra.mxu0 %v959
    %1299 = vmatprep.subr.bf16.mxu0 0
    %1300 = vmatpush2.bf16.msra.mxu0 %v958
    %1301 = vmatprep.subr.bf16.mxu0 0
    %1302 = vmatpush2.bf16.msra.mxu0 %v957
    %1303 = vmatprep.subr.bf16.mxu0 0
    %1304 = vmatpush2.bf16.msra.mxu0 %v956
    %1305 = vmatprep.subr.bf16.mxu0 0
    %1306 = vmatpush2.bf16.msra.mxu0 %v955
    %1307 = vmatprep.mubr.bf16.mxu0 %v321
    %1308 = vmatmul.mubr.bf16.gmra.mxu0 %v319
    %v1309 = vpop.f32.mrf.mxu0
    %v1310 = vadd.f32 %v1270, %v1309
    %v1311 = vpop.f32.mrf.mxu0
    %v1312 = vpop.f32.mrf.mxu0
    %v1313 = vpop.f32.mrf.mxu0
    %1314 = vdwg.mxu0
    %1315 = vmatprep.subr.bf16.mxu0 0
    %1316 = vmatpush1.bf16.msra.mxu0 %v970
    %1317 = vmatprep.subr.bf16.mxu0 0
    %1318 = vmatpush1.bf16.msra.mxu0 %v969
    %1319 = vmatprep.subr.bf16.mxu0 0
    %1320 = vmatpush1.bf16.msra.mxu0 %v968
    %1321 = vmatprep.subr.bf16.mxu0 0
    %1322 = vmatpush1.bf16.msra.mxu0 %v967
    %1323 = vmatprep.subr.bf16.mxu0 0
    %1324 = vmatpush1.bf16.msra.mxu0 %v966
    %1325 = vmatprep.subr.bf16.mxu0 0
    %1326 = vmatpush1.bf16.msra.mxu0 %v965
    %1327 = vmatprep.subr.bf16.mxu0 0
    %1328 = vmatpush1.bf16.msra.mxu0 %v964
    %1329 = vmatprep.subr.bf16.mxu0 0
    %1330 = vmatpush1.bf16.msra.mxu0 %v963
    %1331 = vmatprep.subr.bf16.mxu0 0
    %1332 = vmatpush2.bf16.msra.mxu0 %v978
    %1333 = vmatprep.subr.bf16.mxu0 0
    %1334 = vmatpush2.bf16.msra.mxu0 %v977
    %1335 = vmatprep.subr.bf16.mxu0 0
    %1336 = vmatpush2.bf16.msra.mxu0 %v976
    %1337 = vmatprep.subr.bf16.mxu0 0
    %1338 = vmatpush2.bf16.msra.mxu0 %v975
    %1339 = vmatprep.subr.bf16.mxu0 0
    %1340 = vmatpush2.bf16.msra.mxu0 %v974
    %1341 = vmatprep.subr.bf16.mxu0 0
    %1342 = vmatpush2.bf16.msra.mxu0 %v973
    %1343 = vmatprep.subr.bf16.mxu0 0
    %1344 = vmatpush2.bf16.msra.mxu0 %v972
    %1345 = vmatprep.subr.bf16.mxu0 0
    %1346 = vmatpush2.bf16.msra.mxu0 %v971
    %1347 = vmatprep.mubr.bf16.mxu0 %v359
    %1348 = vmatmul.mubr.bf16.gmra.mxu0 %v345
    %v1349 = vpop.f32.mrf.mxu0
    %v1350 = vadd.f32 %v1310, %v1349
    %v1351 = vpop.f32.mrf.mxu0
    %v1352 = vpop.f32.mrf.mxu0
    %v1353 = vpop.f32.mrf.mxu0
    %1354 = vdwg.mxu0
    %1355 = vmatprep.subr.bf16.mxu0 0
    %1356 = vmatpush1.bf16.msra.mxu0 %v986
    %1357 = vmatprep.subr.bf16.mxu0 0
    %1358 = vmatpush1.bf16.msra.mxu0 %v985
    %1359 = vmatprep.subr.bf16.mxu0 0
    %1360 = vmatpush1.bf16.msra.mxu0 %v984
    %1361 = vmatprep.subr.bf16.mxu0 0
    %1362 = vmatpush1.bf16.msra.mxu0 %v983
    %1363 = vmatprep.subr.bf16.mxu0 0
    %1364 = vmatpush1.bf16.msra.mxu0 %v982
    %1365 = vmatprep.subr.bf16.mxu0 0
    %1366 = vmatpush1.bf16.msra.mxu0 %v981
    %1367 = vmatprep.subr.bf16.mxu0 0
    %1368 = vmatpush1.bf16.msra.mxu0 %v980
    %1369 = vmatprep.subr.bf16.mxu0 0
    %1370 = vmatpush1.bf16.msra.mxu0 %v979
    %1371 = vmatprep.subr.bf16.mxu0 0
    %1372 = vmatpush2.bf16.msra.mxu0 %v994
    %1373 = vmatprep.subr.bf16.mxu0 0
    %1374 = vmatpush2.bf16.msra.mxu0 %v993
    %1375 = vmatprep.subr.bf16.mxu0 0
    %1376 = vmatpush2.bf16.msra.mxu0 %v992
    %1377 = vmatprep.subr.bf16.mxu0 0
    %1378 = vmatpush2.bf16.msra.mxu0 %v991
    %1379 = vmatprep.subr.bf16.mxu0 0
    %1380 = vmatpush2.bf16.msra.mxu0 %v990
    %1381 = vmatprep.subr.bf16.mxu0 0
    %1382 = vmatpush2.bf16.msra.mxu0 %v989
    %1383 = vmatprep.subr.bf16.mxu0 0
    %1384 = vmatpush2.bf16.msra.mxu0 %v988
    %1385 = vmatprep.subr.bf16.mxu0 0
    %1386 = vmatpush2.bf16.msra.mxu0 %v987
    %1387 = vmatprep.mubr.bf16.mxu0 %v369
    %1388 = vmatmul.mubr.bf16.gmra.mxu0 %v367
    %v1389 = vpop.f32.mrf.mxu0
    %v1390 = vadd.f32 %v1350, %v1389
    %v1391 = vpop.f32.mrf.mxu0
    %v1392 = vpop.f32.mrf.mxu0
    %v1393 = vpop.f32.mrf.mxu0
    %1394 = vdwg.mxu0
    %1395 = vmatprep.subr.bf16.mxu0 0
    %1396 = vmatpush1.bf16.msra.mxu0 %v1002
    %1397 = vmatprep.subr.bf16.mxu0 0
    %1398 = vmatpush1.bf16.msra.mxu0 %v1001
    %1399 = vmatprep.subr.bf16.mxu0 0
    %1400 = vmatpush1.bf16.msra.mxu0 %v1000
    %1401 = vmatprep.subr.bf16.mxu0 0
    %1402 = vmatpush1.bf16.msra.mxu0 %v999
    %1403 = vmatprep.subr.bf16.mxu0 0
    %1404 = vmatpush1.bf16.msra.mxu0 %v998
    %1405 = vmatprep.subr.bf16.mxu0 0
    %1406 = vmatpush1.bf16.msra.mxu0 %v997
    %1407 = vmatprep.subr.bf16.mxu0 0
    %1408 = vmatpush1.bf16.msra.mxu0 %v996
    %1409 = vmatprep.subr.bf16.mxu0 0
    %1410 = vmatpush1.bf16.msra.mxu0 %v995
    %1411 = vmatprep.subr.bf16.mxu0 0
    %1412 = vmatpush2.bf16.msra.mxu0 %v1010
    %1413 = vmatprep.subr.bf16.mxu0 0
    %1414 = vmatpush2.bf16.msra.mxu0 %v1009
    %1415 = vmatprep.subr.bf16.mxu0 0
    %1416 = vmatpush2.bf16.msra.mxu0 %v1008
    %1417 = vmatprep.subr.bf16.mxu0 0
    %1418 = vmatpush2.bf16.msra.mxu0 %v1007
    %1419 = vmatprep.subr.bf16.mxu0 0
    %1420 = vmatpush2.bf16.msra.mxu0 %v1006
    %1421 = vmatprep.subr.bf16.mxu0 0
    %1422 = vmatpush2.bf16.msra.mxu0 %v1005
    %1423 = vmatprep.subr.bf16.mxu0 0
    %1424 = vmatpush2.bf16.msra.mxu0 %v1004
    %1425 = vmatprep.subr.bf16.mxu0 0
    %1426 = vmatpush2.bf16.msra.mxu0 %v1003
    %1427 = vmatprep.mubr.bf16.mxu0 %v366
    %1428 = vmatmul.mubr.bf16.gmra.mxu0 %v352
    %v1429 = vpop.f32.mrf.mxu0
    %v1430 = vadd.f32 %v1390, %v1429
    %v1431 = vpop.f32.mrf.mxu0
    %v1432 = vpop.f32.mrf.mxu0
    %v1433 = vpop.f32.mrf.mxu0
    %1434 = vdwg.mxu0
    %1435 = vmatprep.subr.bf16.mxu0 0
    %1436 = vmatpush1.bf16.msra.mxu0 %v1018
    %1437 = vmatprep.subr.bf16.mxu0 0
    %1438 = vmatpush1.bf16.msra.mxu0 %v1017
    %1439 = vmatprep.subr.bf16.mxu0 0
    %1440 = vmatpush1.bf16.msra.mxu0 %v1016
    %1441 = vmatprep.subr.bf16.mxu0 0
    %1442 = vmatpush1.bf16.msra.mxu0 %v1015
    %1443 = vmatprep.subr.bf16.mxu0 0
    %1444 = vmatpush1.bf16.msra.mxu0 %v1014
    %1445 = vmatprep.subr.bf16.mxu0 0
    %1446 = vmatpush1.bf16.msra.mxu0 %v1013
    %1447 = vmatprep.subr.bf16.mxu0 0
    %1448 = vmatpush1.bf16.msra.mxu0 %v1012
    %1449 = vmatprep.subr.bf16.mxu0 0
    %1450 = vmatpush1.bf16.msra.mxu0 %v1011
    %1451 = vmatprep.subr.bf16.mxu0 0
    %1452 = vmatpush2.bf16.msra.mxu0 %v1026
    %1453 = vmatprep.subr.bf16.mxu0 0
    %1454 = vmatpush2.bf16.msra.mxu0 %v1025
    %1455 = vmatprep.subr.bf16.mxu0 0
    %1456 = vmatpush2.bf16.msra.mxu0 %v1024
    %1457 = vmatprep.subr.bf16.mxu0 0
    %1458 = vmatpush2.bf16.msra.mxu0 %v1023
    %1459 = vmatprep.subr.bf16.mxu0 0
    %1460 = vmatpush2.bf16.msra.mxu0 %v1022
    %1461 = vmatprep.subr.bf16.mxu0 0
    %1462 = vmatpush2.bf16.msra.mxu0 %v1021
    %1463 = vmatprep.subr.bf16.mxu0 0
    %1464 = vmatpush2.bf16.msra.mxu0 %v1020
    %1465 = vmatprep.subr.bf16.mxu0 0
    %1466 = vmatpush2.bf16.msra.mxu0 %v1019
    %1467 = vmatprep.mubr.bf16.mxu0 %v370
    %1468 = vmatmul.mubr.bf16.gmra.mxu0 %v368
    %v1469 = vpop.f32.mrf.mxu0
    %v1470 = vadd.f32 %v1430, %v1469
    %v1471 = vpop.f32.mrf.mxu0
    %v1472 = vpop.f32.mrf.mxu0
    %v1473 = vpop.f32.mrf.mxu0
    %1474 = vdwg.mxu0
    %v1475 = vsub.f32 0.0, %v1470
    %v1476 = vmul.f32 %v1475, 1.442695
    %v1477 = vpow.pop %v1476
    %v1478 = vadd.f32 %v1477, 1.0
    %v1479 = vrcp.pop %v1478
    %v1480 = vmul.f32 1.0, %v1479
    %vm1481 = vcmask 8192
    %1482 = vst.msk [vmem:[#allocation2] sm:$0x1] %vm1481, %v1480
    // Predicated region
    $region10: #{discriminator_forward.11} parent=1 // pred_check
      _
    $region11: #{discriminator_forward.11} parent=1 // pred_check_branch
      %1484 = sbr.rel (0) target = $region13
    $region12: #{discriminator_forward.11} parent=1 // pred_region
      %s1486 = ssub.s32 16, 16
      %1487 = vsyncadd [#allocation3], %s1486
      %s1489 = sshll.u32 [#allocation2], 4
      %s1490 = int_to_ptr.vmem [resolvable:$true] %s1489
      %1492 = dma.vmem_to_hbm [thread:$0]  %s1490, 16, %s2, [#allocation3]
    $region13: #{discriminator_forward.11} parent=1 // pred_fallthru
      _
    // Predicated region
    $region14: #{discriminator_forward.11} parent=1 // pred_check
      _
    $region15: #{discriminator_forward.11} parent=1 // pred_check_branch
      %1494 = sbr.rel (0) target = $region17
    $region16: #{discriminator_forward.11} parent=1 // pred_region
      %1495 = dma.done [#allocation3], 16
    $region17: #{discriminator_forward.11} parent=1 // pred_fallthru
      _
    %1496 = vsyncpa [#allocation3], 1

</llo_original>
